<compile_context>
chip_gen: v5e
topology: v5e:2x2
jax: 0.10.0
libtpu: 0.0.40
codegen_flags: <defaults>
</compile_context>

<pallas_src>
import functools

import jax
import jax.numpy as jnp
from jax.experimental import pallas as pl
from jax.experimental.pallas import tpu as pltpu

_PADL = 8  # interior column offset inside the halo scratches (f32 sublane tile)


# ----------------------------------------------------------------------------
# Fused BasicBlock kernel (one grid step == one sample)
# ----------------------------------------------------------------------------
def _basic_block_kernel(*refs, H, W, Cin, Cp, hout, wout, stride,
                        inv_count, eps, has_down):
    if has_down:
        (x_ref, w1_ref, w2_ref, wd_ref, spread_ref, gn1_ref, gn2_ref, gnd_ref,
         o_ref,
         xpad_ref, slab1_ref, o1pad_ref, slab2_ref, ident_ref, stats_ref) = refs
    else:
        (x_ref, w1_ref, w2_ref, spread_ref, gn1_ref, gn2_ref,
         o_ref,
         xpad_ref, slab1_ref, o1pad_ref, slab2_ref, ident_ref, stats_ref) = refs
        wd_ref = gnd_ref = None

    L = hout * wout
    taps = tuple((dh, dw) for dh in range(3) for dw in range(3))
    spread = spread_ref[...]

    def group_norm(acc, gn_ref):
        # One-pass stats on the (L, Cp) matmul layout; per-group mean/E[x^2]
        # broadcast via a single (2,Cp)x(Cp,Cp) block-diagonal spread matmul.
        stats_ref[0:1, :] = jnp.sum(acc, axis=0, keepdims=True)
        stats_ref[1:2, :] = jnp.sum(acc * acc, axis=0, keepdims=True)
        grp = jnp.dot(stats_ref[...], spread,
                      preferred_element_type=jnp.float32) * inv_count
        mean = grp[0:1, :]
        var = grp[1:2, :] - mean * mean
        scale = gn_ref[0:1, :] * jax.lax.rsqrt(var + eps)
        offset = gn_ref[1:2, :] - mean * scale
        return acc * scale + offset                     # single FMA pass

    # ------------------ stage 1: conv3x3(stride) + GN1 + ReLU ----------------
    xpad_ref[...] = jnp.zeros_like(xpad_ref)            # halo (and unused cols) = 0
    xpad_ref[1:H + 1, _PADL:_PADL + W, :] = x_ref[0].astype(jnp.float32)
    for t, (dh, dw) in enumerate(taps):                 # build im2col slab, K=9*Cin
        c0 = _PADL - 1 + dw
        if stride == 1:
            patch = xpad_ref[dh:dh + hout, c0:c0 + wout, :]
        else:
            patch = xpad_ref[pl.ds(dh, hout, stride), pl.ds(c0, wout, stride), :]
        slab1_ref[:, t * Cin:(t + 1) * Cin] = patch.reshape(L, Cin)
    acc1 = jnp.dot(slab1_ref[...].astype(jnp.bfloat16), w1_ref[...],
                   preferred_element_type=jnp.float32)
    y1 = jnp.maximum(group_norm(acc1, gn1_ref), 0.0)    # (L, Cp) f32

    # ------------------ identity / downsample path ---------------------------
    if has_down:
        if stride == 1:
            xs = x_ref[0]
        else:
            xs = x_ref[0, pl.ds(0, hout, stride), pl.ds(0, wout, stride), :]
        accd = jnp.dot(xs.reshape(L, Cin), wd_ref[...],
                       preferred_element_type=jnp.float32)
        ident_ref[...] = group_norm(accd, gnd_ref)      # f32 residual in VMEM
    else:
        # identity: zero-extend the real channels into the padded lane layout
        ident_ref[...] = jnp.zeros_like(ident_ref)
        ident_ref[:, :Cin] = x_ref[0].reshape(L, Cin).astype(jnp.float32)

    # ------------------ stage 2: conv3x3(1) + GN2 + add + ReLU ---------------
    o1pad_ref[...] = jnp.zeros_like(o1pad_ref)
    o1pad_ref[1:hout + 1, _PADL:_PADL + wout, :] = y1.reshape(hout, wout, Cp)
    for t, (dh, dw) in enumerate(taps):                 # im2col slab, K=9*Cp
        c0 = _PADL - 1 + dw
        patch = o1pad_ref[dh:dh + hout, c0:c0 + wout, :]
        slab2_ref[:, t * Cp:(t + 1) * Cp] = patch.reshape(L, Cp).astype(jnp.bfloat16)
    acc2 = jnp.dot(slab2_ref[...], w2_ref[...], preferred_element_type=jnp.float32)
    y2 = group_norm(acc2, gn2_ref)
    o_ref[0] = jnp.maximum(y2 + ident_ref[...], 0.0).astype(o_ref.dtype)


# ----------------------------------------------------------------------------
# Parameter packing (tiny, done once per call under jit)
# ----------------------------------------------------------------------------
def _pack_conv3x3(w_oihw, cin_pad, cout_pad):
    cout, cin, kh, kw = w_oihw.shape
    w = jnp.transpose(w_oihw, (2, 3, 1, 0))                        # (kh,kw,ci,co)
    w = jnp.pad(w, ((0, 0), (0, 0), (0, cin_pad - cin), (0, cout_pad - cout)))
    return w.reshape(kh * kw * cin_pad, cout_pad).astype(jnp.bfloat16)


def _pack_conv1x1(w_oihw, cout_pad):
    cout = w_oihw.shape[0]
    w = jnp.transpose(w_oihw[:, :, 0, 0], (1, 0))                  # (ci, co)
    return jnp.pad(w, ((0, 0), (0, cout_pad - cout))).astype(jnp.bfloat16)


def _pack_gn(gamma, beta, cp):
    c = gamma.shape[0]
    g = jnp.pad(gamma.astype(jnp.float32), (0, cp - c))
    b = jnp.pad(beta.astype(jnp.float32), (0, cp - c))
    return jnp.stack([g, b], axis=0)                               # (2, cp)


def _group_spread_matrix(c_real, cp, groups):
    """(Cp, Cp) f32: 1 where both channels are real and in the same group."""
    cpg = c_real // groups
    idx = jnp.arange(cp)
    gid_row = jnp.where(idx < c_real, idx // cpg, -1)
    gid_col = jnp.where(idx < c_real, idx // cpg, -2)
    return (gid_row[:, None] == gid_col[None, :]).astype(jnp.float32)


# ----------------------------------------------------------------------------
# BasicBlock forward (public interface: NCHW f32, like PyTorch)
# ----------------------------------------------------------------------------
def basic_block_forward(x_nchw, params, *, stride=1, groups=16, eps=1e-5):
    N, Cin, H, W = map(int, x_nchw.shape)
    planes = int(params["w1"].shape[0])
    Cp = max(128, ((planes + 127) // 128) * 128)
    Hout = (H + 2 - 3) // stride + 1
    Wout = (W + 2 - 3) // stride + 1
    L = Hout * Wout
    has_down = (stride != 1) or (Cin != planes)
    inv_count = 1.0 / float((planes // groups) * L)

    # Interface layout change (NCHW -> lane-dense NHWC bf16), paid once.
    x_nhwc = jnp.transpose(x_nchw, (0, 2, 3, 1)).astype(jnp.bfloat16)

    w1 = _pack_conv3x3(params["w1"], cin_pad=Cin, cout_pad=Cp)     # (9*Cin, Cp)
    w2 = _pack_conv3x3(params["w2"], cin_pad=Cp, cout_pad=Cp)      # (9*Cp,  Cp)
    spread = _group_spread_matrix(planes, Cp, groups)
    gn1 = _pack_gn(params["g1"], params["b1"], Cp)
    gn2 = _pack_gn(params["g2"], params["b2"], Cp)

    args = [x_nhwc, w1, w2]
    in_specs = [
        pl.BlockSpec((1, H, W, Cin), lambda n: (n, 0, 0, 0)),
        pl.BlockSpec((9 * Cin, Cp), lambda n: (0, 0)),
        pl.BlockSpec((9 * Cp, Cp), lambda n: (0, 0)),
    ]
    if has_down:
        args.append(_pack_conv1x1(params["wd"], cout_pad=Cp))
        in_specs.append(pl.BlockSpec((Cin, Cp), lambda n: (0, 0)))
    args += [spread, gn1, gn2]
    in_specs += [
        pl.BlockSpec((Cp, Cp), lambda n: (0, 0)),
        pl.BlockSpec((2, Cp), lambda n: (0, 0)),
        pl.BlockSpec((2, Cp), lambda n: (0, 0)),
    ]
    if has_down:
        args.append(_pack_gn(params["gd"], params["bd"], Cp))
        in_specs.append(pl.BlockSpec((2, Cp), lambda n: (0, 0)))

    kern = functools.partial(
        _basic_block_kernel, H=H, W=W, Cin=Cin, Cp=Cp, hout=Hout, wout=Wout,
        stride=stride, inv_count=inv_count, eps=eps, has_down=has_down)

    scratch_shapes = [
        pltpu.VMEM((H + 2, W + 2 * _PADL, Cin), jnp.float32),        # x + halo
        pltpu.VMEM((L, 9 * Cin), jnp.float32),                       # im2col slab 1
        pltpu.VMEM((Hout + 2, Wout + 2 * _PADL, Cp), jnp.float32),   # o1 + halo
        pltpu.VMEM((L, 9 * Cp), jnp.bfloat16),                       # im2col slab 2
        pltpu.VMEM((L, Cp), jnp.float32),                            # residual
        pltpu.VMEM((2, Cp), jnp.float32),                            # GN stats
    ]

    out = pl.pallas_call(
        kern,
        out_shape=jax.ShapeDtypeStruct((N, L, Cp), jnp.float32),
        grid=(N,),
        in_specs=in_specs,
        out_specs=pl.BlockSpec((1, L, Cp), lambda n: (n, 0, 0)),
        scratch_shapes=scratch_shapes,
        compiler_params=pltpu.CompilerParams(
            dimension_semantics=("parallel",)),
    )(*args)

    # Interface: drop padded lanes, back to NCHW f32.  In a full network the
    # next block would consume the lane-dense (N, L, Cp) layout directly.
    out = out.reshape(N, Hout, Wout, Cp)[..., :planes]
    return jnp.transpose(out, (0, 3, 1, 2))


# ----------------------------------------------------------------------------
# Pure-JAX f32 reference (verification only)
# ----------------------------------------------------------------------------
def _ref_conv(x, w, stride, pad):
    return jax.lax.conv_general_dilated(
        x, w, (stride, stride), [(pad, pad), (pad, pad)],
        dimension_numbers=("NCHW", "OIHW", "NCHW"))


def _ref_gn(x, gamma, beta, groups=16, eps=1e-5):
    N, C, H, W = x.shape
    xg = x.reshape(N, groups, -1)
    mean = xg.mean(-1, keepdims=True)
    var = xg.var(-1, keepdims=True)
    xn = ((xg - mean) / jnp.sqrt(var + eps)).reshape(N, C, H, W)
    return xn * gamma.reshape(1, C, 1, 1) + beta.reshape(1, C, 1, 1)


def _ref_basic_block(x, p, stride):
    out = jax.nn.relu(_ref_gn(_ref_conv(x, p["w1"], stride, 1), p["g1"], p["b1"]))
    out = _ref_gn(_ref_conv(out, p["w2"], 1, 1), p["g2"], p["b2"])
    if stride != 1 or x.shape[1] != p["w1"].shape[0]:
        identity = _ref_gn(_ref_conv(x, p["wd"], stride, 0), p["gd"], p["bd"])
    else:
        identity = x
    return jax.nn.relu(out + identity)


# ----------------------------------------------------------------------------
# main
# ----------------------------------------------------------------------------
if __name__ == "__main__":
    N, inplanes, planes, H, W = 2, 16, 32, 16, 16
    stride = 1  # inplanes != planes -> downsample (conv1x1 + GN) branch exercised

    ks = jax.random.split(jax.random.PRNGKey(0), 10)
    params = {
        "w1": 0.1 * jax.random.normal(ks[0], (planes, inplanes, 3, 3), jnp.float32),
        "g1": 1.0 + 0.1 * jax.random.normal(ks[1], (planes,), jnp.float32),
        "b1": 0.1 * jax.random.normal(ks[2], (planes,), jnp.float32),
        "w2": 0.1 * jax.random.normal(ks[3], (planes, planes, 3, 3), jnp.float32),
        "g2": 1.0 + 0.1 * jax.random.normal(ks[4], (planes,), jnp.float32),
        "b2": 0.1 * jax.random.normal(ks[5], (planes,), jnp.float32),
        "wd": 0.1 * jax.random.normal(ks[6], (planes, inplanes, 1, 1), jnp.float32),
        "gd": 1.0 + 0.1 * jax.random.normal(ks[7], (planes,), jnp.float32),
        "bd": 0.1 * jax.random.normal(ks[8], (planes,), jnp.float32),
    }
    x = jax.random.normal(ks[9], (N, inplanes, H, W), jnp.float32)

    fwd = jax.jit(functools.partial(basic_block_forward, stride=stride))
    out = jax.block_until_ready(fwd(x, params))

    ref = _ref_basic_block(x, params, stride)
    assert out.shape == ref.shape == (N, planes, H, W)
    # bf16 MXU operands + bf16 o1 path -> compare against f32 reference with a
    # tolerance scaled to the output magnitude.
    err = float(jnp.max(jnp.abs(out - ref)))
    tol = 5e-2 * max(1.0, float(jnp.max(jnp.abs(ref))))
    assert err < tol, (err, tol)

    print("KERNEL_OK")
</pallas_src>

<mosaic_0001>
module attributes {stable_mosaic.version = 11 : i64} {
  func.func @_basic_block_kernel(%arg0: i32, %arg1: memref<1x16x16x16xbf16, #tpu.memory_space<vmem>>, %arg2: memref<144x128xbf16, #tpu.memory_space<vmem>>, %arg3: memref<1152x128xbf16, #tpu.memory_space<vmem>>, %arg4: memref<16x128xbf16, #tpu.memory_space<vmem>>, %arg5: memref<128x128xf32, #tpu.memory_space<vmem>>, %arg6: memref<2x128xf32, #tpu.memory_space<vmem>>, %arg7: memref<2x128xf32, #tpu.memory_space<vmem>>, %arg8: memref<2x128xf32, #tpu.memory_space<vmem>>, %arg9: memref<1x256x128xf32, #tpu.memory_space<vmem>>, %arg10: memref<18x32x16xf32, #tpu.memory_space<vmem>>, %arg11: memref<256x144xf32, #tpu.memory_space<vmem>>, %arg12: memref<18x32x128xf32, #tpu.memory_space<vmem>>, %arg13: memref<256x1152xbf16, #tpu.memory_space<vmem>>, %arg14: memref<256x128xf32, #tpu.memory_space<vmem>>, %arg15: memref<2x128xf32, #tpu.memory_space<vmem>>) attributes {dimension_semantics = [#tpu.dimension_semantics<parallel>], iteration_bounds = array<i64: 2>, scalar_prefetch = 0 : i64, scratch_operands = 6 : i64, tpu.core_type = #tpu.core_type<tc>, window_params = [{transform_indices = @transform_0, window_bounds = array<i64: 1, 16, 16, 16>}, {pipeline_mode = #tpu.pipeline_mode<synchronous>, transform_indices = @transform_1, window_bounds = array<i64: 144, 128>}, {pipeline_mode = #tpu.pipeline_mode<synchronous>, transform_indices = @transform_2, window_bounds = array<i64: 1152, 128>}, {pipeline_mode = #tpu.pipeline_mode<synchronous>, transform_indices = @transform_3, window_bounds = array<i64: 16, 128>}, {pipeline_mode = #tpu.pipeline_mode<synchronous>, transform_indices = @transform_4, window_bounds = array<i64: 128, 128>}, {pipeline_mode = #tpu.pipeline_mode<synchronous>, transform_indices = @transform_5, window_bounds = array<i64: 2, 128>}, {pipeline_mode = #tpu.pipeline_mode<synchronous>, transform_indices = @transform_6, window_bounds = array<i64: 2, 128>}, {pipeline_mode = #tpu.pipeline_mode<synchronous>, transform_indices = @transform_7, window_bounds = array<i64: 2, 128>}, {transform_indices = @transform_8, window_bounds = array<i64: 1, 256, 128>}]} {
    %c0 = arith.constant 0 : index
    %c0_0 = arith.constant 0 : index
    %0 = vector.load %arg5[%c0, %c0_0] : memref<128x128xf32, #tpu.memory_space<vmem>>, vector<128x128xf32>
    %cst = arith.constant 0.000000e+00 : f32
    %1 = vector.broadcast %cst : f32 to vector<18x32x16xf32>
    %c0_1 = arith.constant 0 : index
    %c0_2 = arith.constant 0 : index
    %c0_3 = arith.constant 0 : index
    %2 = vector.load %arg10[%c0_1, %c0_2, %c0_3] : memref<18x32x16xf32, #tpu.memory_space<vmem>>, vector<18x32x16xf32>
    tpu.vector_store %arg10[%c0_1, %c0_2, %c0_3], %1 {strides = array<i32>} : memref<18x32x16xf32, #tpu.memory_space<vmem>>, vector<18x32x16xf32>,
    %c0_4 = arith.constant 0 : index
    %c0_5 = arith.constant 0 : index
    %c0_6 = arith.constant 0 : index
    %c0_7 = arith.constant 0 : index
    %3 = vector.load %arg1[%c0_4, %c0_5, %c0_6, %c0_7] : memref<1x16x16x16xbf16, #tpu.memory_space<vmem>>, vector<1x16x16x16xbf16>
    %4 = vector.shape_cast %3 : vector<1x16x16x16xbf16> to vector<16x16x16xbf16>
    %5 = arith.extf %4 : vector<16x16x16xbf16> to vector<16x16x16xf32>
    %c1 = arith.constant 1 : index
    %c8 = arith.constant 8 : index
    %c0_8 = arith.constant 0 : index
    %6 = vector.load %arg10[%c1, %c8, %c0_8] : memref<18x32x16xf32, #tpu.memory_space<vmem>>, vector<16x16x16xf32>
    tpu.vector_store %arg10[%c1, %c8, %c0_8], %5 {strides = array<i32>} : memref<18x32x16xf32, #tpu.memory_space<vmem>>, vector<16x16x16xf32>,
    %c0_9 = arith.constant 0 : index
    %c7 = arith.constant 7 : index
    %c0_10 = arith.constant 0 : index
    %7 = vector.load %arg10[%c0_9, %c7, %c0_10] : memref<18x32x16xf32, #tpu.memory_space<vmem>>, vector<16x16x16xf32>
    %8 = vector.shape_cast %7 : vector<16x16x16xf32> to vector<256x16xf32>
    %c0_11 = arith.constant 0 : index
    %c0_12 = arith.constant 0 : index
    %9 = vector.load %arg11[%c0_11, %c0_12] : memref<256x144xf32, #tpu.memory_space<vmem>>, vector<256x16xf32>
    tpu.vector_store %arg11[%c0_11, %c0_12], %8 {strides = array<i32>} : memref<256x144xf32, #tpu.memory_space<vmem>>, vector<256x16xf32>,
    %c0_13 = arith.constant 0 : index
    %c8_14 = arith.constant 8 : index
    %c0_15 = arith.constant 0 : index
    %10 = vector.load %arg10[%c0_13, %c8_14, %c0_15] : memref<18x32x16xf32, #tpu.memory_space<vmem>>, vector<16x16x16xf32>
    %11 = vector.shape_cast %10 : vector<16x16x16xf32> to vector<256x16xf32>
    %c0_16 = arith.constant 0 : index
    %c16 = arith.constant 16 : index
    %12 = vector.load %arg11[%c0_16, %c16] : memref<256x144xf32, #tpu.memory_space<vmem>>, vector<256x16xf32>
    tpu.vector_store %arg11[%c0_16, %c16], %11 {strides = array<i32>} : memref<256x144xf32, #tpu.memory_space<vmem>>, vector<256x16xf32>,
    %c0_17 = arith.constant 0 : index
    %c9 = arith.constant 9 : index
    %c0_18 = arith.constant 0 : index
    %13 = vector.load %arg10[%c0_17, %c9, %c0_18] : memref<18x32x16xf32, #tpu.memory_space<vmem>>, vector<16x16x16xf32>
    %14 = vector.shape_cast %13 : vector<16x16x16xf32> to vector<256x16xf32>
    %c0_19 = arith.constant 0 : index
    %c32 = arith.constant 32 : index
    %15 = vector.load %arg11[%c0_19, %c32] : memref<256x144xf32, #tpu.memory_space<vmem>>, vector<256x16xf32>
    tpu.vector_store %arg11[%c0_19, %c32], %14 {strides = array<i32>} : memref<256x144xf32, #tpu.memory_space<vmem>>, vector<256x16xf32>,
    %c1_20 = arith.constant 1 : index
    %c7_21 = arith.constant 7 : index
    %c0_22 = arith.constant 0 : index
    %16 = vector.load %arg10[%c1_20, %c7_21, %c0_22] : memref<18x32x16xf32, #tpu.memory_space<vmem>>, vector<16x16x16xf32>
    %17 = vector.shape_cast %16 : vector<16x16x16xf32> to vector<256x16xf32>
    %c0_23 = arith.constant 0 : index
    %c48 = arith.constant 48 : index
    %18 = vector.load %arg11[%c0_23, %c48] : memref<256x144xf32, #tpu.memory_space<vmem>>, vector<256x16xf32>
    tpu.vector_store %arg11[%c0_23, %c48], %17 {strides = array<i32>} : memref<256x144xf32, #tpu.memory_space<vmem>>, vector<256x16xf32>,
    %c1_24 = arith.constant 1 : index
    %c8_25 = arith.constant 8 : index
    %c0_26 = arith.constant 0 : index
    %19 = vector.load %arg10[%c1_24, %c8_25, %c0_26] : memref<18x32x16xf32, #tpu.memory_space<vmem>>, vector<16x16x16xf32>
    %20 = vector.shape_cast %19 : vector<16x16x16xf32> to vector<256x16xf32>
    %c0_27 = arith.constant 0 : index
    %c64 = arith.constant 64 : index
    %21 = vector.load %arg11[%c0_27, %c64] : memref<256x144xf32, #tpu.memory_space<vmem>>, vector<256x16xf32>
    tpu.vector_store %arg11[%c0_27, %c64], %20 {strides = array<i32>} : memref<256x144xf32, #tpu.memory_space<vmem>>, vector<256x16xf32>,
    %c1_28 = arith.constant 1 : index
    %c9_29 = arith.constant 9 : index
    %c0_30 = arith.constant 0 : index
    %22 = vector.load %arg10[%c1_28, %c9_29, %c0_30] : memref<18x32x16xf32, #tpu.memory_space<vmem>>, vector<16x16x16xf32>
    %23 = vector.shape_cast %22 : vector<16x16x16xf32> to vector<256x16xf32>
    %c0_31 = arith.constant 0 : index
    %c80 = arith.constant 80 : index
    %24 = vector.load %arg11[%c0_31, %c80] : memref<256x144xf32, #tpu.memory_space<vmem>>, vector<256x16xf32>
    tpu.vector_store %arg11[%c0_31, %c80], %23 {strides = array<i32>} : memref<256x144xf32, #tpu.memory_space<vmem>>, vector<256x16xf32>,
    %c2 = arith.constant 2 : index
    %c7_32 = arith.constant 7 : index
    %c0_33 = arith.constant 0 : index
    %25 = vector.load %arg10[%c2, %c7_32, %c0_33] : memref<18x32x16xf32, #tpu.memory_space<vmem>>, vector<16x16x16xf32>
    %26 = vector.shape_cast %25 : vector<16x16x16xf32> to vector<256x16xf32>
    %c0_34 = arith.constant 0 : index
    %c96 = arith.constant 96 : index
    %27 = vector.load %arg11[%c0_34, %c96] : memref<256x144xf32, #tpu.memory_space<vmem>>, vector<256x16xf32>
    tpu.vector_store %arg11[%c0_34, %c96], %26 {strides = array<i32>} : memref<256x144xf32, #tpu.memory_space<vmem>>, vector<256x16xf32>,
    %c2_35 = arith.constant 2 : index
    %c8_36 = arith.constant 8 : index
    %c0_37 = arith.constant 0 : index
    %28 = vector.load %arg10[%c2_35, %c8_36, %c0_37] : memref<18x32x16xf32, #tpu.memory_space<vmem>>, vector<16x16x16xf32>
    %29 = vector.shape_cast %28 : vector<16x16x16xf32> to vector<256x16xf32>
    %c0_38 = arith.constant 0 : index
    %c112 = arith.constant 112 : index
    %30 = vector.load %arg11[%c0_38, %c112] : memref<256x144xf32, #tpu.memory_space<vmem>>, vector<256x16xf32>
    tpu.vector_store %arg11[%c0_38, %c112], %29 {strides = array<i32>} : memref<256x144xf32, #tpu.memory_space<vmem>>, vector<256x16xf32>,
    %c2_39 = arith.constant 2 : index
    %c9_40 = arith.constant 9 : index
    %c0_41 = arith.constant 0 : index
    %31 = vector.load %arg10[%c2_39, %c9_40, %c0_41] : memref<18x32x16xf32, #tpu.memory_space<vmem>>, vector<16x16x16xf32>
    %32 = vector.shape_cast %31 : vector<16x16x16xf32> to vector<256x16xf32>
    %c0_42 = arith.constant 0 : index
    %c128 = arith.constant 128 : index
    %33 = vector.load %arg11[%c0_42, %c128] : memref<256x144xf32, #tpu.memory_space<vmem>>, vector<256x16xf32>
    tpu.vector_store %arg11[%c0_42, %c128], %32 {strides = array<i32>} : memref<256x144xf32, #tpu.memory_space<vmem>>, vector<256x16xf32>,
    %c0_43 = arith.constant 0 : index
    %c0_44 = arith.constant 0 : index
    %34 = vector.load %arg11[%c0_43, %c0_44] : memref<256x144xf32, #tpu.memory_space<vmem>>, vector<256x144xf32>
    %35 = arith.truncf %34 : vector<256x144xf32> to vector<256x144xbf16>
    %c0_45 = arith.constant 0 : index
    %c0_46 = arith.constant 0 : index
    %36 = vector.load %arg2[%c0_45, %c0_46] : memref<144x128xbf16, #tpu.memory_space<vmem>>, vector<144x128xbf16>
    %cst_47 = arith.constant dense<0.000000e+00> : vector<256x128xf32>
    %37 = tpu.matmul %35, %36, %cst_47 {dimension_numbers = #tpu.dot_dimension_numbers<[1], [0], [0], [1], [0, 0, 1, 1], [], []>} : vector<256x144xbf16>, vector<144x128xbf16>, vector<256x128xf32> -> vector<256x128xf32>
    %cst_48 = arith.constant dense<0.000000e+00> : vector<128xf32>
    %38 = vector.multi_reduction <add>, %37, %cst_48 [0] : vector<256x128xf32> to vector<128xf32>
    %39 = vector.shape_cast %38 : vector<128xf32> to vector<1x128xf32>
    %c0_49 = arith.constant 0 : index
    %c0_50 = arith.constant 0 : index
    %40 = vector.load %arg15[%c0_49, %c0_50] : memref<2x128xf32, #tpu.memory_space<vmem>>, vector<1x128xf32>
    tpu.vector_store %arg15[%c0_49, %c0_50], %39 {strides = array<i32>} : memref<2x128xf32, #tpu.memory_space<vmem>>, vector<1x128xf32>,
    %41 = arith.mulf %37, %37 : vector<256x128xf32>
    %cst_51 = arith.constant dense<0.000000e+00> : vector<128xf32>
    %42 = vector.multi_reduction <add>, %41, %cst_51 [0] : vector<256x128xf32> to vector<128xf32>
    %43 = vector.shape_cast %42 : vector<128xf32> to vector<1x128xf32>
    %c1_52 = arith.constant 1 : index
    %c0_53 = arith.constant 0 : index
    %44 = vector.load %arg15[%c1_52, %c0_53] : memref<2x128xf32, #tpu.memory_space<vmem>>, vector<1x128xf32>
    tpu.vector_store %arg15[%c1_52, %c0_53], %43 {strides = array<i32>} : memref<2x128xf32, #tpu.memory_space<vmem>>, vector<1x128xf32>,
    %c0_54 = arith.constant 0 : index
    %c0_55 = arith.constant 0 : index
    %45 = vector.load %arg15[%c0_54, %c0_55] : memref<2x128xf32, #tpu.memory_space<vmem>>, vector<2x128xf32>
    %cst_56 = arith.constant dense<0.000000e+00> : vector<2x128xf32>
    %46 = tpu.matmul %45, %0, %cst_56 {dimension_numbers = #tpu.dot_dimension_numbers<[1], [0], [0], [1], [0, 0, 1, 1], [], []>} : vector<2x128xf32>, vector<128x128xf32>, vector<2x128xf32> -> vector<2x128xf32>
    %cst_57 = arith.constant 0.001953125 : f32
    %47 = vector.broadcast %cst_57 : f32 to vector<2x128xf32>
    %48 = arith.mulf %46, %47 : vector<2x128xf32>
    %49 = vector.extract_strided_slice %48 {offsets = [0, 0], sizes = [1, 128], strides = [1, 1]} : vector<2x128xf32> to vector<1x128xf32>
    %50 = vector.extract_strided_slice %48 {offsets = [1, 0], sizes = [1, 128], strides = [1, 1]} : vector<2x128xf32> to vector<1x128xf32>
    %51 = arith.mulf %49, %49 : vector<1x128xf32>
    %52 = arith.subf %50, %51 : vector<1x128xf32>
    %c0_58 = arith.constant 0 : index
    %c0_59 = arith.constant 0 : index
    %53 = vector.load %arg6[%c0_58, %c0_59] : memref<2x128xf32, #tpu.memory_space<vmem>>, vector<1x128xf32>
    %cst_60 = arith.constant 9.99999974E-6 : f32
    %54 = vector.broadcast %cst_60 : f32 to vector<1x128xf32>
    %55 = arith.addf %52, %54 : vector<1x128xf32>
    %56 = math.rsqrt %55 : vector<1x128xf32>
    %57 = arith.mulf %53, %56 : vector<1x128xf32>
    %c1_61 = arith.constant 1 : index
    %c0_62 = arith.constant 0 : index
    %58 = vector.load %arg6[%c1_61, %c0_62] : memref<2x128xf32, #tpu.memory_space<vmem>>, vector<1x128xf32>
    %59 = arith.mulf %49, %57 : vector<1x128xf32>
    %60 = arith.subf %58, %59 : vector<1x128xf32>
    %61 = vector.broadcast %57 : vector<1x128xf32> to vector<256x128xf32>
    %62 = arith.mulf %37, %61 : vector<256x128xf32>
    %63 = vector.broadcast %60 : vector<1x128xf32> to vector<256x128xf32>
    %64 = arith.addf %62, %63 : vector<256x128xf32>
    %cst_63 = arith.constant 0.000000e+00 : f32
    %65 = vector.broadcast %cst_63 : f32 to vector<256x128xf32>
    %66 = arith.maximumf %64, %65 : vector<256x128xf32>
    %c0_64 = arith.constant 0 : index
    %c0_65 = arith.constant 0 : index
    %c0_66 = arith.constant 0 : index
    %c0_67 = arith.constant 0 : index
    %67 = vector.load %arg1[%c0_64, %c0_65, %c0_66, %c0_67] : memref<1x16x16x16xbf16, #tpu.memory_space<vmem>>, vector<1x16x16x16xbf16>
    %68 = vector.shape_cast %67 : vector<1x16x16x16xbf16> to vector<16x16x16xbf16>
    %69 = vector.shape_cast %68 : vector<16x16x16xbf16> to vector<256x16xbf16>
    %c0_68 = arith.constant 0 : index
    %c0_69 = arith.constant 0 : index
    %70 = vector.load %arg4[%c0_68, %c0_69] : memref<16x128xbf16, #tpu.memory_space<vmem>>, vector<16x128xbf16>
    %cst_70 = arith.constant dense<0.000000e+00> : vector<256x128xf32>
    %71 = tpu.matmul %69, %70, %cst_70 {dimension_numbers = #tpu.dot_dimension_numbers<[1], [0], [0], [1], [0, 0, 1, 1], [], []>} : vector<256x16xbf16>, vector<16x128xbf16>, vector<256x128xf32> -> vector<256x128xf32>
    %cst_71 = arith.constant dense<0.000000e+00> : vector<128xf32>
    %72 = vector.multi_reduction <add>, %71, %cst_71 [0] : vector<256x128xf32> to vector<128xf32>
    %73 = vector.shape_cast %72 : vector<128xf32> to vector<1x128xf32>
    %c0_72 = arith.constant 0 : index
    %c0_73 = arith.constant 0 : index
    %74 = vector.load %arg15[%c0_72, %c0_73] : memref<2x128xf32, #tpu.memory_space<vmem>>, vector<1x128xf32>
    tpu.vector_store %arg15[%c0_72, %c0_73], %73 {strides = array<i32>} : memref<2x128xf32, #tpu.memory_space<vmem>>, vector<1x128xf32>,
    %75 = arith.mulf %71, %71 : vector<256x128xf32>
    %cst_74 = arith.constant dense<0.000000e+00> : vector<128xf32>
    %76 = vector.multi_reduction <add>, %75, %cst_74 [0] : vector<256x128xf32> to vector<128xf32>
    %77 = vector.shape_cast %76 : vector<128xf32> to vector<1x128xf32>
    %c1_75 = arith.constant 1 : index
    %c0_76 = arith.constant 0 : index
    %78 = vector.load %arg15[%c1_75, %c0_76] : memref<2x128xf32, #tpu.memory_space<vmem>>, vector<1x128xf32>
    tpu.vector_store %arg15[%c1_75, %c0_76], %77 {strides = array<i32>} : memref<2x128xf32, #tpu.memory_space<vmem>>, vector<1x128xf32>,
    %c0_77 = arith.constant 0 : index
    %c0_78 = arith.constant 0 : index
    %79 = vector.load %arg15[%c0_77, %c0_78] : memref<2x128xf32, #tpu.memory_space<vmem>>, vector<2x128xf32>
    %cst_79 = arith.constant dense<0.000000e+00> : vector<2x128xf32>
    %80 = tpu.matmul %79, %0, %cst_79 {dimension_numbers = #tpu.dot_dimension_numbers<[1], [0], [0], [1], [0, 0, 1, 1], [], []>} : vector<2x128xf32>, vector<128x128xf32>, vector<2x128xf32> -> vector<2x128xf32>
    %cst_80 = arith.constant 0.001953125 : f32
    %81 = vector.broadcast %cst_80 : f32 to vector<2x128xf32>
    %82 = arith.mulf %80, %81 : vector<2x128xf32>
    %83 = vector.extract_strided_slice %82 {offsets = [0, 0], sizes = [1, 128], strides = [1, 1]} : vector<2x128xf32> to vector<1x128xf32>
    %84 = vector.extract_strided_slice %82 {offsets = [1, 0], sizes = [1, 128], strides = [1, 1]} : vector<2x128xf32> to vector<1x128xf32>
    %85 = arith.mulf %83, %83 : vector<1x128xf32>
    %86 = arith.subf %84, %85 : vector<1x128xf32>
    %c0_81 = arith.constant 0 : index
    %c0_82 = arith.constant 0 : index
    %87 = vector.load %arg8[%c0_81, %c0_82] : memref<2x128xf32, #tpu.memory_space<vmem>>, vector<1x128xf32>
    %cst_83 = arith.constant 9.99999974E-6 : f32
    %88 = vector.broadcast %cst_83 : f32 to vector<1x128xf32>
    %89 = arith.addf %86, %88 : vector<1x128xf32>
    %90 = math.rsqrt %89 : vector<1x128xf32>
    %91 = arith.mulf %87, %90 : vector<1x128xf32>
    %c1_84 = arith.constant 1 : index
    %c0_85 = arith.constant 0 : index
    %92 = vector.load %arg8[%c1_84, %c0_85] : memref<2x128xf32, #tpu.memory_space<vmem>>, vector<1x128xf32>
    %93 = arith.mulf %83, %91 : vector<1x128xf32>
    %94 = arith.subf %92, %93 : vector<1x128xf32>
    %95 = vector.broadcast %91 : vector<1x128xf32> to vector<256x128xf32>
    %96 = arith.mulf %71, %95 : vector<256x128xf32>
    %97 = vector.broadcast %94 : vector<1x128xf32> to vector<256x128xf32>
    %98 = arith.addf %96, %97 : vector<256x128xf32>
    %c0_86 = arith.constant 0 : index
    %c0_87 = arith.constant 0 : index
    %99 = vector.load %arg14[%c0_86, %c0_87] : memref<256x128xf32, #tpu.memory_space<vmem>>, vector<256x128xf32>
    tpu.vector_store %arg14[%c0_86, %c0_87], %98 {strides = array<i32>} : memref<256x128xf32, #tpu.memory_space<vmem>>, vector<256x128xf32>,
    %cst_88 = arith.constant 0.000000e+00 : f32
    %100 = vector.broadcast %cst_88 : f32 to vector<18x32x128xf32>
    %c0_89 = arith.constant 0 : index
    %c0_90 = arith.constant 0 : index
    %c0_91 = arith.constant 0 : index
    %101 = vector.load %arg12[%c0_89, %c0_90, %c0_91] : memref<18x32x128xf32, #tpu.memory_space<vmem>>, vector<18x32x128xf32>
    tpu.vector_store %arg12[%c0_89, %c0_90, %c0_91], %100 {strides = array<i32>} : memref<18x32x128xf32, #tpu.memory_space<vmem>>, vector<18x32x128xf32>,
    %102 = vector.shape_cast %66 : vector<256x128xf32> to vector<16x16x128xf32>
    %c1_92 = arith.constant 1 : index
    %c8_93 = arith.constant 8 : index
    %c0_94 = arith.constant 0 : index
    %103 = vector.load %arg12[%c1_92, %c8_93, %c0_94] : memref<18x32x128xf32, #tpu.memory_space<vmem>>, vector<16x16x128xf32>
    tpu.vector_store %arg12[%c1_92, %c8_93, %c0_94], %102 {strides = array<i32>} : memref<18x32x128xf32, #tpu.memory_space<vmem>>, vector<16x16x128xf32>,
    %c0_95 = arith.constant 0 : index
    %c7_96 = arith.constant 7 : index
    %c0_97 = arith.constant 0 : index
    %104 = vector.load %arg12[%c0_95, %c7_96, %c0_97] : memref<18x32x128xf32, #tpu.memory_space<vmem>>, vector<16x16x128xf32>
    %105 = vector.shape_cast %104 : vector<16x16x128xf32> to vector<256x128xf32>
    %106 = arith.truncf %105 : vector<256x128xf32> to vector<256x128xbf16>
    %c0_98 = arith.constant 0 : index
    %c0_99 = arith.constant 0 : index
    %107 = vector.load %arg13[%c0_98, %c0_99] : memref<256x1152xbf16, #tpu.memory_space<vmem>>, vector<256x128xbf16>
    tpu.vector_store %arg13[%c0_98, %c0_99], %106 {strides = array<i32>} : memref<256x1152xbf16, #tpu.memory_space<vmem>>, vector<256x128xbf16>,
    %c0_100 = arith.constant 0 : index
    %c8_101 = arith.constant 8 : index
    %c0_102 = arith.constant 0 : index
    %108 = vector.load %arg12[%c0_100, %c8_101, %c0_102] : memref<18x32x128xf32, #tpu.memory_space<vmem>>, vector<16x16x128xf32>
    %109 = vector.shape_cast %108 : vector<16x16x128xf32> to vector<256x128xf32>
    %110 = arith.truncf %109 : vector<256x128xf32> to vector<256x128xbf16>
    %c0_103 = arith.constant 0 : index
    %c128_104 = arith.constant 128 : index
    %111 = vector.load %arg13[%c0_103, %c128_104] : memref<256x1152xbf16, #tpu.memory_space<vmem>>, vector<256x128xbf16>
    tpu.vector_store %arg13[%c0_103, %c128_104], %110 {strides = array<i32>} : memref<256x1152xbf16, #tpu.memory_space<vmem>>, vector<256x128xbf16>,
    %c0_105 = arith.constant 0 : index
    %c9_106 = arith.constant 9 : index
    %c0_107 = arith.constant 0 : index
    %112 = vector.load %arg12[%c0_105, %c9_106, %c0_107] : memref<18x32x128xf32, #tpu.memory_space<vmem>>, vector<16x16x128xf32>
    %113 = vector.shape_cast %112 : vector<16x16x128xf32> to vector<256x128xf32>
    %114 = arith.truncf %113 : vector<256x128xf32> to vector<256x128xbf16>
    %c0_108 = arith.constant 0 : index
    %c256 = arith.constant 256 : index
    %115 = vector.load %arg13[%c0_108, %c256] : memref<256x1152xbf16, #tpu.memory_space<vmem>>, vector<256x128xbf16>
    tpu.vector_store %arg13[%c0_108, %c256], %114 {strides = array<i32>} : memref<256x1152xbf16, #tpu.memory_space<vmem>>, vector<256x128xbf16>,
    %c1_109 = arith.constant 1 : index
    %c7_110 = arith.constant 7 : index
    %c0_111 = arith.constant 0 : index
    %116 = vector.load %arg12[%c1_109, %c7_110, %c0_111] : memref<18x32x128xf32, #tpu.memory_space<vmem>>, vector<16x16x128xf32>
    %117 = vector.shape_cast %116 : vector<16x16x128xf32> to vector<256x128xf32>
    %118 = arith.truncf %117 : vector<256x128xf32> to vector<256x128xbf16>
    %c0_112 = arith.constant 0 : index
    %c384 = arith.constant 384 : index
    %119 = vector.load %arg13[%c0_112, %c384] : memref<256x1152xbf16, #tpu.memory_space<vmem>>, vector<256x128xbf16>
    tpu.vector_store %arg13[%c0_112, %c384], %118 {strides = array<i32>} : memref<256x1152xbf16, #tpu.memory_space<vmem>>, vector<256x128xbf16>,
    %c1_113 = arith.constant 1 : index
    %c8_114 = arith.constant 8 : index
    %c0_115 = arith.constant 0 : index
    %120 = vector.load %arg12[%c1_113, %c8_114, %c0_115] : memref<18x32x128xf32, #tpu.memory_space<vmem>>, vector<16x16x128xf32>
    %121 = vector.shape_cast %120 : vector<16x16x128xf32> to vector<256x128xf32>
    %122 = arith.truncf %121 : vector<256x128xf32> to vector<256x128xbf16>
    %c0_116 = arith.constant 0 : index
    %c512 = arith.constant 512 : index
    %123 = vector.load %arg13[%c0_116, %c512] : memref<256x1152xbf16, #tpu.memory_space<vmem>>, vector<256x128xbf16>
    tpu.vector_store %arg13[%c0_116, %c512], %122 {strides = array<i32>} : memref<256x1152xbf16, #tpu.memory_space<vmem>>, vector<256x128xbf16>,
    %c1_117 = arith.constant 1 : index
    %c9_118 = arith.constant 9 : index
    %c0_119 = arith.constant 0 : index
    %124 = vector.load %arg12[%c1_117, %c9_118, %c0_119] : memref<18x32x128xf32, #tpu.memory_space<vmem>>, vector<16x16x128xf32>
    %125 = vector.shape_cast %124 : vector<16x16x128xf32> to vector<256x128xf32>
    %126 = arith.truncf %125 : vector<256x128xf32> to vector<256x128xbf16>
    %c0_120 = arith.constant 0 : index
    %c640 = arith.constant 640 : index
    %127 = vector.load %arg13[%c0_120, %c640] : memref<256x1152xbf16, #tpu.memory_space<vmem>>, vector<256x128xbf16>
    tpu.vector_store %arg13[%c0_120, %c640], %126 {strides = array<i32>} : memref<256x1152xbf16, #tpu.memory_space<vmem>>, vector<256x128xbf16>,
    %c2_121 = arith.constant 2 : index
    %c7_122 = arith.constant 7 : index
    %c0_123 = arith.constant 0 : index
    %128 = vector.load %arg12[%c2_121, %c7_122, %c0_123] : memref<18x32x128xf32, #tpu.memory_space<vmem>>, vector<16x16x128xf32>
    %129 = vector.shape_cast %128 : vector<16x16x128xf32> to vector<256x128xf32>
    %130 = arith.truncf %129 : vector<256x128xf32> to vector<256x128xbf16>
    %c0_124 = arith.constant 0 : index
    %c768 = arith.constant 768 : index
    %131 = vector.load %arg13[%c0_124, %c768] : memref<256x1152xbf16, #tpu.memory_space<vmem>>, vector<256x128xbf16>
    tpu.vector_store %arg13[%c0_124, %c768], %130 {strides = array<i32>} : memref<256x1152xbf16, #tpu.memory_space<vmem>>, vector<256x128xbf16>,
    %c2_125 = arith.constant 2 : index
    %c8_126 = arith.constant 8 : index
    %c0_127 = arith.constant 0 : index
    %132 = vector.load %arg12[%c2_125, %c8_126, %c0_127] : memref<18x32x128xf32, #tpu.memory_space<vmem>>, vector<16x16x128xf32>
    %133 = vector.shape_cast %132 : vector<16x16x128xf32> to vector<256x128xf32>
    %134 = arith.truncf %133 : vector<256x128xf32> to vector<256x128xbf16>
    %c0_128 = arith.constant 0 : index
    %c896 = arith.constant 896 : index
    %135 = vector.load %arg13[%c0_128, %c896] : memref<256x1152xbf16, #tpu.memory_space<vmem>>, vector<256x128xbf16>
    tpu.vector_store %arg13[%c0_128, %c896], %134 {strides = array<i32>} : memref<256x1152xbf16, #tpu.memory_space<vmem>>, vector<256x128xbf16>,
    %c2_129 = arith.constant 2 : index
    %c9_130 = arith.constant 9 : index
    %c0_131 = arith.constant 0 : index
    %136 = vector.load %arg12[%c2_129, %c9_130, %c0_131] : memref<18x32x128xf32, #tpu.memory_space<vmem>>, vector<16x16x128xf32>
    %137 = vector.shape_cast %136 : vector<16x16x128xf32> to vector<256x128xf32>
    %138 = arith.truncf %137 : vector<256x128xf32> to vector<256x128xbf16>
    %c0_132 = arith.constant 0 : index
    %c1024 = arith.constant 1024 : index
    %139 = vector.load %arg13[%c0_132, %c1024] : memref<256x1152xbf16, #tpu.memory_space<vmem>>, vector<256x128xbf16>
    tpu.vector_store %arg13[%c0_132, %c1024], %138 {strides = array<i32>} : memref<256x1152xbf16, #tpu.memory_space<vmem>>, vector<256x128xbf16>,
    %c0_133 = arith.constant 0 : index
    %c0_134 = arith.constant 0 : index
    %140 = vector.load %arg13[%c0_133, %c0_134] : memref<256x1152xbf16, #tpu.memory_space<vmem>>, vector<256x1152xbf16>
    %c0_135 = arith.constant 0 : index
    %c0_136 = arith.constant 0 : index
    %141 = vector.load %arg3[%c0_135, %c0_136] : memref<1152x128xbf16, #tpu.memory_space<vmem>>, vector<1152x128xbf16>
    %cst_137 = arith.constant dense<0.000000e+00> : vector<256x128xf32>
    %142 = tpu.matmul %140, %141, %cst_137 {dimension_numbers = #tpu.dot_dimension_numbers<[1], [0], [0], [1], [0, 0, 1, 1], [], []>} : vector<256x1152xbf16>, vector<1152x128xbf16>, vector<256x128xf32> -> vector<256x128xf32>
    %cst_138 = arith.constant dense<0.000000e+00> : vector<128xf32>
    %143 = vector.multi_reduction <add>, %142, %cst_138 [0] : vector<256x128xf32> to vector<128xf32>
    %144 = vector.shape_cast %143 : vector<128xf32> to vector<1x128xf32>
    %c0_139 = arith.constant 0 : index
    %c0_140 = arith.constant 0 : index
    %145 = vector.load %arg15[%c0_139, %c0_140] : memref<2x128xf32, #tpu.memory_space<vmem>>, vector<1x128xf32>
    tpu.vector_store %arg15[%c0_139, %c0_140], %144 {strides = array<i32>} : memref<2x128xf32, #tpu.memory_space<vmem>>, vector<1x128xf32>,
    %146 = arith.mulf %142, %142 : vector<256x128xf32>
    %cst_141 = arith.constant dense<0.000000e+00> : vector<128xf32>
    %147 = vector.multi_reduction <add>, %146, %cst_141 [0] : vector<256x128xf32> to vector<128xf32>
    %148 = vector.shape_cast %147 : vector<128xf32> to vector<1x128xf32>
    %c1_142 = arith.constant 1 : index
    %c0_143 = arith.constant 0 : index
    %149 = vector.load %arg15[%c1_142, %c0_143] : memref<2x128xf32, #tpu.memory_space<vmem>>, vector<1x128xf32>
    tpu.vector_store %arg15[%c1_142, %c0_143], %148 {strides = array<i32>} : memref<2x128xf32, #tpu.memory_space<vmem>>, vector<1x128xf32>,
    %c0_144 = arith.constant 0 : index
    %c0_145 = arith.constant 0 : index
    %150 = vector.load %arg15[%c0_144, %c0_145] : memref<2x128xf32, #tpu.memory_space<vmem>>, vector<2x128xf32>
    %cst_146 = arith.constant dense<0.000000e+00> : vector<2x128xf32>
    %151 = tpu.matmul %150, %0, %cst_146 {dimension_numbers = #tpu.dot_dimension_numbers<[1], [0], [0], [1], [0, 0, 1, 1], [], []>} : vector<2x128xf32>, vector<128x128xf32>, vector<2x128xf32> -> vector<2x128xf32>
    %cst_147 = arith.constant 0.001953125 : f32
    %152 = vector.broadcast %cst_147 : f32 to vector<2x128xf32>
    %153 = arith.mulf %151, %152 : vector<2x128xf32>
    %154 = vector.extract_strided_slice %153 {offsets = [0, 0], sizes = [1, 128], strides = [1, 1]} : vector<2x128xf32> to vector<1x128xf32>
    %155 = vector.extract_strided_slice %153 {offsets = [1, 0], sizes = [1, 128], strides = [1, 1]} : vector<2x128xf32> to vector<1x128xf32>
    %156 = arith.mulf %154, %154 : vector<1x128xf32>
    %157 = arith.subf %155, %156 : vector<1x128xf32>
    %c0_148 = arith.constant 0 : index
    %c0_149 = arith.constant 0 : index
    %158 = vector.load %arg7[%c0_148, %c0_149] : memref<2x128xf32, #tpu.memory_space<vmem>>, vector<1x128xf32>
    %cst_150 = arith.constant 9.99999974E-6 : f32
    %159 = vector.broadcast %cst_150 : f32 to vector<1x128xf32>
    %160 = arith.addf %157, %159 : vector<1x128xf32>
    %161 = math.rsqrt %160 : vector<1x128xf32>
    %162 = arith.mulf %158, %161 : vector<1x128xf32>
    %c1_151 = arith.constant 1 : index
    %c0_152 = arith.constant 0 : index
    %163 = vector.load %arg7[%c1_151, %c0_152] : memref<2x128xf32, #tpu.memory_space<vmem>>, vector<1x128xf32>
    %164 = arith.mulf %154, %162 : vector<1x128xf32>
    %165 = arith.subf %163, %164 : vector<1x128xf32>
    %166 = vector.broadcast %162 : vector<1x128xf32> to vector<256x128xf32>
    %167 = arith.mulf %142, %166 : vector<256x128xf32>
    %168 = vector.broadcast %165 : vector<1x128xf32> to vector<256x128xf32>
    %169 = arith.addf %167, %168 : vector<256x128xf32>
    %c0_153 = arith.constant 0 : index
    %c0_154 = arith.constant 0 : index
    %170 = vector.load %arg14[%c0_153, %c0_154] : memref<256x128xf32, #tpu.memory_space<vmem>>, vector<256x128xf32>
    %171 = arith.addf %169, %170 : vector<256x128xf32>
    %cst_155 = arith.constant 0.000000e+00 : f32
    %172 = vector.broadcast %cst_155 : f32 to vector<256x128xf32>
    %173 = arith.maximumf %171, %172 : vector<256x128xf32>
    %c0_156 = arith.constant 0 : index
    %c0_157 = arith.constant 0 : index
    %c0_158 = arith.constant 0 : index
    %174 = vector.load %arg9[%c0_156, %c0_157, %c0_158] : memref<1x256x128xf32, #tpu.memory_space<vmem>>, vector<1x256x128xf32>
    %175 = vector.shape_cast %174 : vector<1x256x128xf32> to vector<256x128xf32>
    %176 = vector.shape_cast %173 : vector<256x128xf32> to vector<1x256x128xf32>
    tpu.vector_store %arg9[%c0_156, %c0_157, %c0_158], %176 {strides = array<i32>} : memref<1x256x128xf32, #tpu.memory_space<vmem>>, vector<1x256x128xf32>,
    return
  }
  func.func @transform_0(%arg0: i32) -> (i32, i32, i32, i32) {
    %c0_i32 = arith.constant 0 : i32
    %c0_i32_0 = arith.constant 0 : i32
    %c0_i32_1 = arith.constant 0 : i32
    %c0_i32_2 = arith.constant 0 : i32
    return %arg0, %c0_i32, %c0_i32_0, %c0_i32_1 : i32, i32, i32, i32
  }
  func.func @transform_1(%arg0: i32) -> (i32, i32) {
    %c0_i32 = arith.constant 0 : i32
    %c0_i32_0 = arith.constant 0 : i32
    %c0_i32_1 = arith.constant 0 : i32
    return %c0_i32, %c0_i32_0 : i32, i32
  }
  func.func @transform_2(%arg0: i32) -> (i32, i32) {
    %c0_i32 = arith.constant 0 : i32
    %c0_i32_0 = arith.constant 0 : i32
    %c0_i32_1 = arith.constant 0 : i32
    return %c0_i32, %c0_i32_0 : i32, i32
  }
  func.func @transform_3(%arg0: i32) -> (i32, i32) {
    %c0_i32 = arith.constant 0 : i32
    %c0_i32_0 = arith.constant 0 : i32
    %c0_i32_1 = arith.constant 0 : i32
    return %c0_i32, %c0_i32_0 : i32, i32
  }
  func.func @transform_4(%arg0: i32) -> (i32, i32) {
    %c0_i32 = arith.constant 0 : i32
    %c0_i32_0 = arith.constant 0 : i32
    %c0_i32_1 = arith.constant 0 : i32
    return %c0_i32, %c0_i32_0 : i32, i32
  }
  func.func @transform_5(%arg0: i32) -> (i32, i32) {
    %c0_i32 = arith.constant 0 : i32
    %c0_i32_0 = arith.constant 0 : i32
    %c0_i32_1 = arith.constant 0 : i32
    return %c0_i32, %c0_i32_0 : i32, i32
  }
  func.func @transform_6(%arg0: i32) -> (i32, i32) {
    %c0_i32 = arith.constant 0 : i32
    %c0_i32_0 = arith.constant 0 : i32
    %c0_i32_1 = arith.constant 0 : i32
    return %c0_i32, %c0_i32_0 : i32, i32
  }
  func.func @transform_7(%arg0: i32) -> (i32, i32) {
    %c0_i32 = arith.constant 0 : i32
    %c0_i32_0 = arith.constant 0 : i32
    %c0_i32_1 = arith.constant 0 : i32
    return %c0_i32, %c0_i32_0 : i32, i32
  }
  func.func @transform_8(%arg0: i32) -> (i32, i32, i32) {
    %c0_i32 = arith.constant 0 : i32
    %c0_i32_0 = arith.constant 0 : i32
    %c0_i32_1 = arith.constant 0 : i32
    return %arg0, %c0_i32, %c0_i32_0 : i32, i32, i32
  }
}

</mosaic_0001>

<llo_original>
// kernel: basic_block_forward.1
$region0: #{basic_block_forward.1}
  #allocation0 [shape = 'u32[]', space=smem, size = 0x4, offset = 0x4, fixed_abs, tag = 'smem constant byte address 0x4 - core index']
  #allocation1 [shape = 'u32[72,128]{1,0:T(1,128)}', space=vmem, size = 0x9000, scoped, tag = 'internal scratch']
  #allocation2 [shape = 'f32[18,32,16]{2,1,0:T(8,128)}', space=vmem, size = 0x48000, scoped, tag = 'scratch operand']
  #allocation3 [shape = 'f32[256,144]{1,0:T(8,128)}', space=vmem, size = 0x40000, scoped, tag = 'scratch operand']
  #allocation4 [shape = 'f32[18,32,128]{2,1,0:T(8,128)}', space=vmem, size = 0x48000, scoped, tag = 'scratch operand']
  #allocation5 [shape = 'bf16[256,1152]{1,0:T(8,128)(2,1)}', space=vmem, size = 0x90000, scoped, tag = 'scratch operand']
  #allocation6 [shape = 'f32[256,128]{1,0:T(8,128)}', space=vmem, size = 0x20000, scoped, tag = 'scratch operand']
  #allocation7 [shape = 'f32[2,128]{1,0:T(2,128)}', space=vmem, size = 0x400, scoped, tag = 'scratch operand']
  %s0 = inlined_call_operand.vmem [shape: bf16[2,16,16,16], index: 0, kind: input, shape index: {}]
  %s1 = inlined_call_operand.vmem [shape: bf16[144,128], index: 1, kind: input, shape index: {}]
  %s2 = inlined_call_operand.vmem [shape: bf16[1152,128], index: 2, kind: input, shape index: {}]
  %s3 = inlined_call_operand.vmem [shape: bf16[16,128], index: 3, kind: input, shape index: {}]
  %s4 = inlined_call_operand.vmem [shape: f32[128,128], index: 4, kind: input, shape index: {}]
  %s5 = inlined_call_operand.vmem [shape: f32[2,128], index: 5, kind: input, shape index: {}]
  %s6 = inlined_call_operand.vmem [shape: f32[2,128], index: 6, kind: input, shape index: {}]
  %s7 = inlined_call_operand.vmem [shape: f32[2,128], index: 7, kind: input, shape index: {}]
  %s8 = inlined_call_operand.vmem [shape: f32[2,256,128], index: 8, kind: output, shape index: {}]
  %s9 = sld [smem:[#allocation0]]
  $region65: #{basic_block_forward.1} parent=0
    _
  %s11 = ssub.s32 1, %s9
  %s12 = scalar_select 0, %s11, %s9
  loop: start=0, step=1, limit=4
  $region2: #{basic_block_forward.1} parent=0 // loop_pre_header
    _
  $region3: #{basic_block_forward.1} parent=0 // loop_header
    %s14 = sphi 0, %s18
    %p15 = scmp.ge.s32.totalorder %s14, 4
    %s24 = sphi 0, %s26
    %s27 = sphi 0, %s24
    %s28 = sphi 0, %s27
    %s44 = sphi 0, %s28
    %s48 = sphi 0, %s48
    %s50 = sphi 0, %s48
    %s51 = sphi 0, %s50
    %s65 = sphi 0, %s51
    %s69 = sphi 0, %s69
    %s71 = sphi 0, %s69
    %s72 = sphi 0, %s71
    %s86 = sphi 0, %s72
    %s90 = sphi 0, %s90
    %s92 = sphi 0, %s90
    %s93 = sphi 0, %s92
    %s107 = sphi 0, %s93
    %s111 = sphi 0, %s111
    %s113 = sphi 0, %s111
    %s114 = sphi 0, %s113
    %s128 = sphi 0, %s114
    %s132 = sphi 0, %s132
    %s134 = sphi 0, %s132
    %s135 = sphi 0, %s134
    %s149 = sphi 0, %s135
    %s153 = sphi 0, %s153
    %s155 = sphi 0, %s153
    %s156 = sphi 0, %s155
    %s170 = sphi 0, %s156
    %s174 = sphi 0, %s174
    %s176 = sphi 0, %s174
    %s177 = sphi 0, %s176
    %s191 = sphi 0, %s177
    %s197 = sphi 0, %s199
    %s200 = sphi 0, %s197
    %s201 = sphi 0, %s200
    %s217 = sphi 0, %s201
  $region4: #{basic_block_forward.1} parent=0 // loop_header_branch
    %17 = sbr.rel (%p15) target = $region8
  $region5: #{basic_block_forward.1} parent=0 // loop_body
    %s19 = ssub.s32 %s14, 1
    %s20 = ssub.s32 %s14, 2
    %s21 = sadd.s32 %s14, 1
    %s22 = ssub.s32 %s14, %s21
    %p23 = scmp.eq.s32.totalorder %s22, 0
    %s25 = sadd.s32 %s24, 1
    %s26 = scalar_select %p23, %s24, %s25
    %p29 = pneg %p23
    %p30 = scmp.eq.s32.totalorder %s14, 1
    %p31 = por %p29, %p30
    %p32 = scmp.ne.s32.totalorder %s24, %s27
    %p33 = scmp.eq.s32.totalorder %s14, 0
    %p34 = por %p32, %p33
    %p35 = scmp.ne.s32.totalorder %s24, %s27
    %p36 = scmp.eq.s32.totalorder %s19, 1
    %p37 = por %p35, %p36
    %p38 = scmp.ne.s32.totalorder %s27, %s28
    %p39 = scmp.eq.s32.totalorder %s19, 0
    %p40 = por %p38, %p39
    %p41 = scmp.ne.s32.totalorder %s27, %s28
    %p42 = scmp.eq.s32.totalorder %s20, 1
    %p43 = por %p41, %p42
    %p45 = scmp.ne.s32.totalorder %s28, %s44
    %p46 = scmp.eq.s32.totalorder %s20, 0
    %p47 = por %p45, %p46
    %s49 = sadd.s32 %s48, 1
    %p52 = scmp.eq.s32.totalorder %s14, 1
    %p53 = scmp.ne.s32.totalorder %s48, %s50
    %p54 = scmp.eq.s32.totalorder %s14, 0
    %p55 = por %p53, %p54
    %p56 = scmp.ne.s32.totalorder %s48, %s50
    %p57 = scmp.eq.s32.totalorder %s19, 1
    %p58 = por %p56, %p57
    %p59 = scmp.ne.s32.totalorder %s50, %s51
    %p60 = scmp.eq.s32.totalorder %s19, 0
    %p61 = por %p59, %p60
    %p62 = scmp.ne.s32.totalorder %s50, %s51
    %p63 = scmp.eq.s32.totalorder %s20, 1
    %p64 = por %p62, %p63
    %p66 = scmp.ne.s32.totalorder %s51, %s65
    %p67 = scmp.eq.s32.totalorder %s20, 0
    %p68 = por %p66, %p67
    %s70 = sadd.s32 %s69, 1
    %p73 = scmp.eq.s32.totalorder %s14, 1
    %p74 = scmp.ne.s32.totalorder %s69, %s71
    %p75 = scmp.eq.s32.totalorder %s14, 0
    %p76 = por %p74, %p75
    %p77 = scmp.ne.s32.totalorder %s69, %s71
    %p78 = scmp.eq.s32.totalorder %s19, 1
    %p79 = por %p77, %p78
    %p80 = scmp.ne.s32.totalorder %s71, %s72
    %p81 = scmp.eq.s32.totalorder %s19, 0
    %p82 = por %p80, %p81
    %p83 = scmp.ne.s32.totalorder %s71, %s72
    %p84 = scmp.eq.s32.totalorder %s20, 1
    %p85 = por %p83, %p84
    %p87 = scmp.ne.s32.totalorder %s72, %s86
    %p88 = scmp.eq.s32.totalorder %s20, 0
    %p89 = por %p87, %p88
    %s91 = sadd.s32 %s90, 1
    %p94 = scmp.eq.s32.totalorder %s14, 1
    %p95 = scmp.ne.s32.totalorder %s90, %s92
    %p96 = scmp.eq.s32.totalorder %s14, 0
    %p97 = por %p95, %p96
    %p98 = scmp.ne.s32.totalorder %s90, %s92
    %p99 = scmp.eq.s32.totalorder %s19, 1
    %p100 = por %p98, %p99
    %p101 = scmp.ne.s32.totalorder %s92, %s93
    %p102 = scmp.eq.s32.totalorder %s19, 0
    %p103 = por %p101, %p102
    %p104 = scmp.ne.s32.totalorder %s92, %s93
    %p105 = scmp.eq.s32.totalorder %s20, 1
    %p106 = por %p104, %p105
    %p108 = scmp.ne.s32.totalorder %s93, %s107
    %p109 = scmp.eq.s32.totalorder %s20, 0
    %p110 = por %p108, %p109
    %s112 = sadd.s32 %s111, 1
    %p115 = scmp.eq.s32.totalorder %s14, 1
    %p116 = scmp.ne.s32.totalorder %s111, %s113
    %p117 = scmp.eq.s32.totalorder %s14, 0
    %p118 = por %p116, %p117
    %p119 = scmp.ne.s32.totalorder %s111, %s113
    %p120 = scmp.eq.s32.totalorder %s19, 1
    %p121 = por %p119, %p120
    %p122 = scmp.ne.s32.totalorder %s113, %s114
    %p123 = scmp.eq.s32.totalorder %s19, 0
    %p124 = por %p122, %p123
    %p125 = scmp.ne.s32.totalorder %s113, %s114
    %p126 = scmp.eq.s32.totalorder %s20, 1
    %p127 = por %p125, %p126
    %p129 = scmp.ne.s32.totalorder %s114, %s128
    %p130 = scmp.eq.s32.totalorder %s20, 0
    %p131 = por %p129, %p130
    %s133 = sadd.s32 %s132, 1
    %p136 = scmp.eq.s32.totalorder %s14, 1
    %p137 = scmp.ne.s32.totalorder %s132, %s134
    %p138 = scmp.eq.s32.totalorder %s14, 0
    %p139 = por %p137, %p138
    %p140 = scmp.ne.s32.totalorder %s132, %s134
    %p141 = scmp.eq.s32.totalorder %s19, 1
    %p142 = por %p140, %p141
    %p143 = scmp.ne.s32.totalorder %s134, %s135
    %p144 = scmp.eq.s32.totalorder %s19, 0
    %p145 = por %p143, %p144
    %p146 = scmp.ne.s32.totalorder %s134, %s135
    %p147 = scmp.eq.s32.totalorder %s20, 1
    %p148 = por %p146, %p147
    %p150 = scmp.ne.s32.totalorder %s135, %s149
    %p151 = scmp.eq.s32.totalorder %s20, 0
    %p152 = por %p150, %p151
    %s154 = sadd.s32 %s153, 1
    %p157 = scmp.eq.s32.totalorder %s14, 1
    %p158 = scmp.ne.s32.totalorder %s153, %s155
    %p159 = scmp.eq.s32.totalorder %s14, 0
    %p160 = por %p158, %p159
    %p161 = scmp.ne.s32.totalorder %s153, %s155
    %p162 = scmp.eq.s32.totalorder %s19, 1
    %p163 = por %p161, %p162
    %p164 = scmp.ne.s32.totalorder %s155, %s156
    %p165 = scmp.eq.s32.totalorder %s19, 0
    %p166 = por %p164, %p165
    %p167 = scmp.ne.s32.totalorder %s155, %s156
    %p168 = scmp.eq.s32.totalorder %s20, 1
    %p169 = por %p167, %p168
    %p171 = scmp.ne.s32.totalorder %s156, %s170
    %p172 = scmp.eq.s32.totalorder %s20, 0
    %p173 = por %p171, %p172
    %s175 = sadd.s32 %s174, 1
    %p178 = scmp.eq.s32.totalorder %s14, 1
    %p179 = scmp.ne.s32.totalorder %s174, %s176
    %p180 = scmp.eq.s32.totalorder %s14, 0
    %p181 = por %p179, %p180
    %p182 = scmp.ne.s32.totalorder %s174, %s176
    %p183 = scmp.eq.s32.totalorder %s19, 1
    %p184 = por %p182, %p183
    %p185 = scmp.ne.s32.totalorder %s176, %s177
    %p186 = scmp.eq.s32.totalorder %s19, 0
    %p187 = por %p185, %p186
    %p188 = scmp.ne.s32.totalorder %s176, %s177
    %p189 = scmp.eq.s32.totalorder %s20, 1
    %p190 = por %p188, %p189
    %p192 = scmp.ne.s32.totalorder %s177, %s191
    %p193 = scmp.eq.s32.totalorder %s20, 0
    %p194 = por %p192, %p193
    %s195 = ssub.s32 %s14, %s21
    %p196 = scmp.eq.s32.totalorder %s195, 0
    %s198 = sadd.s32 %s197, 1
    %s199 = scalar_select %p196, %s197, %s198
    %p202 = pneg %p196
    %p203 = scmp.eq.s32.totalorder %s14, 1
    %p204 = por %p202, %p203
    %p205 = scmp.ne.s32.totalorder %s197, %s200
    %p206 = scmp.eq.s32.totalorder %s14, 0
    %p207 = por %p205, %p206
    %p208 = scmp.ne.s32.totalorder %s197, %s200
    %p209 = scmp.eq.s32.totalorder %s19, 1
    %p210 = por %p208, %p209
    %p211 = scmp.ne.s32.totalorder %s200, %s201
    %p212 = scmp.eq.s32.totalorder %s19, 0
    %p213 = por %p211, %p212
    %p214 = scmp.ne.s32.totalorder %s200, %s201
    %p215 = scmp.eq.s32.totalorder %s20, 1
    %p216 = por %p214, %p215
    %p218 = scmp.ne.s32.totalorder %s201, %s217
    %p219 = scmp.eq.s32.totalorder %s20, 0
    %p220 = por %p218, %p219
    %p221 = scmp.le.s32.totalorder 1, %s14
    %p222 = scmp.lt.s32.totalorder %s14, 3
    %p223 = pnand %p221, %p222
    %p224 = pneg %p223
    // Predicated region
    $region9: #{basic_block_forward.1} parent=5 // pred_check
      _
    $region10: #{basic_block_forward.1} parent=5 // pred_check_branch
      %226 = sbr.rel (%p223) target = $region12
    $region11: #{basic_block_forward.1} parent=5 // pred_region
      %s227 = ssub.s32 %s14, 1
      // Predicated region
      $region13: #{basic_block_forward.1} parent=11 // pred_check
        %p228 = pneg %p61
      $region14: #{basic_block_forward.1} parent=11 // pred_check_branch
        %230 = sbr.rel (%p228) target = $region16
      $region15: #{basic_block_forward.1} parent=11 // pred_region
        _
      $region16: #{basic_block_forward.1} parent=11 // pred_fallthru
        _
      // Predicated region
      $region17: #{basic_block_forward.1} parent=11 // pred_check
        %p231 = pneg %p82
      $region18: #{basic_block_forward.1} parent=11 // pred_check_branch
        %233 = sbr.rel (%p231) target = $region20
      $region19: #{basic_block_forward.1} parent=11 // pred_region
        _
      $region20: #{basic_block_forward.1} parent=11 // pred_fallthru
        _
      // Predicated region
      $region21: #{basic_block_forward.1} parent=11 // pred_check
        %p234 = pneg %p103
      $region22: #{basic_block_forward.1} parent=11 // pred_check_branch
        %236 = sbr.rel (%p234) target = $region24
      $region23: #{basic_block_forward.1} parent=11 // pred_region
        _
      $region24: #{basic_block_forward.1} parent=11 // pred_fallthru
        _
      // Predicated region
      $region25: #{basic_block_forward.1} parent=11 // pred_check
        %p237 = pneg %p124
      $region26: #{basic_block_forward.1} parent=11 // pred_check_branch
        %239 = sbr.rel (%p237) target = $region28
      $region27: #{basic_block_forward.1} parent=11 // pred_region
        _
      $region28: #{basic_block_forward.1} parent=11 // pred_fallthru
        _
      // Predicated region
      $region29: #{basic_block_forward.1} parent=11 // pred_check
        %p240 = pneg %p145
      $region30: #{basic_block_forward.1} parent=11 // pred_check_branch
        %242 = sbr.rel (%p240) target = $region32
      $region31: #{basic_block_forward.1} parent=11 // pred_region
        _
      $region32: #{basic_block_forward.1} parent=11 // pred_fallthru
        _
      // Predicated region
      $region33: #{basic_block_forward.1} parent=11 // pred_check
        %p243 = pneg %p166
      $region34: #{basic_block_forward.1} parent=11 // pred_check_branch
        %245 = sbr.rel (%p243) target = $region36
      $region35: #{basic_block_forward.1} parent=11 // pred_region
        _
      $region36: #{basic_block_forward.1} parent=11 // pred_fallthru
        _
      // Predicated region
      $region37: #{basic_block_forward.1} parent=11 // pred_check
        %p246 = pneg %p187
      $region38: #{basic_block_forward.1} parent=11 // pred_check_branch
        %248 = sbr.rel (%p246) target = $region40
      $region39: #{basic_block_forward.1} parent=11 // pred_region
        _
      $region40: #{basic_block_forward.1} parent=11 // pred_fallthru
        _
    $region12: #{basic_block_forward.1} parent=5 // pred_fallthru
      _
    %p249 = scmp.lt.s32.totalorder %s14, 2
    // Predicated region
    $region41: #{basic_block_forward.1} parent=5 // pred_check
      %p250 = pneg %p249
    $region42: #{basic_block_forward.1} parent=5 // pred_check_branch
      %252 = sbr.rel (%p250) target = $region44
    $region43: #{basic_block_forward.1} parent=5 // pred_region
      // Predicated region
      $region45: #{basic_block_forward.1} parent=43 // pred_check
        %p253 = pneg %p34
      $region46: #{basic_block_forward.1} parent=43 // pred_check_branch
        %255 = sbr.rel (%p253) target = $region48
      $region47: #{basic_block_forward.1} parent=43 // pred_region
        %p256 = scmp.lt.s32.totalorder %s14, 1
        %s257 = scalar_select %p256, %s14, 1
        %s258 = smul.addr %s257, 32
        %s259 = smul.addr %s258, 4
        %s260 = scalar_lea.vmem %s0, %s259
      $region48: #{basic_block_forward.1} parent=43 // pred_fallthru
        _
    $region44: #{basic_block_forward.1} parent=5 // pred_fallthru
      _
    %p261 = scmp.le.s32.totalorder 1, %s14
    %p262 = scmp.lt.s32.totalorder %s14, 3
    %p263 = pnand %p261, %p262
    %p264 = pneg %p263
    // Predicated region
    $region49: #{basic_block_forward.1} parent=5 // pred_check
      _
    $region50: #{basic_block_forward.1} parent=5 // pred_check_branch
      %266 = sbr.rel (%p263) target = $region52
    $region51: #{basic_block_forward.1} parent=5 // pred_region
      %s267 = ssub.s32 %s14, 1
      %p268 = scmp.lt.s32.totalorder %s19, 1
      %s269 = scalar_select %p268, %s19, 1
      %s270 = smul.addr %s269, 32
      %s271 = smul.addr %s270, 4
      %s272 = scalar_lea.vmem %s0, %s271
      %p273 = pneg %p40
      %p274 = pneg %p37
      %p275 = pneg %p61
      %p276 = pneg %p58
      %p277 = pneg %p82
      %p278 = pneg %p79
      %p279 = pneg %p103
      %p280 = pneg %p100
      %p281 = pneg %p124
      %p282 = pneg %p121
      %p283 = pneg %p145
      %p284 = pneg %p142
      %p285 = pneg %p166
      %p286 = pneg %p163
      %p287 = pneg %p187
      %p288 = pneg %p184
      %p289 = pneg %p213
      %p290 = pneg %p210
      %p291 = scmp.lt.s32.totalorder %s19, 1
      %s292 = scalar_select %p291, %s19, 1
      %s293 = smul.addr %s292, 32
      %s294 = smul.addr %s293, 8
      %s295 = scalar_lea.vmem %s8, %s294
      %p296 = scmp.lt.s32.totalorder %s19, 1
      %s297 = scalar_select %p296, %s19, 1
      %s298 = smul.addr %s297, 32
      %s299 = smul.addr %s298, 4
      %s300 = scalar_lea.vmem %s0, %s299
      %p301 = scmp.lt.s32.totalorder %s19, 1
      %s302 = scalar_select %p301, %s19, 1
      %s303 = smul.addr %s302, 32
      %s304 = smul.addr %s303, 8
      %s305 = scalar_lea.vmem %s8, %s304
      %v307 = vld [vmem:[%s4] sm:$0xff]
      %v308 = vld [vmem:[%s4 + $0x8] sm:$0xff]
      %v309 = vld [vmem:[%s4 + $0x10] sm:$0xff]
      %v310 = vld [vmem:[%s4 + $0x18] sm:$0xff]
      %v311 = vld [vmem:[%s4 + $0x20] sm:$0xff]
      %v312 = vld [vmem:[%s4 + $0x28] sm:$0xff]
      %v313 = vld [vmem:[%s4 + $0x30] sm:$0xff]
      %v314 = vld [vmem:[%s4 + $0x38] sm:$0xff]
      %v315 = vld [vmem:[%s4 + $0x40] sm:$0xff]
      %v316 = vld [vmem:[%s4 + $0x48] sm:$0xff]
      %v317 = vld [vmem:[%s4 + $0x50] sm:$0xff]
      %v318 = vld [vmem:[%s4 + $0x58] sm:$0xff]
      %v319 = vld [vmem:[%s4 + $0x60] sm:$0xff]
      %v320 = vld [vmem:[%s4 + $0x68] sm:$0xff]
      %v321 = vld [vmem:[%s4 + $0x70] sm:$0xff]
      %v322 = vld [vmem:[%s4 + $0x78] sm:$0xff]
      %vm323 = vcmask 130048
      %324 = vst.msk [vmem:[#allocation2] sm:$0xff] %vm323, 0.0
      %325 = vst.msk [vmem:[#allocation2 + $0x8] sm:$0xff] %vm323, 0.0
      %326 = vst.msk [vmem:[#allocation2 + $0x10] sm:$0xff] %vm323, 0.0
      %327 = vst.msk [vmem:[#allocation2 + $0x18] sm:$0xff] %vm323, 0.0
      %328 = vst.msk [vmem:[#allocation2 + $0x20] sm:$0xff] %vm323, 0.0
      %329 = vst.msk [vmem:[#allocation2 + $0x28] sm:$0xff] %vm323, 0.0
      %330 = vst.msk [vmem:[#allocation2 + $0x30] sm:$0xff] %vm323, 0.0
      %331 = vst.msk [vmem:[#allocation2 + $0x38] sm:$0xff] %vm323, 0.0
      %332 = vst.msk [vmem:[#allocation2 + $0x40] sm:$0xff] %vm323, 0.0
      %333 = vst.msk [vmem:[#allocation2 + $0x48] sm:$0xff] %vm323, 0.0
      %334 = vst.msk [vmem:[#allocation2 + $0x50] sm:$0xff] %vm323, 0.0
      %335 = vst.msk [vmem:[#allocation2 + $0x58] sm:$0xff] %vm323, 0.0
      %336 = vst.msk [vmem:[#allocation2 + $0x60] sm:$0xff] %vm323, 0.0
      %337 = vst.msk [vmem:[#allocation2 + $0x68] sm:$0xff] %vm323, 0.0
      %338 = vst.msk [vmem:[#allocation2 + $0x70] sm:$0xff] %vm323, 0.0
      %339 = vst.msk [vmem:[#allocation2 + $0x78] sm:$0xff] %vm323, 0.0
      %340 = vst.msk [vmem:[#allocation2 + $0x80] sm:$0xff] %vm323, 0.0
      %341 = vst.msk [vmem:[#allocation2 + $0x88] sm:$0xff] %vm323, 0.0
      %342 = vst.msk [vmem:[#allocation2 + $0x90] sm:$0xff] %vm323, 0.0
      %343 = vst.msk [vmem:[#allocation2 + $0x98] sm:$0xff] %vm323, 0.0
      %344 = vst.msk [vmem:[#allocation2 + $0xa0] sm:$0xff] %vm323, 0.0
      %345 = vst.msk [vmem:[#allocation2 + $0xa8] sm:$0xff] %vm323, 0.0
      %346 = vst.msk [vmem:[#allocation2 + $0xb0] sm:$0xff] %vm323, 0.0
      %347 = vst.msk [vmem:[#allocation2 + $0xb8] sm:$0xff] %vm323, 0.0
      %348 = vst.msk [vmem:[#allocation2 + $0xc0] sm:$0xff] %vm323, 0.0
      %349 = vst.msk [vmem:[#allocation2 + $0xc8] sm:$0xff] %vm323, 0.0
      %350 = vst.msk [vmem:[#allocation2 + $0xd0] sm:$0xff] %vm323, 0.0
      %351 = vst.msk [vmem:[#allocation2 + $0xd8] sm:$0xff] %vm323, 0.0
      %352 = vst.msk [vmem:[#allocation2 + $0xe0] sm:$0xff] %vm323, 0.0
      %353 = vst.msk [vmem:[#allocation2 + $0xe8] sm:$0xff] %vm323, 0.0
      %354 = vst.msk [vmem:[#allocation2 + $0xf0] sm:$0xff] %vm323, 0.0
      %355 = vst.msk [vmem:[#allocation2 + $0xf8] sm:$0xff] %vm323, 0.0
      %356 = vst.msk [vmem:[#allocation2 + $0x100] sm:$0xff] %vm323, 0.0
      %357 = vst.msk [vmem:[#allocation2 + $0x108] sm:$0xff] %vm323, 0.0
      %358 = vst.msk [vmem:[#allocation2 + $0x110] sm:$0xff] %vm323, 0.0
      %359 = vst.msk [vmem:[#allocation2 + $0x118] sm:$0xff] %vm323, 0.0
      %360 = vst.msk [vmem:[#allocation2 + $0x120] sm:$0xff] %vm323, 0.0
      %361 = vst.msk [vmem:[#allocation2 + $0x128] sm:$0xff] %vm323, 0.0
      %362 = vst.msk [vmem:[#allocation2 + $0x130] sm:$0xff] %vm323, 0.0
      %363 = vst.msk [vmem:[#allocation2 + $0x138] sm:$0xff] %vm323, 0.0
      %364 = vst.msk [vmem:[#allocation2 + $0x140] sm:$0xff] %vm323, 0.0
      %365 = vst.msk [vmem:[#allocation2 + $0x148] sm:$0xff] %vm323, 0.0
      %366 = vst.msk [vmem:[#allocation2 + $0x150] sm:$0xff] %vm323, 0.0
      %367 = vst.msk [vmem:[#allocation2 + $0x158] sm:$0xff] %vm323, 0.0
      %368 = vst.msk [vmem:[#allocation2 + $0x160] sm:$0xff] %vm323, 0.0
      %369 = vst.msk [vmem:[#allocation2 + $0x168] sm:$0xff] %vm323, 0.0
      %370 = vst.msk [vmem:[#allocation2 + $0x170] sm:$0xff] %vm323, 0.0
      %371 = vst.msk [vmem:[#allocation2 + $0x178] sm:$0xff] %vm323, 0.0
      %372 = vst.msk [vmem:[#allocation2 + $0x180] sm:$0xff] %vm323, 0.0
      %373 = vst.msk [vmem:[#allocation2 + $0x188] sm:$0xff] %vm323, 0.0
      %374 = vst.msk [vmem:[#allocation2 + $0x190] sm:$0xff] %vm323, 0.0
      %375 = vst.msk [vmem:[#allocation2 + $0x198] sm:$0xff] %vm323, 0.0
      %376 = vst.msk [vmem:[#allocation2 + $0x1a0] sm:$0xff] %vm323, 0.0
      %377 = vst.msk [vmem:[#allocation2 + $0x1a8] sm:$0xff] %vm323, 0.0
      %378 = vst.msk [vmem:[#allocation2 + $0x1b0] sm:$0xff] %vm323, 0.0
      %379 = vst.msk [vmem:[#allocation2 + $0x1b8] sm:$0xff] %vm323, 0.0
      %380 = vst.msk [vmem:[#allocation2 + $0x1c0] sm:$0xff] %vm323, 0.0
      %381 = vst.msk [vmem:[#allocation2 + $0x1c8] sm:$0xff] %vm323, 0.0
      %382 = vst.msk [vmem:[#allocation2 + $0x1d0] sm:$0xff] %vm323, 0.0
      %383 = vst.msk [vmem:[#allocation2 + $0x1d8] sm:$0xff] %vm323, 0.0
      %384 = vst.msk [vmem:[#allocation2 + $0x1e0] sm:$0xff] %vm323, 0.0
      %385 = vst.msk [vmem:[#allocation2 + $0x1e8] sm:$0xff] %vm323, 0.0
      %386 = vst.msk [vmem:[#allocation2 + $0x1f0] sm:$0xff] %vm323, 0.0
      %387 = vst.msk [vmem:[#allocation2 + $0x1f8] sm:$0xff] %vm323, 0.0
      %388 = vst.msk [vmem:[#allocation2 + $0x200] sm:$0xff] %vm323, 0.0
      %389 = vst.msk [vmem:[#allocation2 + $0x208] sm:$0xff] %vm323, 0.0
      %390 = vst.msk [vmem:[#allocation2 + $0x210] sm:$0xff] %vm323, 0.0
      %391 = vst.msk [vmem:[#allocation2 + $0x218] sm:$0xff] %vm323, 0.0
      %392 = vst.msk [vmem:[#allocation2 + $0x220] sm:$0xff] %vm323, 0.0
      %393 = vst.msk [vmem:[#allocation2 + $0x228] sm:$0xff] %vm323, 0.0
      %394 = vst.msk [vmem:[#allocation2 + $0x230] sm:$0xff] %vm323, 0.0
      %395 = vst.msk [vmem:[#allocation2 + $0x238] sm:$0xff] %vm323, 0.0
      %v396 = vld [vmem:[%s300] sm:$0xf]
      %v397 = vld [vmem:[%s300 + $0x4] sm:$0xf]
      %v398 = vld [vmem:[%s300 + $0x8] sm:$0xf]
      %v399 = vld [vmem:[%s300 + $0xc] sm:$0xf]
      %v400 = vld [vmem:[%s300 + $0x10] sm:$0xf]
      %v401 = vld [vmem:[%s300 + $0x14] sm:$0xf]
      %v402 = vld [vmem:[%s300 + $0x18] sm:$0xf]
      %v403 = vld [vmem:[%s300 + $0x1c] sm:$0xf]
      %v404 = vld [vmem:[%s300 + $0x20] sm:$0xf]
      %v405 = vld [vmem:[%s300 + $0x24] sm:$0xf]
      %v406 = vld [vmem:[%s300 + $0x28] sm:$0xf]
      %v407 = vld [vmem:[%s300 + $0x2c] sm:$0xf]
      %v408 = vld [vmem:[%s300 + $0x30] sm:$0xf]
      %v409 = vld [vmem:[%s300 + $0x34] sm:$0xf]
      %v410 = vld [vmem:[%s300 + $0x38] sm:$0xf]
      %v411 = vld [vmem:[%s300 + $0x3c] sm:$0xf]
      %v412 = vld [vmem:[%s300 + $0x40] sm:$0xf]
      %v413 = vld [vmem:[%s300 + $0x44] sm:$0xf]
      %v414 = vld [vmem:[%s300 + $0x48] sm:$0xf]
      %v415 = vld [vmem:[%s300 + $0x4c] sm:$0xf]
      %v416 = vld [vmem:[%s300 + $0x50] sm:$0xf]
      %v417 = vld [vmem:[%s300 + $0x54] sm:$0xf]
      %v418 = vld [vmem:[%s300 + $0x58] sm:$0xf]
      %v419 = vld [vmem:[%s300 + $0x5c] sm:$0xf]
      %v420 = vld [vmem:[%s300 + $0x60] sm:$0xf]
      %v421 = vld [vmem:[%s300 + $0x64] sm:$0xf]
      %v422 = vld [vmem:[%s300 + $0x68] sm:$0xf]
      %v423 = vld [vmem:[%s300 + $0x6c] sm:$0xf]
      %v424 = vld [vmem:[%s300 + $0x70] sm:$0xf]
      %v425 = vld [vmem:[%s300 + $0x74] sm:$0xf]
      %v426 = vld [vmem:[%s300 + $0x78] sm:$0xf]
      %v427 = vld [vmem:[%s300 + $0x7c] sm:$0xf]
      %v428 = vunpack.c.l.bf16 %v396
      %v429 = vunpack.c.l.bf16 %v397
      %v430 = vunpack.c.l.bf16 %v398
      %v431 = vunpack.c.l.bf16 %v399
      %v432 = vunpack.c.l.bf16 %v400
      %v433 = vunpack.c.l.bf16 %v401
      %v434 = vunpack.c.l.bf16 %v402
      %v435 = vunpack.c.l.bf16 %v403
      %v436 = vunpack.c.l.bf16 %v404
      %v437 = vunpack.c.l.bf16 %v405
      %v438 = vunpack.c.l.bf16 %v406
      %v439 = vunpack.c.l.bf16 %v407
      %v440 = vunpack.c.l.bf16 %v408
      %v441 = vunpack.c.l.bf16 %v409
      %v442 = vunpack.c.l.bf16 %v410
      %v443 = vunpack.c.l.bf16 %v411
      %v444 = vunpack.c.l.bf16 %v412
      %v445 = vunpack.c.l.bf16 %v413
      %v446 = vunpack.c.l.bf16 %v414
      %v447 = vunpack.c.l.bf16 %v415
      %v448 = vunpack.c.l.bf16 %v416
      %v449 = vunpack.c.l.bf16 %v417
      %v450 = vunpack.c.l.bf16 %v418
      %v451 = vunpack.c.l.bf16 %v419
      %v452 = vunpack.c.l.bf16 %v420
      %v453 = vunpack.c.l.bf16 %v421
      %v454 = vunpack.c.l.bf16 %v422
      %v455 = vunpack.c.l.bf16 %v423
      %v456 = vunpack.c.l.bf16 %v424
      %v457 = vunpack.c.l.bf16 %v425
      %v458 = vunpack.c.l.bf16 %v426
      %v459 = vunpack.c.l.bf16 %v427
      %s460 = scalar_lea.vmem [#allocation2], 32
      %461 = vst.msk [vmem:[%s460 + $0x8] sm:$0xff] %vm323, %v428
      %462 = vst.msk [vmem:[%s460 + $0x10] sm:$0xff] %vm323, %v429
      %463 = vst.msk [vmem:[%s460 + $0x28] sm:$0xff] %vm323, %v430
      %464 = vst.msk [vmem:[%s460 + $0x30] sm:$0xff] %vm323, %v431
      %465 = vst.msk [vmem:[%s460 + $0x48] sm:$0xff] %vm323, %v432
      %466 = vst.msk [vmem:[%s460 + $0x50] sm:$0xff] %vm323, %v433
      %467 = vst.msk [vmem:[%s460 + $0x68] sm:$0xff] %vm323, %v434
      %468 = vst.msk [vmem:[%s460 + $0x70] sm:$0xff] %vm323, %v435
      %469 = vst.msk [vmem:[%s460 + $0x88] sm:$0xff] %vm323, %v436
      %470 = vst.msk [vmem:[%s460 + $0x90] sm:$0xff] %vm323, %v437
      %471 = vst.msk [vmem:[%s460 + $0xa8] sm:$0xff] %vm323, %v438
      %472 = vst.msk [vmem:[%s460 + $0xb0] sm:$0xff] %vm323, %v439
      %473 = vst.msk [vmem:[%s460 + $0xc8] sm:$0xff] %vm323, %v440
      %474 = vst.msk [vmem:[%s460 + $0xd0] sm:$0xff] %vm323, %v441
      %475 = vst.msk [vmem:[%s460 + $0xe8] sm:$0xff] %vm323, %v442
      %476 = vst.msk [vmem:[%s460 + $0xf0] sm:$0xff] %vm323, %v443
      %477 = vst.msk [vmem:[%s460 + $0x108] sm:$0xff] %vm323, %v444
      %478 = vst.msk [vmem:[%s460 + $0x110] sm:$0xff] %vm323, %v445
      %479 = vst.msk [vmem:[%s460 + $0x128] sm:$0xff] %vm323, %v446
      %480 = vst.msk [vmem:[%s460 + $0x130] sm:$0xff] %vm323, %v447
      %481 = vst.msk [vmem:[%s460 + $0x148] sm:$0xff] %vm323, %v448
      %482 = vst.msk [vmem:[%s460 + $0x150] sm:$0xff] %vm323, %v449
      %483 = vst.msk [vmem:[%s460 + $0x168] sm:$0xff] %vm323, %v450
      %484 = vst.msk [vmem:[%s460 + $0x170] sm:$0xff] %vm323, %v451
      %485 = vst.msk [vmem:[%s460 + $0x188] sm:$0xff] %vm323, %v452
      %486 = vst.msk [vmem:[%s460 + $0x190] sm:$0xff] %vm323, %v453
      %487 = vst.msk [vmem:[%s460 + $0x1a8] sm:$0xff] %vm323, %v454
      %488 = vst.msk [vmem:[%s460 + $0x1b0] sm:$0xff] %vm323, %v455
      %489 = vst.msk [vmem:[%s460 + $0x1c8] sm:$0xff] %vm323, %v456
      %490 = vst.msk [vmem:[%s460 + $0x1d0] sm:$0xff] %vm323, %v457
      %491 = vst.msk [vmem:[%s460 + $0x1e8] sm:$0xff] %vm323, %v458
      %492 = vst.msk [vmem:[%s460 + $0x1f0] sm:$0xff] %vm323, %v459
      %v493 = vld [vmem:[#allocation2 + $0x7] sm:$0xff]
      %v494 = vld [vmem:[#allocation2 + $0xf] sm:$0xff]
      %v495 = vld [vmem:[#allocation2 + $0x27] sm:$0xff]
      %v496 = vld [vmem:[#allocation2 + $0x2f] sm:$0xff]
      %v497 = vld [vmem:[#allocation2 + $0x47] sm:$0xff]
      %v498 = vld [vmem:[#allocation2 + $0x4f] sm:$0xff]
      %v499 = vld [vmem:[#allocation2 + $0x67] sm:$0xff]
      %v500 = vld [vmem:[#allocation2 + $0x6f] sm:$0xff]
      %v501 = vld [vmem:[#allocation2 + $0x87] sm:$0xff]
      %v502 = vld [vmem:[#allocation2 + $0x8f] sm:$0xff]
      %v503 = vld [vmem:[#allocation2 + $0xa7] sm:$0xff]
      %v504 = vld [vmem:[#allocation2 + $0xaf] sm:$0xff]
      %v505 = vld [vmem:[#allocation2 + $0xc7] sm:$0xff]
      %v506 = vld [vmem:[#allocation2 + $0xcf] sm:$0xff]
      %v507 = vld [vmem:[#allocation2 + $0xe7] sm:$0xff]
      %v508 = vld [vmem:[#allocation2 + $0xef] sm:$0xff]
      %v509 = vld [vmem:[#allocation2 + $0x107] sm:$0xff]
      %v510 = vld [vmem:[#allocation2 + $0x10f] sm:$0xff]
      %v511 = vld [vmem:[#allocation2 + $0x127] sm:$0xff]
      %v512 = vld [vmem:[#allocation2 + $0x12f] sm:$0xff]
      %v513 = vld [vmem:[#allocation2 + $0x147] sm:$0xff]
      %v514 = vld [vmem:[#allocation2 + $0x14f] sm:$0xff]
      %v515 = vld [vmem:[#allocation2 + $0x167] sm:$0xff]
      %v516 = vld [vmem:[#allocation2 + $0x16f] sm:$0xff]
      %v517 = vld [vmem:[#allocation2 + $0x187] sm:$0xff]
      %v518 = vld [vmem:[#allocation2 + $0x18f] sm:$0xff]
      %v519 = vld [vmem:[#allocation2 + $0x1a7] sm:$0xff]
      %v520 = vld [vmem:[#allocation2 + $0x1af] sm:$0xff]
      %v521 = vld [vmem:[#allocation2 + $0x1c7] sm:$0xff]
      %v522 = vld [vmem:[#allocation2 + $0x1cf] sm:$0xff]
      %v523 = vld [vmem:[#allocation2 + $0x1e7] sm:$0xff]
      %v524 = vld [vmem:[#allocation2 + $0x1ef] sm:$0xff]
      %525 = vst.msk [vmem:[#allocation3] sm:$0xff] %vm323, %v493
      %526 = vst.msk [vmem:[#allocation3 + $0x10] sm:$0xff] %vm323, %v494
      %527 = vst.msk [vmem:[#allocation3 + $0x20] sm:$0xff] %vm323, %v495
      %528 = vst.msk [vmem:[#allocation3 + $0x30] sm:$0xff] %vm323, %v496
      %529 = vst.msk [vmem:[#allocation3 + $0x40] sm:$0xff] %vm323, %v497
      %530 = vst.msk [vmem:[#allocation3 + $0x50] sm:$0xff] %vm323, %v498
      %531 = vst.msk [vmem:[#allocation3 + $0x60] sm:$0xff] %vm323, %v499
      %532 = vst.msk [vmem:[#allocation3 + $0x70] sm:$0xff] %vm323, %v500
      %533 = vst.msk [vmem:[#allocation3 + $0x80] sm:$0xff] %vm323, %v501
      %534 = vst.msk [vmem:[#allocation3 + $0x90] sm:$0xff] %vm323, %v502
      %535 = vst.msk [vmem:[#allocation3 + $0xa0] sm:$0xff] %vm323, %v503
      %536 = vst.msk [vmem:[#allocation3 + $0xb0] sm:$0xff] %vm323, %v504
      %537 = vst.msk [vmem:[#allocation3 + $0xc0] sm:$0xff] %vm323, %v505
      %538 = vst.msk [vmem:[#allocation3 + $0xd0] sm:$0xff] %vm323, %v506
      %539 = vst.msk [vmem:[#allocation3 + $0xe0] sm:$0xff] %vm323, %v507
      %540 = vst.msk [vmem:[#allocation3 + $0xf0] sm:$0xff] %vm323, %v508
      %541 = vst.msk [vmem:[#allocation3 + $0x100] sm:$0xff] %vm323, %v509
      %542 = vst.msk [vmem:[#allocation3 + $0x110] sm:$0xff] %vm323, %v510
      %543 = vst.msk [vmem:[#allocation3 + $0x120] sm:$0xff] %vm323, %v511
      %544 = vst.msk [vmem:[#allocation3 + $0x130] sm:$0xff] %vm323, %v512
      %545 = vst.msk [vmem:[#allocation3 + $0x140] sm:$0xff] %vm323, %v513
      %546 = vst.msk [vmem:[#allocation3 + $0x150] sm:$0xff] %vm323, %v514
      %547 = vst.msk [vmem:[#allocation3 + $0x160] sm:$0xff] %vm323, %v515
      %548 = vst.msk [vmem:[#allocation3 + $0x170] sm:$0xff] %vm323, %v516
      %549 = vst.msk [vmem:[#allocation3 + $0x180] sm:$0xff] %vm323, %v517
      %550 = vst.msk [vmem:[#allocation3 + $0x190] sm:$0xff] %vm323, %v518
      %551 = vst.msk [vmem:[#allocation3 + $0x1a0] sm:$0xff] %vm323, %v519
      %552 = vst.msk [vmem:[#allocation3 + $0x1b0] sm:$0xff] %vm323, %v520
      %553 = vst.msk [vmem:[#allocation3 + $0x1c0] sm:$0xff] %vm323, %v521
      %554 = vst.msk [vmem:[#allocation3 + $0x1d0] sm:$0xff] %vm323, %v522
      %555 = vst.msk [vmem:[#allocation3 + $0x1e0] sm:$0xff] %vm323, %v523
      %556 = vst.msk [vmem:[#allocation3 + $0x1f0] sm:$0xff] %vm323, %v524
      %v557 = vld [vmem:[#allocation2 + $0x8] sm:$0xff]
      %v558 = vld [vmem:[#allocation2 + $0x10] sm:$0xff]
      %v559 = vld [vmem:[#allocation2 + $0x28] sm:$0xff]
      %v560 = vld [vmem:[#allocation2 + $0x30] sm:$0xff]
      %v561 = vld [vmem:[#allocation2 + $0x48] sm:$0xff]
      %v562 = vld [vmem:[#allocation2 + $0x50] sm:$0xff]
      %v563 = vld [vmem:[#allocation2 + $0x68] sm:$0xff]
      %v564 = vld [vmem:[#allocation2 + $0x70] sm:$0xff]
      %v565 = vld [vmem:[#allocation2 + $0x88] sm:$0xff]
      %v566 = vld [vmem:[#allocation2 + $0x90] sm:$0xff]
      %v567 = vld [vmem:[#allocation2 + $0xa8] sm:$0xff]
      %v568 = vld [vmem:[#allocation2 + $0xb0] sm:$0xff]
      %v569 = vld [vmem:[#allocation2 + $0xc8] sm:$0xff]
      %v570 = vld [vmem:[#allocation2 + $0xd0] sm:$0xff]
      %v571 = vld [vmem:[#allocation2 + $0xe8] sm:$0xff]
      %v572 = vld [vmem:[#allocation2 + $0xf0] sm:$0xff]
      %v573 = vld [vmem:[#allocation2 + $0x108] sm:$0xff]
      %v574 = vld [vmem:[#allocation2 + $0x110] sm:$0xff]
      %v575 = vld [vmem:[#allocation2 + $0x128] sm:$0xff]
      %v576 = vld [vmem:[#allocation2 + $0x130] sm:$0xff]
      %v577 = vld [vmem:[#allocation2 + $0x148] sm:$0xff]
      %v578 = vld [vmem:[#allocation2 + $0x150] sm:$0xff]
      %v579 = vld [vmem:[#allocation2 + $0x168] sm:$0xff]
      %v580 = vld [vmem:[#allocation2 + $0x170] sm:$0xff]
      %v581 = vld [vmem:[#allocation2 + $0x188] sm:$0xff]
      %v582 = vld [vmem:[#allocation2 + $0x190] sm:$0xff]
      %v583 = vld [vmem:[#allocation2 + $0x1a8] sm:$0xff]
      %v584 = vld [vmem:[#allocation2 + $0x1b0] sm:$0xff]
      %v585 = vld [vmem:[#allocation2 + $0x1c8] sm:$0xff]
      %v586 = vld [vmem:[#allocation2 + $0x1d0] sm:$0xff]
      %v587 = vld [vmem:[#allocation2 + $0x1e8] sm:$0xff]
      %v588 = vld [vmem:[#allocation2 + $0x1f0] sm:$0xff]
      %621 = vrot.lane.b32.xlu0 %v557, 16
      %v622 = vpop.permute.xlu0 %621
      %623 = vrot.lane.b32.xlu0 %v558, 16
      %v624 = vpop.permute.xlu0 %623
      %625 = vrot.lane.b32.xlu0 %v559, 16
      %v626 = vpop.permute.xlu0 %625
      %627 = vrot.lane.b32.xlu0 %v560, 16
      %v628 = vpop.permute.xlu0 %627
      %629 = vrot.lane.b32.xlu0 %v561, 16
      %v630 = vpop.permute.xlu0 %629
      %631 = vrot.lane.b32.xlu0 %v562, 16
      %v632 = vpop.permute.xlu0 %631
      %633 = vrot.lane.b32.xlu0 %v563, 16
      %v634 = vpop.permute.xlu0 %633
      %635 = vrot.lane.b32.xlu0 %v564, 16
      %v636 = vpop.permute.xlu0 %635
      %637 = vrot.lane.b32.xlu0 %v565, 16
      %v638 = vpop.permute.xlu0 %637
      %639 = vrot.lane.b32.xlu0 %v566, 16
      %v640 = vpop.permute.xlu0 %639
      %641 = vrot.lane.b32.xlu0 %v567, 16
      %v642 = vpop.permute.xlu0 %641
      %643 = vrot.lane.b32.xlu0 %v568, 16
      %v644 = vpop.permute.xlu0 %643
      %645 = vrot.lane.b32.xlu0 %v569, 16
      %v646 = vpop.permute.xlu0 %645
      %647 = vrot.lane.b32.xlu0 %v570, 16
      %v648 = vpop.permute.xlu0 %647
      %649 = vrot.lane.b32.xlu0 %v571, 16
      %v650 = vpop.permute.xlu0 %649
      %651 = vrot.lane.b32.xlu0 %v572, 16
      %v652 = vpop.permute.xlu0 %651
      %653 = vrot.lane.b32.xlu0 %v573, 16
      %v654 = vpop.permute.xlu0 %653
      %655 = vrot.lane.b32.xlu0 %v574, 16
      %v656 = vpop.permute.xlu0 %655
      %657 = vrot.lane.b32.xlu0 %v575, 16
      %v658 = vpop.permute.xlu0 %657
      %659 = vrot.lane.b32.xlu0 %v576, 16
      %v660 = vpop.permute.xlu0 %659
      %661 = vrot.lane.b32.xlu0 %v577, 16
      %v662 = vpop.permute.xlu0 %661
      %663 = vrot.lane.b32.xlu0 %v578, 16
      %v664 = vpop.permute.xlu0 %663
      %665 = vrot.lane.b32.xlu0 %v579, 16
      %v666 = vpop.permute.xlu0 %665
      %667 = vrot.lane.b32.xlu0 %v580, 16
      %v668 = vpop.permute.xlu0 %667
      %669 = vrot.lane.b32.xlu0 %v581, 16
      %v670 = vpop.permute.xlu0 %669
      %671 = vrot.lane.b32.xlu0 %v582, 16
      %v672 = vpop.permute.xlu0 %671
      %673 = vrot.lane.b32.xlu0 %v583, 16
      %v674 = vpop.permute.xlu0 %673
      %675 = vrot.lane.b32.xlu0 %v584, 16
      %v676 = vpop.permute.xlu0 %675
      %677 = vrot.lane.b32.xlu0 %v585, 16
      %v678 = vpop.permute.xlu0 %677
      %679 = vrot.lane.b32.xlu0 %v586, 16
      %v680 = vpop.permute.xlu0 %679
      %681 = vrot.lane.b32.xlu0 %v587, 16
      %v682 = vpop.permute.xlu0 %681
      %683 = vrot.lane.b32.xlu0 %v588, 16
      %v684 = vpop.permute.xlu0 %683
      %vm717 = vcmask 261248
      %718 = vst.msk [vmem:[#allocation3] sm:$0xff] %vm717, %v622
      %719 = vst.msk [vmem:[#allocation3 + $0x10] sm:$0xff] %vm717, %v624
      %720 = vst.msk [vmem:[#allocation3 + $0x20] sm:$0xff] %vm717, %v626
      %721 = vst.msk [vmem:[#allocation3 + $0x30] sm:$0xff] %vm717, %v628
      %722 = vst.msk [vmem:[#allocation3 + $0x40] sm:$0xff] %vm717, %v630
      %723 = vst.msk [vmem:[#allocation3 + $0x50] sm:$0xff] %vm717, %v632
      %724 = vst.msk [vmem:[#allocation3 + $0x60] sm:$0xff] %vm717, %v634
      %725 = vst.msk [vmem:[#allocation3 + $0x70] sm:$0xff] %vm717, %v636
      %726 = vst.msk [vmem:[#allocation3 + $0x80] sm:$0xff] %vm717, %v638
      %727 = vst.msk [vmem:[#allocation3 + $0x90] sm:$0xff] %vm717, %v640
      %728 = vst.msk [vmem:[#allocation3 + $0xa0] sm:$0xff] %vm717, %v642
      %729 = vst.msk [vmem:[#allocation3 + $0xb0] sm:$0xff] %vm717, %v644
      %730 = vst.msk [vmem:[#allocation3 + $0xc0] sm:$0xff] %vm717, %v646
      %731 = vst.msk [vmem:[#allocation3 + $0xd0] sm:$0xff] %vm717, %v648
      %732 = vst.msk [vmem:[#allocation3 + $0xe0] sm:$0xff] %vm717, %v650
      %733 = vst.msk [vmem:[#allocation3 + $0xf0] sm:$0xff] %vm717, %v652
      %734 = vst.msk [vmem:[#allocation3 + $0x100] sm:$0xff] %vm717, %v654
      %735 = vst.msk [vmem:[#allocation3 + $0x110] sm:$0xff] %vm717, %v656
      %736 = vst.msk [vmem:[#allocation3 + $0x120] sm:$0xff] %vm717, %v658
      %737 = vst.msk [vmem:[#allocation3 + $0x130] sm:$0xff] %vm717, %v660
      %738 = vst.msk [vmem:[#allocation3 + $0x140] sm:$0xff] %vm717, %v662
      %739 = vst.msk [vmem:[#allocation3 + $0x150] sm:$0xff] %vm717, %v664
      %740 = vst.msk [vmem:[#allocation3 + $0x160] sm:$0xff] %vm717, %v666
      %741 = vst.msk [vmem:[#allocation3 + $0x170] sm:$0xff] %vm717, %v668
      %742 = vst.msk [vmem:[#allocation3 + $0x180] sm:$0xff] %vm717, %v670
      %743 = vst.msk [vmem:[#allocation3 + $0x190] sm:$0xff] %vm717, %v672
      %744 = vst.msk [vmem:[#allocation3 + $0x1a0] sm:$0xff] %vm717, %v674
      %745 = vst.msk [vmem:[#allocation3 + $0x1b0] sm:$0xff] %vm717, %v676
      %746 = vst.msk [vmem:[#allocation3 + $0x1c0] sm:$0xff] %vm717, %v678
      %747 = vst.msk [vmem:[#allocation3 + $0x1d0] sm:$0xff] %vm717, %v680
      %748 = vst.msk [vmem:[#allocation3 + $0x1e0] sm:$0xff] %vm717, %v682
      %749 = vst.msk [vmem:[#allocation3 + $0x1f0] sm:$0xff] %vm717, %v684
      %v750 = vld [vmem:[#allocation2 + $0x9] sm:$0xff]
      %v751 = vld [vmem:[#allocation2 + $0x11] sm:$0xff]
      %v752 = vld [vmem:[#allocation2 + $0x29] sm:$0xff]
      %v753 = vld [vmem:[#allocation2 + $0x31] sm:$0xff]
      %v754 = vld [vmem:[#allocation2 + $0x49] sm:$0xff]
      %v755 = vld [vmem:[#allocation2 + $0x51] sm:$0xff]
      %v756 = vld [vmem:[#allocation2 + $0x69] sm:$0xff]
      %v757 = vld [vmem:[#allocation2 + $0x71] sm:$0xff]
      %v758 = vld [vmem:[#allocation2 + $0x89] sm:$0xff]
      %v759 = vld [vmem:[#allocation2 + $0x91] sm:$0xff]
      %v760 = vld [vmem:[#allocation2 + $0xa9] sm:$0xff]
      %v761 = vld [vmem:[#allocation2 + $0xb1] sm:$0xff]
      %v762 = vld [vmem:[#allocation2 + $0xc9] sm:$0xff]
      %v763 = vld [vmem:[#allocation2 + $0xd1] sm:$0xff]
      %v764 = vld [vmem:[#allocation2 + $0xe9] sm:$0xff]
      %v765 = vld [vmem:[#allocation2 + $0xf1] sm:$0xff]
      %v766 = vld [vmem:[#allocation2 + $0x109] sm:$0xff]
      %v767 = vld [vmem:[#allocation2 + $0x111] sm:$0xff]
      %v768 = vld [vmem:[#allocation2 + $0x129] sm:$0xff]
      %v769 = vld [vmem:[#allocation2 + $0x131] sm:$0xff]
      %v770 = vld [vmem:[#allocation2 + $0x149] sm:$0xff]
      %v771 = vld [vmem:[#allocation2 + $0x151] sm:$0xff]
      %v772 = vld [vmem:[#allocation2 + $0x169] sm:$0xff]
      %v773 = vld [vmem:[#allocation2 + $0x171] sm:$0xff]
      %v774 = vld [vmem:[#allocation2 + $0x189] sm:$0xff]
      %v775 = vld [vmem:[#allocation2 + $0x191] sm:$0xff]
      %v776 = vld [vmem:[#allocation2 + $0x1a9] sm:$0xff]
      %v777 = vld [vmem:[#allocation2 + $0x1b1] sm:$0xff]
      %v778 = vld [vmem:[#allocation2 + $0x1c9] sm:$0xff]
      %v779 = vld [vmem:[#allocation2 + $0x1d1] sm:$0xff]
      %v780 = vld [vmem:[#allocation2 + $0x1e9] sm:$0xff]
      %v781 = vld [vmem:[#allocation2 + $0x1f1] sm:$0xff]
      %814 = vrot.lane.b32.xlu0 %v750, 32
      %v815 = vpop.permute.xlu0 %814
      %816 = vrot.lane.b32.xlu0 %v751, 32
      %v817 = vpop.permute.xlu0 %816
      %818 = vrot.lane.b32.xlu0 %v752, 32
      %v819 = vpop.permute.xlu0 %818
      %820 = vrot.lane.b32.xlu0 %v753, 32
      %v821 = vpop.permute.xlu0 %820
      %822 = vrot.lane.b32.xlu0 %v754, 32
      %v823 = vpop.permute.xlu0 %822
      %824 = vrot.lane.b32.xlu0 %v755, 32
      %v825 = vpop.permute.xlu0 %824
      %826 = vrot.lane.b32.xlu0 %v756, 32
      %v827 = vpop.permute.xlu0 %826
      %828 = vrot.lane.b32.xlu0 %v757, 32
      %v829 = vpop.permute.xlu0 %828
      %830 = vrot.lane.b32.xlu0 %v758, 32
      %v831 = vpop.permute.xlu0 %830
      %832 = vrot.lane.b32.xlu0 %v759, 32
      %v833 = vpop.permute.xlu0 %832
      %834 = vrot.lane.b32.xlu0 %v760, 32
      %v835 = vpop.permute.xlu0 %834
      %836 = vrot.lane.b32.xlu0 %v761, 32
      %v837 = vpop.permute.xlu0 %836
      %838 = vrot.lane.b32.xlu0 %v762, 32
      %v839 = vpop.permute.xlu0 %838
      %840 = vrot.lane.b32.xlu0 %v763, 32
      %v841 = vpop.permute.xlu0 %840
      %842 = vrot.lane.b32.xlu0 %v764, 32
      %v843 = vpop.permute.xlu0 %842
      %844 = vrot.lane.b32.xlu0 %v765, 32
      %v845 = vpop.permute.xlu0 %844
      %846 = vrot.lane.b32.xlu0 %v766, 32
      %v847 = vpop.permute.xlu0 %846
      %848 = vrot.lane.b32.xlu0 %v767, 32
      %v849 = vpop.permute.xlu0 %848
      %850 = vrot.lane.b32.xlu0 %v768, 32
      %v851 = vpop.permute.xlu0 %850
      %852 = vrot.lane.b32.xlu0 %v769, 32
      %v853 = vpop.permute.xlu0 %852
      %854 = vrot.lane.b32.xlu0 %v770, 32
      %v855 = vpop.permute.xlu0 %854
      %856 = vrot.lane.b32.xlu0 %v771, 32
      %v857 = vpop.permute.xlu0 %856
      %858 = vrot.lane.b32.xlu0 %v772, 32
      %v859 = vpop.permute.xlu0 %858
      %860 = vrot.lane.b32.xlu0 %v773, 32
      %v861 = vpop.permute.xlu0 %860
      %862 = vrot.lane.b32.xlu0 %v774, 32
      %v863 = vpop.permute.xlu0 %862
      %864 = vrot.lane.b32.xlu0 %v775, 32
      %v865 = vpop.permute.xlu0 %864
      %866 = vrot.lane.b32.xlu0 %v776, 32
      %v867 = vpop.permute.xlu0 %866
      %868 = vrot.lane.b32.xlu0 %v777, 32
      %v869 = vpop.permute.xlu0 %868
      %870 = vrot.lane.b32.xlu0 %v778, 32
      %v871 = vpop.permute.xlu0 %870
      %872 = vrot.lane.b32.xlu0 %v779, 32
      %v873 = vpop.permute.xlu0 %872
      %874 = vrot.lane.b32.xlu0 %v780, 32
      %v875 = vpop.permute.xlu0 %874
      %876 = vrot.lane.b32.xlu0 %v781, 32
      %v877 = vpop.permute.xlu0 %876
      %vm910 = vcmask 392448
      %911 = vst.msk [vmem:[#allocation3] sm:$0xff] %vm910, %v815
      %912 = vst.msk [vmem:[#allocation3 + $0x10] sm:$0xff] %vm910, %v817
      %913 = vst.msk [vmem:[#allocation3 + $0x20] sm:$0xff] %vm910, %v819
      %914 = vst.msk [vmem:[#allocation3 + $0x30] sm:$0xff] %vm910, %v821
      %915 = vst.msk [vmem:[#allocation3 + $0x40] sm:$0xff] %vm910, %v823
      %916 = vst.msk [vmem:[#allocation3 + $0x50] sm:$0xff] %vm910, %v825
      %917 = vst.msk [vmem:[#allocation3 + $0x60] sm:$0xff] %vm910, %v827
      %918 = vst.msk [vmem:[#allocation3 + $0x70] sm:$0xff] %vm910, %v829
      %919 = vst.msk [vmem:[#allocation3 + $0x80] sm:$0xff] %vm910, %v831
      %920 = vst.msk [vmem:[#allocation3 + $0x90] sm:$0xff] %vm910, %v833
      %921 = vst.msk [vmem:[#allocation3 + $0xa0] sm:$0xff] %vm910, %v835
      %922 = vst.msk [vmem:[#allocation3 + $0xb0] sm:$0xff] %vm910, %v837
      %923 = vst.msk [vmem:[#allocation3 + $0xc0] sm:$0xff] %vm910, %v839
      %924 = vst.msk [vmem:[#allocation3 + $0xd0] sm:$0xff] %vm910, %v841
      %925 = vst.msk [vmem:[#allocation3 + $0xe0] sm:$0xff] %vm910, %v843
      %926 = vst.msk [vmem:[#allocation3 + $0xf0] sm:$0xff] %vm910, %v845
      %927 = vst.msk [vmem:[#allocation3 + $0x100] sm:$0xff] %vm910, %v847
      %928 = vst.msk [vmem:[#allocation3 + $0x110] sm:$0xff] %vm910, %v849
      %929 = vst.msk [vmem:[#allocation3 + $0x120] sm:$0xff] %vm910, %v851
      %930 = vst.msk [vmem:[#allocation3 + $0x130] sm:$0xff] %vm910, %v853
      %931 = vst.msk [vmem:[#allocation3 + $0x140] sm:$0xff] %vm910, %v855
      %932 = vst.msk [vmem:[#allocation3 + $0x150] sm:$0xff] %vm910, %v857
      %933 = vst.msk [vmem:[#allocation3 + $0x160] sm:$0xff] %vm910, %v859
      %934 = vst.msk [vmem:[#allocation3 + $0x170] sm:$0xff] %vm910, %v861
      %935 = vst.msk [vmem:[#allocation3 + $0x180] sm:$0xff] %vm910, %v863
      %936 = vst.msk [vmem:[#allocation3 + $0x190] sm:$0xff] %vm910, %v865
      %937 = vst.msk [vmem:[#allocation3 + $0x1a0] sm:$0xff] %vm910, %v867
      %938 = vst.msk [vmem:[#allocation3 + $0x1b0] sm:$0xff] %vm910, %v869
      %939 = vst.msk [vmem:[#allocation3 + $0x1c0] sm:$0xff] %vm910, %v871
      %940 = vst.msk [vmem:[#allocation3 + $0x1d0] sm:$0xff] %vm910, %v873
      %941 = vst.msk [vmem:[#allocation3 + $0x1e0] sm:$0xff] %vm910, %v875
      %942 = vst.msk [vmem:[#allocation3 + $0x1f0] sm:$0xff] %vm910, %v877
      %v943 = vld [vmem:[%s460 + $0x7] sm:$0xff]
      %v944 = vld [vmem:[%s460 + $0xf] sm:$0xff]
      %v945 = vld [vmem:[%s460 + $0x27] sm:$0xff]
      %v946 = vld [vmem:[%s460 + $0x2f] sm:$0xff]
      %v947 = vld [vmem:[%s460 + $0x47] sm:$0xff]
      %v948 = vld [vmem:[%s460 + $0x4f] sm:$0xff]
      %v949 = vld [vmem:[%s460 + $0x67] sm:$0xff]
      %v950 = vld [vmem:[%s460 + $0x6f] sm:$0xff]
      %v951 = vld [vmem:[%s460 + $0x87] sm:$0xff]
      %v952 = vld [vmem:[%s460 + $0x8f] sm:$0xff]
      %v953 = vld [vmem:[%s460 + $0xa7] sm:$0xff]
      %v954 = vld [vmem:[%s460 + $0xaf] sm:$0xff]
      %v955 = vld [vmem:[%s460 + $0xc7] sm:$0xff]
      %v956 = vld [vmem:[%s460 + $0xcf] sm:$0xff]
      %v957 = vld [vmem:[%s460 + $0xe7] sm:$0xff]
      %v958 = vld [vmem:[%s460 + $0xef] sm:$0xff]
      %v959 = vld [vmem:[%s460 + $0x107] sm:$0xff]
      %v960 = vld [vmem:[%s460 + $0x10f] sm:$0xff]
      %v961 = vld [vmem:[%s460 + $0x127] sm:$0xff]
      %v962 = vld [vmem:[%s460 + $0x12f] sm:$0xff]
      %v963 = vld [vmem:[%s460 + $0x147] sm:$0xff]
      %v964 = vld [vmem:[%s460 + $0x14f] sm:$0xff]
      %v965 = vld [vmem:[%s460 + $0x167] sm:$0xff]
      %v966 = vld [vmem:[%s460 + $0x16f] sm:$0xff]
      %v967 = vld [vmem:[%s460 + $0x187] sm:$0xff]
      %v968 = vld [vmem:[%s460 + $0x18f] sm:$0xff]
      %v969 = vld [vmem:[%s460 + $0x1a7] sm:$0xff]
      %v970 = vld [vmem:[%s460 + $0x1af] sm:$0xff]
      %v971 = vld [vmem:[%s460 + $0x1c7] sm:$0xff]
      %v972 = vld [vmem:[%s460 + $0x1cf] sm:$0xff]
      %v973 = vld [vmem:[%s460 + $0x1e7] sm:$0xff]
      %v974 = vld [vmem:[%s460 + $0x1ef] sm:$0xff]
      %1007 = vrot.lane.b32.xlu0 %v943, 48
      %v1008 = vpop.permute.xlu0 %1007
      %1009 = vrot.lane.b32.xlu0 %v944, 48
      %v1010 = vpop.permute.xlu0 %1009
      %1011 = vrot.lane.b32.xlu0 %v945, 48
      %v1012 = vpop.permute.xlu0 %1011
      %1013 = vrot.lane.b32.xlu0 %v946, 48
      %v1014 = vpop.permute.xlu0 %1013
      %1015 = vrot.lane.b32.xlu0 %v947, 48
      %v1016 = vpop.permute.xlu0 %1015
      %1017 = vrot.lane.b32.xlu0 %v948, 48
      %v1018 = vpop.permute.xlu0 %1017
      %1019 = vrot.lane.b32.xlu0 %v949, 48
      %v1020 = vpop.permute.xlu0 %1019
      %1021 = vrot.lane.b32.xlu0 %v950, 48
      %v1022 = vpop.permute.xlu0 %1021
      %1023 = vrot.lane.b32.xlu0 %v951, 48
      %v1024 = vpop.permute.xlu0 %1023
      %1025 = vrot.lane.b32.xlu0 %v952, 48
      %v1026 = vpop.permute.xlu0 %1025
      %1027 = vrot.lane.b32.xlu0 %v953, 48
      %v1028 = vpop.permute.xlu0 %1027
      %1029 = vrot.lane.b32.xlu0 %v954, 48
      %v1030 = vpop.permute.xlu0 %1029
      %1031 = vrot.lane.b32.xlu0 %v955, 48
      %v1032 = vpop.permute.xlu0 %1031
      %1033 = vrot.lane.b32.xlu0 %v956, 48
      %v1034 = vpop.permute.xlu0 %1033
      %1035 = vrot.lane.b32.xlu0 %v957, 48
      %v1036 = vpop.permute.xlu0 %1035
      %1037 = vrot.lane.b32.xlu0 %v958, 48
      %v1038 = vpop.permute.xlu0 %1037
      %1039 = vrot.lane.b32.xlu0 %v959, 48
      %v1040 = vpop.permute.xlu0 %1039
      %1041 = vrot.lane.b32.xlu0 %v960, 48
      %v1042 = vpop.permute.xlu0 %1041
      %1043 = vrot.lane.b32.xlu0 %v961, 48
      %v1044 = vpop.permute.xlu0 %1043
      %1045 = vrot.lane.b32.xlu0 %v962, 48
      %v1046 = vpop.permute.xlu0 %1045
      %1047 = vrot.lane.b32.xlu0 %v963, 48
      %v1048 = vpop.permute.xlu0 %1047
      %1049 = vrot.lane.b32.xlu0 %v964, 48
      %v1050 = vpop.permute.xlu0 %1049
      %1051 = vrot.lane.b32.xlu0 %v965, 48
      %v1052 = vpop.permute.xlu0 %1051
      %1053 = vrot.lane.b32.xlu0 %v966, 48
      %v1054 = vpop.permute.xlu0 %1053
      %1055 = vrot.lane.b32.xlu0 %v967, 48
      %v1056 = vpop.permute.xlu0 %1055
      %1057 = vrot.lane.b32.xlu0 %v968, 48
      %v1058 = vpop.permute.xlu0 %1057
      %1059 = vrot.lane.b32.xlu0 %v969, 48
      %v1060 = vpop.permute.xlu0 %1059
      %1061 = vrot.lane.b32.xlu0 %v970, 48
      %v1062 = vpop.permute.xlu0 %1061
      %1063 = vrot.lane.b32.xlu0 %v971, 48
      %v1064 = vpop.permute.xlu0 %1063
      %1065 = vrot.lane.b32.xlu0 %v972, 48
      %v1066 = vpop.permute.xlu0 %1065
      %1067 = vrot.lane.b32.xlu0 %v973, 48
      %v1068 = vpop.permute.xlu0 %1067
      %1069 = vrot.lane.b32.xlu0 %v974, 48
      %v1070 = vpop.permute.xlu0 %1069
      %vm1103 = vcmask 523648
      %1104 = vst.msk [vmem:[#allocation3] sm:$0xff] %vm1103, %v1008
      %1105 = vst.msk [vmem:[#allocation3 + $0x10] sm:$0xff] %vm1103, %v1010
      %1106 = vst.msk [vmem:[#allocation3 + $0x20] sm:$0xff] %vm1103, %v1012
      %1107 = vst.msk [vmem:[#allocation3 + $0x30] sm:$0xff] %vm1103, %v1014
      %1108 = vst.msk [vmem:[#allocation3 + $0x40] sm:$0xff] %vm1103, %v1016
      %1109 = vst.msk [vmem:[#allocation3 + $0x50] sm:$0xff] %vm1103, %v1018
      %1110 = vst.msk [vmem:[#allocation3 + $0x60] sm:$0xff] %vm1103, %v1020
      %1111 = vst.msk [vmem:[#allocation3 + $0x70] sm:$0xff] %vm1103, %v1022
      %1112 = vst.msk [vmem:[#allocation3 + $0x80] sm:$0xff] %vm1103, %v1024
      %1113 = vst.msk [vmem:[#allocation3 + $0x90] sm:$0xff] %vm1103, %v1026
      %1114 = vst.msk [vmem:[#allocation3 + $0xa0] sm:$0xff] %vm1103, %v1028
      %1115 = vst.msk [vmem:[#allocation3 + $0xb0] sm:$0xff] %vm1103, %v1030
      %1116 = vst.msk [vmem:[#allocation3 + $0xc0] sm:$0xff] %vm1103, %v1032
      %1117 = vst.msk [vmem:[#allocation3 + $0xd0] sm:$0xff] %vm1103, %v1034
      %1118 = vst.msk [vmem:[#allocation3 + $0xe0] sm:$0xff] %vm1103, %v1036
      %1119 = vst.msk [vmem:[#allocation3 + $0xf0] sm:$0xff] %vm1103, %v1038
      %1120 = vst.msk [vmem:[#allocation3 + $0x100] sm:$0xff] %vm1103, %v1040
      %1121 = vst.msk [vmem:[#allocation3 + $0x110] sm:$0xff] %vm1103, %v1042
      %1122 = vst.msk [vmem:[#allocation3 + $0x120] sm:$0xff] %vm1103, %v1044
      %1123 = vst.msk [vmem:[#allocation3 + $0x130] sm:$0xff] %vm1103, %v1046
      %1124 = vst.msk [vmem:[#allocation3 + $0x140] sm:$0xff] %vm1103, %v1048
      %1125 = vst.msk [vmem:[#allocation3 + $0x150] sm:$0xff] %vm1103, %v1050
      %1126 = vst.msk [vmem:[#allocation3 + $0x160] sm:$0xff] %vm1103, %v1052
      %1127 = vst.msk [vmem:[#allocation3 + $0x170] sm:$0xff] %vm1103, %v1054
      %1128 = vst.msk [vmem:[#allocation3 + $0x180] sm:$0xff] %vm1103, %v1056
      %1129 = vst.msk [vmem:[#allocation3 + $0x190] sm:$0xff] %vm1103, %v1058
      %1130 = vst.msk [vmem:[#allocation3 + $0x1a0] sm:$0xff] %vm1103, %v1060
      %1131 = vst.msk [vmem:[#allocation3 + $0x1b0] sm:$0xff] %vm1103, %v1062
      %1132 = vst.msk [vmem:[#allocation3 + $0x1c0] sm:$0xff] %vm1103, %v1064
      %1133 = vst.msk [vmem:[#allocation3 + $0x1d0] sm:$0xff] %vm1103, %v1066
      %1134 = vst.msk [vmem:[#allocation3 + $0x1e0] sm:$0xff] %vm1103, %v1068
      %1135 = vst.msk [vmem:[#allocation3 + $0x1f0] sm:$0xff] %vm1103, %v1070
      %v1136 = vld [vmem:[%s460 + $0x8] sm:$0xff]
      %v1137 = vld [vmem:[%s460 + $0x10] sm:$0xff]
      %v1138 = vld [vmem:[%s460 + $0x28] sm:$0xff]
      %v1139 = vld [vmem:[%s460 + $0x30] sm:$0xff]
      %v1140 = vld [vmem:[%s460 + $0x48] sm:$0xff]
      %v1141 = vld [vmem:[%s460 + $0x50] sm:$0xff]
      %v1142 = vld [vmem:[%s460 + $0x68] sm:$0xff]
      %v1143 = vld [vmem:[%s460 + $0x70] sm:$0xff]
      %v1144 = vld [vmem:[%s460 + $0x88] sm:$0xff]
      %v1145 = vld [vmem:[%s460 + $0x90] sm:$0xff]
      %v1146 = vld [vmem:[%s460 + $0xa8] sm:$0xff]
      %v1147 = vld [vmem:[%s460 + $0xb0] sm:$0xff]
      %v1148 = vld [vmem:[%s460 + $0xc8] sm:$0xff]
      %v1149 = vld [vmem:[%s460 + $0xd0] sm:$0xff]
      %v1150 = vld [vmem:[%s460 + $0xe8] sm:$0xff]
      %v1151 = vld [vmem:[%s460 + $0xf0] sm:$0xff]
      %v1152 = vld [vmem:[%s460 + $0x108] sm:$0xff]
      %v1153 = vld [vmem:[%s460 + $0x110] sm:$0xff]
      %v1154 = vld [vmem:[%s460 + $0x128] sm:$0xff]
      %v1155 = vld [vmem:[%s460 + $0x130] sm:$0xff]
      %v1156 = vld [vmem:[%s460 + $0x148] sm:$0xff]
      %v1157 = vld [vmem:[%s460 + $0x150] sm:$0xff]
      %v1158 = vld [vmem:[%s460 + $0x168] sm:$0xff]
      %v1159 = vld [vmem:[%s460 + $0x170] sm:$0xff]
      %v1160 = vld [vmem:[%s460 + $0x188] sm:$0xff]
      %v1161 = vld [vmem:[%s460 + $0x190] sm:$0xff]
      %v1162 = vld [vmem:[%s460 + $0x1a8] sm:$0xff]
      %v1163 = vld [vmem:[%s460 + $0x1b0] sm:$0xff]
      %v1164 = vld [vmem:[%s460 + $0x1c8] sm:$0xff]
      %v1165 = vld [vmem:[%s460 + $0x1d0] sm:$0xff]
      %v1166 = vld [vmem:[%s460 + $0x1e8] sm:$0xff]
      %v1167 = vld [vmem:[%s460 + $0x1f0] sm:$0xff]
      %1200 = vrot.lane.b32.xlu0 %v1136, 64
      %v1201 = vpop.permute.xlu0 %1200
      %1202 = vrot.lane.b32.xlu0 %v1137, 64
      %v1203 = vpop.permute.xlu0 %1202
      %1204 = vrot.lane.b32.xlu0 %v1138, 64
      %v1205 = vpop.permute.xlu0 %1204
      %1206 = vrot.lane.b32.xlu0 %v1139, 64
      %v1207 = vpop.permute.xlu0 %1206
      %1208 = vrot.lane.b32.xlu0 %v1140, 64
      %v1209 = vpop.permute.xlu0 %1208
      %1210 = vrot.lane.b32.xlu0 %v1141, 64
      %v1211 = vpop.permute.xlu0 %1210
      %1212 = vrot.lane.b32.xlu0 %v1142, 64
      %v1213 = vpop.permute.xlu0 %1212
      %1214 = vrot.lane.b32.xlu0 %v1143, 64
      %v1215 = vpop.permute.xlu0 %1214
      %1216 = vrot.lane.b32.xlu0 %v1144, 64
      %v1217 = vpop.permute.xlu0 %1216
      %1218 = vrot.lane.b32.xlu0 %v1145, 64
      %v1219 = vpop.permute.xlu0 %1218
      %1220 = vrot.lane.b32.xlu0 %v1146, 64
      %v1221 = vpop.permute.xlu0 %1220
      %1222 = vrot.lane.b32.xlu0 %v1147, 64
      %v1223 = vpop.permute.xlu0 %1222
      %1224 = vrot.lane.b32.xlu0 %v1148, 64
      %v1225 = vpop.permute.xlu0 %1224
      %1226 = vrot.lane.b32.xlu0 %v1149, 64
      %v1227 = vpop.permute.xlu0 %1226
      %1228 = vrot.lane.b32.xlu0 %v1150, 64
      %v1229 = vpop.permute.xlu0 %1228
      %1230 = vrot.lane.b32.xlu0 %v1151, 64
      %v1231 = vpop.permute.xlu0 %1230
      %1232 = vrot.lane.b32.xlu0 %v1152, 64
      %v1233 = vpop.permute.xlu0 %1232
      %1234 = vrot.lane.b32.xlu0 %v1153, 64
      %v1235 = vpop.permute.xlu0 %1234
      %1236 = vrot.lane.b32.xlu0 %v1154, 64
      %v1237 = vpop.permute.xlu0 %1236
      %1238 = vrot.lane.b32.xlu0 %v1155, 64
      %v1239 = vpop.permute.xlu0 %1238
      %1240 = vrot.lane.b32.xlu0 %v1156, 64
      %v1241 = vpop.permute.xlu0 %1240
      %1242 = vrot.lane.b32.xlu0 %v1157, 64
      %v1243 = vpop.permute.xlu0 %1242
      %1244 = vrot.lane.b32.xlu0 %v1158, 64
      %v1245 = vpop.permute.xlu0 %1244
      %1246 = vrot.lane.b32.xlu0 %v1159, 64
      %v1247 = vpop.permute.xlu0 %1246
      %1248 = vrot.lane.b32.xlu0 %v1160, 64
      %v1249 = vpop.permute.xlu0 %1248
      %1250 = vrot.lane.b32.xlu0 %v1161, 64
      %v1251 = vpop.permute.xlu0 %1250
      %1252 = vrot.lane.b32.xlu0 %v1162, 64
      %v1253 = vpop.permute.xlu0 %1252
      %1254 = vrot.lane.b32.xlu0 %v1163, 64
      %v1255 = vpop.permute.xlu0 %1254
      %1256 = vrot.lane.b32.xlu0 %v1164, 64
      %v1257 = vpop.permute.xlu0 %1256
      %1258 = vrot.lane.b32.xlu0 %v1165, 64
      %v1259 = vpop.permute.xlu0 %1258
      %1260 = vrot.lane.b32.xlu0 %v1166, 64
      %v1261 = vpop.permute.xlu0 %1260
      %1262 = vrot.lane.b32.xlu0 %v1167, 64
      %v1263 = vpop.permute.xlu0 %1262
      %vm1296 = vcmask 654848
      %1297 = vst.msk [vmem:[#allocation3] sm:$0xff] %vm1296, %v1201
      %1298 = vst.msk [vmem:[#allocation3 + $0x10] sm:$0xff] %vm1296, %v1203
      %1299 = vst.msk [vmem:[#allocation3 + $0x20] sm:$0xff] %vm1296, %v1205
      %1300 = vst.msk [vmem:[#allocation3 + $0x30] sm:$0xff] %vm1296, %v1207
      %1301 = vst.msk [vmem:[#allocation3 + $0x40] sm:$0xff] %vm1296, %v1209
      %1302 = vst.msk [vmem:[#allocation3 + $0x50] sm:$0xff] %vm1296, %v1211
      %1303 = vst.msk [vmem:[#allocation3 + $0x60] sm:$0xff] %vm1296, %v1213
      %1304 = vst.msk [vmem:[#allocation3 + $0x70] sm:$0xff] %vm1296, %v1215
      %1305 = vst.msk [vmem:[#allocation3 + $0x80] sm:$0xff] %vm1296, %v1217
      %1306 = vst.msk [vmem:[#allocation3 + $0x90] sm:$0xff] %vm1296, %v1219
      %1307 = vst.msk [vmem:[#allocation3 + $0xa0] sm:$0xff] %vm1296, %v1221
      %1308 = vst.msk [vmem:[#allocation3 + $0xb0] sm:$0xff] %vm1296, %v1223
      %1309 = vst.msk [vmem:[#allocation3 + $0xc0] sm:$0xff] %vm1296, %v1225
      %1310 = vst.msk [vmem:[#allocation3 + $0xd0] sm:$0xff] %vm1296, %v1227
      %1311 = vst.msk [vmem:[#allocation3 + $0xe0] sm:$0xff] %vm1296, %v1229
      %1312 = vst.msk [vmem:[#allocation3 + $0xf0] sm:$0xff] %vm1296, %v1231
      %1313 = vst.msk [vmem:[#allocation3 + $0x100] sm:$0xff] %vm1296, %v1233
      %1314 = vst.msk [vmem:[#allocation3 + $0x110] sm:$0xff] %vm1296, %v1235
      %1315 = vst.msk [vmem:[#allocation3 + $0x120] sm:$0xff] %vm1296, %v1237
      %1316 = vst.msk [vmem:[#allocation3 + $0x130] sm:$0xff] %vm1296, %v1239
      %1317 = vst.msk [vmem:[#allocation3 + $0x140] sm:$0xff] %vm1296, %v1241
      %1318 = vst.msk [vmem:[#allocation3 + $0x150] sm:$0xff] %vm1296, %v1243
      %1319 = vst.msk [vmem:[#allocation3 + $0x160] sm:$0xff] %vm1296, %v1245
      %1320 = vst.msk [vmem:[#allocation3 + $0x170] sm:$0xff] %vm1296, %v1247
      %1321 = vst.msk [vmem:[#allocation3 + $0x180] sm:$0xff] %vm1296, %v1249
      %1322 = vst.msk [vmem:[#allocation3 + $0x190] sm:$0xff] %vm1296, %v1251
      %1323 = vst.msk [vmem:[#allocation3 + $0x1a0] sm:$0xff] %vm1296, %v1253
      %1324 = vst.msk [vmem:[#allocation3 + $0x1b0] sm:$0xff] %vm1296, %v1255
      %1325 = vst.msk [vmem:[#allocation3 + $0x1c0] sm:$0xff] %vm1296, %v1257
      %1326 = vst.msk [vmem:[#allocation3 + $0x1d0] sm:$0xff] %vm1296, %v1259
      %1327 = vst.msk [vmem:[#allocation3 + $0x1e0] sm:$0xff] %vm1296, %v1261
      %1328 = vst.msk [vmem:[#allocation3 + $0x1f0] sm:$0xff] %vm1296, %v1263
      %v1329 = vld [vmem:[%s460 + $0x9] sm:$0xff]
      %v1330 = vld [vmem:[%s460 + $0x11] sm:$0xff]
      %v1331 = vld [vmem:[%s460 + $0x29] sm:$0xff]
      %v1332 = vld [vmem:[%s460 + $0x31] sm:$0xff]
      %v1333 = vld [vmem:[%s460 + $0x49] sm:$0xff]
      %v1334 = vld [vmem:[%s460 + $0x51] sm:$0xff]
      %v1335 = vld [vmem:[%s460 + $0x69] sm:$0xff]
      %v1336 = vld [vmem:[%s460 + $0x71] sm:$0xff]
      %v1337 = vld [vmem:[%s460 + $0x89] sm:$0xff]
      %v1338 = vld [vmem:[%s460 + $0x91] sm:$0xff]
      %v1339 = vld [vmem:[%s460 + $0xa9] sm:$0xff]
      %v1340 = vld [vmem:[%s460 + $0xb1] sm:$0xff]
      %v1341 = vld [vmem:[%s460 + $0xc9] sm:$0xff]
      %v1342 = vld [vmem:[%s460 + $0xd1] sm:$0xff]
      %v1343 = vld [vmem:[%s460 + $0xe9] sm:$0xff]
      %v1344 = vld [vmem:[%s460 + $0xf1] sm:$0xff]
      %v1345 = vld [vmem:[%s460 + $0x109] sm:$0xff]
      %v1346 = vld [vmem:[%s460 + $0x111] sm:$0xff]
      %v1347 = vld [vmem:[%s460 + $0x129] sm:$0xff]
      %v1348 = vld [vmem:[%s460 + $0x131] sm:$0xff]
      %v1349 = vld [vmem:[%s460 + $0x149] sm:$0xff]
      %v1350 = vld [vmem:[%s460 + $0x151] sm:$0xff]
      %v1351 = vld [vmem:[%s460 + $0x169] sm:$0xff]
      %v1352 = vld [vmem:[%s460 + $0x171] sm:$0xff]
      %v1353 = vld [vmem:[%s460 + $0x189] sm:$0xff]
      %v1354 = vld [vmem:[%s460 + $0x191] sm:$0xff]
      %v1355 = vld [vmem:[%s460 + $0x1a9] sm:$0xff]
      %v1356 = vld [vmem:[%s460 + $0x1b1] sm:$0xff]
      %v1357 = vld [vmem:[%s460 + $0x1c9] sm:$0xff]
      %v1358 = vld [vmem:[%s460 + $0x1d1] sm:$0xff]
      %v1359 = vld [vmem:[%s460 + $0x1e9] sm:$0xff]
      %v1360 = vld [vmem:[%s460 + $0x1f1] sm:$0xff]
      %1393 = vrot.lane.b32.xlu0 %v1329, 80
      %v1394 = vpop.permute.xlu0 %1393
      %1395 = vrot.lane.b32.xlu0 %v1330, 80
      %v1396 = vpop.permute.xlu0 %1395
      %1397 = vrot.lane.b32.xlu0 %v1331, 80
      %v1398 = vpop.permute.xlu0 %1397
      %1399 = vrot.lane.b32.xlu0 %v1332, 80
      %v1400 = vpop.permute.xlu0 %1399
      %1401 = vrot.lane.b32.xlu0 %v1333, 80
      %v1402 = vpop.permute.xlu0 %1401
      %1403 = vrot.lane.b32.xlu0 %v1334, 80
      %v1404 = vpop.permute.xlu0 %1403
      %1405 = vrot.lane.b32.xlu0 %v1335, 80
      %v1406 = vpop.permute.xlu0 %1405
      %1407 = vrot.lane.b32.xlu0 %v1336, 80
      %v1408 = vpop.permute.xlu0 %1407
      %1409 = vrot.lane.b32.xlu0 %v1337, 80
      %v1410 = vpop.permute.xlu0 %1409
      %1411 = vrot.lane.b32.xlu0 %v1338, 80
      %v1412 = vpop.permute.xlu0 %1411
      %1413 = vrot.lane.b32.xlu0 %v1339, 80
      %v1414 = vpop.permute.xlu0 %1413
      %1415 = vrot.lane.b32.xlu0 %v1340, 80
      %v1416 = vpop.permute.xlu0 %1415
      %1417 = vrot.lane.b32.xlu0 %v1341, 80
      %v1418 = vpop.permute.xlu0 %1417
      %1419 = vrot.lane.b32.xlu0 %v1342, 80
      %v1420 = vpop.permute.xlu0 %1419
      %1421 = vrot.lane.b32.xlu0 %v1343, 80
      %v1422 = vpop.permute.xlu0 %1421
      %1423 = vrot.lane.b32.xlu0 %v1344, 80
      %v1424 = vpop.permute.xlu0 %1423
      %1425 = vrot.lane.b32.xlu0 %v1345, 80
      %v1426 = vpop.permute.xlu0 %1425
      %1427 = vrot.lane.b32.xlu0 %v1346, 80
      %v1428 = vpop.permute.xlu0 %1427
      %1429 = vrot.lane.b32.xlu0 %v1347, 80
      %v1430 = vpop.permute.xlu0 %1429
      %1431 = vrot.lane.b32.xlu0 %v1348, 80
      %v1432 = vpop.permute.xlu0 %1431
      %1433 = vrot.lane.b32.xlu0 %v1349, 80
      %v1434 = vpop.permute.xlu0 %1433
      %1435 = vrot.lane.b32.xlu0 %v1350, 80
      %v1436 = vpop.permute.xlu0 %1435
      %1437 = vrot.lane.b32.xlu0 %v1351, 80
      %v1438 = vpop.permute.xlu0 %1437
      %1439 = vrot.lane.b32.xlu0 %v1352, 80
      %v1440 = vpop.permute.xlu0 %1439
      %1441 = vrot.lane.b32.xlu0 %v1353, 80
      %v1442 = vpop.permute.xlu0 %1441
      %1443 = vrot.lane.b32.xlu0 %v1354, 80
      %v1444 = vpop.permute.xlu0 %1443
      %1445 = vrot.lane.b32.xlu0 %v1355, 80
      %v1446 = vpop.permute.xlu0 %1445
      %1447 = vrot.lane.b32.xlu0 %v1356, 80
      %v1448 = vpop.permute.xlu0 %1447
      %1449 = vrot.lane.b32.xlu0 %v1357, 80
      %v1450 = vpop.permute.xlu0 %1449
      %1451 = vrot.lane.b32.xlu0 %v1358, 80
      %v1452 = vpop.permute.xlu0 %1451
      %1453 = vrot.lane.b32.xlu0 %v1359, 80
      %v1454 = vpop.permute.xlu0 %1453
      %1455 = vrot.lane.b32.xlu0 %v1360, 80
      %v1456 = vpop.permute.xlu0 %1455
      %vm1489 = vcmask 786048
      %1490 = vst.msk [vmem:[#allocation3] sm:$0xff] %vm1489, %v1394
      %1491 = vst.msk [vmem:[#allocation3 + $0x10] sm:$0xff] %vm1489, %v1396
      %1492 = vst.msk [vmem:[#allocation3 + $0x20] sm:$0xff] %vm1489, %v1398
      %1493 = vst.msk [vmem:[#allocation3 + $0x30] sm:$0xff] %vm1489, %v1400
      %1494 = vst.msk [vmem:[#allocation3 + $0x40] sm:$0xff] %vm1489, %v1402
      %1495 = vst.msk [vmem:[#allocation3 + $0x50] sm:$0xff] %vm1489, %v1404
      %1496 = vst.msk [vmem:[#allocation3 + $0x60] sm:$0xff] %vm1489, %v1406
      %1497 = vst.msk [vmem:[#allocation3 + $0x70] sm:$0xff] %vm1489, %v1408
      %1498 = vst.msk [vmem:[#allocation3 + $0x80] sm:$0xff] %vm1489, %v1410
      %1499 = vst.msk [vmem:[#allocation3 + $0x90] sm:$0xff] %vm1489, %v1412
      %1500 = vst.msk [vmem:[#allocation3 + $0xa0] sm:$0xff] %vm1489, %v1414
      %1501 = vst.msk [vmem:[#allocation3 + $0xb0] sm:$0xff] %vm1489, %v1416
      %1502 = vst.msk [vmem:[#allocation3 + $0xc0] sm:$0xff] %vm1489, %v1418
      %1503 = vst.msk [vmem:[#allocation3 + $0xd0] sm:$0xff] %vm1489, %v1420
      %1504 = vst.msk [vmem:[#allocation3 + $0xe0] sm:$0xff] %vm1489, %v1422
      %1505 = vst.msk [vmem:[#allocation3 + $0xf0] sm:$0xff] %vm1489, %v1424
      %1506 = vst.msk [vmem:[#allocation3 + $0x100] sm:$0xff] %vm1489, %v1426
      %1507 = vst.msk [vmem:[#allocation3 + $0x110] sm:$0xff] %vm1489, %v1428
      %1508 = vst.msk [vmem:[#allocation3 + $0x120] sm:$0xff] %vm1489, %v1430
      %1509 = vst.msk [vmem:[#allocation3 + $0x130] sm:$0xff] %vm1489, %v1432
      %1510 = vst.msk [vmem:[#allocation3 + $0x140] sm:$0xff] %vm1489, %v1434
      %1511 = vst.msk [vmem:[#allocation3 + $0x150] sm:$0xff] %vm1489, %v1436
      %1512 = vst.msk [vmem:[#allocation3 + $0x160] sm:$0xff] %vm1489, %v1438
      %1513 = vst.msk [vmem:[#allocation3 + $0x170] sm:$0xff] %vm1489, %v1440
      %1514 = vst.msk [vmem:[#allocation3 + $0x180] sm:$0xff] %vm1489, %v1442
      %1515 = vst.msk [vmem:[#allocation3 + $0x190] sm:$0xff] %vm1489, %v1444
      %1516 = vst.msk [vmem:[#allocation3 + $0x1a0] sm:$0xff] %vm1489, %v1446
      %1517 = vst.msk [vmem:[#allocation3 + $0x1b0] sm:$0xff] %vm1489, %v1448
      %1518 = vst.msk [vmem:[#allocation3 + $0x1c0] sm:$0xff] %vm1489, %v1450
      %1519 = vst.msk [vmem:[#allocation3 + $0x1d0] sm:$0xff] %vm1489, %v1452
      %1520 = vst.msk [vmem:[#allocation3 + $0x1e0] sm:$0xff] %vm1489, %v1454
      %1521 = vst.msk [vmem:[#allocation3 + $0x1f0] sm:$0xff] %vm1489, %v1456
      %s1522 = scalar_lea.vmem [#allocation2], 64
      %v1523 = vld [vmem:[%s1522 + $0x7] sm:$0xff]
      %v1524 = vld [vmem:[%s1522 + $0xf] sm:$0xff]
      %v1525 = vld [vmem:[%s1522 + $0x27] sm:$0xff]
      %v1526 = vld [vmem:[%s1522 + $0x2f] sm:$0xff]
      %v1527 = vld [vmem:[%s1522 + $0x47] sm:$0xff]
      %v1528 = vld [vmem:[%s1522 + $0x4f] sm:$0xff]
      %v1529 = vld [vmem:[%s1522 + $0x67] sm:$0xff]
      %v1530 = vld [vmem:[%s1522 + $0x6f] sm:$0xff]
      %v1531 = vld [vmem:[%s1522 + $0x87] sm:$0xff]
      %v1532 = vld [vmem:[%s1522 + $0x8f] sm:$0xff]
      %v1533 = vld [vmem:[%s1522 + $0xa7] sm:$0xff]
      %v1534 = vld [vmem:[%s1522 + $0xaf] sm:$0xff]
      %v1535 = vld [vmem:[%s1522 + $0xc7] sm:$0xff]
      %v1536 = vld [vmem:[%s1522 + $0xcf] sm:$0xff]
      %v1537 = vld [vmem:[%s1522 + $0xe7] sm:$0xff]
      %v1538 = vld [vmem:[%s1522 + $0xef] sm:$0xff]
      %v1539 = vld [vmem:[%s1522 + $0x107] sm:$0xff]
      %v1540 = vld [vmem:[%s1522 + $0x10f] sm:$0xff]
      %v1541 = vld [vmem:[%s1522 + $0x127] sm:$0xff]
      %v1542 = vld [vmem:[%s1522 + $0x12f] sm:$0xff]
      %v1543 = vld [vmem:[%s1522 + $0x147] sm:$0xff]
      %v1544 = vld [vmem:[%s1522 + $0x14f] sm:$0xff]
      %v1545 = vld [vmem:[%s1522 + $0x167] sm:$0xff]
      %v1546 = vld [vmem:[%s1522 + $0x16f] sm:$0xff]
      %v1547 = vld [vmem:[%s1522 + $0x187] sm:$0xff]
      %v1548 = vld [vmem:[%s1522 + $0x18f] sm:$0xff]
      %v1549 = vld [vmem:[%s1522 + $0x1a7] sm:$0xff]
      %v1550 = vld [vmem:[%s1522 + $0x1af] sm:$0xff]
      %v1551 = vld [vmem:[%s1522 + $0x1c7] sm:$0xff]
      %v1552 = vld [vmem:[%s1522 + $0x1cf] sm:$0xff]
      %v1553 = vld [vmem:[%s1522 + $0x1e7] sm:$0xff]
      %v1554 = vld [vmem:[%s1522 + $0x1ef] sm:$0xff]
      %1587 = vrot.lane.b32.xlu0 %v1523, 96
      %v1588 = vpop.permute.xlu0 %1587
      %1589 = vrot.lane.b32.xlu0 %v1524, 96
      %v1590 = vpop.permute.xlu0 %1589
      %1591 = vrot.lane.b32.xlu0 %v1525, 96
      %v1592 = vpop.permute.xlu0 %1591
      %1593 = vrot.lane.b32.xlu0 %v1526, 96
      %v1594 = vpop.permute.xlu0 %1593
      %1595 = vrot.lane.b32.xlu0 %v1527, 96
      %v1596 = vpop.permute.xlu0 %1595
      %1597 = vrot.lane.b32.xlu0 %v1528, 96
      %v1598 = vpop.permute.xlu0 %1597
      %1599 = vrot.lane.b32.xlu0 %v1529, 96
      %v1600 = vpop.permute.xlu0 %1599
      %1601 = vrot.lane.b32.xlu0 %v1530, 96
      %v1602 = vpop.permute.xlu0 %1601
      %1603 = vrot.lane.b32.xlu0 %v1531, 96
      %v1604 = vpop.permute.xlu0 %1603
      %1605 = vrot.lane.b32.xlu0 %v1532, 96
      %v1606 = vpop.permute.xlu0 %1605
      %1607 = vrot.lane.b32.xlu0 %v1533, 96
      %v1608 = vpop.permute.xlu0 %1607
      %1609 = vrot.lane.b32.xlu0 %v1534, 96
      %v1610 = vpop.permute.xlu0 %1609
      %1611 = vrot.lane.b32.xlu0 %v1535, 96
      %v1612 = vpop.permute.xlu0 %1611
      %1613 = vrot.lane.b32.xlu0 %v1536, 96
      %v1614 = vpop.permute.xlu0 %1613
      %1615 = vrot.lane.b32.xlu0 %v1537, 96
      %v1616 = vpop.permute.xlu0 %1615
      %1617 = vrot.lane.b32.xlu0 %v1538, 96
      %v1618 = vpop.permute.xlu0 %1617
      %1619 = vrot.lane.b32.xlu0 %v1539, 96
      %v1620 = vpop.permute.xlu0 %1619
      %1621 = vrot.lane.b32.xlu0 %v1540, 96
      %v1622 = vpop.permute.xlu0 %1621
      %1623 = vrot.lane.b32.xlu0 %v1541, 96
      %v1624 = vpop.permute.xlu0 %1623
      %1625 = vrot.lane.b32.xlu0 %v1542, 96
      %v1626 = vpop.permute.xlu0 %1625
      %1627 = vrot.lane.b32.xlu0 %v1543, 96
      %v1628 = vpop.permute.xlu0 %1627
      %1629 = vrot.lane.b32.xlu0 %v1544, 96
      %v1630 = vpop.permute.xlu0 %1629
      %1631 = vrot.lane.b32.xlu0 %v1545, 96
      %v1632 = vpop.permute.xlu0 %1631
      %1633 = vrot.lane.b32.xlu0 %v1546, 96
      %v1634 = vpop.permute.xlu0 %1633
      %1635 = vrot.lane.b32.xlu0 %v1547, 96
      %v1636 = vpop.permute.xlu0 %1635
      %1637 = vrot.lane.b32.xlu0 %v1548, 96
      %v1638 = vpop.permute.xlu0 %1637
      %1639 = vrot.lane.b32.xlu0 %v1549, 96
      %v1640 = vpop.permute.xlu0 %1639
      %1641 = vrot.lane.b32.xlu0 %v1550, 96
      %v1642 = vpop.permute.xlu0 %1641
      %1643 = vrot.lane.b32.xlu0 %v1551, 96
      %v1644 = vpop.permute.xlu0 %1643
      %1645 = vrot.lane.b32.xlu0 %v1552, 96
      %v1646 = vpop.permute.xlu0 %1645
      %1647 = vrot.lane.b32.xlu0 %v1553, 96
      %v1648 = vpop.permute.xlu0 %1647
      %1649 = vrot.lane.b32.xlu0 %v1554, 96
      %v1650 = vpop.permute.xlu0 %1649
      %vm1683 = vcmask 917248
      %1684 = vst.msk [vmem:[#allocation3] sm:$0xff] %vm1683, %v1588
      %1685 = vst.msk [vmem:[#allocation3 + $0x10] sm:$0xff] %vm1683, %v1590
      %1686 = vst.msk [vmem:[#allocation3 + $0x20] sm:$0xff] %vm1683, %v1592
      %1687 = vst.msk [vmem:[#allocation3 + $0x30] sm:$0xff] %vm1683, %v1594
      %1688 = vst.msk [vmem:[#allocation3 + $0x40] sm:$0xff] %vm1683, %v1596
      %1689 = vst.msk [vmem:[#allocation3 + $0x50] sm:$0xff] %vm1683, %v1598
      %1690 = vst.msk [vmem:[#allocation3 + $0x60] sm:$0xff] %vm1683, %v1600
      %1691 = vst.msk [vmem:[#allocation3 + $0x70] sm:$0xff] %vm1683, %v1602
      %1692 = vst.msk [vmem:[#allocation3 + $0x80] sm:$0xff] %vm1683, %v1604
      %1693 = vst.msk [vmem:[#allocation3 + $0x90] sm:$0xff] %vm1683, %v1606
      %1694 = vst.msk [vmem:[#allocation3 + $0xa0] sm:$0xff] %vm1683, %v1608
      %1695 = vst.msk [vmem:[#allocation3 + $0xb0] sm:$0xff] %vm1683, %v1610
      %1696 = vst.msk [vmem:[#allocation3 + $0xc0] sm:$0xff] %vm1683, %v1612
      %1697 = vst.msk [vmem:[#allocation3 + $0xd0] sm:$0xff] %vm1683, %v1614
      %1698 = vst.msk [vmem:[#allocation3 + $0xe0] sm:$0xff] %vm1683, %v1616
      %1699 = vst.msk [vmem:[#allocation3 + $0xf0] sm:$0xff] %vm1683, %v1618
      %1700 = vst.msk [vmem:[#allocation3 + $0x100] sm:$0xff] %vm1683, %v1620
      %1701 = vst.msk [vmem:[#allocation3 + $0x110] sm:$0xff] %vm1683, %v1622
      %1702 = vst.msk [vmem:[#allocation3 + $0x120] sm:$0xff] %vm1683, %v1624
      %1703 = vst.msk [vmem:[#allocation3 + $0x130] sm:$0xff] %vm1683, %v1626
      %1704 = vst.msk [vmem:[#allocation3 + $0x140] sm:$0xff] %vm1683, %v1628
      %1705 = vst.msk [vmem:[#allocation3 + $0x150] sm:$0xff] %vm1683, %v1630
      %1706 = vst.msk [vmem:[#allocation3 + $0x160] sm:$0xff] %vm1683, %v1632
      %1707 = vst.msk [vmem:[#allocation3 + $0x170] sm:$0xff] %vm1683, %v1634
      %1708 = vst.msk [vmem:[#allocation3 + $0x180] sm:$0xff] %vm1683, %v1636
      %1709 = vst.msk [vmem:[#allocation3 + $0x190] sm:$0xff] %vm1683, %v1638
      %1710 = vst.msk [vmem:[#allocation3 + $0x1a0] sm:$0xff] %vm1683, %v1640
      %1711 = vst.msk [vmem:[#allocation3 + $0x1b0] sm:$0xff] %vm1683, %v1642
      %1712 = vst.msk [vmem:[#allocation3 + $0x1c0] sm:$0xff] %vm1683, %v1644
      %1713 = vst.msk [vmem:[#allocation3 + $0x1d0] sm:$0xff] %vm1683, %v1646
      %1714 = vst.msk [vmem:[#allocation3 + $0x1e0] sm:$0xff] %vm1683, %v1648
      %1715 = vst.msk [vmem:[#allocation3 + $0x1f0] sm:$0xff] %vm1683, %v1650
      %v1716 = vld [vmem:[%s1522 + $0x8] sm:$0xff]
      %v1717 = vld [vmem:[%s1522 + $0x10] sm:$0xff]
      %v1718 = vld [vmem:[%s1522 + $0x28] sm:$0xff]
      %v1719 = vld [vmem:[%s1522 + $0x30] sm:$0xff]
      %v1720 = vld [vmem:[%s1522 + $0x48] sm:$0xff]
      %v1721 = vld [vmem:[%s1522 + $0x50] sm:$0xff]
      %v1722 = vld [vmem:[%s1522 + $0x68] sm:$0xff]
      %v1723 = vld [vmem:[%s1522 + $0x70] sm:$0xff]
      %v1724 = vld [vmem:[%s1522 + $0x88] sm:$0xff]
      %v1725 = vld [vmem:[%s1522 + $0x90] sm:$0xff]
      %v1726 = vld [vmem:[%s1522 + $0xa8] sm:$0xff]
      %v1727 = vld [vmem:[%s1522 + $0xb0] sm:$0xff]
      %v1728 = vld [vmem:[%s1522 + $0xc8] sm:$0xff]
      %v1729 = vld [vmem:[%s1522 + $0xd0] sm:$0xff]
      %v1730 = vld [vmem:[%s1522 + $0xe8] sm:$0xff]
      %v1731 = vld [vmem:[%s1522 + $0xf0] sm:$0xff]
      %v1732 = vld [vmem:[%s1522 + $0x108] sm:$0xff]
      %v1733 = vld [vmem:[%s1522 + $0x110] sm:$0xff]
      %v1734 = vld [vmem:[%s1522 + $0x128] sm:$0xff]
      %v1735 = vld [vmem:[%s1522 + $0x130] sm:$0xff]
      %v1736 = vld [vmem:[%s1522 + $0x148] sm:$0xff]
      %v1737 = vld [vmem:[%s1522 + $0x150] sm:$0xff]
      %v1738 = vld [vmem:[%s1522 + $0x168] sm:$0xff]
      %v1739 = vld [vmem:[%s1522 + $0x170] sm:$0xff]
      %v1740 = vld [vmem:[%s1522 + $0x188] sm:$0xff]
      %v1741 = vld [vmem:[%s1522 + $0x190] sm:$0xff]
      %v1742 = vld [vmem:[%s1522 + $0x1a8] sm:$0xff]
      %v1743 = vld [vmem:[%s1522 + $0x1b0] sm:$0xff]
      %v1744 = vld [vmem:[%s1522 + $0x1c8] sm:$0xff]
      %v1745 = vld [vmem:[%s1522 + $0x1d0] sm:$0xff]
      %v1746 = vld [vmem:[%s1522 + $0x1e8] sm:$0xff]
      %v1747 = vld [vmem:[%s1522 + $0x1f0] sm:$0xff]
      %1780 = vrot.lane.b32.xlu0 %v1716, 112
      %v1781 = vpop.permute.xlu0 %1780
      %1782 = vrot.lane.b32.xlu0 %v1717, 112
      %v1783 = vpop.permute.xlu0 %1782
      %1784 = vrot.lane.b32.xlu0 %v1718, 112
      %v1785 = vpop.permute.xlu0 %1784
      %1786 = vrot.lane.b32.xlu0 %v1719, 112
      %v1787 = vpop.permute.xlu0 %1786
      %1788 = vrot.lane.b32.xlu0 %v1720, 112
      %v1789 = vpop.permute.xlu0 %1788
      %1790 = vrot.lane.b32.xlu0 %v1721, 112
      %v1791 = vpop.permute.xlu0 %1790
      %1792 = vrot.lane.b32.xlu0 %v1722, 112
      %v1793 = vpop.permute.xlu0 %1792
      %1794 = vrot.lane.b32.xlu0 %v1723, 112
      %v1795 = vpop.permute.xlu0 %1794
      %1796 = vrot.lane.b32.xlu0 %v1724, 112
      %v1797 = vpop.permute.xlu0 %1796
      %1798 = vrot.lane.b32.xlu0 %v1725, 112
      %v1799 = vpop.permute.xlu0 %1798
      %1800 = vrot.lane.b32.xlu0 %v1726, 112
      %v1801 = vpop.permute.xlu0 %1800
      %1802 = vrot.lane.b32.xlu0 %v1727, 112
      %v1803 = vpop.permute.xlu0 %1802
      %1804 = vrot.lane.b32.xlu0 %v1728, 112
      %v1805 = vpop.permute.xlu0 %1804
      %1806 = vrot.lane.b32.xlu0 %v1729, 112
      %v1807 = vpop.permute.xlu0 %1806
      %1808 = vrot.lane.b32.xlu0 %v1730, 112
      %v1809 = vpop.permute.xlu0 %1808
      %1810 = vrot.lane.b32.xlu0 %v1731, 112
      %v1811 = vpop.permute.xlu0 %1810
      %1812 = vrot.lane.b32.xlu0 %v1732, 112
      %v1813 = vpop.permute.xlu0 %1812
      %1814 = vrot.lane.b32.xlu0 %v1733, 112
      %v1815 = vpop.permute.xlu0 %1814
      %1816 = vrot.lane.b32.xlu0 %v1734, 112
      %v1817 = vpop.permute.xlu0 %1816
      %1818 = vrot.lane.b32.xlu0 %v1735, 112
      %v1819 = vpop.permute.xlu0 %1818
      %1820 = vrot.lane.b32.xlu0 %v1736, 112
      %v1821 = vpop.permute.xlu0 %1820
      %1822 = vrot.lane.b32.xlu0 %v1737, 112
      %v1823 = vpop.permute.xlu0 %1822
      %1824 = vrot.lane.b32.xlu0 %v1738, 112
      %v1825 = vpop.permute.xlu0 %1824
      %1826 = vrot.lane.b32.xlu0 %v1739, 112
      %v1827 = vpop.permute.xlu0 %1826
      %1828 = vrot.lane.b32.xlu0 %v1740, 112
      %v1829 = vpop.permute.xlu0 %1828
      %1830 = vrot.lane.b32.xlu0 %v1741, 112
      %v1831 = vpop.permute.xlu0 %1830
      %1832 = vrot.lane.b32.xlu0 %v1742, 112
      %v1833 = vpop.permute.xlu0 %1832
      %1834 = vrot.lane.b32.xlu0 %v1743, 112
      %v1835 = vpop.permute.xlu0 %1834
      %1836 = vrot.lane.b32.xlu0 %v1744, 112
      %v1837 = vpop.permute.xlu0 %1836
      %1838 = vrot.lane.b32.xlu0 %v1745, 112
      %v1839 = vpop.permute.xlu0 %1838
      %1840 = vrot.lane.b32.xlu0 %v1746, 112
      %v1841 = vpop.permute.xlu0 %1840
      %1842 = vrot.lane.b32.xlu0 %v1747, 112
      %v1843 = vpop.permute.xlu0 %1842
      %vm1876 = vcmask 1048448
      %1877 = vst.msk [vmem:[#allocation3] sm:$0xff] %vm1876, %v1781
      %1878 = vst.msk [vmem:[#allocation3 + $0x10] sm:$0xff] %vm1876, %v1783
      %1879 = vst.msk [vmem:[#allocation3 + $0x20] sm:$0xff] %vm1876, %v1785
      %1880 = vst.msk [vmem:[#allocation3 + $0x30] sm:$0xff] %vm1876, %v1787
      %1881 = vst.msk [vmem:[#allocation3 + $0x40] sm:$0xff] %vm1876, %v1789
      %1882 = vst.msk [vmem:[#allocation3 + $0x50] sm:$0xff] %vm1876, %v1791
      %1883 = vst.msk [vmem:[#allocation3 + $0x60] sm:$0xff] %vm1876, %v1793
      %1884 = vst.msk [vmem:[#allocation3 + $0x70] sm:$0xff] %vm1876, %v1795
      %1885 = vst.msk [vmem:[#allocation3 + $0x80] sm:$0xff] %vm1876, %v1797
      %1886 = vst.msk [vmem:[#allocation3 + $0x90] sm:$0xff] %vm1876, %v1799
      %1887 = vst.msk [vmem:[#allocation3 + $0xa0] sm:$0xff] %vm1876, %v1801
      %1888 = vst.msk [vmem:[#allocation3 + $0xb0] sm:$0xff] %vm1876, %v1803
      %1889 = vst.msk [vmem:[#allocation3 + $0xc0] sm:$0xff] %vm1876, %v1805
      %1890 = vst.msk [vmem:[#allocation3 + $0xd0] sm:$0xff] %vm1876, %v1807
      %1891 = vst.msk [vmem:[#allocation3 + $0xe0] sm:$0xff] %vm1876, %v1809
      %1892 = vst.msk [vmem:[#allocation3 + $0xf0] sm:$0xff] %vm1876, %v1811
      %1893 = vst.msk [vmem:[#allocation3 + $0x100] sm:$0xff] %vm1876, %v1813
      %1894 = vst.msk [vmem:[#allocation3 + $0x110] sm:$0xff] %vm1876, %v1815
      %1895 = vst.msk [vmem:[#allocation3 + $0x120] sm:$0xff] %vm1876, %v1817
      %1896 = vst.msk [vmem:[#allocation3 + $0x130] sm:$0xff] %vm1876, %v1819
      %1897 = vst.msk [vmem:[#allocation3 + $0x140] sm:$0xff] %vm1876, %v1821
      %1898 = vst.msk [vmem:[#allocation3 + $0x150] sm:$0xff] %vm1876, %v1823
      %1899 = vst.msk [vmem:[#allocation3 + $0x160] sm:$0xff] %vm1876, %v1825
      %1900 = vst.msk [vmem:[#allocation3 + $0x170] sm:$0xff] %vm1876, %v1827
      %1901 = vst.msk [vmem:[#allocation3 + $0x180] sm:$0xff] %vm1876, %v1829
      %1902 = vst.msk [vmem:[#allocation3 + $0x190] sm:$0xff] %vm1876, %v1831
      %1903 = vst.msk [vmem:[#allocation3 + $0x1a0] sm:$0xff] %vm1876, %v1833
      %1904 = vst.msk [vmem:[#allocation3 + $0x1b0] sm:$0xff] %vm1876, %v1835
      %1905 = vst.msk [vmem:[#allocation3 + $0x1c0] sm:$0xff] %vm1876, %v1837
      %1906 = vst.msk [vmem:[#allocation3 + $0x1d0] sm:$0xff] %vm1876, %v1839
      %1907 = vst.msk [vmem:[#allocation3 + $0x1e0] sm:$0xff] %vm1876, %v1841
      %1908 = vst.msk [vmem:[#allocation3 + $0x1f0] sm:$0xff] %vm1876, %v1843
      %v1909 = vld [vmem:[%s1522 + $0x9] sm:$0xff]
      %v1910 = vld [vmem:[%s1522 + $0x11] sm:$0xff]
      %v1911 = vld [vmem:[%s1522 + $0x29] sm:$0xff]
      %v1912 = vld [vmem:[%s1522 + $0x31] sm:$0xff]
      %v1913 = vld [vmem:[%s1522 + $0x49] sm:$0xff]
      %v1914 = vld [vmem:[%s1522 + $0x51] sm:$0xff]
      %v1915 = vld [vmem:[%s1522 + $0x69] sm:$0xff]
      %v1916 = vld [vmem:[%s1522 + $0x71] sm:$0xff]
      %v1917 = vld [vmem:[%s1522 + $0x89] sm:$0xff]
      %v1918 = vld [vmem:[%s1522 + $0x91] sm:$0xff]
      %v1919 = vld [vmem:[%s1522 + $0xa9] sm:$0xff]
      %v1920 = vld [vmem:[%s1522 + $0xb1] sm:$0xff]
      %v1921 = vld [vmem:[%s1522 + $0xc9] sm:$0xff]
      %v1922 = vld [vmem:[%s1522 + $0xd1] sm:$0xff]
      %v1923 = vld [vmem:[%s1522 + $0xe9] sm:$0xff]
      %v1924 = vld [vmem:[%s1522 + $0xf1] sm:$0xff]
      %v1925 = vld [vmem:[%s1522 + $0x109] sm:$0xff]
      %v1926 = vld [vmem:[%s1522 + $0x111] sm:$0xff]
      %v1927 = vld [vmem:[%s1522 + $0x129] sm:$0xff]
      %v1928 = vld [vmem:[%s1522 + $0x131] sm:$0xff]
      %v1929 = vld [vmem:[%s1522 + $0x149] sm:$0xff]
      %v1930 = vld [vmem:[%s1522 + $0x151] sm:$0xff]
      %v1931 = vld [vmem:[%s1522 + $0x169] sm:$0xff]
      %v1932 = vld [vmem:[%s1522 + $0x171] sm:$0xff]
      %v1933 = vld [vmem:[%s1522 + $0x189] sm:$0xff]
      %v1934 = vld [vmem:[%s1522 + $0x191] sm:$0xff]
      %v1935 = vld [vmem:[%s1522 + $0x1a9] sm:$0xff]
      %v1936 = vld [vmem:[%s1522 + $0x1b1] sm:$0xff]
      %v1937 = vld [vmem:[%s1522 + $0x1c9] sm:$0xff]
      %v1938 = vld [vmem:[%s1522 + $0x1d1] sm:$0xff]
      %v1939 = vld [vmem:[%s1522 + $0x1e9] sm:$0xff]
      %v1940 = vld [vmem:[%s1522 + $0x1f1] sm:$0xff]
      %1941 = vst.msk [vmem:[#allocation3 + $0x8] sm:$0xff] %vm323, %v1909
      %1942 = vst.msk [vmem:[#allocation3 + $0x18] sm:$0xff] %vm323, %v1910
      %1943 = vst.msk [vmem:[#allocation3 + $0x28] sm:$0xff] %vm323, %v1911
      %1944 = vst.msk [vmem:[#allocation3 + $0x38] sm:$0xff] %vm323, %v1912
      %1945 = vst.msk [vmem:[#allocation3 + $0x48] sm:$0xff] %vm323, %v1913
      %1946 = vst.msk [vmem:[#allocation3 + $0x58] sm:$0xff] %vm323, %v1914
      %1947 = vst.msk [vmem:[#allocation3 + $0x68] sm:$0xff] %vm323, %v1915
      %1948 = vst.msk [vmem:[#allocation3 + $0x78] sm:$0xff] %vm323, %v1916
      %1949 = vst.msk [vmem:[#allocation3 + $0x88] sm:$0xff] %vm323, %v1917
      %1950 = vst.msk [vmem:[#allocation3 + $0x98] sm:$0xff] %vm323, %v1918
      %1951 = vst.msk [vmem:[#allocation3 + $0xa8] sm:$0xff] %vm323, %v1919
      %1952 = vst.msk [vmem:[#allocation3 + $0xb8] sm:$0xff] %vm323, %v1920
      %1953 = vst.msk [vmem:[#allocation3 + $0xc8] sm:$0xff] %vm323, %v1921
      %1954 = vst.msk [vmem:[#allocation3 + $0xd8] sm:$0xff] %vm323, %v1922
      %1955 = vst.msk [vmem:[#allocation3 + $0xe8] sm:$0xff] %vm323, %v1923
      %1956 = vst.msk [vmem:[#allocation3 + $0xf8] sm:$0xff] %vm323, %v1924
      %1957 = vst.msk [vmem:[#allocation3 + $0x108] sm:$0xff] %vm323, %v1925
      %1958 = vst.msk [vmem:[#allocation3 + $0x118] sm:$0xff] %vm323, %v1926
      %1959 = vst.msk [vmem:[#allocation3 + $0x128] sm:$0xff] %vm323, %v1927
      %1960 = vst.msk [vmem:[#allocation3 + $0x138] sm:$0xff] %vm323, %v1928
      %1961 = vst.msk [vmem:[#allocation3 + $0x148] sm:$0xff] %vm323, %v1929
      %1962 = vst.msk [vmem:[#allocation3 + $0x158] sm:$0xff] %vm323, %v1930
      %1963 = vst.msk [vmem:[#allocation3 + $0x168] sm:$0xff] %vm323, %v1931
      %1964 = vst.msk [vmem:[#allocation3 + $0x178] sm:$0xff] %vm323, %v1932
      %1965 = vst.msk [vmem:[#allocation3 + $0x188] sm:$0xff] %vm323, %v1933
      %1966 = vst.msk [vmem:[#allocation3 + $0x198] sm:$0xff] %vm323, %v1934
      %1967 = vst.msk [vmem:[#allocation3 + $0x1a8] sm:$0xff] %vm323, %v1935
      %1968 = vst.msk [vmem:[#allocation3 + $0x1b8] sm:$0xff] %vm323, %v1936
      %1969 = vst.msk [vmem:[#allocation3 + $0x1c8] sm:$0xff] %vm323, %v1937
      %1970 = vst.msk [vmem:[#allocation3 + $0x1d8] sm:$0xff] %vm323, %v1938
      %1971 = vst.msk [vmem:[#allocation3 + $0x1e8] sm:$0xff] %vm323, %v1939
      %1972 = vst.msk [vmem:[#allocation3 + $0x1f8] sm:$0xff] %vm323, %v1940
      %v1973 = vld [vmem:[#allocation3] sm:$0xff]
      %v1974 = vld [vmem:[#allocation3 + $0x8] sm:$0xff]
      %v1975 = vld [vmem:[#allocation3 + $0x10] sm:$0xff]
      %v1976 = vld [vmem:[#allocation3 + $0x18] sm:$0xff]
      %v1977 = vld [vmem:[#allocation3 + $0x20] sm:$0xff]
      %v1978 = vld [vmem:[#allocation3 + $0x28] sm:$0xff]
      %v1979 = vld [vmem:[#allocation3 + $0x30] sm:$0xff]
      %v1980 = vld [vmem:[#allocation3 + $0x38] sm:$0xff]
      %v1981 = vld [vmem:[#allocation3 + $0x40] sm:$0xff]
      %v1982 = vld [vmem:[#allocation3 + $0x48] sm:$0xff]
      %v1983 = vld [vmem:[#allocation3 + $0x50] sm:$0xff]
      %v1984 = vld [vmem:[#allocation3 + $0x58] sm:$0xff]
      %v1985 = vld [vmem:[#allocation3 + $0x60] sm:$0xff]
      %v1986 = vld [vmem:[#allocation3 + $0x68] sm:$0xff]
      %v1987 = vld [vmem:[#allocation3 + $0x70] sm:$0xff]
      %v1988 = vld [vmem:[#allocation3 + $0x78] sm:$0xff]
      %v1989 = vld [vmem:[#allocation3 + $0x80] sm:$0xff]
      %v1990 = vld [vmem:[#allocation3 + $0x88] sm:$0xff]
      %v1991 = vld [vmem:[#allocation3 + $0x90] sm:$0xff]
      %v1992 = vld [vmem:[#allocation3 + $0x98] sm:$0xff]
      %v1993 = vld [vmem:[#allocation3 + $0xa0] sm:$0xff]
      %v1994 = vld [vmem:[#allocation3 + $0xa8] sm:$0xff]
      %v1995 = vld [vmem:[#allocation3 + $0xb0] sm:$0xff]
      %v1996 = vld [vmem:[#allocation3 + $0xb8] sm:$0xff]
      %v1997 = vld [vmem:[#allocation3 + $0xc0] sm:$0xff]
      %v1998 = vld [vmem:[#allocation3 + $0xc8] sm:$0xff]
      %v1999 = vld [vmem:[#allocation3 + $0xd0] sm:$0xff]
      %v2000 = vld [vmem:[#allocation3 + $0xd8] sm:$0xff]
      %v2001 = vld [vmem:[#allocation3 + $0xe0] sm:$0xff]
      %v2002 = vld [vmem:[#allocation3 + $0xe8] sm:$0xff]
      %v2003 = vld [vmem:[#allocation3 + $0xf0] sm:$0xff]
      %v2004 = vld [vmem:[#allocation3 + $0xf8] sm:$0xff]
      %v2005 = vld [vmem:[#allocation3 + $0x100] sm:$0xff]
      %v2006 = vld [vmem:[#allocation3 + $0x108] sm:$0xff]
      %v2007 = vld [vmem:[#allocation3 + $0x110] sm:$0xff]
      %v2008 = vld [vmem:[#allocation3 + $0x118] sm:$0xff]
      %v2009 = vld [vmem:[#allocation3 + $0x120] sm:$0xff]
      %v2010 = vld [vmem:[#allocation3 + $0x128] sm:$0xff]
      %v2011 = vld [vmem:[#allocation3 + $0x130] sm:$0xff]
      %v2012 = vld [vmem:[#allocation3 + $0x138] sm:$0xff]
      %v2013 = vld [vmem:[#allocation3 + $0x140] sm:$0xff]
      %v2014 = vld [vmem:[#allocation3 + $0x148] sm:$0xff]
      %v2015 = vld [vmem:[#allocation3 + $0x150] sm:$0xff]
      %v2016 = vld [vmem:[#allocation3 + $0x158] sm:$0xff]
      %v2017 = vld [vmem:[#allocation3 + $0x160] sm:$0xff]
      %v2018 = vld [vmem:[#allocation3 + $0x168] sm:$0xff]
      %v2019 = vld [vmem:[#allocation3 + $0x170] sm:$0xff]
      %v2020 = vld [vmem:[#allocation3 + $0x178] sm:$0xff]
      %v2021 = vld [vmem:[#allocation3 + $0x180] sm:$0xff]
      %v2022 = vld [vmem:[#allocation3 + $0x188] sm:$0xff]
      %v2023 = vld [vmem:[#allocation3 + $0x190] sm:$0xff]
      %v2024 = vld [vmem:[#allocation3 + $0x198] sm:$0xff]
      %v2025 = vld [vmem:[#allocation3 + $0x1a0] sm:$0xff]
      %v2026 = vld [vmem:[#allocation3 + $0x1a8] sm:$0xff]
      %v2027 = vld [vmem:[#allocation3 + $0x1b0] sm:$0xff]
      %v2028 = vld [vmem:[#allocation3 + $0x1b8] sm:$0xff]
      %v2029 = vld [vmem:[#allocation3 + $0x1c0] sm:$0xff]
      %v2030 = vld [vmem:[#allocation3 + $0x1c8] sm:$0xff]
      %v2031 = vld [vmem:[#allocation3 + $0x1d0] sm:$0xff]
      %v2032 = vld [vmem:[#allocation3 + $0x1d8] sm:$0xff]
      %v2033 = vld [vmem:[#allocation3 + $0x1e0] sm:$0xff]
      %v2034 = vld [vmem:[#allocation3 + $0x1e8] sm:$0xff]
      %v2035 = vld [vmem:[#allocation3 + $0x1f0] sm:$0xff]
      %v2036 = vld [vmem:[#allocation3 + $0x1f8] sm:$0xff]
      %v2037 = vpack.c.bf16 %v1975, %v1973
      %v2038 = vpack.c.bf16 %v1976, %v1974
      %v2039 = vpack.c.bf16 %v1979, %v1977
      %v2040 = vpack.c.bf16 %v1980, %v1978
      %v2041 = vpack.c.bf16 %v1983, %v1981
      %v2042 = vpack.c.bf16 %v1984, %v1982
      %v2043 = vpack.c.bf16 %v1987, %v1985
      %v2044 = vpack.c.bf16 %v1988, %v1986
      %v2045 = vpack.c.bf16 %v1991, %v1989
      %v2046 = vpack.c.bf16 %v1992, %v1990
      %v2047 = vpack.c.bf16 %v1995, %v1993
      %v2048 = vpack.c.bf16 %v1996, %v1994
      %v2049 = vpack.c.bf16 %v1999, %v1997
      %v2050 = vpack.c.bf16 %v2000, %v1998
      %v2051 = vpack.c.bf16 %v2003, %v2001
      %v2052 = vpack.c.bf16 %v2004, %v2002
      %v2053 = vpack.c.bf16 %v2007, %v2005
      %v2054 = vpack.c.bf16 %v2008, %v2006
      %v2055 = vpack.c.bf16 %v2011, %v2009
      %v2056 = vpack.c.bf16 %v2012, %v2010
      %v2057 = vpack.c.bf16 %v2015, %v2013
      %v2058 = vpack.c.bf16 %v2016, %v2014
      %v2059 = vpack.c.bf16 %v2019, %v2017
      %v2060 = vpack.c.bf16 %v2020, %v2018
      %v2061 = vpack.c.bf16 %v2023, %v2021
      %v2062 = vpack.c.bf16 %v2024, %v2022
      %v2063 = vpack.c.bf16 %v2027, %v2025
      %v2064 = vpack.c.bf16 %v2028, %v2026
      %v2065 = vpack.c.bf16 %v2031, %v2029
      %v2066 = vpack.c.bf16 %v2032, %v2030
      %v2067 = vpack.c.bf16 %v2035, %v2033
      %v2068 = vpack.c.bf16 %v2036, %v2034
      %v2069 = vld [vmem:[%s1] sm:$0xf]
      %v2070 = vld [vmem:[%s1 + $0x4] sm:$0xf]
      %v2071 = vld [vmem:[%s1 + $0x8] sm:$0xf]
      %v2072 = vld [vmem:[%s1 + $0xc] sm:$0xf]
      %v2073 = vld [vmem:[%s1 + $0x10] sm:$0xf]
      %v2074 = vld [vmem:[%s1 + $0x14] sm:$0xf]
      %v2075 = vld [vmem:[%s1 + $0x18] sm:$0xf]
      %v2076 = vld [vmem:[%s1 + $0x1c] sm:$0xf]
      %v2077 = vld [vmem:[%s1 + $0x20] sm:$0xf]
      %v2078 = vld [vmem:[%s1 + $0x24] sm:$0xf]
      %v2079 = vld [vmem:[%s1 + $0x28] sm:$0xf]
      %v2080 = vld [vmem:[%s1 + $0x2c] sm:$0xf]
      %v2081 = vld [vmem:[%s1 + $0x30] sm:$0xf]
      %v2082 = vld [vmem:[%s1 + $0x34] sm:$0xf]
      %v2083 = vld [vmem:[%s1 + $0x38] sm:$0xf]
      %v2084 = vld [vmem:[%s1 + $0x3c] sm:$0xf]
      %v2085 = vld [vmem:[%s1 + $0x40] sm:$0xf]
      %v2086 = vld [vmem:[%s1 + $0x44] sm:$0xf]
      %v2105 = vunpack.c.l.b16 %v2069
      %v2106 = vunpack.c.l.b16 %v2070
      %v2107 = vunpack.c.l.b16 %v2071
      %v2108 = vunpack.c.l.b16 %v2072
      %v2109 = vunpack.c.l.b16 %v2073
      %v2110 = vunpack.c.l.b16 %v2074
      %v2111 = vunpack.c.l.b16 %v2075
      %v2112 = vunpack.c.l.b16 %v2076
      %v2113 = vunpack.c.l.b16 %v2077
      %v2114 = vunpack.c.l.b16 %v2078
      %v2115 = vunpack.c.l.b16 %v2079
      %v2116 = vunpack.c.l.b16 %v2080
      %v2117 = vunpack.c.l.b16 %v2081
      %v2118 = vunpack.c.l.b16 %v2082
      %v2119 = vunpack.c.l.b16 %v2083
      %v2120 = vunpack.c.l.b16 %v2084
      %v2121 = vunpack.c.l.b16 %v2085
      %v2122 = vunpack.c.l.b16 %v2086
      %v2123 = vpack.c.b16 %v2106, %v2105
      %v2124 = vpack.c.b16 %v2108, %v2107
      %v2125 = vpack.c.b16 %v2110, %v2109
      %v2126 = vpack.c.b16 %v2112, %v2111
      %v2127 = vpack.c.b16 %v2114, %v2113
      %v2128 = vpack.c.b16 %v2116, %v2115
      %v2129 = vpack.c.b16 %v2118, %v2117
      %v2130 = vpack.c.b16 %v2120, %v2119
      %v2131 = vpack.c.b16 %v2122, %v2121
      %v2142 = vsel %vm323, %v2038, 0
      %v2145 = vsel %vm323, %v2040, 0
      %v2148 = vsel %vm323, %v2042, 0
      %v2151 = vsel %vm323, %v2044, 0
      %v2154 = vsel %vm323, %v2046, 0
      %v2157 = vsel %vm323, %v2048, 0
      %v2160 = vsel %vm323, %v2050, 0
      %v2163 = vsel %vm323, %v2052, 0
      %v2166 = vsel %vm323, %v2054, 0
      %v2169 = vsel %vm323, %v2056, 0
      %v2172 = vsel %vm323, %v2058, 0
      %v2175 = vsel %vm323, %v2060, 0
      %v2178 = vsel %vm323, %v2062, 0
      %v2181 = vsel %vm323, %v2064, 0
      %v2184 = vsel %vm323, %v2066, 0
      %v2187 = vsel %vm323, %v2068, 0
      %2189 = vmatpush.bf16.msra.mxu0 %v2130
      %2190 = vmatpush.bf16.msra.mxu0 %v2129
      %2191 = vmatpush.bf16.msra.mxu0 %v2128
      %2192 = vmatpush.bf16.msra.mxu0 %v2127
      %2193 = vmatpush.bf16.msra.mxu0 %v2126
      %2194 = vmatpush.bf16.msra.mxu0 %v2125
      %2195 = vmatpush.bf16.msra.mxu0 %v2124
      %2196 = vmatpush.bf16.msra.mxu0 %v2123
      %2197 = vmatmul.bf16.gmra.mxu0 %v2037
      %v2198 = vpop.f32.mrf.mxu0
      %v2199 = vadd.f32 0.0, %v2198
      %v2200 = vpop.f32.mrf.mxu0
      %v2201 = vadd.f32 0.0, %v2200
      %2202 = vmatmul.bf16.gmra.mxu0 %v2039
      %v2203 = vpop.f32.mrf.mxu0
      %v2204 = vadd.f32 0.0, %v2203
      %v2205 = vpop.f32.mrf.mxu0
      %v2206 = vadd.f32 0.0, %v2205
      %2207 = vmatmul.bf16.gmra.mxu0 %v2041
      %v2208 = vpop.f32.mrf.mxu0
      %v2209 = vadd.f32 0.0, %v2208
      %v2210 = vpop.f32.mrf.mxu0
      %v2211 = vadd.f32 0.0, %v2210
      %2212 = vmatmul.bf16.gmra.mxu0 %v2043
      %v2213 = vpop.f32.mrf.mxu0
      %v2214 = vadd.f32 0.0, %v2213
      %v2215 = vpop.f32.mrf.mxu0
      %v2216 = vadd.f32 0.0, %v2215
      %2217 = vmatmul.bf16.gmra.mxu0 %v2045
      %v2218 = vpop.f32.mrf.mxu0
      %v2219 = vadd.f32 0.0, %v2218
      %v2220 = vpop.f32.mrf.mxu0
      %v2221 = vadd.f32 0.0, %v2220
      %2222 = vmatmul.bf16.gmra.mxu0 %v2047
      %v2223 = vpop.f32.mrf.mxu0
      %v2224 = vadd.f32 0.0, %v2223
      %v2225 = vpop.f32.mrf.mxu0
      %v2226 = vadd.f32 0.0, %v2225
      %2227 = vmatmul.bf16.gmra.mxu0 %v2049
      %v2228 = vpop.f32.mrf.mxu0
      %v2229 = vadd.f32 0.0, %v2228
      %v2230 = vpop.f32.mrf.mxu0
      %v2231 = vadd.f32 0.0, %v2230
      %2232 = vmatmul.bf16.gmra.mxu0 %v2051
      %v2233 = vpop.f32.mrf.mxu0
      %v2234 = vadd.f32 0.0, %v2233
      %v2235 = vpop.f32.mrf.mxu0
      %v2236 = vadd.f32 0.0, %v2235
      %2237 = vmatmul.bf16.gmra.mxu0 %v2053
      %v2238 = vpop.f32.mrf.mxu0
      %v2239 = vadd.f32 0.0, %v2238
      %v2240 = vpop.f32.mrf.mxu0
      %v2241 = vadd.f32 0.0, %v2240
      %2242 = vmatmul.bf16.gmra.mxu0 %v2055
      %v2243 = vpop.f32.mrf.mxu0
      %v2244 = vadd.f32 0.0, %v2243
      %v2245 = vpop.f32.mrf.mxu0
      %v2246 = vadd.f32 0.0, %v2245
      %2247 = vmatmul.bf16.gmra.mxu0 %v2057
      %v2248 = vpop.f32.mrf.mxu0
      %v2249 = vadd.f32 0.0, %v2248
      %v2250 = vpop.f32.mrf.mxu0
      %v2251 = vadd.f32 0.0, %v2250
      %2252 = vmatmul.bf16.gmra.mxu0 %v2059
      %v2253 = vpop.f32.mrf.mxu0
      %v2254 = vadd.f32 0.0, %v2253
      %v2255 = vpop.f32.mrf.mxu0
      %v2256 = vadd.f32 0.0, %v2255
      %2257 = vmatmul.bf16.gmra.mxu0 %v2061
      %v2258 = vpop.f32.mrf.mxu0
      %v2259 = vadd.f32 0.0, %v2258
      %v2260 = vpop.f32.mrf.mxu0
      %v2261 = vadd.f32 0.0, %v2260
      %2262 = vmatmul.bf16.gmra.mxu0 %v2063
      %v2263 = vpop.f32.mrf.mxu0
      %v2264 = vadd.f32 0.0, %v2263
      %v2265 = vpop.f32.mrf.mxu0
      %v2266 = vadd.f32 0.0, %v2265
      %2267 = vmatmul.bf16.gmra.mxu0 %v2065
      %v2268 = vpop.f32.mrf.mxu0
      %v2269 = vadd.f32 0.0, %v2268
      %v2270 = vpop.f32.mrf.mxu0
      %v2271 = vadd.f32 0.0, %v2270
      %2272 = vmatmul.bf16.gmra.mxu0 %v2067
      %v2273 = vpop.f32.mrf.mxu0
      %v2274 = vadd.f32 0.0, %v2273
      %v2275 = vpop.f32.mrf.mxu0
      %v2276 = vadd.f32 0.0, %v2275
      %2277 = vdwg.mxu0
      %2278 = vmatpush.bf16.msra.mxu0 0
      %2279 = vmatpush.bf16.msra.mxu0 0
      %2280 = vmatpush.bf16.msra.mxu0 0
      %2281 = vmatpush.bf16.msra.mxu0 0
      %2282 = vmatpush.bf16.msra.mxu0 0
      %2283 = vmatpush.bf16.msra.mxu0 0
      %2284 = vmatpush.bf16.msra.mxu0 0
      %2285 = vmatpush.bf16.msra.mxu0 %v2131
      %2286 = vmatmul.bf16.gmra.mxu0 %v2142
      %v2287 = vpop.f32.mrf.mxu0
      %v2288 = vadd.f32 %v2199, %v2287
      %v2289 = vpop.f32.mrf.mxu0
      %v2290 = vadd.f32 %v2201, %v2289
      %2291 = vmatmul.bf16.gmra.mxu0 %v2145
      %v2292 = vpop.f32.mrf.mxu0
      %v2293 = vadd.f32 %v2204, %v2292
      %v2294 = vpop.f32.mrf.mxu0
      %v2295 = vadd.f32 %v2206, %v2294
      %2296 = vmatmul.bf16.gmra.mxu0 %v2148
      %v2297 = vpop.f32.mrf.mxu0
      %v2298 = vadd.f32 %v2209, %v2297
      %v2299 = vpop.f32.mrf.mxu0
      %v2300 = vadd.f32 %v2211, %v2299
      %2301 = vmatmul.bf16.gmra.mxu0 %v2151
      %v2302 = vpop.f32.mrf.mxu0
      %v2303 = vadd.f32 %v2214, %v2302
      %v2304 = vpop.f32.mrf.mxu0
      %v2305 = vadd.f32 %v2216, %v2304
      %2306 = vmatmul.bf16.gmra.mxu0 %v2154
      %v2307 = vpop.f32.mrf.mxu0
      %v2308 = vadd.f32 %v2219, %v2307
      %v2309 = vpop.f32.mrf.mxu0
      %v2310 = vadd.f32 %v2221, %v2309
      %2311 = vmatmul.bf16.gmra.mxu0 %v2157
      %v2312 = vpop.f32.mrf.mxu0
      %v2313 = vadd.f32 %v2224, %v2312
      %v2314 = vpop.f32.mrf.mxu0
      %v2315 = vadd.f32 %v2226, %v2314
      %2316 = vmatmul.bf16.gmra.mxu0 %v2160
      %v2317 = vpop.f32.mrf.mxu0
      %v2318 = vadd.f32 %v2229, %v2317
      %v2319 = vpop.f32.mrf.mxu0
      %v2320 = vadd.f32 %v2231, %v2319
      %2321 = vmatmul.bf16.gmra.mxu0 %v2163
      %v2322 = vpop.f32.mrf.mxu0
      %v2323 = vadd.f32 %v2234, %v2322
      %v2324 = vpop.f32.mrf.mxu0
      %v2325 = vadd.f32 %v2236, %v2324
      %2326 = vmatmul.bf16.gmra.mxu0 %v2166
      %v2327 = vpop.f32.mrf.mxu0
      %v2328 = vadd.f32 %v2239, %v2327
      %v2329 = vpop.f32.mrf.mxu0
      %v2330 = vadd.f32 %v2241, %v2329
      %2331 = vmatmul.bf16.gmra.mxu0 %v2169
      %v2332 = vpop.f32.mrf.mxu0
      %v2333 = vadd.f32 %v2244, %v2332
      %v2334 = vpop.f32.mrf.mxu0
      %v2335 = vadd.f32 %v2246, %v2334
      %2336 = vmatmul.bf16.gmra.mxu0 %v2172
      %v2337 = vpop.f32.mrf.mxu0
      %v2338 = vadd.f32 %v2249, %v2337
      %v2339 = vpop.f32.mrf.mxu0
      %v2340 = vadd.f32 %v2251, %v2339
      %2341 = vmatmul.bf16.gmra.mxu0 %v2175
      %v2342 = vpop.f32.mrf.mxu0
      %v2343 = vadd.f32 %v2254, %v2342
      %v2344 = vpop.f32.mrf.mxu0
      %v2345 = vadd.f32 %v2256, %v2344
      %2346 = vmatmul.bf16.gmra.mxu0 %v2178
      %v2347 = vpop.f32.mrf.mxu0
      %v2348 = vadd.f32 %v2259, %v2347
      %v2349 = vpop.f32.mrf.mxu0
      %v2350 = vadd.f32 %v2261, %v2349
      %2351 = vmatmul.bf16.gmra.mxu0 %v2181
      %v2352 = vpop.f32.mrf.mxu0
      %v2353 = vadd.f32 %v2264, %v2352
      %v2354 = vpop.f32.mrf.mxu0
      %v2355 = vadd.f32 %v2266, %v2354
      %2356 = vmatmul.bf16.gmra.mxu0 %v2184
      %v2357 = vpop.f32.mrf.mxu0
      %v2358 = vadd.f32 %v2269, %v2357
      %v2359 = vpop.f32.mrf.mxu0
      %v2360 = vadd.f32 %v2271, %v2359
      %2361 = vmatmul.bf16.gmra.mxu0 %v2187
      %v2362 = vpop.f32.mrf.mxu0
      %v2363 = vadd.f32 %v2274, %v2362
      %v2364 = vpop.f32.mrf.mxu0
      %v2365 = vadd.f32 %v2276, %v2364
      %2366 = vdwg.mxu0
      %v2367 = vadd.f32 %v2288, %v2290
      %v2368 = vadd.f32 %v2367, %v2293
      %v2369 = vadd.f32 %v2368, %v2295
      %v2370 = vadd.f32 %v2369, %v2298
      %v2371 = vadd.f32 %v2370, %v2300
      %v2372 = vadd.f32 %v2371, %v2303
      %v2373 = vadd.f32 %v2372, %v2305
      %v2374 = vadd.f32 %v2373, %v2308
      %v2375 = vadd.f32 %v2374, %v2310
      %v2376 = vadd.f32 %v2375, %v2313
      %v2377 = vadd.f32 %v2376, %v2315
      %v2378 = vadd.f32 %v2377, %v2318
      %v2379 = vadd.f32 %v2378, %v2320
      %v2380 = vadd.f32 %v2379, %v2323
      %v2381 = vadd.f32 %v2380, %v2325
      %v2382 = vadd.f32 %v2381, %v2328
      %v2383 = vadd.f32 %v2382, %v2330
      %v2384 = vadd.f32 %v2383, %v2333
      %v2385 = vadd.f32 %v2384, %v2335
      %v2386 = vadd.f32 %v2385, %v2338
      %v2387 = vadd.f32 %v2386, %v2340
      %v2388 = vadd.f32 %v2387, %v2343
      %v2389 = vadd.f32 %v2388, %v2345
      %v2390 = vadd.f32 %v2389, %v2348
      %v2391 = vadd.f32 %v2390, %v2350
      %v2392 = vadd.f32 %v2391, %v2353
      %v2393 = vadd.f32 %v2392, %v2355
      %v2394 = vadd.f32 %v2393, %v2358
      %v2395 = vadd.f32 %v2394, %v2360
      %v2396 = vadd.f32 %v2395, %v2363
      %v2397 = vadd.f32 %v2396, %v2365
      %v2398 = vrot.slane %v2397, 4
      %v2399 = vadd.f32 %v2397, %v2398
      %v2400 = vrot.slane %v2399, 2
      %v2401 = vadd.f32 %v2399, %v2400
      %v2402 = vrot.slane %v2401, 1
      %v2403 = vadd.f32 %v2401, %v2402
      %2404 = vst [vmem:[#allocation7] sm:$0x1] %v2403
      %v2405 = vmul.f32 %v2288, %v2288
      %v2406 = vmul.f32 %v2290, %v2290
      %v2407 = vmul.f32 %v2293, %v2293
      %v2408 = vmul.f32 %v2295, %v2295
      %v2409 = vmul.f32 %v2298, %v2298
      %v2410 = vmul.f32 %v2300, %v2300
      %v2411 = vmul.f32 %v2303, %v2303
      %v2412 = vmul.f32 %v2305, %v2305
      %v2413 = vmul.f32 %v2308, %v2308
      %v2414 = vmul.f32 %v2310, %v2310
      %v2415 = vmul.f32 %v2313, %v2313
      %v2416 = vmul.f32 %v2315, %v2315
      %v2417 = vmul.f32 %v2318, %v2318
      %v2418 = vmul.f32 %v2320, %v2320
      %v2419 = vmul.f32 %v2323, %v2323
      %v2420 = vmul.f32 %v2325, %v2325
      %v2421 = vmul.f32 %v2328, %v2328
      %v2422 = vmul.f32 %v2330, %v2330
      %v2423 = vmul.f32 %v2333, %v2333
      %v2424 = vmul.f32 %v2335, %v2335
      %v2425 = vmul.f32 %v2338, %v2338
      %v2426 = vmul.f32 %v2340, %v2340
      %v2427 = vmul.f32 %v2343, %v2343
      %v2428 = vmul.f32 %v2345, %v2345
      %v2429 = vmul.f32 %v2348, %v2348
      %v2430 = vmul.f32 %v2350, %v2350
      %v2431 = vmul.f32 %v2353, %v2353
      %v2432 = vmul.f32 %v2355, %v2355
      %v2433 = vmul.f32 %v2358, %v2358
      %v2434 = vmul.f32 %v2360, %v2360
      %v2435 = vmul.f32 %v2363, %v2363
      %v2436 = vmul.f32 %v2365, %v2365
      %v2437 = vadd.f32 %v2405, %v2406
      %v2438 = vadd.f32 %v2437, %v2407
      %v2439 = vadd.f32 %v2438, %v2408
      %v2440 = vadd.f32 %v2439, %v2409
      %v2441 = vadd.f32 %v2440, %v2410
      %v2442 = vadd.f32 %v2441, %v2411
      %v2443 = vadd.f32 %v2442, %v2412
      %v2444 = vadd.f32 %v2443, %v2413
      %v2445 = vadd.f32 %v2444, %v2414
      %v2446 = vadd.f32 %v2445, %v2415
      %v2447 = vadd.f32 %v2446, %v2416
      %v2448 = vadd.f32 %v2447, %v2417
      %v2449 = vadd.f32 %v2448, %v2418
      %v2450 = vadd.f32 %v2449, %v2419
      %v2451 = vadd.f32 %v2450, %v2420
      %v2452 = vadd.f32 %v2451, %v2421
      %v2453 = vadd.f32 %v2452, %v2422
      %v2454 = vadd.f32 %v2453, %v2423
      %v2455 = vadd.f32 %v2454, %v2424
      %v2456 = vadd.f32 %v2455, %v2425
      %v2457 = vadd.f32 %v2456, %v2426
      %v2458 = vadd.f32 %v2457, %v2427
      %v2459 = vadd.f32 %v2458, %v2428
      %v2460 = vadd.f32 %v2459, %v2429
      %v2461 = vadd.f32 %v2460, %v2430
      %v2462 = vadd.f32 %v2461, %v2431
      %v2463 = vadd.f32 %v2462, %v2432
      %v2464 = vadd.f32 %v2463, %v2433
      %v2465 = vadd.f32 %v2464, %v2434
      %v2466 = vadd.f32 %v2465, %v2435
      %v2467 = vadd.f32 %v2466, %v2436
      %v2468 = vrot.slane %v2467, 4
      %v2469 = vadd.f32 %v2467, %v2468
      %v2470 = vrot.slane %v2469, 2
      %v2471 = vadd.f32 %v2469, %v2470
      %v2472 = vrot.slane %v2471, 1
      %v2473 = vadd.f32 %v2471, %v2472
      %2474 = vst [vmem:[#allocation7 + $0x1] sm:$0x1] %v2473
      %v2475 = vld [vmem:[#allocation7] sm:$0x3]
      %2476 = vmatpush.msra.mxu0 %v322
      %2477 = vmatpush.msra.mxu0 %v321
      %2478 = vmatpush.msra.mxu0 %v320
      %2479 = vmatpush.msra.mxu0 %v319
      %2480 = vmatpush.msra.mxu0 %v318
      %2481 = vmatpush.msra.mxu0 %v317
      %2482 = vmatpush.msra.mxu0 %v316
      %2483 = vmatpush.msra.mxu0 %v315
      %2484 = vmatpush.msra.mxu0 %v314
      %2485 = vmatpush.msra.mxu0 %v313
      %2486 = vmatpush.msra.mxu0 %v312
      %2487 = vmatpush.msra.mxu0 %v311
      %2488 = vmatpush.msra.mxu0 %v310
      %2489 = vmatpush.msra.mxu0 %v309
      %2490 = vmatpush.msra.mxu0 %v308
      %2491 = vmatpush.msra.mxu0 %v307
      %2492 = vmatmul.f32.gmra.mxu0 %v2475
      %v2493 = vpop.f32.mrf.mxu0
      %v2494 = vadd.f32 0.0, %v2493
      %2495 = vdwg.mxu0
      %v2496 = vmul.f32 %v2494, 0.001953125
      %v2497 = vmul.f32 %v2496, %v2496
      %v2499 = vrot.slane %v2497, 7
      %v2501 = vsub.f32 %v2496, %v2499
      %v2502 = vld [vmem:[%s5] sm:$0x1]
      %v2503 = vadd.f32 %v2501, 1e-05
      %v2504 = vrsqrt.pop %v2503
      %v2505 = vmul.f32 %v2504, %v2503
      %v2506 = vmul.f32 %v2505, %v2504
      %v2507 = vmul.f32 0.5, %v2506
      %v2508 = vsub.f32 1.5, %v2507
      %v2509 = vmul.f32 %v2504, %v2508
      %vm2510 = vweird.f32 %v2503
      %vm2511 = vweird.f32 %v2504
      %vm2512 = vmor %vm2510, %vm2511
      %v2513 = vsel %vm2512, %v2504, %v2509
      %v2515 = vrot.slane %v2513, 1
      %v2517 = vmul.f32 %v2502, %v2515
      %v2518 = vld [vmem:[%s5 + $0x1] sm:$0x1]
      %v2519 = vmul.f32 %v2496, %v2517
      %v2520 = vsub.f32 %v2518, %v2519
      %v2521 = vperm.slane %v2517, 0
      %v2522 = vmul.f32 %v2288, %v2521
      %v2523 = vmul.f32 %v2290, %v2521
      %v2524 = vmul.f32 %v2293, %v2521
      %v2525 = vmul.f32 %v2295, %v2521
      %v2526 = vmul.f32 %v2298, %v2521
      %v2527 = vmul.f32 %v2300, %v2521
      %v2528 = vmul.f32 %v2303, %v2521
      %v2529 = vmul.f32 %v2305, %v2521
      %v2530 = vmul.f32 %v2308, %v2521
      %v2531 = vmul.f32 %v2310, %v2521
      %v2532 = vmul.f32 %v2313, %v2521
      %v2533 = vmul.f32 %v2315, %v2521
      %v2534 = vmul.f32 %v2318, %v2521
      %v2535 = vmul.f32 %v2320, %v2521
      %v2536 = vmul.f32 %v2323, %v2521
      %v2537 = vmul.f32 %v2325, %v2521
      %v2538 = vmul.f32 %v2328, %v2521
      %v2539 = vmul.f32 %v2330, %v2521
      %v2540 = vmul.f32 %v2333, %v2521
      %v2541 = vmul.f32 %v2335, %v2521
      %v2542 = vmul.f32 %v2338, %v2521
      %v2543 = vmul.f32 %v2340, %v2521
      %v2544 = vmul.f32 %v2343, %v2521
      %v2545 = vmul.f32 %v2345, %v2521
      %v2546 = vmul.f32 %v2348, %v2521
      %v2547 = vmul.f32 %v2350, %v2521
      %v2548 = vmul.f32 %v2353, %v2521
      %v2549 = vmul.f32 %v2355, %v2521
      %v2550 = vmul.f32 %v2358, %v2521
      %v2551 = vmul.f32 %v2360, %v2521
      %v2552 = vmul.f32 %v2363, %v2521
      %v2553 = vmul.f32 %v2365, %v2521
      %v2554 = vperm.slane %v2520, 0
      %v2555 = vadd.f32 %v2522, %v2554
      %v2556 = vadd.f32 %v2523, %v2554
      %v2557 = vadd.f32 %v2524, %v2554
      %v2558 = vadd.f32 %v2525, %v2554
      %v2559 = vadd.f32 %v2526, %v2554
      %v2560 = vadd.f32 %v2527, %v2554
      %v2561 = vadd.f32 %v2528, %v2554
      %v2562 = vadd.f32 %v2529, %v2554
      %v2563 = vadd.f32 %v2530, %v2554
      %v2564 = vadd.f32 %v2531, %v2554
      %v2565 = vadd.f32 %v2532, %v2554
      %v2566 = vadd.f32 %v2533, %v2554
      %v2567 = vadd.f32 %v2534, %v2554
      %v2568 = vadd.f32 %v2535, %v2554
      %v2569 = vadd.f32 %v2536, %v2554
      %v2570 = vadd.f32 %v2537, %v2554
      %v2571 = vadd.f32 %v2538, %v2554
      %v2572 = vadd.f32 %v2539, %v2554
      %v2573 = vadd.f32 %v2540, %v2554
      %v2574 = vadd.f32 %v2541, %v2554
      %v2575 = vadd.f32 %v2542, %v2554
      %v2576 = vadd.f32 %v2543, %v2554
      %v2577 = vadd.f32 %v2544, %v2554
      %v2578 = vadd.f32 %v2545, %v2554
      %v2579 = vadd.f32 %v2546, %v2554
      %v2580 = vadd.f32 %v2547, %v2554
      %v2581 = vadd.f32 %v2548, %v2554
      %v2582 = vadd.f32 %v2549, %v2554
      %v2583 = vadd.f32 %v2550, %v2554
      %v2584 = vadd.f32 %v2551, %v2554
      %v2585 = vadd.f32 %v2552, %v2554
      %v2586 = vadd.f32 %v2553, %v2554
      %v2587 = vmax.f32 %v2555, 0.0
      %v2588 = vmax.f32 %v2556, 0.0
      %v2589 = vmax.f32 %v2557, 0.0
      %v2590 = vmax.f32 %v2558, 0.0
      %v2591 = vmax.f32 %v2559, 0.0
      %v2592 = vmax.f32 %v2560, 0.0
      %v2593 = vmax.f32 %v2561, 0.0
      %v2594 = vmax.f32 %v2562, 0.0
      %v2595 = vmax.f32 %v2563, 0.0
      %v2596 = vmax.f32 %v2564, 0.0
      %v2597 = vmax.f32 %v2565, 0.0
      %v2598 = vmax.f32 %v2566, 0.0
      %v2599 = vmax.f32 %v2567, 0.0
      %v2600 = vmax.f32 %v2568, 0.0
      %v2601 = vmax.f32 %v2569, 0.0
      %v2602 = vmax.f32 %v2570, 0.0
      %v2603 = vmax.f32 %v2571, 0.0
      %v2604 = vmax.f32 %v2572, 0.0
      %v2605 = vmax.f32 %v2573, 0.0
      %v2606 = vmax.f32 %v2574, 0.0
      %v2607 = vmax.f32 %v2575, 0.0
      %v2608 = vmax.f32 %v2576, 0.0
      %v2609 = vmax.f32 %v2577, 0.0
      %v2610 = vmax.f32 %v2578, 0.0
      %v2611 = vmax.f32 %v2579, 0.0
      %v2612 = vmax.f32 %v2580, 0.0
      %v2613 = vmax.f32 %v2581, 0.0
      %v2614 = vmax.f32 %v2582, 0.0
      %v2615 = vmax.f32 %v2583, 0.0
      %v2616 = vmax.f32 %v2584, 0.0
      %v2617 = vmax.f32 %v2585, 0.0
      %v2618 = vmax.f32 %v2586, 0.0
      %v2619 = vld [vmem:[%s300] sm:$0xf]
      %v2620 = vld [vmem:[%s300 + $0x4] sm:$0xf]
      %v2621 = vld [vmem:[%s300 + $0x8] sm:$0xf]
      %v2622 = vld [vmem:[%s300 + $0xc] sm:$0xf]
      %v2623 = vld [vmem:[%s300 + $0x10] sm:$0xf]
      %v2624 = vld [vmem:[%s300 + $0x14] sm:$0xf]
      %v2625 = vld [vmem:[%s300 + $0x18] sm:$0xf]
      %v2626 = vld [vmem:[%s300 + $0x1c] sm:$0xf]
      %v2627 = vld [vmem:[%s300 + $0x20] sm:$0xf]
      %v2628 = vld [vmem:[%s300 + $0x24] sm:$0xf]
      %v2629 = vld [vmem:[%s300 + $0x28] sm:$0xf]
      %v2630 = vld [vmem:[%s300 + $0x2c] sm:$0xf]
      %v2631 = vld [vmem:[%s300 + $0x30] sm:$0xf]
      %v2632 = vld [vmem:[%s300 + $0x34] sm:$0xf]
      %v2633 = vld [vmem:[%s300 + $0x38] sm:$0xf]
      %v2634 = vld [vmem:[%s300 + $0x3c] sm:$0xf]
      %v2635 = vld [vmem:[%s300 + $0x40] sm:$0xf]
      %v2636 = vld [vmem:[%s300 + $0x44] sm:$0xf]
      %v2637 = vld [vmem:[%s300 + $0x48] sm:$0xf]
      %v2638 = vld [vmem:[%s300 + $0x4c] sm:$0xf]
      %v2639 = vld [vmem:[%s300 + $0x50] sm:$0xf]
      %v2640 = vld [vmem:[%s300 + $0x54] sm:$0xf]
      %v2641 = vld [vmem:[%s300 + $0x58] sm:$0xf]
      %v2642 = vld [vmem:[%s300 + $0x5c] sm:$0xf]
      %v2643 = vld [vmem:[%s300 + $0x60] sm:$0xf]
      %v2644 = vld [vmem:[%s300 + $0x64] sm:$0xf]
      %v2645 = vld [vmem:[%s300 + $0x68] sm:$0xf]
      %v2646 = vld [vmem:[%s300 + $0x6c] sm:$0xf]
      %v2647 = vld [vmem:[%s300 + $0x70] sm:$0xf]
      %v2648 = vld [vmem:[%s300 + $0x74] sm:$0xf]
      %v2649 = vld [vmem:[%s300 + $0x78] sm:$0xf]
      %v2650 = vld [vmem:[%s300 + $0x7c] sm:$0xf]
      %v2651 = vld [vmem:[%s3] sm:$0xf]
      %v2652 = vld [vmem:[%s3 + $0x4] sm:$0xf]
      %v2685 = vunpack.c.l.b16 %v2619
      %v2686 = vunpack.c.l.b16 %v2620
      %v2687 = vunpack.c.l.b16 %v2621
      %v2688 = vunpack.c.l.b16 %v2622
      %v2689 = vunpack.c.l.b16 %v2623
      %v2690 = vunpack.c.l.b16 %v2624
      %v2691 = vunpack.c.l.b16 %v2625
      %v2692 = vunpack.c.l.b16 %v2626
      %v2693 = vunpack.c.l.b16 %v2627
      %v2694 = vunpack.c.l.b16 %v2628
      %v2695 = vunpack.c.l.b16 %v2629
      %v2696 = vunpack.c.l.b16 %v2630
      %v2697 = vunpack.c.l.b16 %v2631
      %v2698 = vunpack.c.l.b16 %v2632
      %v2699 = vunpack.c.l.b16 %v2633
      %v2700 = vunpack.c.l.b16 %v2634
      %v2701 = vunpack.c.l.b16 %v2635
      %v2702 = vunpack.c.l.b16 %v2636
      %v2703 = vunpack.c.l.b16 %v2637
      %v2704 = vunpack.c.l.b16 %v2638
      %v2705 = vunpack.c.l.b16 %v2639
      %v2706 = vunpack.c.l.b16 %v2640
      %v2707 = vunpack.c.l.b16 %v2641
      %v2708 = vunpack.c.l.b16 %v2642
      %v2709 = vunpack.c.l.b16 %v2643
      %v2710 = vunpack.c.l.b16 %v2644
      %v2711 = vunpack.c.l.b16 %v2645
      %v2712 = vunpack.c.l.b16 %v2646
      %v2713 = vunpack.c.l.b16 %v2647
      %v2714 = vunpack.c.l.b16 %v2648
      %v2715 = vunpack.c.l.b16 %v2649
      %v2716 = vunpack.c.l.b16 %v2650
      %v2717 = vpack.c.b16 %v2686, %v2685
      %v2718 = vpack.c.b16 %v2688, %v2687
      %v2719 = vpack.c.b16 %v2690, %v2689
      %v2720 = vpack.c.b16 %v2692, %v2691
      %v2721 = vpack.c.b16 %v2694, %v2693
      %v2722 = vpack.c.b16 %v2696, %v2695
      %v2723 = vpack.c.b16 %v2698, %v2697
      %v2724 = vpack.c.b16 %v2700, %v2699
      %v2725 = vpack.c.b16 %v2702, %v2701
      %v2726 = vpack.c.b16 %v2704, %v2703
      %v2727 = vpack.c.b16 %v2706, %v2705
      %v2728 = vpack.c.b16 %v2708, %v2707
      %v2729 = vpack.c.b16 %v2710, %v2709
      %v2730 = vpack.c.b16 %v2712, %v2711
      %v2731 = vpack.c.b16 %v2714, %v2713
      %v2732 = vpack.c.b16 %v2716, %v2715
      %v2735 = vunpack.c.l.b16 %v2651
      %v2736 = vunpack.c.l.b16 %v2652
      %v2737 = vpack.c.b16 %v2736, %v2735
      %v2740 = vsel %vm323, %v2717, 0
      %v2743 = vsel %vm323, %v2718, 0
      %v2746 = vsel %vm323, %v2719, 0
      %v2749 = vsel %vm323, %v2720, 0
      %v2752 = vsel %vm323, %v2721, 0
      %v2755 = vsel %vm323, %v2722, 0
      %v2758 = vsel %vm323, %v2723, 0
      %v2761 = vsel %vm323, %v2724, 0
      %v2764 = vsel %vm323, %v2725, 0
      %v2767 = vsel %vm323, %v2726, 0
      %v2770 = vsel %vm323, %v2727, 0
      %v2773 = vsel %vm323, %v2728, 0
      %v2776 = vsel %vm323, %v2729, 0
      %v2779 = vsel %vm323, %v2730, 0
      %v2782 = vsel %vm323, %v2731, 0
      %v2785 = vsel %vm323, %v2732, 0
      %2787 = vmatpush.bf16.msra.mxu0 0
      %2788 = vmatpush.bf16.msra.mxu0 0
      %2789 = vmatpush.bf16.msra.mxu0 0
      %2790 = vmatpush.bf16.msra.mxu0 0
      %2791 = vmatpush.bf16.msra.mxu0 0
      %2792 = vmatpush.bf16.msra.mxu0 0
      %2793 = vmatpush.bf16.msra.mxu0 0
      %2794 = vmatpush.bf16.msra.mxu0 %v2737
      %2795 = vmatmul.bf16.gmra.mxu0 %v2740
      %v2796 = vpop.f32.mrf.mxu0
      %v2797 = vadd.f32 0.0, %v2796
      %v2798 = vpop.f32.mrf.mxu0
      %v2799 = vadd.f32 0.0, %v2798
      %2800 = vmatmul.bf16.gmra.mxu0 %v2743
      %v2801 = vpop.f32.mrf.mxu0
      %v2802 = vadd.f32 0.0, %v2801
      %v2803 = vpop.f32.mrf.mxu0
      %v2804 = vadd.f32 0.0, %v2803
      %2805 = vmatmul.bf16.gmra.mxu0 %v2746
      %v2806 = vpop.f32.mrf.mxu0
      %v2807 = vadd.f32 0.0, %v2806
      %v2808 = vpop.f32.mrf.mxu0
      %v2809 = vadd.f32 0.0, %v2808
      %2810 = vmatmul.bf16.gmra.mxu0 %v2749
      %v2811 = vpop.f32.mrf.mxu0
      %v2812 = vadd.f32 0.0, %v2811
      %v2813 = vpop.f32.mrf.mxu0
      %v2814 = vadd.f32 0.0, %v2813
      %2815 = vmatmul.bf16.gmra.mxu0 %v2752
      %v2816 = vpop.f32.mrf.mxu0
      %v2817 = vadd.f32 0.0, %v2816
      %v2818 = vpop.f32.mrf.mxu0
      %v2819 = vadd.f32 0.0, %v2818
      %2820 = vmatmul.bf16.gmra.mxu0 %v2755
      %v2821 = vpop.f32.mrf.mxu0
      %v2822 = vadd.f32 0.0, %v2821
      %v2823 = vpop.f32.mrf.mxu0
      %v2824 = vadd.f32 0.0, %v2823
      %2825 = vmatmul.bf16.gmra.mxu0 %v2758
      %v2826 = vpop.f32.mrf.mxu0
      %v2827 = vadd.f32 0.0, %v2826
      %v2828 = vpop.f32.mrf.mxu0
      %v2829 = vadd.f32 0.0, %v2828
      %2830 = vmatmul.bf16.gmra.mxu0 %v2761
      %v2831 = vpop.f32.mrf.mxu0
      %v2832 = vadd.f32 0.0, %v2831
      %v2833 = vpop.f32.mrf.mxu0
      %v2834 = vadd.f32 0.0, %v2833
      %2835 = vmatmul.bf16.gmra.mxu0 %v2764
      %v2836 = vpop.f32.mrf.mxu0
      %v2837 = vadd.f32 0.0, %v2836
      %v2838 = vpop.f32.mrf.mxu0
      %v2839 = vadd.f32 0.0, %v2838
      %2840 = vmatmul.bf16.gmra.mxu0 %v2767
      %v2841 = vpop.f32.mrf.mxu0
      %v2842 = vadd.f32 0.0, %v2841
      %v2843 = vpop.f32.mrf.mxu0
      %v2844 = vadd.f32 0.0, %v2843
      %2845 = vmatmul.bf16.gmra.mxu0 %v2770
      %v2846 = vpop.f32.mrf.mxu0
      %v2847 = vadd.f32 0.0, %v2846
      %v2848 = vpop.f32.mrf.mxu0
      %v2849 = vadd.f32 0.0, %v2848
      %2850 = vmatmul.bf16.gmra.mxu0 %v2773
      %v2851 = vpop.f32.mrf.mxu0
      %v2852 = vadd.f32 0.0, %v2851
      %v2853 = vpop.f32.mrf.mxu0
      %v2854 = vadd.f32 0.0, %v2853
      %2855 = vmatmul.bf16.gmra.mxu0 %v2776
      %v2856 = vpop.f32.mrf.mxu0
      %v2857 = vadd.f32 0.0, %v2856
      %v2858 = vpop.f32.mrf.mxu0
      %v2859 = vadd.f32 0.0, %v2858
      %2860 = vmatmul.bf16.gmra.mxu0 %v2779
      %v2861 = vpop.f32.mrf.mxu0
      %v2862 = vadd.f32 0.0, %v2861
      %v2863 = vpop.f32.mrf.mxu0
      %v2864 = vadd.f32 0.0, %v2863
      %2865 = vmatmul.bf16.gmra.mxu0 %v2782
      %v2866 = vpop.f32.mrf.mxu0
      %v2867 = vadd.f32 0.0, %v2866
      %v2868 = vpop.f32.mrf.mxu0
      %v2869 = vadd.f32 0.0, %v2868
      %2870 = vmatmul.bf16.gmra.mxu0 %v2785
      %v2871 = vpop.f32.mrf.mxu0
      %v2872 = vadd.f32 0.0, %v2871
      %v2873 = vpop.f32.mrf.mxu0
      %v2874 = vadd.f32 0.0, %v2873
      %2875 = vdwg.mxu0
      %v2876 = vadd.f32 %v2797, %v2799
      %v2877 = vadd.f32 %v2876, %v2802
      %v2878 = vadd.f32 %v2877, %v2804
      %v2879 = vadd.f32 %v2878, %v2807
      %v2880 = vadd.f32 %v2879, %v2809
      %v2881 = vadd.f32 %v2880, %v2812
      %v2882 = vadd.f32 %v2881, %v2814
      %v2883 = vadd.f32 %v2882, %v2817
      %v2884 = vadd.f32 %v2883, %v2819
      %v2885 = vadd.f32 %v2884, %v2822
      %v2886 = vadd.f32 %v2885, %v2824
      %v2887 = vadd.f32 %v2886, %v2827
      %v2888 = vadd.f32 %v2887, %v2829
      %v2889 = vadd.f32 %v2888, %v2832
      %v2890 = vadd.f32 %v2889, %v2834
      %v2891 = vadd.f32 %v2890, %v2837
      %v2892 = vadd.f32 %v2891, %v2839
      %v2893 = vadd.f32 %v2892, %v2842
      %v2894 = vadd.f32 %v2893, %v2844
      %v2895 = vadd.f32 %v2894, %v2847
      %v2896 = vadd.f32 %v2895, %v2849
      %v2897 = vadd.f32 %v2896, %v2852
      %v2898 = vadd.f32 %v2897, %v2854
      %v2899 = vadd.f32 %v2898, %v2857
      %v2900 = vadd.f32 %v2899, %v2859
      %v2901 = vadd.f32 %v2900, %v2862
      %v2902 = vadd.f32 %v2901, %v2864
      %v2903 = vadd.f32 %v2902, %v2867
      %v2904 = vadd.f32 %v2903, %v2869
      %v2905 = vadd.f32 %v2904, %v2872
      %v2906 = vadd.f32 %v2905, %v2874
      %v2907 = vrot.slane %v2906, 4
      %v2908 = vadd.f32 %v2906, %v2907
      %v2909 = vrot.slane %v2908, 2
      %v2910 = vadd.f32 %v2908, %v2909
      %v2911 = vrot.slane %v2910, 1
      %v2912 = vadd.f32 %v2910, %v2911
      %2913 = vst [vmem:[#allocation7] sm:$0x1] %v2912
      %v2914 = vmul.f32 %v2797, %v2797
      %v2915 = vmul.f32 %v2799, %v2799
      %v2916 = vmul.f32 %v2802, %v2802
      %v2917 = vmul.f32 %v2804, %v2804
      %v2918 = vmul.f32 %v2807, %v2807
      %v2919 = vmul.f32 %v2809, %v2809
      %v2920 = vmul.f32 %v2812, %v2812
      %v2921 = vmul.f32 %v2814, %v2814
      %v2922 = vmul.f32 %v2817, %v2817
      %v2923 = vmul.f32 %v2819, %v2819
      %v2924 = vmul.f32 %v2822, %v2822
      %v2925 = vmul.f32 %v2824, %v2824
      %v2926 = vmul.f32 %v2827, %v2827
      %v2927 = vmul.f32 %v2829, %v2829
      %v2928 = vmul.f32 %v2832, %v2832
      %v2929 = vmul.f32 %v2834, %v2834
      %v2930 = vmul.f32 %v2837, %v2837
      %v2931 = vmul.f32 %v2839, %v2839
      %v2932 = vmul.f32 %v2842, %v2842
      %v2933 = vmul.f32 %v2844, %v2844
      %v2934 = vmul.f32 %v2847, %v2847
      %v2935 = vmul.f32 %v2849, %v2849
      %v2936 = vmul.f32 %v2852, %v2852
      %v2937 = vmul.f32 %v2854, %v2854
      %v2938 = vmul.f32 %v2857, %v2857
      %v2939 = vmul.f32 %v2859, %v2859
      %v2940 = vmul.f32 %v2862, %v2862
      %v2941 = vmul.f32 %v2864, %v2864
      %v2942 = vmul.f32 %v2867, %v2867
      %v2943 = vmul.f32 %v2869, %v2869
      %v2944 = vmul.f32 %v2872, %v2872
      %v2945 = vmul.f32 %v2874, %v2874
      %v2946 = vadd.f32 %v2914, %v2915
      %v2947 = vadd.f32 %v2946, %v2916
      %v2948 = vadd.f32 %v2947, %v2917
      %v2949 = vadd.f32 %v2948, %v2918
      %v2950 = vadd.f32 %v2949, %v2919
      %v2951 = vadd.f32 %v2950, %v2920
      %v2952 = vadd.f32 %v2951, %v2921
      %v2953 = vadd.f32 %v2952, %v2922
      %v2954 = vadd.f32 %v2953, %v2923
      %v2955 = vadd.f32 %v2954, %v2924
      %v2956 = vadd.f32 %v2955, %v2925
      %v2957 = vadd.f32 %v2956, %v2926
      %v2958 = vadd.f32 %v2957, %v2927
      %v2959 = vadd.f32 %v2958, %v2928
      %v2960 = vadd.f32 %v2959, %v2929
      %v2961 = vadd.f32 %v2960, %v2930
      %v2962 = vadd.f32 %v2961, %v2931
      %v2963 = vadd.f32 %v2962, %v2932
      %v2964 = vadd.f32 %v2963, %v2933
      %v2965 = vadd.f32 %v2964, %v2934
      %v2966 = vadd.f32 %v2965, %v2935
      %v2967 = vadd.f32 %v2966, %v2936
      %v2968 = vadd.f32 %v2967, %v2937
      %v2969 = vadd.f32 %v2968, %v2938
      %v2970 = vadd.f32 %v2969, %v2939
      %v2971 = vadd.f32 %v2970, %v2940
      %v2972 = vadd.f32 %v2971, %v2941
      %v2973 = vadd.f32 %v2972, %v2942
      %v2974 = vadd.f32 %v2973, %v2943
      %v2975 = vadd.f32 %v2974, %v2944
      %v2976 = vadd.f32 %v2975, %v2945
      %v2977 = vrot.slane %v2976, 4
      %v2978 = vadd.f32 %v2976, %v2977
      %v2979 = vrot.slane %v2978, 2
      %v2980 = vadd.f32 %v2978, %v2979
      %v2981 = vrot.slane %v2980, 1
      %v2982 = vadd.f32 %v2980, %v2981
      %2983 = vst [vmem:[#allocation7 + $0x1] sm:$0x1] %v2982
      %v2984 = vld [vmem:[#allocation7] sm:$0x3]
      %2985 = vmatpush.msra.mxu0 %v322
      %2986 = vmatpush.msra.mxu0 %v321
      %2987 = vmatpush.msra.mxu0 %v320
      %2988 = vmatpush.msra.mxu0 %v319
      %2989 = vmatpush.msra.mxu0 %v318
      %2990 = vmatpush.msra.mxu0 %v317
      %2991 = vmatpush.msra.mxu0 %v316
      %2992 = vmatpush.msra.mxu0 %v315
      %2993 = vmatpush.msra.mxu0 %v314
      %2994 = vmatpush.msra.mxu0 %v313
      %2995 = vmatpush.msra.mxu0 %v312
      %2996 = vmatpush.msra.mxu0 %v311
      %2997 = vmatpush.msra.mxu0 %v310
      %2998 = vmatpush.msra.mxu0 %v309
      %2999 = vmatpush.msra.mxu0 %v308
      %3000 = vmatpush.msra.mxu0 %v307
      %3001 = vmatmul.f32.gmra.mxu0 %v2984
      %v3002 = vpop.f32.mrf.mxu0
      %v3003 = vadd.f32 0.0, %v3002
      %3004 = vdwg.mxu0
      %v3005 = vmul.f32 %v3003, 0.001953125
      %v3006 = vmul.f32 %v3005, %v3005
      %v3008 = vrot.slane %v3006, 7
      %v3010 = vsub.f32 %v3005, %v3008
      %v3011 = vld [vmem:[%s7] sm:$0x1]
      %v3012 = vadd.f32 %v3010, 1e-05
      %v3013 = vrsqrt.pop %v3012
      %v3014 = vmul.f32 %v3013, %v3012
      %v3015 = vmul.f32 %v3014, %v3013
      %v3016 = vmul.f32 0.5, %v3015
      %v3017 = vsub.f32 1.5, %v3016
      %v3018 = vmul.f32 %v3013, %v3017
      %vm3019 = vweird.f32 %v3012
      %vm3020 = vweird.f32 %v3013
      %vm3021 = vmor %vm3019, %vm3020
      %v3022 = vsel %vm3021, %v3013, %v3018
      %v3024 = vrot.slane %v3022, 1
      %v3026 = vmul.f32 %v3011, %v3024
      %v3027 = vld [vmem:[%s7 + $0x1] sm:$0x1]
      %v3028 = vmul.f32 %v3005, %v3026
      %v3029 = vsub.f32 %v3027, %v3028
      %v3030 = vperm.slane %v3026, 0
      %v3031 = vmul.f32 %v2797, %v3030
      %v3032 = vmul.f32 %v2799, %v3030
      %v3033 = vmul.f32 %v2802, %v3030
      %v3034 = vmul.f32 %v2804, %v3030
      %v3035 = vmul.f32 %v2807, %v3030
      %v3036 = vmul.f32 %v2809, %v3030
      %v3037 = vmul.f32 %v2812, %v3030
      %v3038 = vmul.f32 %v2814, %v3030
      %v3039 = vmul.f32 %v2817, %v3030
      %v3040 = vmul.f32 %v2819, %v3030
      %v3041 = vmul.f32 %v2822, %v3030
      %v3042 = vmul.f32 %v2824, %v3030
      %v3043 = vmul.f32 %v2827, %v3030
      %v3044 = vmul.f32 %v2829, %v3030
      %v3045 = vmul.f32 %v2832, %v3030
      %v3046 = vmul.f32 %v2834, %v3030
      %v3047 = vmul.f32 %v2837, %v3030
      %v3048 = vmul.f32 %v2839, %v3030
      %v3049 = vmul.f32 %v2842, %v3030
      %v3050 = vmul.f32 %v2844, %v3030
      %v3051 = vmul.f32 %v2847, %v3030
      %v3052 = vmul.f32 %v2849, %v3030
      %v3053 = vmul.f32 %v2852, %v3030
      %v3054 = vmul.f32 %v2854, %v3030
      %v3055 = vmul.f32 %v2857, %v3030
      %v3056 = vmul.f32 %v2859, %v3030
      %v3057 = vmul.f32 %v2862, %v3030
      %v3058 = vmul.f32 %v2864, %v3030
      %v3059 = vmul.f32 %v2867, %v3030
      %v3060 = vmul.f32 %v2869, %v3030
      %v3061 = vmul.f32 %v2872, %v3030
      %v3062 = vmul.f32 %v2874, %v3030
      %v3063 = vperm.slane %v3029, 0
      %v3064 = vadd.f32 %v3031, %v3063
      %v3065 = vadd.f32 %v3032, %v3063
      %v3066 = vadd.f32 %v3033, %v3063
      %v3067 = vadd.f32 %v3034, %v3063
      %v3068 = vadd.f32 %v3035, %v3063
      %v3069 = vadd.f32 %v3036, %v3063
      %v3070 = vadd.f32 %v3037, %v3063
      %v3071 = vadd.f32 %v3038, %v3063
      %v3072 = vadd.f32 %v3039, %v3063
      %v3073 = vadd.f32 %v3040, %v3063
      %v3074 = vadd.f32 %v3041, %v3063
      %v3075 = vadd.f32 %v3042, %v3063
      %v3076 = vadd.f32 %v3043, %v3063
      %v3077 = vadd.f32 %v3044, %v3063
      %v3078 = vadd.f32 %v3045, %v3063
      %v3079 = vadd.f32 %v3046, %v3063
      %v3080 = vadd.f32 %v3047, %v3063
      %v3081 = vadd.f32 %v3048, %v3063
      %v3082 = vadd.f32 %v3049, %v3063
      %v3083 = vadd.f32 %v3050, %v3063
      %v3084 = vadd.f32 %v3051, %v3063
      %v3085 = vadd.f32 %v3052, %v3063
      %v3086 = vadd.f32 %v3053, %v3063
      %v3087 = vadd.f32 %v3054, %v3063
      %v3088 = vadd.f32 %v3055, %v3063
      %v3089 = vadd.f32 %v3056, %v3063
      %v3090 = vadd.f32 %v3057, %v3063
      %v3091 = vadd.f32 %v3058, %v3063
      %v3092 = vadd.f32 %v3059, %v3063
      %v3093 = vadd.f32 %v3060, %v3063
      %v3094 = vadd.f32 %v3061, %v3063
      %v3095 = vadd.f32 %v3062, %v3063
      %3096 = vst [vmem:[#allocation6] sm:$0xff] %v3064
      %3097 = vst [vmem:[#allocation6 + $0x8] sm:$0xff] %v3065
      %3098 = vst [vmem:[#allocation6 + $0x10] sm:$0xff] %v3066
      %3099 = vst [vmem:[#allocation6 + $0x18] sm:$0xff] %v3067
      %3100 = vst [vmem:[#allocation6 + $0x20] sm:$0xff] %v3068
      %3101 = vst [vmem:[#allocation6 + $0x28] sm:$0xff] %v3069
      %3102 = vst [vmem:[#allocation6 + $0x30] sm:$0xff] %v3070
      %3103 = vst [vmem:[#allocation6 + $0x38] sm:$0xff] %v3071
      %3104 = vst [vmem:[#allocation6 + $0x40] sm:$0xff] %v3072
      %3105 = vst [vmem:[#allocation6 + $0x48] sm:$0xff] %v3073
      %3106 = vst [vmem:[#allocation6 + $0x50] sm:$0xff] %v3074
      %3107 = vst [vmem:[#allocation6 + $0x58] sm:$0xff] %v3075
      %3108 = vst [vmem:[#allocation6 + $0x60] sm:$0xff] %v3076
      %3109 = vst [vmem:[#allocation6 + $0x68] sm:$0xff] %v3077
      %3110 = vst [vmem:[#allocation6 + $0x70] sm:$0xff] %v3078
      %3111 = vst [vmem:[#allocation6 + $0x78] sm:$0xff] %v3079
      %3112 = vst [vmem:[#allocation6 + $0x80] sm:$0xff] %v3080
      %3113 = vst [vmem:[#allocation6 + $0x88] sm:$0xff] %v3081
      %3114 = vst [vmem:[#allocation6 + $0x90] sm:$0xff] %v3082
      %3115 = vst [vmem:[#allocation6 + $0x98] sm:$0xff] %v3083
      %3116 = vst [vmem:[#allocation6 + $0xa0] sm:$0xff] %v3084
      %3117 = vst [vmem:[#allocation6 + $0xa8] sm:$0xff] %v3085
      %3118 = vst [vmem:[#allocation6 + $0xb0] sm:$0xff] %v3086
      %3119 = vst [vmem:[#allocation6 + $0xb8] sm:$0xff] %v3087
      %3120 = vst [vmem:[#allocation6 + $0xc0] sm:$0xff] %v3088
      %3121 = vst [vmem:[#allocation6 + $0xc8] sm:$0xff] %v3089
      %3122 = vst [vmem:[#allocation6 + $0xd0] sm:$0xff] %v3090
      %3123 = vst [vmem:[#allocation6 + $0xd8] sm:$0xff] %v3091
      %3124 = vst [vmem:[#allocation6 + $0xe0] sm:$0xff] %v3092
      %3125 = vst [vmem:[#allocation6 + $0xe8] sm:$0xff] %v3093
      %3126 = vst [vmem:[#allocation6 + $0xf0] sm:$0xff] %v3094
      %3127 = vst [vmem:[#allocation6 + $0xf8] sm:$0xff] %v3095
      %3128 = vst [vmem:[#allocation4] sm:$0xff] 0.0
      %3129 = vst [vmem:[#allocation4 + $0x8] sm:$0xff] 0.0
      %3130 = vst [vmem:[#allocation4 + $0x10] sm:$0xff] 0.0
      %3131 = vst [vmem:[#allocation4 + $0x18] sm:$0xff] 0.0
      %3132 = vst [vmem:[#allocation4 + $0x20] sm:$0xff] 0.0
      %3133 = vst [vmem:[#allocation4 + $0x28] sm:$0xff] 0.0
      %3134 = vst [vmem:[#allocation4 + $0x30] sm:$0xff] 0.0
      %3135 = vst [vmem:[#allocation4 + $0x38] sm:$0xff] 0.0
      %3136 = vst [vmem:[#allocation4 + $0x40] sm:$0xff] 0.0
      %3137 = vst [vmem:[#allocation4 + $0x48] sm:$0xff] 0.0
      %3138 = vst [vmem:[#allocation4 + $0x50] sm:$0xff] 0.0
      %3139 = vst [vmem:[#allocation4 + $0x58] sm:$0xff] 0.0
      %3140 = vst [vmem:[#allocation4 + $0x60] sm:$0xff] 0.0
      %3141 = vst [vmem:[#allocation4 + $0x68] sm:$0xff] 0.0
      %3142 = vst [vmem:[#allocation4 + $0x70] sm:$0xff] 0.0
      %3143 = vst [vmem:[#allocation4 + $0x78] sm:$0xff] 0.0
      %3144 = vst [vmem:[#allocation4 + $0x80] sm:$0xff] 0.0
      %3145 = vst [vmem:[#allocation4 + $0x88] sm:$0xff] 0.0
      %3146 = vst [vmem:[#allocation4 + $0x90] sm:$0xff] 0.0
      %3147 = vst [vmem:[#allocation4 + $0x98] sm:$0xff] 0.0
      %3148 = vst [vmem:[#allocation4 + $0xa0] sm:$0xff] 0.0
      %3149 = vst [vmem:[#allocation4 + $0xa8] sm:$0xff] 0.0
      %3150 = vst [vmem:[#allocation4 + $0xb0] sm:$0xff] 0.0
      %3151 = vst [vmem:[#allocation4 + $0xb8] sm:$0xff] 0.0
      %3152 = vst [vmem:[#allocation4 + $0xc0] sm:$0xff] 0.0
      %3153 = vst [vmem:[#allocation4 + $0xc8] sm:$0xff] 0.0
      %3154 = vst [vmem:[#allocation4 + $0xd0] sm:$0xff] 0.0
      %3155 = vst [vmem:[#allocation4 + $0xd8] sm:$0xff] 0.0
      %3156 = vst [vmem:[#allocation4 + $0xe0] sm:$0xff] 0.0
      %3157 = vst [vmem:[#allocation4 + $0xe8] sm:$0xff] 0.0
      %3158 = vst [vmem:[#allocation4 + $0xf0] sm:$0xff] 0.0
      %3159 = vst [vmem:[#allocation4 + $0xf8] sm:$0xff] 0.0
      %3160 = vst [vmem:[#allocation4 + $0x100] sm:$0xff] 0.0
      %3161 = vst [vmem:[#allocation4 + $0x108] sm:$0xff] 0.0
      %3162 = vst [vmem:[#allocation4 + $0x110] sm:$0xff] 0.0
      %3163 = vst [vmem:[#allocation4 + $0x118] sm:$0xff] 0.0
      %3164 = vst [vmem:[#allocation4 + $0x120] sm:$0xff] 0.0
      %3165 = vst [vmem:[#allocation4 + $0x128] sm:$0xff] 0.0
      %3166 = vst [vmem:[#allocation4 + $0x130] sm:$0xff] 0.0
      %3167 = vst [vmem:[#allocation4 + $0x138] sm:$0xff] 0.0
      %3168 = vst [vmem:[#allocation4 + $0x140] sm:$0xff] 0.0
      %3169 = vst [vmem:[#allocation4 + $0x148] sm:$0xff] 0.0
      %3170 = vst [vmem:[#allocation4 + $0x150] sm:$0xff] 0.0
      %3171 = vst [vmem:[#allocation4 + $0x158] sm:$0xff] 0.0
      %3172 = vst [vmem:[#allocation4 + $0x160] sm:$0xff] 0.0
      %3173 = vst [vmem:[#allocation4 + $0x168] sm:$0xff] 0.0
      %3174 = vst [vmem:[#allocation4 + $0x170] sm:$0xff] 0.0
      %3175 = vst [vmem:[#allocation4 + $0x178] sm:$0xff] 0.0
      %3176 = vst [vmem:[#allocation4 + $0x180] sm:$0xff] 0.0
      %3177 = vst [vmem:[#allocation4 + $0x188] sm:$0xff] 0.0
      %3178 = vst [vmem:[#allocation4 + $0x190] sm:$0xff] 0.0
      %3179 = vst [vmem:[#allocation4 + $0x198] sm:$0xff] 0.0
      %3180 = vst [vmem:[#allocation4 + $0x1a0] sm:$0xff] 0.0
      %3181 = vst [vmem:[#allocation4 + $0x1a8] sm:$0xff] 0.0
      %3182 = vst [vmem:[#allocation4 + $0x1b0] sm:$0xff] 0.0
      %3183 = vst [vmem:[#allocation4 + $0x1b8] sm:$0xff] 0.0
      %3184 = vst [vmem:[#allocation4 + $0x1c0] sm:$0xff] 0.0
      %3185 = vst [vmem:[#allocation4 + $0x1c8] sm:$0xff] 0.0
      %3186 = vst [vmem:[#allocation4 + $0x1d0] sm:$0xff] 0.0
      %3187 = vst [vmem:[#allocation4 + $0x1d8] sm:$0xff] 0.0
      %3188 = vst [vmem:[#allocation4 + $0x1e0] sm:$0xff] 0.0
      %3189 = vst [vmem:[#allocation4 + $0x1e8] sm:$0xff] 0.0
      %3190 = vst [vmem:[#allocation4 + $0x1f0] sm:$0xff] 0.0
      %3191 = vst [vmem:[#allocation4 + $0x1f8] sm:$0xff] 0.0
      %3192 = vst [vmem:[#allocation4 + $0x200] sm:$0xff] 0.0
      %3193 = vst [vmem:[#allocation4 + $0x208] sm:$0xff] 0.0
      %3194 = vst [vmem:[#allocation4 + $0x210] sm:$0xff] 0.0
      %3195 = vst [vmem:[#allocation4 + $0x218] sm:$0xff] 0.0
      %3196 = vst [vmem:[#allocation4 + $0x220] sm:$0xff] 0.0
      %3197 = vst [vmem:[#allocation4 + $0x228] sm:$0xff] 0.0
      %3198 = vst [vmem:[#allocation4 + $0x230] sm:$0xff] 0.0
      %3199 = vst [vmem:[#allocation4 + $0x238] sm:$0xff] 0.0
      %s3200 = scalar_lea.vmem [#allocation4], 32
      %3201 = vst [vmem:[%s3200 + $0x8] sm:$0xff] %v2587
      %3202 = vst [vmem:[%s3200 + $0x10] sm:$0xff] %v2588
      %3203 = vst [vmem:[%s3200 + $0x28] sm:$0xff] %v2589
      %3204 = vst [vmem:[%s3200 + $0x30] sm:$0xff] %v2590
      %3205 = vst [vmem:[%s3200 + $0x48] sm:$0xff] %v2591
      %3206 = vst [vmem:[%s3200 + $0x50] sm:$0xff] %v2592
      %3207 = vst [vmem:[%s3200 + $0x68] sm:$0xff] %v2593
      %3208 = vst [vmem:[%s3200 + $0x70] sm:$0xff] %v2594
      %3209 = vst [vmem:[%s3200 + $0x88] sm:$0xff] %v2595
      %3210 = vst [vmem:[%s3200 + $0x90] sm:$0xff] %v2596
      %3211 = vst [vmem:[%s3200 + $0xa8] sm:$0xff] %v2597
      %3212 = vst [vmem:[%s3200 + $0xb0] sm:$0xff] %v2598
      %3213 = vst [vmem:[%s3200 + $0xc8] sm:$0xff] %v2599
      %3214 = vst [vmem:[%s3200 + $0xd0] sm:$0xff] %v2600
      %3215 = vst [vmem:[%s3200 + $0xe8] sm:$0xff] %v2601
      %3216 = vst [vmem:[%s3200 + $0xf0] sm:$0xff] %v2602
      %3217 = vst [vmem:[%s3200 + $0x108] sm:$0xff] %v2603
      %3218 = vst [vmem:[%s3200 + $0x110] sm:$0xff] %v2604
      %3219 = vst [vmem:[%s3200 + $0x128] sm:$0xff] %v2605
      %3220 = vst [vmem:[%s3200 + $0x130] sm:$0xff] %v2606
      %3221 = vst [vmem:[%s3200 + $0x148] sm:$0xff] %v2607
      %3222 = vst [vmem:[%s3200 + $0x150] sm:$0xff] %v2608
      %3223 = vst [vmem:[%s3200 + $0x168] sm:$0xff] %v2609
      %3224 = vst [vmem:[%s3200 + $0x170] sm:$0xff] %v2610
      %3225 = vst [vmem:[%s3200 + $0x188] sm:$0xff] %v2611
      %3226 = vst [vmem:[%s3200 + $0x190] sm:$0xff] %v2612
      %3227 = vst [vmem:[%s3200 + $0x1a8] sm:$0xff] %v2613
      %3228 = vst [vmem:[%s3200 + $0x1b0] sm:$0xff] %v2614
      %3229 = vst [vmem:[%s3200 + $0x1c8] sm:$0xff] %v2615
      %3230 = vst [vmem:[%s3200 + $0x1d0] sm:$0xff] %v2616
      %3231 = vst [vmem:[%s3200 + $0x1e8] sm:$0xff] %v2617
      %3232 = vst [vmem:[%s3200 + $0x1f0] sm:$0xff] %v2618
      %v3233 = vld [vmem:[#allocation4 + $0x7] sm:$0xff]
      %v3234 = vld [vmem:[#allocation4 + $0xf] sm:$0xff]
      %v3235 = vld [vmem:[#allocation4 + $0x27] sm:$0xff]
      %v3236 = vld [vmem:[#allocation4 + $0x2f] sm:$0xff]
      %v3237 = vld [vmem:[#allocation4 + $0x47] sm:$0xff]
      %v3238 = vld [vmem:[#allocation4 + $0x4f] sm:$0xff]
      %v3239 = vld [vmem:[#allocation4 + $0x67] sm:$0xff]
      %v3240 = vld [vmem:[#allocation4 + $0x6f] sm:$0xff]
      %v3241 = vld [vmem:[#allocation4 + $0x87] sm:$0xff]
      %v3242 = vld [vmem:[#allocation4 + $0x8f] sm:$0xff]
      %v3243 = vld [vmem:[#allocation4 + $0xa7] sm:$0xff]
      %v3244 = vld [vmem:[#allocation4 + $0xaf] sm:$0xff]
      %v3245 = vld [vmem:[#allocation4 + $0xc7] sm:$0xff]
      %v3246 = vld [vmem:[#allocation4 + $0xcf] sm:$0xff]
      %v3247 = vld [vmem:[#allocation4 + $0xe7] sm:$0xff]
      %v3248 = vld [vmem:[#allocation4 + $0xef] sm:$0xff]
      %v3249 = vld [vmem:[#allocation4 + $0x107] sm:$0xff]
      %v3250 = vld [vmem:[#allocation4 + $0x10f] sm:$0xff]
      %v3251 = vld [vmem:[#allocation4 + $0x127] sm:$0xff]
      %v3252 = vld [vmem:[#allocation4 + $0x12f] sm:$0xff]
      %v3253 = vld [vmem:[#allocation4 + $0x147] sm:$0xff]
      %v3254 = vld [vmem:[#allocation4 + $0x14f] sm:$0xff]
      %v3255 = vld [vmem:[#allocation4 + $0x167] sm:$0xff]
      %v3256 = vld [vmem:[#allocation4 + $0x16f] sm:$0xff]
      %v3257 = vld [vmem:[#allocation4 + $0x187] sm:$0xff]
      %v3258 = vld [vmem:[#allocation4 + $0x18f] sm:$0xff]
      %v3259 = vld [vmem:[#allocation4 + $0x1a7] sm:$0xff]
      %v3260 = vld [vmem:[#allocation4 + $0x1af] sm:$0xff]
      %v3261 = vld [vmem:[#allocation4 + $0x1c7] sm:$0xff]
      %v3262 = vld [vmem:[#allocation4 + $0x1cf] sm:$0xff]
      %v3263 = vld [vmem:[#allocation4 + $0x1e7] sm:$0xff]
      %v3264 = vld [vmem:[#allocation4 + $0x1ef] sm:$0xff]
      %v3265 = vpack.c.bf16 %v3233, %v3233
      %v3266 = vpack.c.bf16 %v3234, %v3234
      %v3267 = vpack.c.bf16 %v3235, %v3235
      %v3268 = vpack.c.bf16 %v3236, %v3236
      %v3269 = vpack.c.bf16 %v3237, %v3237
      %v3270 = vpack.c.bf16 %v3238, %v3238
      %v3271 = vpack.c.bf16 %v3239, %v3239
      %v3272 = vpack.c.bf16 %v3240, %v3240
      %v3273 = vpack.c.bf16 %v3241, %v3241
      %v3274 = vpack.c.bf16 %v3242, %v3242
      %v3275 = vpack.c.bf16 %v3243, %v3243
      %v3276 = vpack.c.bf16 %v3244, %v3244
      %v3277 = vpack.c.bf16 %v3245, %v3245
      %v3278 = vpack.c.bf16 %v3246, %v3246
      %v3279 = vpack.c.bf16 %v3247, %v3247
      %v3280 = vpack.c.bf16 %v3248, %v3248
      %v3281 = vpack.c.bf16 %v3249, %v3249
      %v3282 = vpack.c.bf16 %v3250, %v3250
      %v3283 = vpack.c.bf16 %v3251, %v3251
      %v3284 = vpack.c.bf16 %v3252, %v3252
      %v3285 = vpack.c.bf16 %v3253, %v3253
      %v3286 = vpack.c.bf16 %v3254, %v3254
      %v3287 = vpack.c.bf16 %v3255, %v3255
      %v3288 = vpack.c.bf16 %v3256, %v3256
      %v3289 = vpack.c.bf16 %v3257, %v3257
      %v3290 = vpack.c.bf16 %v3258, %v3258
      %v3291 = vpack.c.bf16 %v3259, %v3259
      %v3292 = vpack.c.bf16 %v3260, %v3260
      %v3293 = vpack.c.bf16 %v3261, %v3261
      %v3294 = vpack.c.bf16 %v3262, %v3262
      %v3295 = vpack.c.bf16 %v3263, %v3263
      %v3296 = vpack.c.bf16 %v3264, %v3264
      %3297 = vst [vmem:[#allocation5] sm:$0xf] %v3265
      %3298 = vst [vmem:[#allocation5 + $0x24] sm:$0xf] %v3266
      %3299 = vst [vmem:[#allocation5 + $0x48] sm:$0xf] %v3267
      %3300 = vst [vmem:[#allocation5 + $0x6c] sm:$0xf] %v3268
      %3301 = vst [vmem:[#allocation5 + $0x90] sm:$0xf] %v3269
      %3302 = vst [vmem:[#allocation5 + $0xb4] sm:$0xf] %v3270
      %3303 = vst [vmem:[#allocation5 + $0xd8] sm:$0xf] %v3271
      %3304 = vst [vmem:[#allocation5 + $0xfc] sm:$0xf] %v3272
      %3305 = vst [vmem:[#allocation5 + $0x120] sm:$0xf] %v3273
      %3306 = vst [vmem:[#allocation5 + $0x144] sm:$0xf] %v3274
      %3307 = vst [vmem:[#allocation5 + $0x168] sm:$0xf] %v3275
      %3308 = vst [vmem:[#allocation5 + $0x18c] sm:$0xf] %v3276
      %3309 = vst [vmem:[#allocation5 + $0x1b0] sm:$0xf] %v3277
      %3310 = vst [vmem:[#allocation5 + $0x1d4] sm:$0xf] %v3278
      %3311 = vst [vmem:[#allocation5 + $0x1f8] sm:$0xf] %v3279
      %3312 = vst [vmem:[#allocation5 + $0x21c] sm:$0xf] %v3280
      %3313 = vst [vmem:[#allocation5 + $0x240] sm:$0xf] %v3281
      %3314 = vst [vmem:[#allocation5 + $0x264] sm:$0xf] %v3282
      %3315 = vst [vmem:[#allocation5 + $0x288] sm:$0xf] %v3283
      %3316 = vst [vmem:[#allocation5 + $0x2ac] sm:$0xf] %v3284
      %3317 = vst [vmem:[#allocation5 + $0x2d0] sm:$0xf] %v3285
      %3318 = vst [vmem:[#allocation5 + $0x2f4] sm:$0xf] %v3286
      %3319 = vst [vmem:[#allocation5 + $0x318] sm:$0xf] %v3287
      %3320 = vst [vmem:[#allocation5 + $0x33c] sm:$0xf] %v3288
      %3321 = vst [vmem:[#allocation5 + $0x360] sm:$0xf] %v3289
      %3322 = vst [vmem:[#allocation5 + $0x384] sm:$0xf] %v3290
      %3323 = vst [vmem:[#allocation5 + $0x3a8] sm:$0xf] %v3291
      %3324 = vst [vmem:[#allocation5 + $0x3cc] sm:$0xf] %v3292
      %3325 = vst [vmem:[#allocation5 + $0x3f0] sm:$0xf] %v3293
      %3326 = vst [vmem:[#allocation5 + $0x414] sm:$0xf] %v3294
      %3327 = vst [vmem:[#allocation5 + $0x438] sm:$0xf] %v3295
      %3328 = vst [vmem:[#allocation5 + $0x45c] sm:$0xf] %v3296
      %v3329 = vld [vmem:[#allocation4 + $0x8] sm:$0xff]
      %v3330 = vld [vmem:[#allocation4 + $0x10] sm:$0xff]
      %v3331 = vld [vmem:[#allocation4 + $0x28] sm:$0xff]
      %v3332 = vld [vmem:[#allocation4 + $0x30] sm:$0xff]
      %v3333 = vld [vmem:[#allocation4 + $0x48] sm:$0xff]
      %v3334 = vld [vmem:[#allocation4 + $0x50] sm:$0xff]
      %v3335 = vld [vmem:[#allocation4 + $0x68] sm:$0xff]
      %v3336 = vld [vmem:[#allocation4 + $0x70] sm:$0xff]
      %v3337 = vld [vmem:[#allocation4 + $0x88] sm:$0xff]
      %v3338 = vld [vmem:[#allocation4 + $0x90] sm:$0xff]
      %v3339 = vld [vmem:[#allocation4 + $0xa8] sm:$0xff]
      %v3340 = vld [vmem:[#allocation4 + $0xb0] sm:$0xff]
      %v3341 = vld [vmem:[#allocation4 + $0xc8] sm:$0xff]
      %v3342 = vld [vmem:[#allocation4 + $0xd0] sm:$0xff]
      %v3343 = vld [vmem:[#allocation4 + $0xe8] sm:$0xff]
      %v3344 = vld [vmem:[#allocation4 + $0xf0] sm:$0xff]
      %v3345 = vld [vmem:[#allocation4 + $0x108] sm:$0xff]
      %v3346 = vld [vmem:[#allocation4 + $0x110] sm:$0xff]
      %v3347 = vld [vmem:[#allocation4 + $0x128] sm:$0xff]
      %v3348 = vld [vmem:[#allocation4 + $0x130] sm:$0xff]
      %v3349 = vld [vmem:[#allocation4 + $0x148] sm:$0xff]
      %v3350 = vld [vmem:[#allocation4 + $0x150] sm:$0xff]
      %v3351 = vld [vmem:[#allocation4 + $0x168] sm:$0xff]
      %v3352 = vld [vmem:[#allocation4 + $0x170] sm:$0xff]
      %v3353 = vld [vmem:[#allocation4 + $0x188] sm:$0xff]
      %v3354 = vld [vmem:[#allocation4 + $0x190] sm:$0xff]
      %v3355 = vld [vmem:[#allocation4 + $0x1a8] sm:$0xff]
      %v3356 = vld [vmem:[#allocation4 + $0x1b0] sm:$0xff]
      %v3357 = vld [vmem:[#allocation4 + $0x1c8] sm:$0xff]
      %v3358 = vld [vmem:[#allocation4 + $0x1d0] sm:$0xff]
      %v3359 = vld [vmem:[#allocation4 + $0x1e8] sm:$0xff]
      %v3360 = vld [vmem:[#allocation4 + $0x1f0] sm:$0xff]
      %v3361 = vpack.c.bf16 %v3329, %v3329
      %v3362 = vpack.c.bf16 %v3330, %v3330
      %v3363 = vpack.c.bf16 %v3331, %v3331
      %v3364 = vpack.c.bf16 %v3332, %v3332
      %v3365 = vpack.c.bf16 %v3333, %v3333
      %v3366 = vpack.c.bf16 %v3334, %v3334
      %v3367 = vpack.c.bf16 %v3335, %v3335
      %v3368 = vpack.c.bf16 %v3336, %v3336
      %v3369 = vpack.c.bf16 %v3337, %v3337
      %v3370 = vpack.c.bf16 %v3338, %v3338
      %v3371 = vpack.c.bf16 %v3339, %v3339
      %v3372 = vpack.c.bf16 %v3340, %v3340
      %v3373 = vpack.c.bf16 %v3341, %v3341
      %v3374 = vpack.c.bf16 %v3342, %v3342
      %v3375 = vpack.c.bf16 %v3343, %v3343
      %v3376 = vpack.c.bf16 %v3344, %v3344
      %v3377 = vpack.c.bf16 %v3345, %v3345
      %v3378 = vpack.c.bf16 %v3346, %v3346
      %v3379 = vpack.c.bf16 %v3347, %v3347
      %v3380 = vpack.c.bf16 %v3348, %v3348
      %v3381 = vpack.c.bf16 %v3349, %v3349
      %v3382 = vpack.c.bf16 %v3350, %v3350
      %v3383 = vpack.c.bf16 %v3351, %v3351
      %v3384 = vpack.c.bf16 %v3352, %v3352
      %v3385 = vpack.c.bf16 %v3353, %v3353
      %v3386 = vpack.c.bf16 %v3354, %v3354
      %v3387 = vpack.c.bf16 %v3355, %v3355
      %v3388 = vpack.c.bf16 %v3356, %v3356
      %v3389 = vpack.c.bf16 %v3357, %v3357
      %v3390 = vpack.c.bf16 %v3358, %v3358
      %v3391 = vpack.c.bf16 %v3359, %v3359
      %v3392 = vpack.c.bf16 %v3360, %v3360
      %3393 = vst [vmem:[#allocation5 + $0x4] sm:$0xf] %v3361
      %3394 = vst [vmem:[#allocation5 + $0x28] sm:$0xf] %v3362
      %3395 = vst [vmem:[#allocation5 + $0x4c] sm:$0xf] %v3363
      %3396 = vst [vmem:[#allocation5 + $0x70] sm:$0xf] %v3364
      %3397 = vst [vmem:[#allocation5 + $0x94] sm:$0xf] %v3365
      %3398 = vst [vmem:[#allocation5 + $0xb8] sm:$0xf] %v3366
      %3399 = vst [vmem:[#allocation5 + $0xdc] sm:$0xf] %v3367
      %3400 = vst [vmem:[#allocation5 + $0x100] sm:$0xf] %v3368
      %3401 = vst [vmem:[#allocation5 + $0x124] sm:$0xf] %v3369
      %3402 = vst [vmem:[#allocation5 + $0x148] sm:$0xf] %v3370
      %3403 = vst [vmem:[#allocation5 + $0x16c] sm:$0xf] %v3371
      %3404 = vst [vmem:[#allocation5 + $0x190] sm:$0xf] %v3372
      %3405 = vst [vmem:[#allocation5 + $0x1b4] sm:$0xf] %v3373
      %3406 = vst [vmem:[#allocation5 + $0x1d8] sm:$0xf] %v3374
      %3407 = vst [vmem:[#allocation5 + $0x1fc] sm:$0xf] %v3375
      %3408 = vst [vmem:[#allocation5 + $0x220] sm:$0xf] %v3376
      %3409 = vst [vmem:[#allocation5 + $0x244] sm:$0xf] %v3377
      %3410 = vst [vmem:[#allocation5 + $0x268] sm:$0xf] %v3378
      %3411 = vst [vmem:[#allocation5 + $0x28c] sm:$0xf] %v3379
      %3412 = vst [vmem:[#allocation5 + $0x2b0] sm:$0xf] %v3380
      %3413 = vst [vmem:[#allocation5 + $0x2d4] sm:$0xf] %v3381
      %3414 = vst [vmem:[#allocation5 + $0x2f8] sm:$0xf] %v3382
      %3415 = vst [vmem:[#allocation5 + $0x31c] sm:$0xf] %v3383
      %3416 = vst [vmem:[#allocation5 + $0x340] sm:$0xf] %v3384
      %3417 = vst [vmem:[#allocation5 + $0x364] sm:$0xf] %v3385
      %3418 = vst [vmem:[#allocation5 + $0x388] sm:$0xf] %v3386
      %3419 = vst [vmem:[#allocation5 + $0x3ac] sm:$0xf] %v3387
      %3420 = vst [vmem:[#allocation5 + $0x3d0] sm:$0xf] %v3388
      %3421 = vst [vmem:[#allocation5 + $0x3f4] sm:$0xf] %v3389
      %3422 = vst [vmem:[#allocation5 + $0x418] sm:$0xf] %v3390
      %3423 = vst [vmem:[#allocation5 + $0x43c] sm:$0xf] %v3391
      %3424 = vst [vmem:[#allocation5 + $0x460] sm:$0xf] %v3392
      %v3425 = vld [vmem:[#allocation4 + $0x9] sm:$0xff]
      %v3426 = vld [vmem:[#allocation4 + $0x11] sm:$0xff]
      %v3427 = vld [vmem:[#allocation4 + $0x29] sm:$0xff]
      %v3428 = vld [vmem:[#allocation4 + $0x31] sm:$0xff]
      %v3429 = vld [vmem:[#allocation4 + $0x49] sm:$0xff]
      %v3430 = vld [vmem:[#allocation4 + $0x51] sm:$0xff]
      %v3431 = vld [vmem:[#allocation4 + $0x69] sm:$0xff]
      %v3432 = vld [vmem:[#allocation4 + $0x71] sm:$0xff]
      %v3433 = vld [vmem:[#allocation4 + $0x89] sm:$0xff]
      %v3434 = vld [vmem:[#allocation4 + $0x91] sm:$0xff]
      %v3435 = vld [vmem:[#allocation4 + $0xa9] sm:$0xff]
      %v3436 = vld [vmem:[#allocation4 + $0xb1] sm:$0xff]
      %v3437 = vld [vmem:[#allocation4 + $0xc9] sm:$0xff]
      %v3438 = vld [vmem:[#allocation4 + $0xd1] sm:$0xff]
      %v3439 = vld [vmem:[#allocation4 + $0xe9] sm:$0xff]
      %v3440 = vld [vmem:[#allocation4 + $0xf1] sm:$0xff]
      %v3441 = vld [vmem:[#allocation4 + $0x109] sm:$0xff]
      %v3442 = vld [vmem:[#allocation4 + $0x111] sm:$0xff]
      %v3443 = vld [vmem:[#allocation4 + $0x129] sm:$0xff]
      %v3444 = vld [vmem:[#allocation4 + $0x131] sm:$0xff]
      %v3445 = vld [vmem:[#allocation4 + $0x149] sm:$0xff]
      %v3446 = vld [vmem:[#allocation4 + $0x151] sm:$0xff]
      %v3447 = vld [vmem:[#allocation4 + $0x169] sm:$0xff]
      %v3448 = vld [vmem:[#allocation4 + $0x171] sm:$0xff]
      %v3449 = vld [vmem:[#allocation4 + $0x189] sm:$0xff]
      %v3450 = vld [vmem:[#allocation4 + $0x191] sm:$0xff]
      %v3451 = vld [vmem:[#allocation4 + $0x1a9] sm:$0xff]
      %v3452 = vld [vmem:[#allocation4 + $0x1b1] sm:$0xff]
      %v3453 = vld [vmem:[#allocation4 + $0x1c9] sm:$0xff]
      %v3454 = vld [vmem:[#allocation4 + $0x1d1] sm:$0xff]
      %v3455 = vld [vmem:[#allocation4 + $0x1e9] sm:$0xff]
      %v3456 = vld [vmem:[#allocation4 + $0x1f1] sm:$0xff]
      %v3457 = vpack.c.bf16 %v3425, %v3425
      %v3458 = vpack.c.bf16 %v3426, %v3426
      %v3459 = vpack.c.bf16 %v3427, %v3427
      %v3460 = vpack.c.bf16 %v3428, %v3428
      %v3461 = vpack.c.bf16 %v3429, %v3429
      %v3462 = vpack.c.bf16 %v3430, %v3430
      %v3463 = vpack.c.bf16 %v3431, %v3431
      %v3464 = vpack.c.bf16 %v3432, %v3432
      %v3465 = vpack.c.bf16 %v3433, %v3433
      %v3466 = vpack.c.bf16 %v3434, %v3434
      %v3467 = vpack.c.bf16 %v3435, %v3435
      %v3468 = vpack.c.bf16 %v3436, %v3436
      %v3469 = vpack.c.bf16 %v3437, %v3437
      %v3470 = vpack.c.bf16 %v3438, %v3438
      %v3471 = vpack.c.bf16 %v3439, %v3439
      %v3472 = vpack.c.bf16 %v3440, %v3440
      %v3473 = vpack.c.bf16 %v3441, %v3441
      %v3474 = vpack.c.bf16 %v3442, %v3442
      %v3475 = vpack.c.bf16 %v3443, %v3443
      %v3476 = vpack.c.bf16 %v3444, %v3444
      %v3477 = vpack.c.bf16 %v3445, %v3445
      %v3478 = vpack.c.bf16 %v3446, %v3446
      %v3479 = vpack.c.bf16 %v3447, %v3447
      %v3480 = vpack.c.bf16 %v3448, %v3448
      %v3481 = vpack.c.bf16 %v3449, %v3449
      %v3482 = vpack.c.bf16 %v3450, %v3450
      %v3483 = vpack.c.bf16 %v3451, %v3451
      %v3484 = vpack.c.bf16 %v3452, %v3452
      %v3485 = vpack.c.bf16 %v3453, %v3453
      %v3486 = vpack.c.bf16 %v3454, %v3454
      %v3487 = vpack.c.bf16 %v3455, %v3455
      %v3488 = vpack.c.bf16 %v3456, %v3456
      %3489 = vst [vmem:[#allocation5 + $0x8] sm:$0xf] %v3457
      %3490 = vst [vmem:[#allocation5 + $0x2c] sm:$0xf] %v3458
      %3491 = vst [vmem:[#allocation5 + $0x50] sm:$0xf] %v3459
      %3492 = vst [vmem:[#allocation5 + $0x74] sm:$0xf] %v3460
      %3493 = vst [vmem:[#allocation5 + $0x98] sm:$0xf] %v3461
      %3494 = vst [vmem:[#allocation5 + $0xbc] sm:$0xf] %v3462
      %3495 = vst [vmem:[#allocation5 + $0xe0] sm:$0xf] %v3463
      %3496 = vst [vmem:[#allocation5 + $0x104] sm:$0xf] %v3464
      %3497 = vst [vmem:[#allocation5 + $0x128] sm:$0xf] %v3465
      %3498 = vst [vmem:[#allocation5 + $0x14c] sm:$0xf] %v3466
      %3499 = vst [vmem:[#allocation5 + $0x170] sm:$0xf] %v3467
      %3500 = vst [vmem:[#allocation5 + $0x194] sm:$0xf] %v3468
      %3501 = vst [vmem:[#allocation5 + $0x1b8] sm:$0xf] %v3469
      %3502 = vst [vmem:[#allocation5 + $0x1dc] sm:$0xf] %v3470
      %3503 = vst [vmem:[#allocation5 + $0x200] sm:$0xf] %v3471
      %3504 = vst [vmem:[#allocation5 + $0x224] sm:$0xf] %v3472
      %3505 = vst [vmem:[#allocation5 + $0x248] sm:$0xf] %v3473
      %3506 = vst [vmem:[#allocation5 + $0x26c] sm:$0xf] %v3474
      %3507 = vst [vmem:[#allocation5 + $0x290] sm:$0xf] %v3475
      %3508 = vst [vmem:[#allocation5 + $0x2b4] sm:$0xf] %v3476
      %3509 = vst [vmem:[#allocation5 + $0x2d8] sm:$0xf] %v3477
      %3510 = vst [vmem:[#allocation5 + $0x2fc] sm:$0xf] %v3478
      %3511 = vst [vmem:[#allocation5 + $0x320] sm:$0xf] %v3479
      %3512 = vst [vmem:[#allocation5 + $0x344] sm:$0xf] %v3480
      %3513 = vst [vmem:[#allocation5 + $0x368] sm:$0xf] %v3481
      %3514 = vst [vmem:[#allocation5 + $0x38c] sm:$0xf] %v3482
      %3515 = vst [vmem:[#allocation5 + $0x3b0] sm:$0xf] %v3483
      %3516 = vst [vmem:[#allocation5 + $0x3d4] sm:$0xf] %v3484
      %3517 = vst [vmem:[#allocation5 + $0x3f8] sm:$0xf] %v3485
      %3518 = vst [vmem:[#allocation5 + $0x41c] sm:$0xf] %v3486
      %3519 = vst [vmem:[#allocation5 + $0x440] sm:$0xf] %v3487
      %3520 = vst [vmem:[#allocation5 + $0x464] sm:$0xf] %v3488
      %v3521 = vld [vmem:[%s3200 + $0x7] sm:$0xff]
      %v3522 = vld [vmem:[%s3200 + $0xf] sm:$0xff]
      %v3523 = vld [vmem:[%s3200 + $0x27] sm:$0xff]
      %v3524 = vld [vmem:[%s3200 + $0x2f] sm:$0xff]
      %v3525 = vld [vmem:[%s3200 + $0x47] sm:$0xff]
      %v3526 = vld [vmem:[%s3200 + $0x4f] sm:$0xff]
      %v3527 = vld [vmem:[%s3200 + $0x67] sm:$0xff]
      %v3528 = vld [vmem:[%s3200 + $0x6f] sm:$0xff]
      %v3529 = vld [vmem:[%s3200 + $0x87] sm:$0xff]
      %v3530 = vld [vmem:[%s3200 + $0x8f] sm:$0xff]
      %v3531 = vld [vmem:[%s3200 + $0xa7] sm:$0xff]
      %v3532 = vld [vmem:[%s3200 + $0xaf] sm:$0xff]
      %v3533 = vld [vmem:[%s3200 + $0xc7] sm:$0xff]
      %v3534 = vld [vmem:[%s3200 + $0xcf] sm:$0xff]
      %v3535 = vld [vmem:[%s3200 + $0xe7] sm:$0xff]
      %v3536 = vld [vmem:[%s3200 + $0xef] sm:$0xff]
      %v3537 = vld [vmem:[%s3200 + $0x107] sm:$0xff]
      %v3538 = vld [vmem:[%s3200 + $0x10f] sm:$0xff]
      %v3539 = vld [vmem:[%s3200 + $0x127] sm:$0xff]
      %v3540 = vld [vmem:[%s3200 + $0x12f] sm:$0xff]
      %v3541 = vld [vmem:[%s3200 + $0x147] sm:$0xff]
      %v3542 = vld [vmem:[%s3200 + $0x14f] sm:$0xff]
      %v3543 = vld [vmem:[%s3200 + $0x167] sm:$0xff]
      %v3544 = vld [vmem:[%s3200 + $0x16f] sm:$0xff]
      %v3545 = vld [vmem:[%s3200 + $0x187] sm:$0xff]
      %v3546 = vld [vmem:[%s3200 + $0x18f] sm:$0xff]
      %v3547 = vld [vmem:[%s3200 + $0x1a7] sm:$0xff]
      %v3548 = vld [vmem:[%s3200 + $0x1af] sm:$0xff]
      %v3549 = vld [vmem:[%s3200 + $0x1c7] sm:$0xff]
      %v3550 = vld [vmem:[%s3200 + $0x1cf] sm:$0xff]
      %v3551 = vld [vmem:[%s3200 + $0x1e7] sm:$0xff]
      %v3552 = vld [vmem:[%s3200 + $0x1ef] sm:$0xff]
      %v3553 = vpack.c.bf16 %v3521, %v3521
      %v3554 = vpack.c.bf16 %v3522, %v3522
      %v3555 = vpack.c.bf16 %v3523, %v3523
      %v3556 = vpack.c.bf16 %v3524, %v3524
      %v3557 = vpack.c.bf16 %v3525, %v3525
      %v3558 = vpack.c.bf16 %v3526, %v3526
      %v3559 = vpack.c.bf16 %v3527, %v3527
      %v3560 = vpack.c.bf16 %v3528, %v3528
      %v3561 = vpack.c.bf16 %v3529, %v3529
      %v3562 = vpack.c.bf16 %v3530, %v3530
      %v3563 = vpack.c.bf16 %v3531, %v3531
      %v3564 = vpack.c.bf16 %v3532, %v3532
      %v3565 = vpack.c.bf16 %v3533, %v3533
      %v3566 = vpack.c.bf16 %v3534, %v3534
      %v3567 = vpack.c.bf16 %v3535, %v3535
      %v3568 = vpack.c.bf16 %v3536, %v3536
      %v3569 = vpack.c.bf16 %v3537, %v3537
      %v3570 = vpack.c.bf16 %v3538, %v3538
      %v3571 = vpack.c.bf16 %v3539, %v3539
      %v3572 = vpack.c.bf16 %v3540, %v3540
      %v3573 = vpack.c.bf16 %v3541, %v3541
      %v3574 = vpack.c.bf16 %v3542, %v3542
      %v3575 = vpack.c.bf16 %v3543, %v3543
      %v3576 = vpack.c.bf16 %v3544, %v3544
      %v3577 = vpack.c.bf16 %v3545, %v3545
      %v3578 = vpack.c.bf16 %v3546, %v3546
      %v3579 = vpack.c.bf16 %v3547, %v3547
      %v3580 = vpack.c.bf16 %v3548, %v3548
      %v3581 = vpack.c.bf16 %v3549, %v3549
      %v3582 = vpack.c.bf16 %v3550, %v3550
      %v3583 = vpack.c.bf16 %v3551, %v3551
      %v3584 = vpack.c.bf16 %v3552, %v3552
      %3585 = vst [vmem:[#allocation5 + $0xc] sm:$0xf] %v3553
      %3586 = vst [vmem:[#allocation5 + $0x30] sm:$0xf] %v3554
      %3587 = vst [vmem:[#allocation5 + $0x54] sm:$0xf] %v3555
      %3588 = vst [vmem:[#allocation5 + $0x78] sm:$0xf] %v3556
      %3589 = vst [vmem:[#allocation5 + $0x9c] sm:$0xf] %v3557
      %3590 = vst [vmem:[#allocation5 + $0xc0] sm:$0xf] %v3558
      %3591 = vst [vmem:[#allocation5 + $0xe4] sm:$0xf] %v3559
      %3592 = vst [vmem:[#allocation5 + $0x108] sm:$0xf] %v3560
      %3593 = vst [vmem:[#allocation5 + $0x12c] sm:$0xf] %v3561
      %3594 = vst [vmem:[#allocation5 + $0x150] sm:$0xf] %v3562
      %3595 = vst [vmem:[#allocation5 + $0x174] sm:$0xf] %v3563
      %3596 = vst [vmem:[#allocation5 + $0x198] sm:$0xf] %v3564
      %3597 = vst [vmem:[#allocation5 + $0x1bc] sm:$0xf] %v3565
      %3598 = vst [vmem:[#allocation5 + $0x1e0] sm:$0xf] %v3566
      %3599 = vst [vmem:[#allocation5 + $0x204] sm:$0xf] %v3567
      %3600 = vst [vmem:[#allocation5 + $0x228] sm:$0xf] %v3568
      %3601 = vst [vmem:[#allocation5 + $0x24c] sm:$0xf] %v3569
      %3602 = vst [vmem:[#allocation5 + $0x270] sm:$0xf] %v3570
      %3603 = vst [vmem:[#allocation5 + $0x294] sm:$0xf] %v3571
      %3604 = vst [vmem:[#allocation5 + $0x2b8] sm:$0xf] %v3572
      %3605 = vst [vmem:[#allocation5 + $0x2dc] sm:$0xf] %v3573
      %3606 = vst [vmem:[#allocation5 + $0x300] sm:$0xf] %v3574
      %3607 = vst [vmem:[#allocation5 + $0x324] sm:$0xf] %v3575
      %3608 = vst [vmem:[#allocation5 + $0x348] sm:$0xf] %v3576
      %3609 = vst [vmem:[#allocation5 + $0x36c] sm:$0xf] %v3577
      %3610 = vst [vmem:[#allocation5 + $0x390] sm:$0xf] %v3578
      %3611 = vst [vmem:[#allocation5 + $0x3b4] sm:$0xf] %v3579
      %3612 = vst [vmem:[#allocation5 + $0x3d8] sm:$0xf] %v3580
      %3613 = vst [vmem:[#allocation5 + $0x3fc] sm:$0xf] %v3581
      %3614 = vst [vmem:[#allocation5 + $0x420] sm:$0xf] %v3582
      %3615 = vst [vmem:[#allocation5 + $0x444] sm:$0xf] %v3583
      %3616 = vst [vmem:[#allocation5 + $0x468] sm:$0xf] %v3584
      %v3617 = vld [vmem:[%s3200 + $0x8] sm:$0xff]
      %v3618 = vld [vmem:[%s3200 + $0x10] sm:$0xff]
      %v3619 = vld [vmem:[%s3200 + $0x28] sm:$0xff]
      %v3620 = vld [vmem:[%s3200 + $0x30] sm:$0xff]
      %v3621 = vld [vmem:[%s3200 + $0x48] sm:$0xff]
      %v3622 = vld [vmem:[%s3200 + $0x50] sm:$0xff]
      %v3623 = vld [vmem:[%s3200 + $0x68] sm:$0xff]
      %v3624 = vld [vmem:[%s3200 + $0x70] sm:$0xff]
      %v3625 = vld [vmem:[%s3200 + $0x88] sm:$0xff]
      %v3626 = vld [vmem:[%s3200 + $0x90] sm:$0xff]
      %v3627 = vld [vmem:[%s3200 + $0xa8] sm:$0xff]
      %v3628 = vld [vmem:[%s3200 + $0xb0] sm:$0xff]
      %v3629 = vld [vmem:[%s3200 + $0xc8] sm:$0xff]
      %v3630 = vld [vmem:[%s3200 + $0xd0] sm:$0xff]
      %v3631 = vld [vmem:[%s3200 + $0xe8] sm:$0xff]
      %v3632 = vld [vmem:[%s3200 + $0xf0] sm:$0xff]
      %v3633 = vld [vmem:[%s3200 + $0x108] sm:$0xff]
      %v3634 = vld [vmem:[%s3200 + $0x110] sm:$0xff]
      %v3635 = vld [vmem:[%s3200 + $0x128] sm:$0xff]
      %v3636 = vld [vmem:[%s3200 + $0x130] sm:$0xff]
      %v3637 = vld [vmem:[%s3200 + $0x148] sm:$0xff]
      %v3638 = vld [vmem:[%s3200 + $0x150] sm:$0xff]
      %v3639 = vld [vmem:[%s3200 + $0x168] sm:$0xff]
      %v3640 = vld [vmem:[%s3200 + $0x170] sm:$0xff]
      %v3641 = vld [vmem:[%s3200 + $0x188] sm:$0xff]
      %v3642 = vld [vmem:[%s3200 + $0x190] sm:$0xff]
      %v3643 = vld [vmem:[%s3200 + $0x1a8] sm:$0xff]
      %v3644 = vld [vmem:[%s3200 + $0x1b0] sm:$0xff]
      %v3645 = vld [vmem:[%s3200 + $0x1c8] sm:$0xff]
      %v3646 = vld [vmem:[%s3200 + $0x1d0] sm:$0xff]
      %v3647 = vld [vmem:[%s3200 + $0x1e8] sm:$0xff]
      %v3648 = vld [vmem:[%s3200 + $0x1f0] sm:$0xff]
      %v3649 = vpack.c.bf16 %v3617, %v3617
      %v3650 = vpack.c.bf16 %v3618, %v3618
      %v3651 = vpack.c.bf16 %v3619, %v3619
      %v3652 = vpack.c.bf16 %v3620, %v3620
      %v3653 = vpack.c.bf16 %v3621, %v3621
      %v3654 = vpack.c.bf16 %v3622, %v3622
      %v3655 = vpack.c.bf16 %v3623, %v3623
      %v3656 = vpack.c.bf16 %v3624, %v3624
      %v3657 = vpack.c.bf16 %v3625, %v3625
      %v3658 = vpack.c.bf16 %v3626, %v3626
      %v3659 = vpack.c.bf16 %v3627, %v3627
      %v3660 = vpack.c.bf16 %v3628, %v3628
      %v3661 = vpack.c.bf16 %v3629, %v3629
      %v3662 = vpack.c.bf16 %v3630, %v3630
      %v3663 = vpack.c.bf16 %v3631, %v3631
      %v3664 = vpack.c.bf16 %v3632, %v3632
      %v3665 = vpack.c.bf16 %v3633, %v3633
      %v3666 = vpack.c.bf16 %v3634, %v3634
      %v3667 = vpack.c.bf16 %v3635, %v3635
      %v3668 = vpack.c.bf16 %v3636, %v3636
      %v3669 = vpack.c.bf16 %v3637, %v3637
      %v3670 = vpack.c.bf16 %v3638, %v3638
      %v3671 = vpack.c.bf16 %v3639, %v3639
      %v3672 = vpack.c.bf16 %v3640, %v3640
      %v3673 = vpack.c.bf16 %v3641, %v3641
      %v3674 = vpack.c.bf16 %v3642, %v3642
      %v3675 = vpack.c.bf16 %v3643, %v3643
      %v3676 = vpack.c.bf16 %v3644, %v3644
      %v3677 = vpack.c.bf16 %v3645, %v3645
      %v3678 = vpack.c.bf16 %v3646, %v3646
      %v3679 = vpack.c.bf16 %v3647, %v3647
      %v3680 = vpack.c.bf16 %v3648, %v3648
      %3681 = vst [vmem:[#allocation5 + $0x10] sm:$0xf] %v3649
      %3682 = vst [vmem:[#allocation5 + $0x34] sm:$0xf] %v3650
      %3683 = vst [vmem:[#allocation5 + $0x58] sm:$0xf] %v3651
      %3684 = vst [vmem:[#allocation5 + $0x7c] sm:$0xf] %v3652
      %3685 = vst [vmem:[#allocation5 + $0xa0] sm:$0xf] %v3653
      %3686 = vst [vmem:[#allocation5 + $0xc4] sm:$0xf] %v3654
      %3687 = vst [vmem:[#allocation5 + $0xe8] sm:$0xf] %v3655
      %3688 = vst [vmem:[#allocation5 + $0x10c] sm:$0xf] %v3656
      %3689 = vst [vmem:[#allocation5 + $0x130] sm:$0xf] %v3657
      %3690 = vst [vmem:[#allocation5 + $0x154] sm:$0xf] %v3658
      %3691 = vst [vmem:[#allocation5 + $0x178] sm:$0xf] %v3659
      %3692 = vst [vmem:[#allocation5 + $0x19c] sm:$0xf] %v3660
      %3693 = vst [vmem:[#allocation5 + $0x1c0] sm:$0xf] %v3661
      %3694 = vst [vmem:[#allocation5 + $0x1e4] sm:$0xf] %v3662
      %3695 = vst [vmem:[#allocation5 + $0x208] sm:$0xf] %v3663
      %3696 = vst [vmem:[#allocation5 + $0x22c] sm:$0xf] %v3664
      %3697 = vst [vmem:[#allocation5 + $0x250] sm:$0xf] %v3665
      %3698 = vst [vmem:[#allocation5 + $0x274] sm:$0xf] %v3666
      %3699 = vst [vmem:[#allocation5 + $0x298] sm:$0xf] %v3667
      %3700 = vst [vmem:[#allocation5 + $0x2bc] sm:$0xf] %v3668
      %3701 = vst [vmem:[#allocation5 + $0x2e0] sm:$0xf] %v3669
      %3702 = vst [vmem:[#allocation5 + $0x304] sm:$0xf] %v3670
      %3703 = vst [vmem:[#allocation5 + $0x328] sm:$0xf] %v3671
      %3704 = vst [vmem:[#allocation5 + $0x34c] sm:$0xf] %v3672
      %3705 = vst [vmem:[#allocation5 + $0x370] sm:$0xf] %v3673
      %3706 = vst [vmem:[#allocation5 + $0x394] sm:$0xf] %v3674
      %3707 = vst [vmem:[#allocation5 + $0x3b8] sm:$0xf] %v3675
      %3708 = vst [vmem:[#allocation5 + $0x3dc] sm:$0xf] %v3676
      %3709 = vst [vmem:[#allocation5 + $0x400] sm:$0xf] %v3677
      %3710 = vst [vmem:[#allocation5 + $0x424] sm:$0xf] %v3678
      %3711 = vst [vmem:[#allocation5 + $0x448] sm:$0xf] %v3679
      %3712 = vst [vmem:[#allocation5 + $0x46c] sm:$0xf] %v3680
      %v3713 = vld [vmem:[%s3200 + $0x9] sm:$0xff]
      %v3714 = vld [vmem:[%s3200 + $0x11] sm:$0xff]
      %v3715 = vld [vmem:[%s3200 + $0x29] sm:$0xff]
      %v3716 = vld [vmem:[%s3200 + $0x31] sm:$0xff]
      %v3717 = vld [vmem:[%s3200 + $0x49] sm:$0xff]
      %v3718 = vld [vmem:[%s3200 + $0x51] sm:$0xff]
      %v3719 = vld [vmem:[%s3200 + $0x69] sm:$0xff]
      %v3720 = vld [vmem:[%s3200 + $0x71] sm:$0xff]
      %v3721 = vld [vmem:[%s3200 + $0x89] sm:$0xff]
      %v3722 = vld [vmem:[%s3200 + $0x91] sm:$0xff]
      %v3723 = vld [vmem:[%s3200 + $0xa9] sm:$0xff]
      %v3724 = vld [vmem:[%s3200 + $0xb1] sm:$0xff]
      %v3725 = vld [vmem:[%s3200 + $0xc9] sm:$0xff]
      %v3726 = vld [vmem:[%s3200 + $0xd1] sm:$0xff]
      %v3727 = vld [vmem:[%s3200 + $0xe9] sm:$0xff]
      %v3728 = vld [vmem:[%s3200 + $0xf1] sm:$0xff]
      %v3729 = vld [vmem:[%s3200 + $0x109] sm:$0xff]
      %v3730 = vld [vmem:[%s3200 + $0x111] sm:$0xff]
      %v3731 = vld [vmem:[%s3200 + $0x129] sm:$0xff]
      %v3732 = vld [vmem:[%s3200 + $0x131] sm:$0xff]
      %v3733 = vld [vmem:[%s3200 + $0x149] sm:$0xff]
      %v3734 = vld [vmem:[%s3200 + $0x151] sm:$0xff]
      %v3735 = vld [vmem:[%s3200 + $0x169] sm:$0xff]
      %v3736 = vld [vmem:[%s3200 + $0x171] sm:$0xff]
      %v3737 = vld [vmem:[%s3200 + $0x189] sm:$0xff]
      %v3738 = vld [vmem:[%s3200 + $0x191] sm:$0xff]
      %v3739 = vld [vmem:[%s3200 + $0x1a9] sm:$0xff]
      %v3740 = vld [vmem:[%s3200 + $0x1b1] sm:$0xff]
      %v3741 = vld [vmem:[%s3200 + $0x1c9] sm:$0xff]
      %v3742 = vld [vmem:[%s3200 + $0x1d1] sm:$0xff]
      %v3743 = vld [vmem:[%s3200 + $0x1e9] sm:$0xff]
      %v3744 = vld [vmem:[%s3200 + $0x1f1] sm:$0xff]
      %v3745 = vpack.c.bf16 %v3713, %v3713
      %v3746 = vpack.c.bf16 %v3714, %v3714
      %v3747 = vpack.c.bf16 %v3715, %v3715
      %v3748 = vpack.c.bf16 %v3716, %v3716
      %v3749 = vpack.c.bf16 %v3717, %v3717
      %v3750 = vpack.c.bf16 %v3718, %v3718
      %v3751 = vpack.c.bf16 %v3719, %v3719
      %v3752 = vpack.c.bf16 %v3720, %v3720
      %v3753 = vpack.c.bf16 %v3721, %v3721
      %v3754 = vpack.c.bf16 %v3722, %v3722
      %v3755 = vpack.c.bf16 %v3723, %v3723
      %v3756 = vpack.c.bf16 %v3724, %v3724
      %v3757 = vpack.c.bf16 %v3725, %v3725
      %v3758 = vpack.c.bf16 %v3726, %v3726
      %v3759 = vpack.c.bf16 %v3727, %v3727
      %v3760 = vpack.c.bf16 %v3728, %v3728
      %v3761 = vpack.c.bf16 %v3729, %v3729
      %v3762 = vpack.c.bf16 %v3730, %v3730
      %v3763 = vpack.c.bf16 %v3731, %v3731
      %v3764 = vpack.c.bf16 %v3732, %v3732
      %v3765 = vpack.c.bf16 %v3733, %v3733
      %v3766 = vpack.c.bf16 %v3734, %v3734
      %v3767 = vpack.c.bf16 %v3735, %v3735
      %v3768 = vpack.c.bf16 %v3736, %v3736
      %v3769 = vpack.c.bf16 %v3737, %v3737
      %v3770 = vpack.c.bf16 %v3738, %v3738
      %v3771 = vpack.c.bf16 %v3739, %v3739
      %v3772 = vpack.c.bf16 %v3740, %v3740
      %v3773 = vpack.c.bf16 %v3741, %v3741
      %v3774 = vpack.c.bf16 %v3742, %v3742
      %v3775 = vpack.c.bf16 %v3743, %v3743
      %v3776 = vpack.c.bf16 %v3744, %v3744
      %3777 = vst [vmem:[#allocation5 + $0x14] sm:$0xf] %v3745
      %3778 = vst [vmem:[#allocation5 + $0x38] sm:$0xf] %v3746
      %3779 = vst [vmem:[#allocation5 + $0x5c] sm:$0xf] %v3747
      %3780 = vst [vmem:[#allocation5 + $0x80] sm:$0xf] %v3748
      %3781 = vst [vmem:[#allocation5 + $0xa4] sm:$0xf] %v3749
      %3782 = vst [vmem:[#allocation5 + $0xc8] sm:$0xf] %v3750
      %3783 = vst [vmem:[#allocation5 + $0xec] sm:$0xf] %v3751
      %3784 = vst [vmem:[#allocation5 + $0x110] sm:$0xf] %v3752
      %3785 = vst [vmem:[#allocation5 + $0x134] sm:$0xf] %v3753
      %3786 = vst [vmem:[#allocation5 + $0x158] sm:$0xf] %v3754
      %3787 = vst [vmem:[#allocation5 + $0x17c] sm:$0xf] %v3755
      %3788 = vst [vmem:[#allocation5 + $0x1a0] sm:$0xf] %v3756
      %3789 = vst [vmem:[#allocation5 + $0x1c4] sm:$0xf] %v3757
      %3790 = vst [vmem:[#allocation5 + $0x1e8] sm:$0xf] %v3758
      %3791 = vst [vmem:[#allocation5 + $0x20c] sm:$0xf] %v3759
      %3792 = vst [vmem:[#allocation5 + $0x230] sm:$0xf] %v3760
      %3793 = vst [vmem:[#allocation5 + $0x254] sm:$0xf] %v3761
      %3794 = vst [vmem:[#allocation5 + $0x278] sm:$0xf] %v3762
      %3795 = vst [vmem:[#allocation5 + $0x29c] sm:$0xf] %v3763
      %3796 = vst [vmem:[#allocation5 + $0x2c0] sm:$0xf] %v3764
      %3797 = vst [vmem:[#allocation5 + $0x2e4] sm:$0xf] %v3765
      %3798 = vst [vmem:[#allocation5 + $0x308] sm:$0xf] %v3766
      %3799 = vst [vmem:[#allocation5 + $0x32c] sm:$0xf] %v3767
      %3800 = vst [vmem:[#allocation5 + $0x350] sm:$0xf] %v3768
      %3801 = vst [vmem:[#allocation5 + $0x374] sm:$0xf] %v3769
      %3802 = vst [vmem:[#allocation5 + $0x398] sm:$0xf] %v3770
      %3803 = vst [vmem:[#allocation5 + $0x3bc] sm:$0xf] %v3771
      %3804 = vst [vmem:[#allocation5 + $0x3e0] sm:$0xf] %v3772
      %3805 = vst [vmem:[#allocation5 + $0x404] sm:$0xf] %v3773
      %3806 = vst [vmem:[#allocation5 + $0x428] sm:$0xf] %v3774
      %3807 = vst [vmem:[#allocation5 + $0x44c] sm:$0xf] %v3775
      %3808 = vst [vmem:[#allocation5 + $0x470] sm:$0xf] %v3776
      %s3809 = scalar_lea.vmem [#allocation4], 64
      %v3810 = vld [vmem:[%s3809 + $0x7] sm:$0xff]
      %v3811 = vld [vmem:[%s3809 + $0xf] sm:$0xff]
      %v3812 = vld [vmem:[%s3809 + $0x27] sm:$0xff]
      %v3813 = vld [vmem:[%s3809 + $0x2f] sm:$0xff]
      %v3814 = vld [vmem:[%s3809 + $0x47] sm:$0xff]
      %v3815 = vld [vmem:[%s3809 + $0x4f] sm:$0xff]
      %v3816 = vld [vmem:[%s3809 + $0x67] sm:$0xff]
      %v3817 = vld [vmem:[%s3809 + $0x6f] sm:$0xff]
      %v3818 = vld [vmem:[%s3809 + $0x87] sm:$0xff]
      %v3819 = vld [vmem:[%s3809 + $0x8f] sm:$0xff]
      %v3820 = vld [vmem:[%s3809 + $0xa7] sm:$0xff]
      %v3821 = vld [vmem:[%s3809 + $0xaf] sm:$0xff]
      %v3822 = vld [vmem:[%s3809 + $0xc7] sm:$0xff]
      %v3823 = vld [vmem:[%s3809 + $0xcf] sm:$0xff]
      %v3824 = vld [vmem:[%s3809 + $0xe7] sm:$0xff]
      %v3825 = vld [vmem:[%s3809 + $0xef] sm:$0xff]
      %v3826 = vld [vmem:[%s3809 + $0x107] sm:$0xff]
      %v3827 = vld [vmem:[%s3809 + $0x10f] sm:$0xff]
      %v3828 = vld [vmem:[%s3809 + $0x127] sm:$0xff]
      %v3829 = vld [vmem:[%s3809 + $0x12f] sm:$0xff]
      %v3830 = vld [vmem:[%s3809 + $0x147] sm:$0xff]
      %v3831 = vld [vmem:[%s3809 + $0x14f] sm:$0xff]
      %v3832 = vld [vmem:[%s3809 + $0x167] sm:$0xff]
      %v3833 = vld [vmem:[%s3809 + $0x16f] sm:$0xff]
      %v3834 = vld [vmem:[%s3809 + $0x187] sm:$0xff]
      %v3835 = vld [vmem:[%s3809 + $0x18f] sm:$0xff]
      %v3836 = vld [vmem:[%s3809 + $0x1a7] sm:$0xff]
      %v3837 = vld [vmem:[%s3809 + $0x1af] sm:$0xff]
      %v3838 = vld [vmem:[%s3809 + $0x1c7] sm:$0xff]
      %v3839 = vld [vmem:[%s3809 + $0x1cf] sm:$0xff]
      %v3840 = vld [vmem:[%s3809 + $0x1e7] sm:$0xff]
      %v3841 = vld [vmem:[%s3809 + $0x1ef] sm:$0xff]
      %v3842 = vpack.c.bf16 %v3810, %v3810
      %v3843 = vpack.c.bf16 %v3811, %v3811
      %v3844 = vpack.c.bf16 %v3812, %v3812
      %v3845 = vpack.c.bf16 %v3813, %v3813
      %v3846 = vpack.c.bf16 %v3814, %v3814
      %v3847 = vpack.c.bf16 %v3815, %v3815
      %v3848 = vpack.c.bf16 %v3816, %v3816
      %v3849 = vpack.c.bf16 %v3817, %v3817
      %v3850 = vpack.c.bf16 %v3818, %v3818
      %v3851 = vpack.c.bf16 %v3819, %v3819
      %v3852 = vpack.c.bf16 %v3820, %v3820
      %v3853 = vpack.c.bf16 %v3821, %v3821
      %v3854 = vpack.c.bf16 %v3822, %v3822
      %v3855 = vpack.c.bf16 %v3823, %v3823
      %v3856 = vpack.c.bf16 %v3824, %v3824
      %v3857 = vpack.c.bf16 %v3825, %v3825
      %v3858 = vpack.c.bf16 %v3826, %v3826
      %v3859 = vpack.c.bf16 %v3827, %v3827
      %v3860 = vpack.c.bf16 %v3828, %v3828
      %v3861 = vpack.c.bf16 %v3829, %v3829
      %v3862 = vpack.c.bf16 %v3830, %v3830
      %v3863 = vpack.c.bf16 %v3831, %v3831
      %v3864 = vpack.c.bf16 %v3832, %v3832
      %v3865 = vpack.c.bf16 %v3833, %v3833
      %v3866 = vpack.c.bf16 %v3834, %v3834
      %v3867 = vpack.c.bf16 %v3835, %v3835
      %v3868 = vpack.c.bf16 %v3836, %v3836
      %v3869 = vpack.c.bf16 %v3837, %v3837
      %v3870 = vpack.c.bf16 %v3838, %v3838
      %v3871 = vpack.c.bf16 %v3839, %v3839
      %v3872 = vpack.c.bf16 %v3840, %v3840
      %v3873 = vpack.c.bf16 %v3841, %v3841
      %3874 = vst [vmem:[#allocation5 + $0x18] sm:$0xf] %v3842
      %3875 = vst [vmem:[#allocation5 + $0x3c] sm:$0xf] %v3843
      %3876 = vst [vmem:[#allocation5 + $0x60] sm:$0xf] %v3844
      %3877 = vst [vmem:[#allocation5 + $0x84] sm:$0xf] %v3845
      %3878 = vst [vmem:[#allocation5 + $0xa8] sm:$0xf] %v3846
      %3879 = vst [vmem:[#allocation5 + $0xcc] sm:$0xf] %v3847
      %3880 = vst [vmem:[#allocation5 + $0xf0] sm:$0xf] %v3848
      %3881 = vst [vmem:[#allocation5 + $0x114] sm:$0xf] %v3849
      %3882 = vst [vmem:[#allocation5 + $0x138] sm:$0xf] %v3850
      %3883 = vst [vmem:[#allocation5 + $0x15c] sm:$0xf] %v3851
      %3884 = vst [vmem:[#allocation5 + $0x180] sm:$0xf] %v3852
      %3885 = vst [vmem:[#allocation5 + $0x1a4] sm:$0xf] %v3853
      %3886 = vst [vmem:[#allocation5 + $0x1c8] sm:$0xf] %v3854
      %3887 = vst [vmem:[#allocation5 + $0x1ec] sm:$0xf] %v3855
      %3888 = vst [vmem:[#allocation5 + $0x210] sm:$0xf] %v3856
      %3889 = vst [vmem:[#allocation5 + $0x234] sm:$0xf] %v3857
      %3890 = vst [vmem:[#allocation5 + $0x258] sm:$0xf] %v3858
      %3891 = vst [vmem:[#allocation5 + $0x27c] sm:$0xf] %v3859
      %3892 = vst [vmem:[#allocation5 + $0x2a0] sm:$0xf] %v3860
      %3893 = vst [vmem:[#allocation5 + $0x2c4] sm:$0xf] %v3861
      %3894 = vst [vmem:[#allocation5 + $0x2e8] sm:$0xf] %v3862
      %3895 = vst [vmem:[#allocation5 + $0x30c] sm:$0xf] %v3863
      %3896 = vst [vmem:[#allocation5 + $0x330] sm:$0xf] %v3864
      %3897 = vst [vmem:[#allocation5 + $0x354] sm:$0xf] %v3865
      %3898 = vst [vmem:[#allocation5 + $0x378] sm:$0xf] %v3866
      %3899 = vst [vmem:[#allocation5 + $0x39c] sm:$0xf] %v3867
      %3900 = vst [vmem:[#allocation5 + $0x3c0] sm:$0xf] %v3868
      %3901 = vst [vmem:[#allocation5 + $0x3e4] sm:$0xf] %v3869
      %3902 = vst [vmem:[#allocation5 + $0x408] sm:$0xf] %v3870
      %3903 = vst [vmem:[#allocation5 + $0x42c] sm:$0xf] %v3871
      %3904 = vst [vmem:[#allocation5 + $0x450] sm:$0xf] %v3872
      %3905 = vst [vmem:[#allocation5 + $0x474] sm:$0xf] %v3873
      %v3906 = vld [vmem:[%s3809 + $0x8] sm:$0xff]
      %v3907 = vld [vmem:[%s3809 + $0x10] sm:$0xff]
      %v3908 = vld [vmem:[%s3809 + $0x28] sm:$0xff]
      %v3909 = vld [vmem:[%s3809 + $0x30] sm:$0xff]
      %v3910 = vld [vmem:[%s3809 + $0x48] sm:$0xff]
      %v3911 = vld [vmem:[%s3809 + $0x50] sm:$0xff]
      %v3912 = vld [vmem:[%s3809 + $0x68] sm:$0xff]
      %v3913 = vld [vmem:[%s3809 + $0x70] sm:$0xff]
      %v3914 = vld [vmem:[%s3809 + $0x88] sm:$0xff]
      %v3915 = vld [vmem:[%s3809 + $0x90] sm:$0xff]
      %v3916 = vld [vmem:[%s3809 + $0xa8] sm:$0xff]
      %v3917 = vld [vmem:[%s3809 + $0xb0] sm:$0xff]
      %v3918 = vld [vmem:[%s3809 + $0xc8] sm:$0xff]
      %v3919 = vld [vmem:[%s3809 + $0xd0] sm:$0xff]
      %v3920 = vld [vmem:[%s3809 + $0xe8] sm:$0xff]
      %v3921 = vld [vmem:[%s3809 + $0xf0] sm:$0xff]
      %v3922 = vld [vmem:[%s3809 + $0x108] sm:$0xff]
      %v3923 = vld [vmem:[%s3809 + $0x110] sm:$0xff]
      %v3924 = vld [vmem:[%s3809 + $0x128] sm:$0xff]
      %v3925 = vld [vmem:[%s3809 + $0x130] sm:$0xff]
      %v3926 = vld [vmem:[%s3809 + $0x148] sm:$0xff]
      %v3927 = vld [vmem:[%s3809 + $0x150] sm:$0xff]
      %v3928 = vld [vmem:[%s3809 + $0x168] sm:$0xff]
      %v3929 = vld [vmem:[%s3809 + $0x170] sm:$0xff]
      %v3930 = vld [vmem:[%s3809 + $0x188] sm:$0xff]
      %v3931 = vld [vmem:[%s3809 + $0x190] sm:$0xff]
      %v3932 = vld [vmem:[%s3809 + $0x1a8] sm:$0xff]
      %v3933 = vld [vmem:[%s3809 + $0x1b0] sm:$0xff]
      %v3934 = vld [vmem:[%s3809 + $0x1c8] sm:$0xff]
      %v3935 = vld [vmem:[%s3809 + $0x1d0] sm:$0xff]
      %v3936 = vld [vmem:[%s3809 + $0x1e8] sm:$0xff]
      %v3937 = vld [vmem:[%s3809 + $0x1f0] sm:$0xff]
      %v3938 = vpack.c.bf16 %v3906, %v3906
      %v3939 = vpack.c.bf16 %v3907, %v3907
      %v3940 = vpack.c.bf16 %v3908, %v3908
      %v3941 = vpack.c.bf16 %v3909, %v3909
      %v3942 = vpack.c.bf16 %v3910, %v3910
      %v3943 = vpack.c.bf16 %v3911, %v3911
      %v3944 = vpack.c.bf16 %v3912, %v3912
      %v3945 = vpack.c.bf16 %v3913, %v3913
      %v3946 = vpack.c.bf16 %v3914, %v3914
      %v3947 = vpack.c.bf16 %v3915, %v3915
      %v3948 = vpack.c.bf16 %v3916, %v3916
      %v3949 = vpack.c.bf16 %v3917, %v3917
      %v3950 = vpack.c.bf16 %v3918, %v3918
      %v3951 = vpack.c.bf16 %v3919, %v3919
      %v3952 = vpack.c.bf16 %v3920, %v3920
      %v3953 = vpack.c.bf16 %v3921, %v3921
      %v3954 = vpack.c.bf16 %v3922, %v3922
      %v3955 = vpack.c.bf16 %v3923, %v3923
      %v3956 = vpack.c.bf16 %v3924, %v3924
      %v3957 = vpack.c.bf16 %v3925, %v3925
      %v3958 = vpack.c.bf16 %v3926, %v3926
      %v3959 = vpack.c.bf16 %v3927, %v3927
      %v3960 = vpack.c.bf16 %v3928, %v3928
      %v3961 = vpack.c.bf16 %v3929, %v3929
      %v3962 = vpack.c.bf16 %v3930, %v3930
      %v3963 = vpack.c.bf16 %v3931, %v3931
      %v3964 = vpack.c.bf16 %v3932, %v3932
      %v3965 = vpack.c.bf16 %v3933, %v3933
      %v3966 = vpack.c.bf16 %v3934, %v3934
      %v3967 = vpack.c.bf16 %v3935, %v3935
      %v3968 = vpack.c.bf16 %v3936, %v3936
      %v3969 = vpack.c.bf16 %v3937, %v3937
      %3970 = vst [vmem:[#allocation5 + $0x1c] sm:$0xf] %v3938
      %3971 = vst [vmem:[#allocation5 + $0x40] sm:$0xf] %v3939
      %3972 = vst [vmem:[#allocation5 + $0x64] sm:$0xf] %v3940
      %3973 = vst [vmem:[#allocation5 + $0x88] sm:$0xf] %v3941
      %3974 = vst [vmem:[#allocation5 + $0xac] sm:$0xf] %v3942
      %3975 = vst [vmem:[#allocation5 + $0xd0] sm:$0xf] %v3943
      %3976 = vst [vmem:[#allocation5 + $0xf4] sm:$0xf] %v3944
      %3977 = vst [vmem:[#allocation5 + $0x118] sm:$0xf] %v3945
      %3978 = vst [vmem:[#allocation5 + $0x13c] sm:$0xf] %v3946
      %3979 = vst [vmem:[#allocation5 + $0x160] sm:$0xf] %v3947
      %3980 = vst [vmem:[#allocation5 + $0x184] sm:$0xf] %v3948
      %3981 = vst [vmem:[#allocation5 + $0x1a8] sm:$0xf] %v3949
      %3982 = vst [vmem:[#allocation5 + $0x1cc] sm:$0xf] %v3950
      %3983 = vst [vmem:[#allocation5 + $0x1f0] sm:$0xf] %v3951
      %3984 = vst [vmem:[#allocation5 + $0x214] sm:$0xf] %v3952
      %3985 = vst [vmem:[#allocation5 + $0x238] sm:$0xf] %v3953
      %3986 = vst [vmem:[#allocation5 + $0x25c] sm:$0xf] %v3954
      %3987 = vst [vmem:[#allocation5 + $0x280] sm:$0xf] %v3955
      %3988 = vst [vmem:[#allocation5 + $0x2a4] sm:$0xf] %v3956
      %3989 = vst [vmem:[#allocation5 + $0x2c8] sm:$0xf] %v3957
      %3990 = vst [vmem:[#allocation5 + $0x2ec] sm:$0xf] %v3958
      %3991 = vst [vmem:[#allocation5 + $0x310] sm:$0xf] %v3959
      %3992 = vst [vmem:[#allocation5 + $0x334] sm:$0xf] %v3960
      %3993 = vst [vmem:[#allocation5 + $0x358] sm:$0xf] %v3961
      %3994 = vst [vmem:[#allocation5 + $0x37c] sm:$0xf] %v3962
      %3995 = vst [vmem:[#allocation5 + $0x3a0] sm:$0xf] %v3963
      %3996 = vst [vmem:[#allocation5 + $0x3c4] sm:$0xf] %v3964
      %3997 = vst [vmem:[#allocation5 + $0x3e8] sm:$0xf] %v3965
      %3998 = vst [vmem:[#allocation5 + $0x40c] sm:$0xf] %v3966
      %3999 = vst [vmem:[#allocation5 + $0x430] sm:$0xf] %v3967
      %4000 = vst [vmem:[#allocation5 + $0x454] sm:$0xf] %v3968
      %4001 = vst [vmem:[#allocation5 + $0x478] sm:$0xf] %v3969
      %v4002 = vld [vmem:[%s3809 + $0x9] sm:$0xff]
      %v4003 = vld [vmem:[%s3809 + $0x11] sm:$0xff]
      %v4004 = vld [vmem:[%s3809 + $0x29] sm:$0xff]
      %v4005 = vld [vmem:[%s3809 + $0x31] sm:$0xff]
      %v4006 = vld [vmem:[%s3809 + $0x49] sm:$0xff]
      %v4007 = vld [vmem:[%s3809 + $0x51] sm:$0xff]
      %v4008 = vld [vmem:[%s3809 + $0x69] sm:$0xff]
      %v4009 = vld [vmem:[%s3809 + $0x71] sm:$0xff]
      %v4010 = vld [vmem:[%s3809 + $0x89] sm:$0xff]
      %v4011 = vld [vmem:[%s3809 + $0x91] sm:$0xff]
      %v4012 = vld [vmem:[%s3809 + $0xa9] sm:$0xff]
      %v4013 = vld [vmem:[%s3809 + $0xb1] sm:$0xff]
      %v4014 = vld [vmem:[%s3809 + $0xc9] sm:$0xff]
      %v4015 = vld [vmem:[%s3809 + $0xd1] sm:$0xff]
      %v4016 = vld [vmem:[%s3809 + $0xe9] sm:$0xff]
      %v4017 = vld [vmem:[%s3809 + $0xf1] sm:$0xff]
      %v4018 = vld [vmem:[%s3809 + $0x109] sm:$0xff]
      %v4019 = vld [vmem:[%s3809 + $0x111] sm:$0xff]
      %v4020 = vld [vmem:[%s3809 + $0x129] sm:$0xff]
      %v4021 = vld [vmem:[%s3809 + $0x131] sm:$0xff]
      %v4022 = vld [vmem:[%s3809 + $0x149] sm:$0xff]
      %v4023 = vld [vmem:[%s3809 + $0x151] sm:$0xff]
      %v4024 = vld [vmem:[%s3809 + $0x169] sm:$0xff]
      %v4025 = vld [vmem:[%s3809 + $0x171] sm:$0xff]
      %v4026 = vld [vmem:[%s3809 + $0x189] sm:$0xff]
      %v4027 = vld [vmem:[%s3809 + $0x191] sm:$0xff]
      %v4028 = vld [vmem:[%s3809 + $0x1a9] sm:$0xff]
      %v4029 = vld [vmem:[%s3809 + $0x1b1] sm:$0xff]
      %v4030 = vld [vmem:[%s3809 + $0x1c9] sm:$0xff]
      %v4031 = vld [vmem:[%s3809 + $0x1d1] sm:$0xff]
      %v4032 = vld [vmem:[%s3809 + $0x1e9] sm:$0xff]
      %v4033 = vld [vmem:[%s3809 + $0x1f1] sm:$0xff]
      %v4034 = vpack.c.bf16 %v4002, %v4002
      %v4035 = vpack.c.bf16 %v4003, %v4003
      %v4036 = vpack.c.bf16 %v4004, %v4004
      %v4037 = vpack.c.bf16 %v4005, %v4005
      %v4038 = vpack.c.bf16 %v4006, %v4006
      %v4039 = vpack.c.bf16 %v4007, %v4007
      %v4040 = vpack.c.bf16 %v4008, %v4008
      %v4041 = vpack.c.bf16 %v4009, %v4009
      %v4042 = vpack.c.bf16 %v4010, %v4010
      %v4043 = vpack.c.bf16 %v4011, %v4011
      %v4044 = vpack.c.bf16 %v4012, %v4012
      %v4045 = vpack.c.bf16 %v4013, %v4013
      %v4046 = vpack.c.bf16 %v4014, %v4014
      %v4047 = vpack.c.bf16 %v4015, %v4015
      %v4048 = vpack.c.bf16 %v4016, %v4016
      %v4049 = vpack.c.bf16 %v4017, %v4017
      %v4050 = vpack.c.bf16 %v4018, %v4018
      %v4051 = vpack.c.bf16 %v4019, %v4019
      %v4052 = vpack.c.bf16 %v4020, %v4020
      %v4053 = vpack.c.bf16 %v4021, %v4021
      %v4054 = vpack.c.bf16 %v4022, %v4022
      %v4055 = vpack.c.bf16 %v4023, %v4023
      %v4056 = vpack.c.bf16 %v4024, %v4024
      %v4057 = vpack.c.bf16 %v4025, %v4025
      %v4058 = vpack.c.bf16 %v4026, %v4026
      %v4059 = vpack.c.bf16 %v4027, %v4027
      %v4060 = vpack.c.bf16 %v4028, %v4028
      %v4061 = vpack.c.bf16 %v4029, %v4029
      %v4062 = vpack.c.bf16 %v4030, %v4030
      %v4063 = vpack.c.bf16 %v4031, %v4031
      %v4064 = vpack.c.bf16 %v4032, %v4032
      %v4065 = vpack.c.bf16 %v4033, %v4033
      %4066 = vst [vmem:[#allocation5 + $0x20] sm:$0xf] %v4034
      %4067 = vst [vmem:[#allocation5 + $0x44] sm:$0xf] %v4035
      %4068 = vst [vmem:[#allocation5 + $0x68] sm:$0xf] %v4036
      %4069 = vst [vmem:[#allocation5 + $0x8c] sm:$0xf] %v4037
      %4070 = vst [vmem:[#allocation5 + $0xb0] sm:$0xf] %v4038
      %4071 = vst [vmem:[#allocation5 + $0xd4] sm:$0xf] %v4039
      %4072 = vst [vmem:[#allocation5 + $0xf8] sm:$0xf] %v4040
      %4073 = vst [vmem:[#allocation5 + $0x11c] sm:$0xf] %v4041
      %4074 = vst [vmem:[#allocation5 + $0x140] sm:$0xf] %v4042
      %4075 = vst [vmem:[#allocation5 + $0x164] sm:$0xf] %v4043
      %4076 = vst [vmem:[#allocation5 + $0x188] sm:$0xf] %v4044
      %4077 = vst [vmem:[#allocation5 + $0x1ac] sm:$0xf] %v4045
      %4078 = vst [vmem:[#allocation5 + $0x1d0] sm:$0xf] %v4046
      %4079 = vst [vmem:[#allocation5 + $0x1f4] sm:$0xf] %v4047
      %4080 = vst [vmem:[#allocation5 + $0x218] sm:$0xf] %v4048
      %4081 = vst [vmem:[#allocation5 + $0x23c] sm:$0xf] %v4049
      %4082 = vst [vmem:[#allocation5 + $0x260] sm:$0xf] %v4050
      %4083 = vst [vmem:[#allocation5 + $0x284] sm:$0xf] %v4051
      %4084 = vst [vmem:[#allocation5 + $0x2a8] sm:$0xf] %v4052
      %4085 = vst [vmem:[#allocation5 + $0x2cc] sm:$0xf] %v4053
      %4086 = vst [vmem:[#allocation5 + $0x2f0] sm:$0xf] %v4054
      %4087 = vst [vmem:[#allocation5 + $0x314] sm:$0xf] %v4055
      %4088 = vst [vmem:[#allocation5 + $0x338] sm:$0xf] %v4056
      %4089 = vst [vmem:[#allocation5 + $0x35c] sm:$0xf] %v4057
      %4090 = vst [vmem:[#allocation5 + $0x380] sm:$0xf] %v4058
      %4091 = vst [vmem:[#allocation5 + $0x3a4] sm:$0xf] %v4059
      %4092 = vst [vmem:[#allocation5 + $0x3c8] sm:$0xf] %v4060
      %4093 = vst [vmem:[#allocation5 + $0x3ec] sm:$0xf] %v4061
      %4094 = vst [vmem:[#allocation5 + $0x410] sm:$0xf] %v4062
      %4095 = vst [vmem:[#allocation5 + $0x434] sm:$0xf] %v4063
      %4096 = vst [vmem:[#allocation5 + $0x458] sm:$0xf] %v4064
      %4097 = vst [vmem:[#allocation5 + $0x47c] sm:$0xf] %v4065
      %v4098 = vld [vmem:[#allocation5] sm:$0xff]
      %v4099 = vld [vmem:[#allocation5 + $0x8] sm:$0xff]
      %v4100 = vld [vmem:[#allocation5 + $0x10] sm:$0xff]
      %v4101 = vld [vmem:[#allocation5 + $0x18] sm:$0xff]
      %v4102 = vld [vmem:[#allocation5 + $0x20] sm:$0xf]
      %v4103 = vld [vmem:[#allocation5 + $0x24] sm:$0xff]
      %v4104 = vld [vmem:[#allocation5 + $0x2c] sm:$0xff]
      %v4105 = vld [vmem:[#allocation5 + $0x34] sm:$0xff]
      %v4106 = vld [vmem:[#allocation5 + $0x3c] sm:$0xff]
      %v4107 = vld [vmem:[#allocation5 + $0x44] sm:$0xf]
      %v4108 = vld [vmem:[#allocation5 + $0x48] sm:$0xff]
      %v4109 = vld [vmem:[#allocation5 + $0x50] sm:$0xff]
      %v4110 = vld [vmem:[#allocation5 + $0x58] sm:$0xff]
      %v4111 = vld [vmem:[#allocation5 + $0x60] sm:$0xff]
      %v4112 = vld [vmem:[#allocation5 + $0x68] sm:$0xf]
      %v4113 = vld [vmem:[#allocation5 + $0x6c] sm:$0xff]
      %v4114 = vld [vmem:[#allocation5 + $0x74] sm:$0xff]
      %v4115 = vld [vmem:[#allocation5 + $0x7c] sm:$0xff]
      %v4116 = vld [vmem:[#allocation5 + $0x84] sm:$0xff]
      %v4117 = vld [vmem:[#allocation5 + $0x8c] sm:$0xf]
      %v4118 = vld [vmem:[#allocation5 + $0x90] sm:$0xff]
      %v4119 = vld [vmem:[#allocation5 + $0x98] sm:$0xff]
      %v4120 = vld [vmem:[#allocation5 + $0xa0] sm:$0xff]
      %v4121 = vld [vmem:[#allocation5 + $0xa8] sm:$0xff]
      %v4122 = vld [vmem:[#allocation5 + $0xb0] sm:$0xf]
      %v4123 = vld [vmem:[#allocation5 + $0xb4] sm:$0xff]
      %v4124 = vld [vmem:[#allocation5 + $0xbc] sm:$0xff]
      %v4125 = vld [vmem:[#allocation5 + $0xc4] sm:$0xff]
      %v4126 = vld [vmem:[#allocation5 + $0xcc] sm:$0xff]
      %v4127 = vld [vmem:[#allocation5 + $0xd4] sm:$0xf]
      %v4128 = vld [vmem:[#allocation5 + $0xd8] sm:$0xff]
      %v4129 = vld [vmem:[#allocation5 + $0xe0] sm:$0xff]
      %v4130 = vld [vmem:[#allocation5 + $0xe8] sm:$0xff]
      %v4131 = vld [vmem:[#allocation5 + $0xf0] sm:$0xff]
      %v4132 = vld [vmem:[#allocation5 + $0xf8] sm:$0xf]
      %v4133 = vld [vmem:[#allocation5 + $0xfc] sm:$0xff]
      %v4134 = vld [vmem:[#allocation5 + $0x104] sm:$0xff]
      %v4135 = vld [vmem:[#allocation5 + $0x10c] sm:$0xff]
      %v4136 = vld [vmem:[#allocation5 + $0x114] sm:$0xff]
      %v4137 = vld [vmem:[#allocation5 + $0x11c] sm:$0xf]
      %v4138 = vld [vmem:[#allocation5 + $0x120] sm:$0xff]
      %v4139 = vld [vmem:[#allocation5 + $0x128] sm:$0xff]
      %v4140 = vld [vmem:[#allocation5 + $0x130] sm:$0xff]
      %v4141 = vld [vmem:[#allocation5 + $0x138] sm:$0xff]
      %v4142 = vld [vmem:[#allocation5 + $0x140] sm:$0xf]
      %v4143 = vld [vmem:[#allocation5 + $0x144] sm:$0xff]
      %v4144 = vld [vmem:[#allocation5 + $0x14c] sm:$0xff]
      %v4145 = vld [vmem:[#allocation5 + $0x154] sm:$0xff]
      %v4146 = vld [vmem:[#allocation5 + $0x15c] sm:$0xff]
      %v4147 = vld [vmem:[#allocation5 + $0x164] sm:$0xf]
      %v4148 = vld [vmem:[#allocation5 + $0x168] sm:$0xff]
      %v4149 = vld [vmem:[#allocation5 + $0x170] sm:$0xff]
      %v4150 = vld [vmem:[#allocation5 + $0x178] sm:$0xff]
      %v4151 = vld [vmem:[#allocation5 + $0x180] sm:$0xff]
      %v4152 = vld [vmem:[#allocation5 + $0x188] sm:$0xf]
      %v4153 = vld [vmem:[#allocation5 + $0x18c] sm:$0xff]
      %v4154 = vld [vmem:[#allocation5 + $0x194] sm:$0xff]
      %v4155 = vld [vmem:[#allocation5 + $0x19c] sm:$0xff]
      %v4156 = vld [vmem:[#allocation5 + $0x1a4] sm:$0xff]
      %v4157 = vld [vmem:[#allocation5 + $0x1ac] sm:$0xf]
      %v4158 = vld [vmem:[#allocation5 + $0x1b0] sm:$0xff]
      %v4159 = vld [vmem:[#allocation5 + $0x1b8] sm:$0xff]
      %v4160 = vld [vmem:[#allocation5 + $0x1c0] sm:$0xff]
      %v4161 = vld [vmem:[#allocation5 + $0x1c8] sm:$0xff]
      %v4162 = vld [vmem:[#allocation5 + $0x1d0] sm:$0xf]
      %v4163 = vld [vmem:[#allocation5 + $0x1d4] sm:$0xff]
      %v4164 = vld [vmem:[#allocation5 + $0x1dc] sm:$0xff]
      %v4165 = vld [vmem:[#allocation5 + $0x1e4] sm:$0xff]
      %v4166 = vld [vmem:[#allocation5 + $0x1ec] sm:$0xff]
      %v4167 = vld [vmem:[#allocation5 + $0x1f4] sm:$0xf]
      %v4168 = vld [vmem:[#allocation5 + $0x1f8] sm:$0xff]
      %v4169 = vld [vmem:[#allocation5 + $0x200] sm:$0xff]
      %v4170 = vld [vmem:[#allocation5 + $0x208] sm:$0xff]
      %v4171 = vld [vmem:[#allocation5 + $0x210] sm:$0xff]
      %v4172 = vld [vmem:[#allocation5 + $0x218] sm:$0xf]
      %v4173 = vld [vmem:[#allocation5 + $0x21c] sm:$0xff]
      %v4174 = vld [vmem:[#allocation5 + $0x224] sm:$0xff]
      %v4175 = vld [vmem:[#allocation5 + $0x22c] sm:$0xff]
      %v4176 = vld [vmem:[#allocation5 + $0x234] sm:$0xff]
      %v4177 = vld [vmem:[#allocation5 + $0x23c] sm:$0xf]
      %v4178 = vld [vmem:[#allocation5 + $0x240] sm:$0xff]
      %v4179 = vld [vmem:[#allocation5 + $0x248] sm:$0xff]
      %v4180 = vld [vmem:[#allocation5 + $0x250] sm:$0xff]
      %v4181 = vld [vmem:[#allocation5 + $0x258] sm:$0xff]
      %v4182 = vld [vmem:[#allocation5 + $0x260] sm:$0xf]
      %v4183 = vld [vmem:[#allocation5 + $0x264] sm:$0xff]
      %v4184 = vld [vmem:[#allocation5 + $0x26c] sm:$0xff]
      %v4185 = vld [vmem:[#allocation5 + $0x274] sm:$0xff]
      %v4186 = vld [vmem:[#allocation5 + $0x27c] sm:$0xff]
      %v4187 = vld [vmem:[#allocation5 + $0x284] sm:$0xf]
      %v4188 = vld [vmem:[#allocation5 + $0x288] sm:$0xff]
      %v4189 = vld [vmem:[#allocation5 + $0x290] sm:$0xff]
      %v4190 = vld [vmem:[#allocation5 + $0x298] sm:$0xff]
      %v4191 = vld [vmem:[#allocation5 + $0x2a0] sm:$0xff]
      %v4192 = vld [vmem:[#allocation5 + $0x2a8] sm:$0xf]
      %v4193 = vld [vmem:[#allocation5 + $0x2ac] sm:$0xff]
      %v4194 = vld [vmem:[#allocation5 + $0x2b4] sm:$0xff]
      %v4195 = vld [vmem:[#allocation5 + $0x2bc] sm:$0xff]
      %v4196 = vld [vmem:[#allocation5 + $0x2c4] sm:$0xff]
      %v4197 = vld [vmem:[#allocation5 + $0x2cc] sm:$0xf]
      %v4198 = vld [vmem:[#allocation5 + $0x2d0] sm:$0xff]
      %v4199 = vld [vmem:[#allocation5 + $0x2d8] sm:$0xff]
      %v4200 = vld [vmem:[#allocation5 + $0x2e0] sm:$0xff]
      %v4201 = vld [vmem:[#allocation5 + $0x2e8] sm:$0xff]
      %v4202 = vld [vmem:[#allocation5 + $0x2f0] sm:$0xf]
      %v4203 = vld [vmem:[#allocation5 + $0x2f4] sm:$0xff]
      %v4204 = vld [vmem:[#allocation5 + $0x2fc] sm:$0xff]
      %v4205 = vld [vmem:[#allocation5 + $0x304] sm:$0xff]
      %v4206 = vld [vmem:[#allocation5 + $0x30c] sm:$0xff]
      %v4207 = vld [vmem:[#allocation5 + $0x314] sm:$0xf]
      %v4208 = vld [vmem:[#allocation5 + $0x318] sm:$0xff]
      %v4209 = vld [vmem:[#allocation5 + $0x320] sm:$0xff]
      %v4210 = vld [vmem:[#allocation5 + $0x328] sm:$0xff]
      %v4211 = vld [vmem:[#allocation5 + $0x330] sm:$0xff]
      %v4212 = vld [vmem:[#allocation5 + $0x338] sm:$0xf]
      %v4213 = vld [vmem:[#allocation5 + $0x33c] sm:$0xff]
      %v4214 = vld [vmem:[#allocation5 + $0x344] sm:$0xff]
      %v4215 = vld [vmem:[#allocation5 + $0x34c] sm:$0xff]
      %v4216 = vld [vmem:[#allocation5 + $0x354] sm:$0xff]
      %v4217 = vld [vmem:[#allocation5 + $0x35c] sm:$0xf]
      %v4218 = vld [vmem:[#allocation5 + $0x360] sm:$0xff]
      %v4219 = vld [vmem:[#allocation5 + $0x368] sm:$0xff]
      %v4220 = vld [vmem:[#allocation5 + $0x370] sm:$0xff]
      %v4221 = vld [vmem:[#allocation5 + $0x378] sm:$0xff]
      %v4222 = vld [vmem:[#allocation5 + $0x380] sm:$0xf]
      %v4223 = vld [vmem:[#allocation5 + $0x384] sm:$0xff]
      %v4224 = vld [vmem:[#allocation5 + $0x38c] sm:$0xff]
      %v4225 = vld [vmem:[#allocation5 + $0x394] sm:$0xff]
      %v4226 = vld [vmem:[#allocation5 + $0x39c] sm:$0xff]
      %v4227 = vld [vmem:[#allocation5 + $0x3a4] sm:$0xf]
      %v4228 = vld [vmem:[#allocation5 + $0x3a8] sm:$0xff]
      %v4229 = vld [vmem:[#allocation5 + $0x3b0] sm:$0xff]
      %v4230 = vld [vmem:[#allocation5 + $0x3b8] sm:$0xff]
      %v4231 = vld [vmem:[#allocation5 + $0x3c0] sm:$0xff]
      %v4232 = vld [vmem:[#allocation5 + $0x3c8] sm:$0xf]
      %v4233 = vld [vmem:[#allocation5 + $0x3cc] sm:$0xff]
      %v4234 = vld [vmem:[#allocation5 + $0x3d4] sm:$0xff]
      %v4235 = vld [vmem:[#allocation5 + $0x3dc] sm:$0xff]
      %v4236 = vld [vmem:[#allocation5 + $0x3e4] sm:$0xff]
      %v4237 = vld [vmem:[#allocation5 + $0x3ec] sm:$0xf]
      %v4238 = vld [vmem:[#allocation5 + $0x3f0] sm:$0xff]
      %v4239 = vld [vmem:[#allocation5 + $0x3f8] sm:$0xff]
      %v4240 = vld [vmem:[#allocation5 + $0x400] sm:$0xff]
      %v4241 = vld [vmem:[#allocation5 + $0x408] sm:$0xff]
      %v4242 = vld [vmem:[#allocation5 + $0x410] sm:$0xf]
      %v4243 = vld [vmem:[#allocation5 + $0x414] sm:$0xff]
      %v4244 = vld [vmem:[#allocation5 + $0x41c] sm:$0xff]
      %v4245 = vld [vmem:[#allocation5 + $0x424] sm:$0xff]
      %v4246 = vld [vmem:[#allocation5 + $0x42c] sm:$0xff]
      %v4247 = vld [vmem:[#allocation5 + $0x434] sm:$0xf]
      %v4248 = vld [vmem:[#allocation5 + $0x438] sm:$0xff]
      %v4249 = vld [vmem:[#allocation5 + $0x440] sm:$0xff]
      %v4250 = vld [vmem:[#allocation5 + $0x448] sm:$0xff]
      %v4251 = vld [vmem:[#allocation5 + $0x450] sm:$0xff]
      %v4252 = vld [vmem:[#allocation5 + $0x458] sm:$0xf]
      %v4253 = vld [vmem:[#allocation5 + $0x45c] sm:$0xff]
      %v4254 = vld [vmem:[#allocation5 + $0x464] sm:$0xff]
      %v4255 = vld [vmem:[#allocation5 + $0x46c] sm:$0xff]
      %v4256 = vld [vmem:[#allocation5 + $0x474] sm:$0xff]
      %v4257 = vld [vmem:[#allocation5 + $0x47c] sm:$0xf]
      %v4258 = vld [vmem:[%s2] sm:$0xf]
      %v4259 = vld [vmem:[%s2 + $0x4] sm:$0xf]
      %v4260 = vld [vmem:[%s2 + $0x8] sm:$0xf]
      %v4261 = vld [vmem:[%s2 + $0xc] sm:$0xf]
      %v4262 = vld [vmem:[%s2 + $0x10] sm:$0xf]
      %v4263 = vld [vmem:[%s2 + $0x14] sm:$0xf]
      %v4264 = vld [vmem:[%s2 + $0x18] sm:$0xf]
      %v4265 = vld [vmem:[%s2 + $0x1c] sm:$0xf]
      %v4266 = vld [vmem:[%s2 + $0x20] sm:$0xf]
      %v4267 = vld [vmem:[%s2 + $0x24] sm:$0xf]
      %v4268 = vld [vmem:[%s2 + $0x28] sm:$0xf]
      %v4269 = vld [vmem:[%s2 + $0x2c] sm:$0xf]
      %v4270 = vld [vmem:[%s2 + $0x30] sm:$0xf]
      %v4271 = vld [vmem:[%s2 + $0x34] sm:$0xf]
      %v4272 = vld [vmem:[%s2 + $0x38] sm:$0xf]
      %v4273 = vld [vmem:[%s2 + $0x3c] sm:$0xf]
      %v4274 = vld [vmem:[%s2 + $0x40] sm:$0xf]
      %v4275 = vld [vmem:[%s2 + $0x44] sm:$0xf]
      %v4276 = vld [vmem:[%s2 + $0x48] sm:$0xf]
      %v4277 = vld [vmem:[%s2 + $0x4c] sm:$0xf]
      %v4278 = vld [vmem:[%s2 + $0x50] sm:$0xf]
      %v4279 = vld [vmem:[%s2 + $0x54] sm:$0xf]
      %v4280 = vld [vmem:[%s2 + $0x58] sm:$0xf]
      %v4281 = vld [vmem:[%s2 + $0x5c] sm:$0xf]
      %v4282 = vld [vmem:[%s2 + $0x60] sm:$0xf]
      %v4283 = vld [vmem:[%s2 + $0x64] sm:$0xf]
      %v4284 = vld [vmem:[%s2 + $0x68] sm:$0xf]
      %v4285 = vld [vmem:[%s2 + $0x6c] sm:$0xf]
      %v4286 = vld [vmem:[%s2 + $0x70] sm:$0xf]
      %v4287 = vld [vmem:[%s2 + $0x74] sm:$0xf]
      %v4288 = vld [vmem:[%s2 + $0x78] sm:$0xf]
      %v4289 = vld [vmem:[%s2 + $0x7c] sm:$0xf]
      %v4290 = vld [vmem:[%s2 + $0x80] sm:$0xf]
      %v4291 = vld [vmem:[%s2 + $0x84] sm:$0xf]
      %v4292 = vld [vmem:[%s2 + $0x88] sm:$0xf]
      %v4293 = vld [vmem:[%s2 + $0x8c] sm:$0xf]
      %v4294 = vld [vmem:[%s2 + $0x90] sm:$0xf]
      %v4295 = vld [vmem:[%s2 + $0x94] sm:$0xf]
      %v4296 = vld [vmem:[%s2 + $0x98] sm:$0xf]
      %v4297 = vld [vmem:[%s2 + $0x9c] sm:$0xf]
      %v4298 = vld [vmem:[%s2 + $0xa0] sm:$0xf]
      %v4299 = vld [vmem:[%s2 + $0xa4] sm:$0xf]
      %v4300 = vld [vmem:[%s2 + $0xa8] sm:$0xf]
      %v4301 = vld [vmem:[%s2 + $0xac] sm:$0xf]
      %v4302 = vld [vmem:[%s2 + $0xb0] sm:$0xf]
      %v4303 = vld [vmem:[%s2 + $0xb4] sm:$0xf]
      %v4304 = vld [vmem:[%s2 + $0xb8] sm:$0xf]
      %v4305 = vld [vmem:[%s2 + $0xbc] sm:$0xf]
      %v4306 = vld [vmem:[%s2 + $0xc0] sm:$0xf]
      %v4307 = vld [vmem:[%s2 + $0xc4] sm:$0xf]
      %v4308 = vld [vmem:[%s2 + $0xc8] sm:$0xf]
      %v4309 = vld [vmem:[%s2 + $0xcc] sm:$0xf]
      %v4310 = vld [vmem:[%s2 + $0xd0] sm:$0xf]
      %v4311 = vld [vmem:[%s2 + $0xd4] sm:$0xf]
      %v4312 = vld [vmem:[%s2 + $0xd8] sm:$0xf]
      %v4313 = vld [vmem:[%s2 + $0xdc] sm:$0xf]
      %v4314 = vld [vmem:[%s2 + $0xe0] sm:$0xf]
      %v4315 = vld [vmem:[%s2 + $0xe4] sm:$0xf]
      %v4316 = vld [vmem:[%s2 + $0xe8] sm:$0xf]
      %v4317 = vld [vmem:[%s2 + $0xec] sm:$0xf]
      %v4318 = vld [vmem:[%s2 + $0xf0] sm:$0xf]
      %v4319 = vld [vmem:[%s2 + $0xf4] sm:$0xf]
      %v4320 = vld [vmem:[%s2 + $0xf8] sm:$0xf]
      %v4321 = vld [vmem:[%s2 + $0xfc] sm:$0xf]
      %v4322 = vld [vmem:[%s2 + $0x100] sm:$0xf]
      %v4323 = vld [vmem:[%s2 + $0x104] sm:$0xf]
      %v4324 = vld [vmem:[%s2 + $0x108] sm:$0xf]
      %v4325 = vld [vmem:[%s2 + $0x10c] sm:$0xf]
      %v4326 = vld [vmem:[%s2 + $0x110] sm:$0xf]
      %v4327 = vld [vmem:[%s2 + $0x114] sm:$0xf]
      %v4328 = vld [vmem:[%s2 + $0x118] sm:$0xf]
      %v4329 = vld [vmem:[%s2 + $0x11c] sm:$0xf]
      %v4330 = vld [vmem:[%s2 + $0x120] sm:$0xf]
      %v4331 = vld [vmem:[%s2 + $0x124] sm:$0xf]
      %v4332 = vld [vmem:[%s2 + $0x128] sm:$0xf]
      %v4333 = vld [vmem:[%s2 + $0x12c] sm:$0xf]
      %v4334 = vld [vmem:[%s2 + $0x130] sm:$0xf]
      %v4335 = vld [vmem:[%s2 + $0x134] sm:$0xf]
      %v4336 = vld [vmem:[%s2 + $0x138] sm:$0xf]
      %v4337 = vld [vmem:[%s2 + $0x13c] sm:$0xf]
      %v4338 = vld [vmem:[%s2 + $0x140] sm:$0xf]
      %v4339 = vld [vmem:[%s2 + $0x144] sm:$0xf]
      %v4340 = vld [vmem:[%s2 + $0x148] sm:$0xf]
      %v4341 = vld [vmem:[%s2 + $0x14c] sm:$0xf]
      %v4342 = vld [vmem:[%s2 + $0x150] sm:$0xf]
      %v4343 = vld [vmem:[%s2 + $0x154] sm:$0xf]
      %v4344 = vld [vmem:[%s2 + $0x158] sm:$0xf]
      %v4345 = vld [vmem:[%s2 + $0x15c] sm:$0xf]
      %v4346 = vld [vmem:[%s2 + $0x160] sm:$0xf]
      %v4347 = vld [vmem:[%s2 + $0x164] sm:$0xf]
      %v4348 = vld [vmem:[%s2 + $0x168] sm:$0xf]
      %v4349 = vld [vmem:[%s2 + $0x16c] sm:$0xf]
      %v4350 = vld [vmem:[%s2 + $0x170] sm:$0xf]
      %v4351 = vld [vmem:[%s2 + $0x174] sm:$0xf]
      %v4352 = vld [vmem:[%s2 + $0x178] sm:$0xf]
      %v4353 = vld [vmem:[%s2 + $0x17c] sm:$0xf]
      %v4354 = vld [vmem:[%s2 + $0x180] sm:$0xf]
      %v4355 = vld [vmem:[%s2 + $0x184] sm:$0xf]
      %v4356 = vld [vmem:[%s2 + $0x188] sm:$0xf]
      %v4357 = vld [vmem:[%s2 + $0x18c] sm:$0xf]
      %v4358 = vld [vmem:[%s2 + $0x190] sm:$0xf]
      %v4359 = vld [vmem:[%s2 + $0x194] sm:$0xf]
      %v4360 = vld [vmem:[%s2 + $0x198] sm:$0xf]
      %v4361 = vld [vmem:[%s2 + $0x19c] sm:$0xf]
      %v4362 = vld [vmem:[%s2 + $0x1a0] sm:$0xf]
      %v4363 = vld [vmem:[%s2 + $0x1a4] sm:$0xf]
      %v4364 = vld [vmem:[%s2 + $0x1a8] sm:$0xf]
      %v4365 = vld [vmem:[%s2 + $0x1ac] sm:$0xf]
      %v4366 = vld [vmem:[%s2 + $0x1b0] sm:$0xf]
      %v4367 = vld [vmem:[%s2 + $0x1b4] sm:$0xf]
      %v4368 = vld [vmem:[%s2 + $0x1b8] sm:$0xf]
      %v4369 = vld [vmem:[%s2 + $0x1bc] sm:$0xf]
      %v4370 = vld [vmem:[%s2 + $0x1c0] sm:$0xf]
      %v4371 = vld [vmem:[%s2 + $0x1c4] sm:$0xf]
      %v4372 = vld [vmem:[%s2 + $0x1c8] sm:$0xf]
      %v4373 = vld [vmem:[%s2 + $0x1cc] sm:$0xf]
      %v4374 = vld [vmem:[%s2 + $0x1d0] sm:$0xf]
      %v4375 = vld [vmem:[%s2 + $0x1d4] sm:$0xf]
      %v4376 = vld [vmem:[%s2 + $0x1d8] sm:$0xf]
      %v4377 = vld [vmem:[%s2 + $0x1dc] sm:$0xf]
      %v4378 = vld [vmem:[%s2 + $0x1e0] sm:$0xf]
      %v4379 = vld [vmem:[%s2 + $0x1e4] sm:$0xf]
      %v4380 = vld [vmem:[%s2 + $0x1e8] sm:$0xf]
      %v4381 = vld [vmem:[%s2 + $0x1ec] sm:$0xf]
      %v4382 = vld [vmem:[%s2 + $0x1f0] sm:$0xf]
      %v4383 = vld [vmem:[%s2 + $0x1f4] sm:$0xf]
      %v4384 = vld [vmem:[%s2 + $0x1f8] sm:$0xf]
      %v4385 = vld [vmem:[%s2 + $0x1fc] sm:$0xf]
      %v4386 = vld [vmem:[%s2 + $0x200] sm:$0xf]
      %v4387 = vld [vmem:[%s2 + $0x204] sm:$0xf]
      %v4388 = vld [vmem:[%s2 + $0x208] sm:$0xf]
      %v4389 = vld [vmem:[%s2 + $0x20c] sm:$0xf]
      %v4390 = vld [vmem:[%s2 + $0x210] sm:$0xf]
      %v4391 = vld [vmem:[%s2 + $0x214] sm:$0xf]
      %v4392 = vld [vmem:[%s2 + $0x218] sm:$0xf]
      %v4393 = vld [vmem:[%s2 + $0x21c] sm:$0xf]
      %v4394 = vld [vmem:[%s2 + $0x220] sm:$0xf]
      %v4395 = vld [vmem:[%s2 + $0x224] sm:$0xf]
      %v4396 = vld [vmem:[%s2 + $0x228] sm:$0xf]
      %v4397 = vld [vmem:[%s2 + $0x22c] sm:$0xf]
      %v4398 = vld [vmem:[%s2 + $0x230] sm:$0xf]
      %v4399 = vld [vmem:[%s2 + $0x234] sm:$0xf]
      %v4400 = vld [vmem:[%s2 + $0x238] sm:$0xf]
      %v4401 = vld [vmem:[%s2 + $0x23c] sm:$0xf]
      %v4562 = vunpack.c.l.b16 %v4098
      %v4563 = vunpack.c.h.b16 %v4098
      %v4564 = vunpack.c.l.b16 %v4099
      %v4565 = vunpack.c.h.b16 %v4099
      %v4566 = vunpack.c.l.b16 %v4100
      %v4567 = vunpack.c.h.b16 %v4100
      %v4568 = vunpack.c.l.b16 %v4101
      %v4569 = vunpack.c.h.b16 %v4101
      %v4570 = vunpack.c.l.b16 %v4102
      %v4571 = vunpack.c.l.b16 %v4103
      %v4572 = vunpack.c.h.b16 %v4103
      %v4573 = vunpack.c.l.b16 %v4104
      %v4574 = vunpack.c.h.b16 %v4104
      %v4575 = vunpack.c.l.b16 %v4105
      %v4576 = vunpack.c.h.b16 %v4105
      %v4577 = vunpack.c.l.b16 %v4106
      %v4578 = vunpack.c.h.b16 %v4106
      %v4579 = vunpack.c.l.b16 %v4107
      %v4580 = vunpack.c.l.b16 %v4108
      %v4581 = vunpack.c.h.b16 %v4108
      %v4582 = vunpack.c.l.b16 %v4109
      %v4583 = vunpack.c.h.b16 %v4109
      %v4584 = vunpack.c.l.b16 %v4110
      %v4585 = vunpack.c.h.b16 %v4110
      %v4586 = vunpack.c.l.b16 %v4111
      %v4587 = vunpack.c.h.b16 %v4111
      %v4588 = vunpack.c.l.b16 %v4112
      %v4589 = vunpack.c.l.b16 %v4113
      %v4590 = vunpack.c.h.b16 %v4113
      %v4591 = vunpack.c.l.b16 %v4114
      %v4592 = vunpack.c.h.b16 %v4114
      %v4593 = vunpack.c.l.b16 %v4115
      %v4594 = vunpack.c.h.b16 %v4115
      %v4595 = vunpack.c.l.b16 %v4116
      %v4596 = vunpack.c.h.b16 %v4116
      %v4597 = vunpack.c.l.b16 %v4117
      %v4598 = vunpack.c.l.b16 %v4118
      %v4599 = vunpack.c.h.b16 %v4118
      %v4600 = vunpack.c.l.b16 %v4119
      %v4601 = vunpack.c.h.b16 %v4119
      %v4602 = vunpack.c.l.b16 %v4120
      %v4603 = vunpack.c.h.b16 %v4120
      %v4604 = vunpack.c.l.b16 %v4121
      %v4605 = vunpack.c.h.b16 %v4121
      %v4606 = vunpack.c.l.b16 %v4122
      %v4607 = vunpack.c.l.b16 %v4123
      %v4608 = vunpack.c.h.b16 %v4123
      %v4609 = vunpack.c.l.b16 %v4124
      %v4610 = vunpack.c.h.b16 %v4124
      %v4611 = vunpack.c.l.b16 %v4125
      %v4612 = vunpack.c.h.b16 %v4125
      %v4613 = vunpack.c.l.b16 %v4126
      %v4614 = vunpack.c.h.b16 %v4126
      %v4615 = vunpack.c.l.b16 %v4127
      %v4616 = vunpack.c.l.b16 %v4128
      %v4617 = vunpack.c.h.b16 %v4128
      %v4618 = vunpack.c.l.b16 %v4129
      %v4619 = vunpack.c.h.b16 %v4129
      %v4620 = vunpack.c.l.b16 %v4130
      %v4621 = vunpack.c.h.b16 %v4130
      %v4622 = vunpack.c.l.b16 %v4131
      %v4623 = vunpack.c.h.b16 %v4131
      %v4624 = vunpack.c.l.b16 %v4132
      %v4625 = vunpack.c.l.b16 %v4133
      %v4626 = vunpack.c.h.b16 %v4133
      %v4627 = vunpack.c.l.b16 %v4134
      %v4628 = vunpack.c.h.b16 %v4134
      %v4629 = vunpack.c.l.b16 %v4135
      %v4630 = vunpack.c.h.b16 %v4135
      %v4631 = vunpack.c.l.b16 %v4136
      %v4632 = vunpack.c.h.b16 %v4136
      %v4633 = vunpack.c.l.b16 %v4137
      %v4634 = vunpack.c.l.b16 %v4138
      %v4635 = vunpack.c.h.b16 %v4138
      %v4636 = vunpack.c.l.b16 %v4139
      %v4637 = vunpack.c.h.b16 %v4139
      %v4638 = vunpack.c.l.b16 %v4140
      %v4639 = vunpack.c.h.b16 %v4140
      %v4640 = vunpack.c.l.b16 %v4141
      %v4641 = vunpack.c.h.b16 %v4141
      %v4642 = vunpack.c.l.b16 %v4142
      %v4643 = vunpack.c.l.b16 %v4143
      %v4644 = vunpack.c.h.b16 %v4143
      %v4645 = vunpack.c.l.b16 %v4144
      %v4646 = vunpack.c.h.b16 %v4144
      %v4647 = vunpack.c.l.b16 %v4145
      %v4648 = vunpack.c.h.b16 %v4145
      %v4649 = vunpack.c.l.b16 %v4146
      %v4650 = vunpack.c.h.b16 %v4146
      %v4651 = vunpack.c.l.b16 %v4147
      %v4652 = vunpack.c.l.b16 %v4148
      %v4653 = vunpack.c.h.b16 %v4148
      %v4654 = vunpack.c.l.b16 %v4149
      %v4655 = vunpack.c.h.b16 %v4149
      %v4656 = vunpack.c.l.b16 %v4150
      %v4657 = vunpack.c.h.b16 %v4150
      %v4658 = vunpack.c.l.b16 %v4151
      %v4659 = vunpack.c.h.b16 %v4151
      %v4660 = vunpack.c.l.b16 %v4152
      %v4661 = vunpack.c.l.b16 %v4153
      %v4662 = vunpack.c.h.b16 %v4153
      %v4663 = vunpack.c.l.b16 %v4154
      %v4664 = vunpack.c.h.b16 %v4154
      %v4665 = vunpack.c.l.b16 %v4155
      %v4666 = vunpack.c.h.b16 %v4155
      %v4667 = vunpack.c.l.b16 %v4156
      %v4668 = vunpack.c.h.b16 %v4156
      %v4669 = vunpack.c.l.b16 %v4157
      %v4670 = vunpack.c.l.b16 %v4158
      %v4671 = vunpack.c.h.b16 %v4158
      %v4672 = vunpack.c.l.b16 %v4159
      %v4673 = vunpack.c.h.b16 %v4159
      %v4674 = vunpack.c.l.b16 %v4160
      %v4675 = vunpack.c.h.b16 %v4160
      %v4676 = vunpack.c.l.b16 %v4161
      %v4677 = vunpack.c.h.b16 %v4161
      %v4678 = vunpack.c.l.b16 %v4162
      %v4679 = vunpack.c.l.b16 %v4163
      %v4680 = vunpack.c.h.b16 %v4163
      %v4681 = vunpack.c.l.b16 %v4164
      %v4682 = vunpack.c.h.b16 %v4164
      %v4683 = vunpack.c.l.b16 %v4165
      %v4684 = vunpack.c.h.b16 %v4165
      %v4685 = vunpack.c.l.b16 %v4166
      %v4686 = vunpack.c.h.b16 %v4166
      %v4687 = vunpack.c.l.b16 %v4167
      %v4688 = vunpack.c.l.b16 %v4168
      %v4689 = vunpack.c.h.b16 %v4168
      %v4690 = vunpack.c.l.b16 %v4169
      %v4691 = vunpack.c.h.b16 %v4169
      %v4692 = vunpack.c.l.b16 %v4170
      %v4693 = vunpack.c.h.b16 %v4170
      %v4694 = vunpack.c.l.b16 %v4171
      %v4695 = vunpack.c.h.b16 %v4171
      %v4696 = vunpack.c.l.b16 %v4172
      %v4697 = vunpack.c.l.b16 %v4173
      %v4698 = vunpack.c.h.b16 %v4173
      %v4699 = vunpack.c.l.b16 %v4174
      %v4700 = vunpack.c.h.b16 %v4174
      %v4701 = vunpack.c.l.b16 %v4175
      %v4702 = vunpack.c.h.b16 %v4175
      %v4703 = vunpack.c.l.b16 %v4176
      %v4704 = vunpack.c.h.b16 %v4176
      %v4705 = vunpack.c.l.b16 %v4177
      %v4706 = vunpack.c.l.b16 %v4178
      %v4707 = vunpack.c.h.b16 %v4178
      %v4708 = vunpack.c.l.b16 %v4179
      %v4709 = vunpack.c.h.b16 %v4179
      %v4710 = vunpack.c.l.b16 %v4180
      %v4711 = vunpack.c.h.b16 %v4180
      %v4712 = vunpack.c.l.b16 %v4181
      %v4713 = vunpack.c.h.b16 %v4181
      %v4714 = vunpack.c.l.b16 %v4182
      %v4715 = vunpack.c.l.b16 %v4183
      %v4716 = vunpack.c.h.b16 %v4183
      %v4717 = vunpack.c.l.b16 %v4184
      %v4718 = vunpack.c.h.b16 %v4184
      %v4719 = vunpack.c.l.b16 %v4185
      %v4720 = vunpack.c.h.b16 %v4185
      %v4721 = vunpack.c.l.b16 %v4186
      %v4722 = vunpack.c.h.b16 %v4186
      %v4723 = vunpack.c.l.b16 %v4187
      %v4724 = vunpack.c.l.b16 %v4188
      %v4725 = vunpack.c.h.b16 %v4188
      %v4726 = vunpack.c.l.b16 %v4189
      %v4727 = vunpack.c.h.b16 %v4189
      %v4728 = vunpack.c.l.b16 %v4190
      %v4729 = vunpack.c.h.b16 %v4190
      %v4730 = vunpack.c.l.b16 %v4191
      %v4731 = vunpack.c.h.b16 %v4191
      %v4732 = vunpack.c.l.b16 %v4192
      %v4733 = vunpack.c.l.b16 %v4193
      %v4734 = vunpack.c.h.b16 %v4193
      %v4735 = vunpack.c.l.b16 %v4194
      %v4736 = vunpack.c.h.b16 %v4194
      %v4737 = vunpack.c.l.b16 %v4195
      %v4738 = vunpack.c.h.b16 %v4195
      %v4739 = vunpack.c.l.b16 %v4196
      %v4740 = vunpack.c.h.b16 %v4196
      %v4741 = vunpack.c.l.b16 %v4197
      %v4742 = vunpack.c.l.b16 %v4198
      %v4743 = vunpack.c.h.b16 %v4198
      %v4744 = vunpack.c.l.b16 %v4199
      %v4745 = vunpack.c.h.b16 %v4199
      %v4746 = vunpack.c.l.b16 %v4200
      %v4747 = vunpack.c.h.b16 %v4200
      %v4748 = vunpack.c.l.b16 %v4201
      %v4749 = vunpack.c.h.b16 %v4201
      %v4750 = vunpack.c.l.b16 %v4202
      %v4751 = vunpack.c.l.b16 %v4203
      %v4752 = vunpack.c.h.b16 %v4203
      %v4753 = vunpack.c.l.b16 %v4204
      %v4754 = vunpack.c.h.b16 %v4204
      %v4755 = vunpack.c.l.b16 %v4205
      %v4756 = vunpack.c.h.b16 %v4205
      %v4757 = vunpack.c.l.b16 %v4206
      %v4758 = vunpack.c.h.b16 %v4206
      %v4759 = vunpack.c.l.b16 %v4207
      %v4760 = vunpack.c.l.b16 %v4208
      %v4761 = vunpack.c.h.b16 %v4208
      %v4762 = vunpack.c.l.b16 %v4209
      %v4763 = vunpack.c.h.b16 %v4209
      %v4764 = vunpack.c.l.b16 %v4210
      %v4765 = vunpack.c.h.b16 %v4210
      %v4766 = vunpack.c.l.b16 %v4211
      %v4767 = vunpack.c.h.b16 %v4211
      %v4768 = vunpack.c.l.b16 %v4212
      %v4769 = vunpack.c.l.b16 %v4213
      %v4770 = vunpack.c.h.b16 %v4213
      %v4771 = vunpack.c.l.b16 %v4214
      %v4772 = vunpack.c.h.b16 %v4214
      %v4773 = vunpack.c.l.b16 %v4215
      %v4774 = vunpack.c.h.b16 %v4215
      %v4775 = vunpack.c.l.b16 %v4216
      %v4776 = vunpack.c.h.b16 %v4216
      %v4777 = vunpack.c.l.b16 %v4217
      %v4778 = vunpack.c.l.b16 %v4218
      %v4779 = vunpack.c.h.b16 %v4218
      %v4780 = vunpack.c.l.b16 %v4219
      %v4781 = vunpack.c.h.b16 %v4219
      %v4782 = vunpack.c.l.b16 %v4220
      %v4783 = vunpack.c.h.b16 %v4220
      %v4784 = vunpack.c.l.b16 %v4221
      %v4785 = vunpack.c.h.b16 %v4221
      %v4786 = vunpack.c.l.b16 %v4222
      %v4787 = vunpack.c.l.b16 %v4223
      %v4788 = vunpack.c.h.b16 %v4223
      %v4789 = vunpack.c.l.b16 %v4224
      %v4790 = vunpack.c.h.b16 %v4224
      %v4791 = vunpack.c.l.b16 %v4225
      %v4792 = vunpack.c.h.b16 %v4225
      %v4793 = vunpack.c.l.b16 %v4226
      %v4794 = vunpack.c.h.b16 %v4226
      %v4795 = vunpack.c.l.b16 %v4227
      %v4796 = vunpack.c.l.b16 %v4228
      %v4797 = vunpack.c.h.b16 %v4228
      %v4798 = vunpack.c.l.b16 %v4229
      %v4799 = vunpack.c.h.b16 %v4229
      %v4800 = vunpack.c.l.b16 %v4230
      %v4801 = vunpack.c.h.b16 %v4230
      %v4802 = vunpack.c.l.b16 %v4231
      %v4803 = vunpack.c.h.b16 %v4231
      %v4804 = vunpack.c.l.b16 %v4232
      %v4805 = vunpack.c.l.b16 %v4233
      %v4806 = vunpack.c.h.b16 %v4233
      %v4807 = vunpack.c.l.b16 %v4234
      %v4808 = vunpack.c.h.b16 %v4234
      %v4809 = vunpack.c.l.b16 %v4235
      %v4810 = vunpack.c.h.b16 %v4235
      %v4811 = vunpack.c.l.b16 %v4236
      %v4812 = vunpack.c.h.b16 %v4236
      %v4813 = vunpack.c.l.b16 %v4237
      %v4814 = vunpack.c.l.b16 %v4238
      %v4815 = vunpack.c.h.b16 %v4238
      %v4816 = vunpack.c.l.b16 %v4239
      %v4817 = vunpack.c.h.b16 %v4239
      %v4818 = vunpack.c.l.b16 %v4240
      %v4819 = vunpack.c.h.b16 %v4240
      %v4820 = vunpack.c.l.b16 %v4241
      %v4821 = vunpack.c.h.b16 %v4241
      %v4822 = vunpack.c.l.b16 %v4242
      %v4823 = vunpack.c.l.b16 %v4243
      %v4824 = vunpack.c.h.b16 %v4243
      %v4825 = vunpack.c.l.b16 %v4244
      %v4826 = vunpack.c.h.b16 %v4244
      %v4827 = vunpack.c.l.b16 %v4245
      %v4828 = vunpack.c.h.b16 %v4245
      %v4829 = vunpack.c.l.b16 %v4246
      %v4830 = vunpack.c.h.b16 %v4246
      %v4831 = vunpack.c.l.b16 %v4247
      %v4832 = vunpack.c.l.b16 %v4248
      %v4833 = vunpack.c.h.b16 %v4248
      %v4834 = vunpack.c.l.b16 %v4249
      %v4835 = vunpack.c.h.b16 %v4249
      %v4836 = vunpack.c.l.b16 %v4250
      %v4837 = vunpack.c.h.b16 %v4250
      %v4838 = vunpack.c.l.b16 %v4251
      %v4839 = vunpack.c.h.b16 %v4251
      %v4840 = vunpack.c.l.b16 %v4252
      %v4841 = vunpack.c.l.b16 %v4253
      %v4842 = vunpack.c.h.b16 %v4253
      %v4843 = vunpack.c.l.b16 %v4254
      %v4844 = vunpack.c.h.b16 %v4254
      %v4845 = vunpack.c.l.b16 %v4255
      %v4846 = vunpack.c.h.b16 %v4255
      %v4847 = vunpack.c.l.b16 %v4256
      %v4848 = vunpack.c.h.b16 %v4256
      %v4849 = vunpack.c.l.b16 %v4257
      %v4850 = vpack.c.b16 %v4571, %v4562
      %v4851 = vpack.c.b16 %v4572, %v4563
      %v4852 = vpack.c.b16 %v4573, %v4564
      %v4853 = vpack.c.b16 %v4574, %v4565
      %v4854 = vpack.c.b16 %v4575, %v4566
      %v4855 = vpack.c.b16 %v4576, %v4567
      %v4856 = vpack.c.b16 %v4577, %v4568
      %v4857 = vpack.c.b16 %v4578, %v4569
      %v4858 = vpack.c.b16 %v4579, %v4570
      %v4859 = vpack.c.b16 %v4589, %v4580
      %v4860 = vpack.c.b16 %v4590, %v4581
      %v4861 = vpack.c.b16 %v4591, %v4582
      %v4862 = vpack.c.b16 %v4592, %v4583
      %v4863 = vpack.c.b16 %v4593, %v4584
      %v4864 = vpack.c.b16 %v4594, %v4585
      %v4865 = vpack.c.b16 %v4595, %v4586
      %v4866 = vpack.c.b16 %v4596, %v4587
      %v4867 = vpack.c.b16 %v4597, %v4588
      %v4868 = vpack.c.b16 %v4607, %v4598
      %v4869 = vpack.c.b16 %v4608, %v4599
      %v4870 = vpack.c.b16 %v4609, %v4600
      %v4871 = vpack.c.b16 %v4610, %v4601
      %v4872 = vpack.c.b16 %v4611, %v4602
      %v4873 = vpack.c.b16 %v4612, %v4603
      %v4874 = vpack.c.b16 %v4613, %v4604
      %v4875 = vpack.c.b16 %v4614, %v4605
      %v4876 = vpack.c.b16 %v4615, %v4606
      %v4877 = vpack.c.b16 %v4625, %v4616
      %v4878 = vpack.c.b16 %v4626, %v4617
      %v4879 = vpack.c.b16 %v4627, %v4618
      %v4880 = vpack.c.b16 %v4628, %v4619
      %v4881 = vpack.c.b16 %v4629, %v4620
      %v4882 = vpack.c.b16 %v4630, %v4621
      %v4883 = vpack.c.b16 %v4631, %v4622
      %v4884 = vpack.c.b16 %v4632, %v4623
      %v4885 = vpack.c.b16 %v4633, %v4624
      %v4886 = vpack.c.b16 %v4643, %v4634
      %v4887 = vpack.c.b16 %v4644, %v4635
      %v4888 = vpack.c.b16 %v4645, %v4636
      %v4889 = vpack.c.b16 %v4646, %v4637
      %v4890 = vpack.c.b16 %v4647, %v4638
      %v4891 = vpack.c.b16 %v4648, %v4639
      %v4892 = vpack.c.b16 %v4649, %v4640
      %v4893 = vpack.c.b16 %v4650, %v4641
      %v4894 = vpack.c.b16 %v4651, %v4642
      %v4895 = vpack.c.b16 %v4661, %v4652
      %v4896 = vpack.c.b16 %v4662, %v4653
      %v4897 = vpack.c.b16 %v4663, %v4654
      %v4898 = vpack.c.b16 %v4664, %v4655
      %v4899 = vpack.c.b16 %v4665, %v4656
      %v4900 = vpack.c.b16 %v4666, %v4657
      %v4901 = vpack.c.b16 %v4667, %v4658
      %v4902 = vpack.c.b16 %v4668, %v4659
      %v4903 = vpack.c.b16 %v4669, %v4660
      %v4904 = vpack.c.b16 %v4679, %v4670
      %v4905 = vpack.c.b16 %v4680, %v4671
      %v4906 = vpack.c.b16 %v4681, %v4672
      %v4907 = vpack.c.b16 %v4682, %v4673
      %v4908 = vpack.c.b16 %v4683, %v4674
      %v4909 = vpack.c.b16 %v4684, %v4675
      %v4910 = vpack.c.b16 %v4685, %v4676
      %v4911 = vpack.c.b16 %v4686, %v4677
      %v4912 = vpack.c.b16 %v4687, %v4678
      %v4913 = vpack.c.b16 %v4697, %v4688
      %v4914 = vpack.c.b16 %v4698, %v4689
      %v4915 = vpack.c.b16 %v4699, %v4690
      %v4916 = vpack.c.b16 %v4700, %v4691
      %v4917 = vpack.c.b16 %v4701, %v4692
      %v4918 = vpack.c.b16 %v4702, %v4693
      %v4919 = vpack.c.b16 %v4703, %v4694
      %v4920 = vpack.c.b16 %v4704, %v4695
      %v4921 = vpack.c.b16 %v4705, %v4696
      %v4922 = vpack.c.b16 %v4715, %v4706
      %v4923 = vpack.c.b16 %v4716, %v4707
      %v4924 = vpack.c.b16 %v4717, %v4708
      %v4925 = vpack.c.b16 %v4718, %v4709
      %v4926 = vpack.c.b16 %v4719, %v4710
      %v4927 = vpack.c.b16 %v4720, %v4711
      %v4928 = vpack.c.b16 %v4721, %v4712
      %v4929 = vpack.c.b16 %v4722, %v4713
      %v4930 = vpack.c.b16 %v4723, %v4714
      %v4931 = vpack.c.b16 %v4733, %v4724
      %v4932 = vpack.c.b16 %v4734, %v4725
      %v4933 = vpack.c.b16 %v4735, %v4726
      %v4934 = vpack.c.b16 %v4736, %v4727
      %v4935 = vpack.c.b16 %v4737, %v4728
      %v4936 = vpack.c.b16 %v4738, %v4729
      %v4937 = vpack.c.b16 %v4739, %v4730
      %v4938 = vpack.c.b16 %v4740, %v4731
      %v4939 = vpack.c.b16 %v4741, %v4732
      %v4940 = vpack.c.b16 %v4751, %v4742
      %v4941 = vpack.c.b16 %v4752, %v4743
      %v4942 = vpack.c.b16 %v4753, %v4744
      %v4943 = vpack.c.b16 %v4754, %v4745
      %v4944 = vpack.c.b16 %v4755, %v4746
      %v4945 = vpack.c.b16 %v4756, %v4747
      %v4946 = vpack.c.b16 %v4757, %v4748
      %v4947 = vpack.c.b16 %v4758, %v4749
      %v4948 = vpack.c.b16 %v4759, %v4750
      %v4949 = vpack.c.b16 %v4769, %v4760
      %v4950 = vpack.c.b16 %v4770, %v4761
      %v4951 = vpack.c.b16 %v4771, %v4762
      %v4952 = vpack.c.b16 %v4772, %v4763
      %v4953 = vpack.c.b16 %v4773, %v4764
      %v4954 = vpack.c.b16 %v4774, %v4765
      %v4955 = vpack.c.b16 %v4775, %v4766
      %v4956 = vpack.c.b16 %v4776, %v4767
      %v4957 = vpack.c.b16 %v4777, %v4768
      %v4958 = vpack.c.b16 %v4787, %v4778
      %v4959 = vpack.c.b16 %v4788, %v4779
      %v4960 = vpack.c.b16 %v4789, %v4780
      %v4961 = vpack.c.b16 %v4790, %v4781
      %v4962 = vpack.c.b16 %v4791, %v4782
      %v4963 = vpack.c.b16 %v4792, %v4783
      %v4964 = vpack.c.b16 %v4793, %v4784
      %v4965 = vpack.c.b16 %v4794, %v4785
      %v4966 = vpack.c.b16 %v4795, %v4786
      %v4967 = vpack.c.b16 %v4805, %v4796
      %v4968 = vpack.c.b16 %v4806, %v4797
      %v4969 = vpack.c.b16 %v4807, %v4798
      %v4970 = vpack.c.b16 %v4808, %v4799
      %v4971 = vpack.c.b16 %v4809, %v4800
      %v4972 = vpack.c.b16 %v4810, %v4801
      %v4973 = vpack.c.b16 %v4811, %v4802
      %v4974 = vpack.c.b16 %v4812, %v4803
      %v4975 = vpack.c.b16 %v4813, %v4804
      %v4976 = vpack.c.b16 %v4823, %v4814
      %v4977 = vpack.c.b16 %v4824, %v4815
      %v4978 = vpack.c.b16 %v4825, %v4816
      %v4979 = vpack.c.b16 %v4826, %v4817
      %v4980 = vpack.c.b16 %v4827, %v4818
      %v4981 = vpack.c.b16 %v4828, %v4819
      %v4982 = vpack.c.b16 %v4829, %v4820
      %v4983 = vpack.c.b16 %v4830, %v4821
      %v4984 = vpack.c.b16 %v4831, %v4822
      %v4985 = vpack.c.b16 %v4841, %v4832
      %v4986 = vpack.c.b16 %v4842, %v4833
      %v4987 = vpack.c.b16 %v4843, %v4834
      %v4988 = vpack.c.b16 %v4844, %v4835
      %v4989 = vpack.c.b16 %v4845, %v4836
      %v4990 = vpack.c.b16 %v4846, %v4837
      %v4991 = vpack.c.b16 %v4847, %v4838
      %v4992 = vpack.c.b16 %v4848, %v4839
      %v4993 = vpack.c.b16 %v4849, %v4840
      %v5282 = vunpack.c.l.b16 %v4258
      %v5283 = vunpack.c.l.b16 %v4259
      %v5284 = vunpack.c.l.b16 %v4260
      %v5285 = vunpack.c.l.b16 %v4261
      %v5286 = vunpack.c.l.b16 %v4262
      %v5287 = vunpack.c.l.b16 %v4263
      %v5288 = vunpack.c.l.b16 %v4264
      %v5289 = vunpack.c.l.b16 %v4265
      %v5290 = vunpack.c.l.b16 %v4266
      %v5291 = vunpack.c.l.b16 %v4267
      %v5292 = vunpack.c.l.b16 %v4268
      %v5293 = vunpack.c.l.b16 %v4269
      %v5294 = vunpack.c.l.b16 %v4270
      %v5295 = vunpack.c.l.b16 %v4271
      %v5296 = vunpack.c.l.b16 %v4272
      %v5297 = vunpack.c.l.b16 %v4273
      %v5298 = vunpack.c.l.b16 %v4274
      %v5299 = vunpack.c.l.b16 %v4275
      %v5300 = vunpack.c.l.b16 %v4276
      %v5301 = vunpack.c.l.b16 %v4277
      %v5302 = vunpack.c.l.b16 %v4278
      %v5303 = vunpack.c.l.b16 %v4279
      %v5304 = vunpack.c.l.b16 %v4280
      %v5305 = vunpack.c.l.b16 %v4281
      %v5306 = vunpack.c.l.b16 %v4282
      %v5307 = vunpack.c.l.b16 %v4283
      %v5308 = vunpack.c.l.b16 %v4284
      %v5309 = vunpack.c.l.b16 %v4285
      %v5310 = vunpack.c.l.b16 %v4286
      %v5311 = vunpack.c.l.b16 %v4287
      %v5312 = vunpack.c.l.b16 %v4288
      %v5313 = vunpack.c.l.b16 %v4289
      %v5314 = vunpack.c.l.b16 %v4290
      %v5315 = vunpack.c.l.b16 %v4291
      %v5316 = vunpack.c.l.b16 %v4292
      %v5317 = vunpack.c.l.b16 %v4293
      %v5318 = vunpack.c.l.b16 %v4294
      %v5319 = vunpack.c.l.b16 %v4295
      %v5320 = vunpack.c.l.b16 %v4296
      %v5321 = vunpack.c.l.b16 %v4297
      %v5322 = vunpack.c.l.b16 %v4298
      %v5323 = vunpack.c.l.b16 %v4299
      %v5324 = vunpack.c.l.b16 %v4300
      %v5325 = vunpack.c.l.b16 %v4301
      %v5326 = vunpack.c.l.b16 %v4302
      %v5327 = vunpack.c.l.b16 %v4303
      %v5328 = vunpack.c.l.b16 %v4304
      %v5329 = vunpack.c.l.b16 %v4305
      %v5330 = vunpack.c.l.b16 %v4306
      %v5331 = vunpack.c.l.b16 %v4307
      %v5332 = vunpack.c.l.b16 %v4308
      %v5333 = vunpack.c.l.b16 %v4309
      %v5334 = vunpack.c.l.b16 %v4310
      %v5335 = vunpack.c.l.b16 %v4311
      %v5336 = vunpack.c.l.b16 %v4312
      %v5337 = vunpack.c.l.b16 %v4313
      %v5338 = vunpack.c.l.b16 %v4314
      %v5339 = vunpack.c.l.b16 %v4315
      %v5340 = vunpack.c.l.b16 %v4316
      %v5341 = vunpack.c.l.b16 %v4317
      %v5342 = vunpack.c.l.b16 %v4318
      %v5343 = vunpack.c.l.b16 %v4319
      %v5344 = vunpack.c.l.b16 %v4320
      %v5345 = vunpack.c.l.b16 %v4321
      %v5346 = vunpack.c.l.b16 %v4322
      %v5347 = vunpack.c.l.b16 %v4323
      %v5348 = vunpack.c.l.b16 %v4324
      %v5349 = vunpack.c.l.b16 %v4325
      %v5350 = vunpack.c.l.b16 %v4326
      %v5351 = vunpack.c.l.b16 %v4327
      %v5352 = vunpack.c.l.b16 %v4328
      %v5353 = vunpack.c.l.b16 %v4329
      %v5354 = vunpack.c.l.b16 %v4330
      %v5355 = vunpack.c.l.b16 %v4331
      %v5356 = vunpack.c.l.b16 %v4332
      %v5357 = vunpack.c.l.b16 %v4333
      %v5358 = vunpack.c.l.b16 %v4334
      %v5359 = vunpack.c.l.b16 %v4335
      %v5360 = vunpack.c.l.b16 %v4336
      %v5361 = vunpack.c.l.b16 %v4337
      %v5362 = vunpack.c.l.b16 %v4338
      %v5363 = vunpack.c.l.b16 %v4339
      %v5364 = vunpack.c.l.b16 %v4340
      %v5365 = vunpack.c.l.b16 %v4341
      %v5366 = vunpack.c.l.b16 %v4342
      %v5367 = vunpack.c.l.b16 %v4343
      %v5368 = vunpack.c.l.b16 %v4344
      %v5369 = vunpack.c.l.b16 %v4345
      %v5370 = vunpack.c.l.b16 %v4346
      %v5371 = vunpack.c.l.b16 %v4347
      %v5372 = vunpack.c.l.b16 %v4348
      %v5373 = vunpack.c.l.b16 %v4349
      %v5374 = vunpack.c.l.b16 %v4350
      %v5375 = vunpack.c.l.b16 %v4351
      %v5376 = vunpack.c.l.b16 %v4352
      %v5377 = vunpack.c.l.b16 %v4353
      %v5378 = vunpack.c.l.b16 %v4354
      %v5379 = vunpack.c.l.b16 %v4355
      %v5380 = vunpack.c.l.b16 %v4356
      %v5381 = vunpack.c.l.b16 %v4357
      %v5382 = vunpack.c.l.b16 %v4358
      %v5383 = vunpack.c.l.b16 %v4359
      %v5384 = vunpack.c.l.b16 %v4360
      %v5385 = vunpack.c.l.b16 %v4361
      %v5386 = vunpack.c.l.b16 %v4362
      %v5387 = vunpack.c.l.b16 %v4363
      %v5388 = vunpack.c.l.b16 %v4364
      %v5389 = vunpack.c.l.b16 %v4365
      %v5390 = vunpack.c.l.b16 %v4366
      %v5391 = vunpack.c.l.b16 %v4367
      %v5392 = vunpack.c.l.b16 %v4368
      %v5393 = vunpack.c.l.b16 %v4369
      %v5394 = vunpack.c.l.b16 %v4370
      %v5395 = vunpack.c.l.b16 %v4371
      %v5396 = vunpack.c.l.b16 %v4372
      %v5397 = vunpack.c.l.b16 %v4373
      %v5398 = vunpack.c.l.b16 %v4374
      %v5399 = vunpack.c.l.b16 %v4375
      %v5400 = vunpack.c.l.b16 %v4376
      %v5401 = vunpack.c.l.b16 %v4377
      %v5402 = vunpack.c.l.b16 %v4378
      %v5403 = vunpack.c.l.b16 %v4379
      %v5404 = vunpack.c.l.b16 %v4380
      %v5405 = vunpack.c.l.b16 %v4381
      %v5406 = vunpack.c.l.b16 %v4382
      %v5407 = vunpack.c.l.b16 %v4383
      %v5408 = vunpack.c.l.b16 %v4384
      %v5409 = vunpack.c.l.b16 %v4385
      %v5410 = vunpack.c.l.b16 %v4386
      %v5411 = vunpack.c.l.b16 %v4387
      %v5412 = vunpack.c.l.b16 %v4388
      %v5413 = vunpack.c.l.b16 %v4389
      %v5414 = vunpack.c.l.b16 %v4390
      %v5415 = vunpack.c.l.b16 %v4391
      %v5416 = vunpack.c.l.b16 %v4392
      %v5417 = vunpack.c.l.b16 %v4393
      %v5418 = vunpack.c.l.b16 %v4394
      %v5419 = vunpack.c.l.b16 %v4395
      %v5420 = vunpack.c.l.b16 %v4396
      %v5421 = vunpack.c.l.b16 %v4397
      %v5422 = vunpack.c.l.b16 %v4398
      %v5423 = vunpack.c.l.b16 %v4399
      %v5424 = vunpack.c.l.b16 %v4400
      %v5425 = vunpack.c.l.b16 %v4401
      %v5426 = vpack.c.b16 %v5283, %v5282
      %v5427 = vpack.c.b16 %v5285, %v5284
      %v5428 = vpack.c.b16 %v5287, %v5286
      %v5429 = vpack.c.b16 %v5289, %v5288
      %v5430 = vpack.c.b16 %v5291, %v5290
      %v5431 = vpack.c.b16 %v5293, %v5292
      %v5432 = vpack.c.b16 %v5295, %v5294
      %v5433 = vpack.c.b16 %v5297, %v5296
      %v5434 = vpack.c.b16 %v5299, %v5298
      %v5435 = vpack.c.b16 %v5301, %v5300
      %v5436 = vpack.c.b16 %v5303, %v5302
      %v5437 = vpack.c.b16 %v5305, %v5304
      %v5438 = vpack.c.b16 %v5307, %v5306
      %v5439 = vpack.c.b16 %v5309, %v5308
      %v5440 = vpack.c.b16 %v5311, %v5310
      %v5441 = vpack.c.b16 %v5313, %v5312
      %v5442 = vpack.c.b16 %v5315, %v5314
      %v5443 = vpack.c.b16 %v5317, %v5316
      %v5444 = vpack.c.b16 %v5319, %v5318
      %v5445 = vpack.c.b16 %v5321, %v5320
      %v5446 = vpack.c.b16 %v5323, %v5322
      %v5447 = vpack.c.b16 %v5325, %v5324
      %v5448 = vpack.c.b16 %v5327, %v5326
      %v5449 = vpack.c.b16 %v5329, %v5328
      %v5450 = vpack.c.b16 %v5331, %v5330
      %v5451 = vpack.c.b16 %v5333, %v5332
      %v5452 = vpack.c.b16 %v5335, %v5334
      %v5453 = vpack.c.b16 %v5337, %v5336
      %v5454 = vpack.c.b16 %v5339, %v5338
      %v5455 = vpack.c.b16 %v5341, %v5340
      %v5456 = vpack.c.b16 %v5343, %v5342
      %v5457 = vpack.c.b16 %v5345, %v5344
      %v5458 = vpack.c.b16 %v5347, %v5346
      %v5459 = vpack.c.b16 %v5349, %v5348
      %v5460 = vpack.c.b16 %v5351, %v5350
      %v5461 = vpack.c.b16 %v5353, %v5352
      %v5462 = vpack.c.b16 %v5355, %v5354
      %v5463 = vpack.c.b16 %v5357, %v5356
      %v5464 = vpack.c.b16 %v5359, %v5358
      %v5465 = vpack.c.b16 %v5361, %v5360
      %v5466 = vpack.c.b16 %v5363, %v5362
      %v5467 = vpack.c.b16 %v5365, %v5364
      %v5468 = vpack.c.b16 %v5367, %v5366
      %v5469 = vpack.c.b16 %v5369, %v5368
      %v5470 = vpack.c.b16 %v5371, %v5370
      %v5471 = vpack.c.b16 %v5373, %v5372
      %v5472 = vpack.c.b16 %v5375, %v5374
      %v5473 = vpack.c.b16 %v5377, %v5376
      %v5474 = vpack.c.b16 %v5379, %v5378
      %v5475 = vpack.c.b16 %v5381, %v5380
      %v5476 = vpack.c.b16 %v5383, %v5382
      %v5477 = vpack.c.b16 %v5385, %v5384
      %v5478 = vpack.c.b16 %v5387, %v5386
      %v5479 = vpack.c.b16 %v5389, %v5388
      %v5480 = vpack.c.b16 %v5391, %v5390
      %v5481 = vpack.c.b16 %v5393, %v5392
      %v5482 = vpack.c.b16 %v5395, %v5394
      %v5483 = vpack.c.b16 %v5397, %v5396
      %v5484 = vpack.c.b16 %v5399, %v5398
      %v5485 = vpack.c.b16 %v5401, %v5400
      %v5486 = vpack.c.b16 %v5403, %v5402
      %v5487 = vpack.c.b16 %v5405, %v5404
      %v5488 = vpack.c.b16 %v5407, %v5406
      %v5489 = vpack.c.b16 %v5409, %v5408
      %v5490 = vpack.c.b16 %v5411, %v5410
      %v5491 = vpack.c.b16 %v5413, %v5412
      %v5492 = vpack.c.b16 %v5415, %v5414
      %v5493 = vpack.c.b16 %v5417, %v5416
      %v5494 = vpack.c.b16 %v5419, %v5418
      %v5495 = vpack.c.b16 %v5421, %v5420
      %v5496 = vpack.c.b16 %v5423, %v5422
      %v5497 = vpack.c.b16 %v5425, %v5424
      %5570 = vmatpush.bf16.msra.mxu0 %v5433
      %5571 = vmatpush.bf16.msra.mxu0 %v5432
      %5572 = vmatpush.bf16.msra.mxu0 %v5431
      %5573 = vmatpush.bf16.msra.mxu0 %v5430
      %5574 = vmatpush.bf16.msra.mxu0 %v5429
      %5575 = vmatpush.bf16.msra.mxu0 %v5428
      %5576 = vmatpush.bf16.msra.mxu0 %v5427
      %5577 = vmatpush.bf16.msra.mxu0 %v5426
      %5578 = vmatmul.bf16.gmra.mxu0 %v4850
      %v5579 = vpop.f32.mrf.mxu0
      %v5580 = vadd.f32 0.0, %v5579
      %v5581 = vpop.f32.mrf.mxu0
      %v5582 = vadd.f32 0.0, %v5581
      %5583 = vmatmul.bf16.gmra.mxu0 %v4859
      %v5584 = vpop.f32.mrf.mxu0
      %v5585 = vadd.f32 0.0, %v5584
      %v5586 = vpop.f32.mrf.mxu0
      %v5587 = vadd.f32 0.0, %v5586
      %5588 = vmatmul.bf16.gmra.mxu0 %v4868
      %v5589 = vpop.f32.mrf.mxu0
      %v5590 = vadd.f32 0.0, %v5589
      %v5591 = vpop.f32.mrf.mxu0
      %v5592 = vadd.f32 0.0, %v5591
      %5593 = vmatmul.bf16.gmra.mxu0 %v4877
      %v5594 = vpop.f32.mrf.mxu0
      %v5595 = vadd.f32 0.0, %v5594
      %v5596 = vpop.f32.mrf.mxu0
      %v5597 = vadd.f32 0.0, %v5596
      %5598 = vmatmul.bf16.gmra.mxu0 %v4886
      %v5599 = vpop.f32.mrf.mxu0
      %v5600 = vadd.f32 0.0, %v5599
      %v5601 = vpop.f32.mrf.mxu0
      %v5602 = vadd.f32 0.0, %v5601
      %5603 = vmatmul.bf16.gmra.mxu0 %v4895
      %v5604 = vpop.f32.mrf.mxu0
      %v5605 = vadd.f32 0.0, %v5604
      %v5606 = vpop.f32.mrf.mxu0
      %v5607 = vadd.f32 0.0, %v5606
      %5608 = vmatmul.bf16.gmra.mxu0 %v4904
      %v5609 = vpop.f32.mrf.mxu0
      %v5610 = vadd.f32 0.0, %v5609
      %v5611 = vpop.f32.mrf.mxu0
      %v5612 = vadd.f32 0.0, %v5611
      %5613 = vmatmul.bf16.gmra.mxu0 %v4913
      %v5614 = vpop.f32.mrf.mxu0
      %v5615 = vadd.f32 0.0, %v5614
      %v5616 = vpop.f32.mrf.mxu0
      %v5617 = vadd.f32 0.0, %v5616
      %5618 = vmatmul.bf16.gmra.mxu0 %v4922
      %v5619 = vpop.f32.mrf.mxu0
      %v5620 = vadd.f32 0.0, %v5619
      %v5621 = vpop.f32.mrf.mxu0
      %v5622 = vadd.f32 0.0, %v5621
      %5623 = vmatmul.bf16.gmra.mxu0 %v4931
      %v5624 = vpop.f32.mrf.mxu0
      %v5625 = vadd.f32 0.0, %v5624
      %v5626 = vpop.f32.mrf.mxu0
      %v5627 = vadd.f32 0.0, %v5626
      %5628 = vmatmul.bf16.gmra.mxu0 %v4940
      %v5629 = vpop.f32.mrf.mxu0
      %v5630 = vadd.f32 0.0, %v5629
      %v5631 = vpop.f32.mrf.mxu0
      %v5632 = vadd.f32 0.0, %v5631
      %5633 = vmatmul.bf16.gmra.mxu0 %v4949
      %v5634 = vpop.f32.mrf.mxu0
      %v5635 = vadd.f32 0.0, %v5634
      %v5636 = vpop.f32.mrf.mxu0
      %v5637 = vadd.f32 0.0, %v5636
      %5638 = vmatmul.bf16.gmra.mxu0 %v4958
      %v5639 = vpop.f32.mrf.mxu0
      %v5640 = vadd.f32 0.0, %v5639
      %v5641 = vpop.f32.mrf.mxu0
      %v5642 = vadd.f32 0.0, %v5641
      %5643 = vmatmul.bf16.gmra.mxu0 %v4967
      %v5644 = vpop.f32.mrf.mxu0
      %v5645 = vadd.f32 0.0, %v5644
      %v5646 = vpop.f32.mrf.mxu0
      %v5647 = vadd.f32 0.0, %v5646
      %5648 = vmatmul.bf16.gmra.mxu0 %v4976
      %v5649 = vpop.f32.mrf.mxu0
      %v5650 = vadd.f32 0.0, %v5649
      %v5651 = vpop.f32.mrf.mxu0
      %v5652 = vadd.f32 0.0, %v5651
      %5653 = vmatmul.bf16.gmra.mxu0 %v4985
      %v5654 = vpop.f32.mrf.mxu0
      %v5655 = vadd.f32 0.0, %v5654
      %v5656 = vpop.f32.mrf.mxu0
      %v5657 = vadd.f32 0.0, %v5656
      %5658 = vdwg.mxu0
      %5659 = vmatpush.bf16.msra.mxu0 %v5441
      %5660 = vmatpush.bf16.msra.mxu0 %v5440
      %5661 = vmatpush.bf16.msra.mxu0 %v5439
      %5662 = vmatpush.bf16.msra.mxu0 %v5438
      %5663 = vmatpush.bf16.msra.mxu0 %v5437
      %5664 = vmatpush.bf16.msra.mxu0 %v5436
      %5665 = vmatpush.bf16.msra.mxu0 %v5435
      %5666 = vmatpush.bf16.msra.mxu0 %v5434
      %5667 = vmatmul.bf16.gmra.mxu0 %v4851
      %v5668 = vpop.f32.mrf.mxu0
      %v5669 = vadd.f32 %v5580, %v5668
      %v5670 = vpop.f32.mrf.mxu0
      %v5671 = vadd.f32 %v5582, %v5670
      %5672 = vmatmul.bf16.gmra.mxu0 %v4860
      %v5673 = vpop.f32.mrf.mxu0
      %v5674 = vadd.f32 %v5585, %v5673
      %v5675 = vpop.f32.mrf.mxu0
      %v5676 = vadd.f32 %v5587, %v5675
      %5677 = vmatmul.bf16.gmra.mxu0 %v4869
      %v5678 = vpop.f32.mrf.mxu0
      %v5679 = vadd.f32 %v5590, %v5678
      %v5680 = vpop.f32.mrf.mxu0
      %v5681 = vadd.f32 %v5592, %v5680
      %5682 = vmatmul.bf16.gmra.mxu0 %v4878
      %v5683 = vpop.f32.mrf.mxu0
      %v5684 = vadd.f32 %v5595, %v5683
      %v5685 = vpop.f32.mrf.mxu0
      %v5686 = vadd.f32 %v5597, %v5685
      %5687 = vmatmul.bf16.gmra.mxu0 %v4887
      %v5688 = vpop.f32.mrf.mxu0
      %v5689 = vadd.f32 %v5600, %v5688
      %v5690 = vpop.f32.mrf.mxu0
      %v5691 = vadd.f32 %v5602, %v5690
      %5692 = vmatmul.bf16.gmra.mxu0 %v4896
      %v5693 = vpop.f32.mrf.mxu0
      %v5694 = vadd.f32 %v5605, %v5693
      %v5695 = vpop.f32.mrf.mxu0
      %v5696 = vadd.f32 %v5607, %v5695
      %5697 = vmatmul.bf16.gmra.mxu0 %v4905
      %v5698 = vpop.f32.mrf.mxu0
      %v5699 = vadd.f32 %v5610, %v5698
      %v5700 = vpop.f32.mrf.mxu0
      %v5701 = vadd.f32 %v5612, %v5700
      %5702 = vmatmul.bf16.gmra.mxu0 %v4914
      %v5703 = vpop.f32.mrf.mxu0
      %v5704 = vadd.f32 %v5615, %v5703
      %v5705 = vpop.f32.mrf.mxu0
      %v5706 = vadd.f32 %v5617, %v5705
      %5707 = vmatmul.bf16.gmra.mxu0 %v4923
      %v5708 = vpop.f32.mrf.mxu0
      %v5709 = vadd.f32 %v5620, %v5708
      %v5710 = vpop.f32.mrf.mxu0
      %v5711 = vadd.f32 %v5622, %v5710
      %5712 = vmatmul.bf16.gmra.mxu0 %v4932
      %v5713 = vpop.f32.mrf.mxu0
      %v5714 = vadd.f32 %v5625, %v5713
      %v5715 = vpop.f32.mrf.mxu0
      %v5716 = vadd.f32 %v5627, %v5715
      %5717 = vmatmul.bf16.gmra.mxu0 %v4941
      %v5718 = vpop.f32.mrf.mxu0
      %v5719 = vadd.f32 %v5630, %v5718
      %v5720 = vpop.f32.mrf.mxu0
      %v5721 = vadd.f32 %v5632, %v5720
      %5722 = vmatmul.bf16.gmra.mxu0 %v4950
      %v5723 = vpop.f32.mrf.mxu0
      %v5724 = vadd.f32 %v5635, %v5723
      %v5725 = vpop.f32.mrf.mxu0
      %v5726 = vadd.f32 %v5637, %v5725
      %5727 = vmatmul.bf16.gmra.mxu0 %v4959
      %v5728 = vpop.f32.mrf.mxu0
      %v5729 = vadd.f32 %v5640, %v5728
      %v5730 = vpop.f32.mrf.mxu0
      %v5731 = vadd.f32 %v5642, %v5730
      %5732 = vmatmul.bf16.gmra.mxu0 %v4968
      %v5733 = vpop.f32.mrf.mxu0
      %v5734 = vadd.f32 %v5645, %v5733
      %v5735 = vpop.f32.mrf.mxu0
      %v5736 = vadd.f32 %v5647, %v5735
      %5737 = vmatmul.bf16.gmra.mxu0 %v4977
      %v5738 = vpop.f32.mrf.mxu0
      %v5739 = vadd.f32 %v5650, %v5738
      %v5740 = vpop.f32.mrf.mxu0
      %v5741 = vadd.f32 %v5652, %v5740
      %5742 = vmatmul.bf16.gmra.mxu0 %v4986
      %v5743 = vpop.f32.mrf.mxu0
      %v5744 = vadd.f32 %v5655, %v5743
      %v5745 = vpop.f32.mrf.mxu0
      %v5746 = vadd.f32 %v5657, %v5745
      %5747 = vdwg.mxu0
      %5748 = vmatpush.bf16.msra.mxu0 %v5449
      %5749 = vmatpush.bf16.msra.mxu0 %v5448
      %5750 = vmatpush.bf16.msra.mxu0 %v5447
      %5751 = vmatpush.bf16.msra.mxu0 %v5446
      %5752 = vmatpush.bf16.msra.mxu0 %v5445
      %5753 = vmatpush.bf16.msra.mxu0 %v5444
      %5754 = vmatpush.bf16.msra.mxu0 %v5443
      %5755 = vmatpush.bf16.msra.mxu0 %v5442
      %5756 = vmatmul.bf16.gmra.mxu0 %v4852
      %v5757 = vpop.f32.mrf.mxu0
      %v5758 = vadd.f32 %v5669, %v5757
      %v5759 = vpop.f32.mrf.mxu0
      %v5760 = vadd.f32 %v5671, %v5759
      %5761 = vmatmul.bf16.gmra.mxu0 %v4861
      %v5762 = vpop.f32.mrf.mxu0
      %v5763 = vadd.f32 %v5674, %v5762
      %v5764 = vpop.f32.mrf.mxu0
      %v5765 = vadd.f32 %v5676, %v5764
      %5766 = vmatmul.bf16.gmra.mxu0 %v4870
      %v5767 = vpop.f32.mrf.mxu0
      %v5768 = vadd.f32 %v5679, %v5767
      %v5769 = vpop.f32.mrf.mxu0
      %v5770 = vadd.f32 %v5681, %v5769
      %5771 = vmatmul.bf16.gmra.mxu0 %v4879
      %v5772 = vpop.f32.mrf.mxu0
      %v5773 = vadd.f32 %v5684, %v5772
      %v5774 = vpop.f32.mrf.mxu0
      %v5775 = vadd.f32 %v5686, %v5774
      %5776 = vmatmul.bf16.gmra.mxu0 %v4888
      %v5777 = vpop.f32.mrf.mxu0
      %v5778 = vadd.f32 %v5689, %v5777
      %v5779 = vpop.f32.mrf.mxu0
      %v5780 = vadd.f32 %v5691, %v5779
      %5781 = vmatmul.bf16.gmra.mxu0 %v4897
      %v5782 = vpop.f32.mrf.mxu0
      %v5783 = vadd.f32 %v5694, %v5782
      %v5784 = vpop.f32.mrf.mxu0
      %v5785 = vadd.f32 %v5696, %v5784
      %5786 = vmatmul.bf16.gmra.mxu0 %v4906
      %v5787 = vpop.f32.mrf.mxu0
      %v5788 = vadd.f32 %v5699, %v5787
      %v5789 = vpop.f32.mrf.mxu0
      %v5790 = vadd.f32 %v5701, %v5789
      %5791 = vmatmul.bf16.gmra.mxu0 %v4915
      %v5792 = vpop.f32.mrf.mxu0
      %v5793 = vadd.f32 %v5704, %v5792
      %v5794 = vpop.f32.mrf.mxu0
      %v5795 = vadd.f32 %v5706, %v5794
      %5796 = vmatmul.bf16.gmra.mxu0 %v4924
      %v5797 = vpop.f32.mrf.mxu0
      %v5798 = vadd.f32 %v5709, %v5797
      %v5799 = vpop.f32.mrf.mxu0
      %v5800 = vadd.f32 %v5711, %v5799
      %5801 = vmatmul.bf16.gmra.mxu0 %v4933
      %v5802 = vpop.f32.mrf.mxu0
      %v5803 = vadd.f32 %v5714, %v5802
      %v5804 = vpop.f32.mrf.mxu0
      %v5805 = vadd.f32 %v5716, %v5804
      %5806 = vmatmul.bf16.gmra.mxu0 %v4942
      %v5807 = vpop.f32.mrf.mxu0
      %v5808 = vadd.f32 %v5719, %v5807
      %v5809 = vpop.f32.mrf.mxu0
      %v5810 = vadd.f32 %v5721, %v5809
      %5811 = vmatmul.bf16.gmra.mxu0 %v4951
      %v5812 = vpop.f32.mrf.mxu0
      %v5813 = vadd.f32 %v5724, %v5812
      %v5814 = vpop.f32.mrf.mxu0
      %v5815 = vadd.f32 %v5726, %v5814
      %5816 = vmatmul.bf16.gmra.mxu0 %v4960
      %v5817 = vpop.f32.mrf.mxu0
      %v5818 = vadd.f32 %v5729, %v5817
      %v5819 = vpop.f32.mrf.mxu0
      %v5820 = vadd.f32 %v5731, %v5819
      %5821 = vmatmul.bf16.gmra.mxu0 %v4969
      %v5822 = vpop.f32.mrf.mxu0
      %v5823 = vadd.f32 %v5734, %v5822
      %v5824 = vpop.f32.mrf.mxu0
      %v5825 = vadd.f32 %v5736, %v5824
      %5826 = vmatmul.bf16.gmra.mxu0 %v4978
      %v5827 = vpop.f32.mrf.mxu0
      %v5828 = vadd.f32 %v5739, %v5827
      %v5829 = vpop.f32.mrf.mxu0
      %v5830 = vadd.f32 %v5741, %v5829
      %5831 = vmatmul.bf16.gmra.mxu0 %v4987
      %v5832 = vpop.f32.mrf.mxu0
      %v5833 = vadd.f32 %v5744, %v5832
      %v5834 = vpop.f32.mrf.mxu0
      %v5835 = vadd.f32 %v5746, %v5834
      %5836 = vdwg.mxu0
      %5837 = vmatpush.bf16.msra.mxu0 %v5457
      %5838 = vmatpush.bf16.msra.mxu0 %v5456
      %5839 = vmatpush.bf16.msra.mxu0 %v5455
      %5840 = vmatpush.bf16.msra.mxu0 %v5454
      %5841 = vmatpush.bf16.msra.mxu0 %v5453
      %5842 = vmatpush.bf16.msra.mxu0 %v5452
      %5843 = vmatpush.bf16.msra.mxu0 %v5451
      %5844 = vmatpush.bf16.msra.mxu0 %v5450
      %5845 = vmatmul.bf16.gmra.mxu0 %v4853
      %v5846 = vpop.f32.mrf.mxu0
      %v5847 = vadd.f32 %v5758, %v5846
      %v5848 = vpop.f32.mrf.mxu0
      %v5849 = vadd.f32 %v5760, %v5848
      %5850 = vmatmul.bf16.gmra.mxu0 %v4862
      %v5851 = vpop.f32.mrf.mxu0
      %v5852 = vadd.f32 %v5763, %v5851
      %v5853 = vpop.f32.mrf.mxu0
      %v5854 = vadd.f32 %v5765, %v5853
      %5855 = vmatmul.bf16.gmra.mxu0 %v4871
      %v5856 = vpop.f32.mrf.mxu0
      %v5857 = vadd.f32 %v5768, %v5856
      %v5858 = vpop.f32.mrf.mxu0
      %v5859 = vadd.f32 %v5770, %v5858
      %5860 = vmatmul.bf16.gmra.mxu0 %v4880
      %v5861 = vpop.f32.mrf.mxu0
      %v5862 = vadd.f32 %v5773, %v5861
      %v5863 = vpop.f32.mrf.mxu0
      %v5864 = vadd.f32 %v5775, %v5863
      %5865 = vmatmul.bf16.gmra.mxu0 %v4889
      %v5866 = vpop.f32.mrf.mxu0
      %v5867 = vadd.f32 %v5778, %v5866
      %v5868 = vpop.f32.mrf.mxu0
      %v5869 = vadd.f32 %v5780, %v5868
      %5870 = vmatmul.bf16.gmra.mxu0 %v4898
      %v5871 = vpop.f32.mrf.mxu0
      %v5872 = vadd.f32 %v5783, %v5871
      %v5873 = vpop.f32.mrf.mxu0
      %v5874 = vadd.f32 %v5785, %v5873
      %5875 = vmatmul.bf16.gmra.mxu0 %v4907
      %v5876 = vpop.f32.mrf.mxu0
      %v5877 = vadd.f32 %v5788, %v5876
      %v5878 = vpop.f32.mrf.mxu0
      %v5879 = vadd.f32 %v5790, %v5878
      %5880 = vmatmul.bf16.gmra.mxu0 %v4916
      %v5881 = vpop.f32.mrf.mxu0
      %v5882 = vadd.f32 %v5793, %v5881
      %v5883 = vpop.f32.mrf.mxu0
      %v5884 = vadd.f32 %v5795, %v5883
      %5885 = vmatmul.bf16.gmra.mxu0 %v4925
      %v5886 = vpop.f32.mrf.mxu0
      %v5887 = vadd.f32 %v5798, %v5886
      %v5888 = vpop.f32.mrf.mxu0
      %v5889 = vadd.f32 %v5800, %v5888
      %5890 = vmatmul.bf16.gmra.mxu0 %v4934
      %v5891 = vpop.f32.mrf.mxu0
      %v5892 = vadd.f32 %v5803, %v5891
      %v5893 = vpop.f32.mrf.mxu0
      %v5894 = vadd.f32 %v5805, %v5893
      %5895 = vmatmul.bf16.gmra.mxu0 %v4943
      %v5896 = vpop.f32.mrf.mxu0
      %v5897 = vadd.f32 %v5808, %v5896
      %v5898 = vpop.f32.mrf.mxu0
      %v5899 = vadd.f32 %v5810, %v5898
      %5900 = vmatmul.bf16.gmra.mxu0 %v4952
      %v5901 = vpop.f32.mrf.mxu0
      %v5902 = vadd.f32 %v5813, %v5901
      %v5903 = vpop.f32.mrf.mxu0
      %v5904 = vadd.f32 %v5815, %v5903
      %5905 = vmatmul.bf16.gmra.mxu0 %v4961
      %v5906 = vpop.f32.mrf.mxu0
      %v5907 = vadd.f32 %v5818, %v5906
      %v5908 = vpop.f32.mrf.mxu0
      %v5909 = vadd.f32 %v5820, %v5908
      %5910 = vmatmul.bf16.gmra.mxu0 %v4970
      %v5911 = vpop.f32.mrf.mxu0
      %v5912 = vadd.f32 %v5823, %v5911
      %v5913 = vpop.f32.mrf.mxu0
      %v5914 = vadd.f32 %v5825, %v5913
      %5915 = vmatmul.bf16.gmra.mxu0 %v4979
      %v5916 = vpop.f32.mrf.mxu0
      %v5917 = vadd.f32 %v5828, %v5916
      %v5918 = vpop.f32.mrf.mxu0
      %v5919 = vadd.f32 %v5830, %v5918
      %5920 = vmatmul.bf16.gmra.mxu0 %v4988
      %v5921 = vpop.f32.mrf.mxu0
      %v5922 = vadd.f32 %v5833, %v5921
      %v5923 = vpop.f32.mrf.mxu0
      %v5924 = vadd.f32 %v5835, %v5923
      %5925 = vdwg.mxu0
      %5926 = vmatpush.bf16.msra.mxu0 %v5465
      %5927 = vmatpush.bf16.msra.mxu0 %v5464
      %5928 = vmatpush.bf16.msra.mxu0 %v5463
      %5929 = vmatpush.bf16.msra.mxu0 %v5462
      %5930 = vmatpush.bf16.msra.mxu0 %v5461
      %5931 = vmatpush.bf16.msra.mxu0 %v5460
      %5932 = vmatpush.bf16.msra.mxu0 %v5459
      %5933 = vmatpush.bf16.msra.mxu0 %v5458
      %5934 = vmatmul.bf16.gmra.mxu0 %v4854
      %v5935 = vpop.f32.mrf.mxu0
      %v5936 = vadd.f32 %v5847, %v5935
      %v5937 = vpop.f32.mrf.mxu0
      %v5938 = vadd.f32 %v5849, %v5937
      %5939 = vmatmul.bf16.gmra.mxu0 %v4863
      %v5940 = vpop.f32.mrf.mxu0
      %v5941 = vadd.f32 %v5852, %v5940
      %v5942 = vpop.f32.mrf.mxu0
      %v5943 = vadd.f32 %v5854, %v5942
      %5944 = vmatmul.bf16.gmra.mxu0 %v4872
      %v5945 = vpop.f32.mrf.mxu0
      %v5946 = vadd.f32 %v5857, %v5945
      %v5947 = vpop.f32.mrf.mxu0
      %v5948 = vadd.f32 %v5859, %v5947
      %5949 = vmatmul.bf16.gmra.mxu0 %v4881
      %v5950 = vpop.f32.mrf.mxu0
      %v5951 = vadd.f32 %v5862, %v5950
      %v5952 = vpop.f32.mrf.mxu0
      %v5953 = vadd.f32 %v5864, %v5952
      %5954 = vmatmul.bf16.gmra.mxu0 %v4890
      %v5955 = vpop.f32.mrf.mxu0
      %v5956 = vadd.f32 %v5867, %v5955
      %v5957 = vpop.f32.mrf.mxu0
      %v5958 = vadd.f32 %v5869, %v5957
      %5959 = vmatmul.bf16.gmra.mxu0 %v4899
      %v5960 = vpop.f32.mrf.mxu0
      %v5961 = vadd.f32 %v5872, %v5960
      %v5962 = vpop.f32.mrf.mxu0
      %v5963 = vadd.f32 %v5874, %v5962
      %5964 = vmatmul.bf16.gmra.mxu0 %v4908
      %v5965 = vpop.f32.mrf.mxu0
      %v5966 = vadd.f32 %v5877, %v5965
      %v5967 = vpop.f32.mrf.mxu0
      %v5968 = vadd.f32 %v5879, %v5967
      %5969 = vmatmul.bf16.gmra.mxu0 %v4917
      %v5970 = vpop.f32.mrf.mxu0
      %v5971 = vadd.f32 %v5882, %v5970
      %v5972 = vpop.f32.mrf.mxu0
      %v5973 = vadd.f32 %v5884, %v5972
      %5974 = vmatmul.bf16.gmra.mxu0 %v4926
      %v5975 = vpop.f32.mrf.mxu0
      %v5976 = vadd.f32 %v5887, %v5975
      %v5977 = vpop.f32.mrf.mxu0
      %v5978 = vadd.f32 %v5889, %v5977
      %5979 = vmatmul.bf16.gmra.mxu0 %v4935
      %v5980 = vpop.f32.mrf.mxu0
      %v5981 = vadd.f32 %v5892, %v5980
      %v5982 = vpop.f32.mrf.mxu0
      %v5983 = vadd.f32 %v5894, %v5982
      %5984 = vmatmul.bf16.gmra.mxu0 %v4944
      %v5985 = vpop.f32.mrf.mxu0
      %v5986 = vadd.f32 %v5897, %v5985
      %v5987 = vpop.f32.mrf.mxu0
      %v5988 = vadd.f32 %v5899, %v5987
      %5989 = vmatmul.bf16.gmra.mxu0 %v4953
      %v5990 = vpop.f32.mrf.mxu0
      %v5991 = vadd.f32 %v5902, %v5990
      %v5992 = vpop.f32.mrf.mxu0
      %v5993 = vadd.f32 %v5904, %v5992
      %5994 = vmatmul.bf16.gmra.mxu0 %v4962
      %v5995 = vpop.f32.mrf.mxu0
      %v5996 = vadd.f32 %v5907, %v5995
      %v5997 = vpop.f32.mrf.mxu0
      %v5998 = vadd.f32 %v5909, %v5997
      %5999 = vmatmul.bf16.gmra.mxu0 %v4971
      %v6000 = vpop.f32.mrf.mxu0
      %v6001 = vadd.f32 %v5912, %v6000
      %v6002 = vpop.f32.mrf.mxu0
      %v6003 = vadd.f32 %v5914, %v6002
      %6004 = vmatmul.bf16.gmra.mxu0 %v4980
      %v6005 = vpop.f32.mrf.mxu0
      %v6006 = vadd.f32 %v5917, %v6005
      %v6007 = vpop.f32.mrf.mxu0
      %v6008 = vadd.f32 %v5919, %v6007
      %6009 = vmatmul.bf16.gmra.mxu0 %v4989
      %v6010 = vpop.f32.mrf.mxu0
      %v6011 = vadd.f32 %v5922, %v6010
      %v6012 = vpop.f32.mrf.mxu0
      %v6013 = vadd.f32 %v5924, %v6012
      %6014 = vdwg.mxu0
      %6015 = vmatpush.bf16.msra.mxu0 %v5473
      %6016 = vmatpush.bf16.msra.mxu0 %v5472
      %6017 = vmatpush.bf16.msra.mxu0 %v5471
      %6018 = vmatpush.bf16.msra.mxu0 %v5470
      %6019 = vmatpush.bf16.msra.mxu0 %v5469
      %6020 = vmatpush.bf16.msra.mxu0 %v5468
      %6021 = vmatpush.bf16.msra.mxu0 %v5467
      %6022 = vmatpush.bf16.msra.mxu0 %v5466
      %6023 = vmatmul.bf16.gmra.mxu0 %v4855
      %v6024 = vpop.f32.mrf.mxu0
      %v6025 = vadd.f32 %v5936, %v6024
      %v6026 = vpop.f32.mrf.mxu0
      %v6027 = vadd.f32 %v5938, %v6026
      %6028 = vmatmul.bf16.gmra.mxu0 %v4864
      %v6029 = vpop.f32.mrf.mxu0
      %v6030 = vadd.f32 %v5941, %v6029
      %v6031 = vpop.f32.mrf.mxu0
      %v6032 = vadd.f32 %v5943, %v6031
      %6033 = vmatmul.bf16.gmra.mxu0 %v4873
      %v6034 = vpop.f32.mrf.mxu0
      %v6035 = vadd.f32 %v5946, %v6034
      %v6036 = vpop.f32.mrf.mxu0
      %v6037 = vadd.f32 %v5948, %v6036
      %6038 = vmatmul.bf16.gmra.mxu0 %v4882
      %v6039 = vpop.f32.mrf.mxu0
      %v6040 = vadd.f32 %v5951, %v6039
      %v6041 = vpop.f32.mrf.mxu0
      %v6042 = vadd.f32 %v5953, %v6041
      %6043 = vmatmul.bf16.gmra.mxu0 %v4891
      %v6044 = vpop.f32.mrf.mxu0
      %v6045 = vadd.f32 %v5956, %v6044
      %v6046 = vpop.f32.mrf.mxu0
      %v6047 = vadd.f32 %v5958, %v6046
      %6048 = vmatmul.bf16.gmra.mxu0 %v4900
      %v6049 = vpop.f32.mrf.mxu0
      %v6050 = vadd.f32 %v5961, %v6049
      %v6051 = vpop.f32.mrf.mxu0
      %v6052 = vadd.f32 %v5963, %v6051
      %6053 = vmatmul.bf16.gmra.mxu0 %v4909
      %v6054 = vpop.f32.mrf.mxu0
      %v6055 = vadd.f32 %v5966, %v6054
      %v6056 = vpop.f32.mrf.mxu0
      %v6057 = vadd.f32 %v5968, %v6056
      %6058 = vmatmul.bf16.gmra.mxu0 %v4918
      %v6059 = vpop.f32.mrf.mxu0
      %v6060 = vadd.f32 %v5971, %v6059
      %v6061 = vpop.f32.mrf.mxu0
      %v6062 = vadd.f32 %v5973, %v6061
      %6063 = vmatmul.bf16.gmra.mxu0 %v4927
      %v6064 = vpop.f32.mrf.mxu0
      %v6065 = vadd.f32 %v5976, %v6064
      %v6066 = vpop.f32.mrf.mxu0
      %v6067 = vadd.f32 %v5978, %v6066
      %6068 = vmatmul.bf16.gmra.mxu0 %v4936
      %v6069 = vpop.f32.mrf.mxu0
      %v6070 = vadd.f32 %v5981, %v6069
      %v6071 = vpop.f32.mrf.mxu0
      %v6072 = vadd.f32 %v5983, %v6071
      %6073 = vmatmul.bf16.gmra.mxu0 %v4945
      %v6074 = vpop.f32.mrf.mxu0
      %v6075 = vadd.f32 %v5986, %v6074
      %v6076 = vpop.f32.mrf.mxu0
      %v6077 = vadd.f32 %v5988, %v6076
      %6078 = vmatmul.bf16.gmra.mxu0 %v4954
      %v6079 = vpop.f32.mrf.mxu0
      %v6080 = vadd.f32 %v5991, %v6079
      %v6081 = vpop.f32.mrf.mxu0
      %v6082 = vadd.f32 %v5993, %v6081
      %6083 = vmatmul.bf16.gmra.mxu0 %v4963
      %v6084 = vpop.f32.mrf.mxu0
      %v6085 = vadd.f32 %v5996, %v6084
      %v6086 = vpop.f32.mrf.mxu0
      %v6087 = vadd.f32 %v5998, %v6086
      %6088 = vmatmul.bf16.gmra.mxu0 %v4972
      %v6089 = vpop.f32.mrf.mxu0
      %v6090 = vadd.f32 %v6001, %v6089
      %v6091 = vpop.f32.mrf.mxu0
      %v6092 = vadd.f32 %v6003, %v6091
      %6093 = vmatmul.bf16.gmra.mxu0 %v4981
      %v6094 = vpop.f32.mrf.mxu0
      %v6095 = vadd.f32 %v6006, %v6094
      %v6096 = vpop.f32.mrf.mxu0
      %v6097 = vadd.f32 %v6008, %v6096
      %6098 = vmatmul.bf16.gmra.mxu0 %v4990
      %v6099 = vpop.f32.mrf.mxu0
      %v6100 = vadd.f32 %v6011, %v6099
      %v6101 = vpop.f32.mrf.mxu0
      %v6102 = vadd.f32 %v6013, %v6101
      %6103 = vdwg.mxu0
      %6104 = vmatpush.bf16.msra.mxu0 %v5481
      %6105 = vmatpush.bf16.msra.mxu0 %v5480
      %6106 = vmatpush.bf16.msra.mxu0 %v5479
      %6107 = vmatpush.bf16.msra.mxu0 %v5478
      %6108 = vmatpush.bf16.msra.mxu0 %v5477
      %6109 = vmatpush.bf16.msra.mxu0 %v5476
      %6110 = vmatpush.bf16.msra.mxu0 %v5475
      %6111 = vmatpush.bf16.msra.mxu0 %v5474
      %6112 = vmatmul.bf16.gmra.mxu0 %v4856
      %v6113 = vpop.f32.mrf.mxu0
      %v6114 = vadd.f32 %v6025, %v6113
      %v6115 = vpop.f32.mrf.mxu0
      %v6116 = vadd.f32 %v6027, %v6115
      %6117 = vmatmul.bf16.gmra.mxu0 %v4865
      %v6118 = vpop.f32.mrf.mxu0
      %v6119 = vadd.f32 %v6030, %v6118
      %v6120 = vpop.f32.mrf.mxu0
      %v6121 = vadd.f32 %v6032, %v6120
      %6122 = vmatmul.bf16.gmra.mxu0 %v4874
      %v6123 = vpop.f32.mrf.mxu0
      %v6124 = vadd.f32 %v6035, %v6123
      %v6125 = vpop.f32.mrf.mxu0
      %v6126 = vadd.f32 %v6037, %v6125
      %6127 = vmatmul.bf16.gmra.mxu0 %v4883
      %v6128 = vpop.f32.mrf.mxu0
      %v6129 = vadd.f32 %v6040, %v6128
      %v6130 = vpop.f32.mrf.mxu0
      %v6131 = vadd.f32 %v6042, %v6130
      %6132 = vmatmul.bf16.gmra.mxu0 %v4892
      %v6133 = vpop.f32.mrf.mxu0
      %v6134 = vadd.f32 %v6045, %v6133
      %v6135 = vpop.f32.mrf.mxu0
      %v6136 = vadd.f32 %v6047, %v6135
      %6137 = vmatmul.bf16.gmra.mxu0 %v4901
      %v6138 = vpop.f32.mrf.mxu0
      %v6139 = vadd.f32 %v6050, %v6138
      %v6140 = vpop.f32.mrf.mxu0
      %v6141 = vadd.f32 %v6052, %v6140
      %6142 = vmatmul.bf16.gmra.mxu0 %v4910
      %v6143 = vpop.f32.mrf.mxu0
      %v6144 = vadd.f32 %v6055, %v6143
      %v6145 = vpop.f32.mrf.mxu0
      %v6146 = vadd.f32 %v6057, %v6145
      %6147 = vmatmul.bf16.gmra.mxu0 %v4919
      %v6148 = vpop.f32.mrf.mxu0
      %v6149 = vadd.f32 %v6060, %v6148
      %v6150 = vpop.f32.mrf.mxu0
      %v6151 = vadd.f32 %v6062, %v6150
      %6152 = vmatmul.bf16.gmra.mxu0 %v4928
      %v6153 = vpop.f32.mrf.mxu0
      %v6154 = vadd.f32 %v6065, %v6153
      %v6155 = vpop.f32.mrf.mxu0
      %v6156 = vadd.f32 %v6067, %v6155
      %6157 = vmatmul.bf16.gmra.mxu0 %v4937
      %v6158 = vpop.f32.mrf.mxu0
      %v6159 = vadd.f32 %v6070, %v6158
      %v6160 = vpop.f32.mrf.mxu0
      %v6161 = vadd.f32 %v6072, %v6160
      %6162 = vmatmul.bf16.gmra.mxu0 %v4946
      %v6163 = vpop.f32.mrf.mxu0
      %v6164 = vadd.f32 %v6075, %v6163
      %v6165 = vpop.f32.mrf.mxu0
      %v6166 = vadd.f32 %v6077, %v6165
      %6167 = vmatmul.bf16.gmra.mxu0 %v4955
      %v6168 = vpop.f32.mrf.mxu0
      %v6169 = vadd.f32 %v6080, %v6168
      %v6170 = vpop.f32.mrf.mxu0
      %v6171 = vadd.f32 %v6082, %v6170
      %6172 = vmatmul.bf16.gmra.mxu0 %v4964
      %v6173 = vpop.f32.mrf.mxu0
      %v6174 = vadd.f32 %v6085, %v6173
      %v6175 = vpop.f32.mrf.mxu0
      %v6176 = vadd.f32 %v6087, %v6175
      %6177 = vmatmul.bf16.gmra.mxu0 %v4973
      %v6178 = vpop.f32.mrf.mxu0
      %v6179 = vadd.f32 %v6090, %v6178
      %v6180 = vpop.f32.mrf.mxu0
      %v6181 = vadd.f32 %v6092, %v6180
      %6182 = vmatmul.bf16.gmra.mxu0 %v4982
      %v6183 = vpop.f32.mrf.mxu0
      %v6184 = vadd.f32 %v6095, %v6183
      %v6185 = vpop.f32.mrf.mxu0
      %v6186 = vadd.f32 %v6097, %v6185
      %6187 = vmatmul.bf16.gmra.mxu0 %v4991
      %v6188 = vpop.f32.mrf.mxu0
      %v6189 = vadd.f32 %v6100, %v6188
      %v6190 = vpop.f32.mrf.mxu0
      %v6191 = vadd.f32 %v6102, %v6190
      %6192 = vdwg.mxu0
      %6193 = vmatpush.bf16.msra.mxu0 %v5489
      %6194 = vmatpush.bf16.msra.mxu0 %v5488
      %6195 = vmatpush.bf16.msra.mxu0 %v5487
      %6196 = vmatpush.bf16.msra.mxu0 %v5486
      %6197 = vmatpush.bf16.msra.mxu0 %v5485
      %6198 = vmatpush.bf16.msra.mxu0 %v5484
      %6199 = vmatpush.bf16.msra.mxu0 %v5483
      %6200 = vmatpush.bf16.msra.mxu0 %v5482
      %6201 = vmatmul.bf16.gmra.mxu0 %v4857
      %v6202 = vpop.f32.mrf.mxu0
      %v6203 = vadd.f32 %v6114, %v6202
      %v6204 = vpop.f32.mrf.mxu0
      %v6205 = vadd.f32 %v6116, %v6204
      %6206 = vmatmul.bf16.gmra.mxu0 %v4866
      %v6207 = vpop.f32.mrf.mxu0
      %v6208 = vadd.f32 %v6119, %v6207
      %v6209 = vpop.f32.mrf.mxu0
      %v6210 = vadd.f32 %v6121, %v6209
      %6211 = vmatmul.bf16.gmra.mxu0 %v4875
      %v6212 = vpop.f32.mrf.mxu0
      %v6213 = vadd.f32 %v6124, %v6212
      %v6214 = vpop.f32.mrf.mxu0
      %v6215 = vadd.f32 %v6126, %v6214
      %6216 = vmatmul.bf16.gmra.mxu0 %v4884
      %v6217 = vpop.f32.mrf.mxu0
      %v6218 = vadd.f32 %v6129, %v6217
      %v6219 = vpop.f32.mrf.mxu0
      %v6220 = vadd.f32 %v6131, %v6219
      %6221 = vmatmul.bf16.gmra.mxu0 %v4893
      %v6222 = vpop.f32.mrf.mxu0
      %v6223 = vadd.f32 %v6134, %v6222
      %v6224 = vpop.f32.mrf.mxu0
      %v6225 = vadd.f32 %v6136, %v6224
      %6226 = vmatmul.bf16.gmra.mxu0 %v4902
      %v6227 = vpop.f32.mrf.mxu0
      %v6228 = vadd.f32 %v6139, %v6227
      %v6229 = vpop.f32.mrf.mxu0
      %v6230 = vadd.f32 %v6141, %v6229
      %6231 = vmatmul.bf16.gmra.mxu0 %v4911
      %v6232 = vpop.f32.mrf.mxu0
      %v6233 = vadd.f32 %v6144, %v6232
      %v6234 = vpop.f32.mrf.mxu0
      %v6235 = vadd.f32 %v6146, %v6234
      %6236 = vmatmul.bf16.gmra.mxu0 %v4920
      %v6237 = vpop.f32.mrf.mxu0
      %v6238 = vadd.f32 %v6149, %v6237
      %v6239 = vpop.f32.mrf.mxu0
      %v6240 = vadd.f32 %v6151, %v6239
      %6241 = vmatmul.bf16.gmra.mxu0 %v4929
      %v6242 = vpop.f32.mrf.mxu0
      %v6243 = vadd.f32 %v6154, %v6242
      %v6244 = vpop.f32.mrf.mxu0
      %v6245 = vadd.f32 %v6156, %v6244
      %6246 = vmatmul.bf16.gmra.mxu0 %v4938
      %v6247 = vpop.f32.mrf.mxu0
      %v6248 = vadd.f32 %v6159, %v6247
      %v6249 = vpop.f32.mrf.mxu0
      %v6250 = vadd.f32 %v6161, %v6249
      %6251 = vmatmul.bf16.gmra.mxu0 %v4947
      %v6252 = vpop.f32.mrf.mxu0
      %v6253 = vadd.f32 %v6164, %v6252
      %v6254 = vpop.f32.mrf.mxu0
      %v6255 = vadd.f32 %v6166, %v6254
      %6256 = vmatmul.bf16.gmra.mxu0 %v4956
      %v6257 = vpop.f32.mrf.mxu0
      %v6258 = vadd.f32 %v6169, %v6257
      %v6259 = vpop.f32.mrf.mxu0
      %v6260 = vadd.f32 %v6171, %v6259
      %6261 = vmatmul.bf16.gmra.mxu0 %v4965
      %v6262 = vpop.f32.mrf.mxu0
      %v6263 = vadd.f32 %v6174, %v6262
      %v6264 = vpop.f32.mrf.mxu0
      %v6265 = vadd.f32 %v6176, %v6264
      %6266 = vmatmul.bf16.gmra.mxu0 %v4974
      %v6267 = vpop.f32.mrf.mxu0
      %v6268 = vadd.f32 %v6179, %v6267
      %v6269 = vpop.f32.mrf.mxu0
      %v6270 = vadd.f32 %v6181, %v6269
      %6271 = vmatmul.bf16.gmra.mxu0 %v4983
      %v6272 = vpop.f32.mrf.mxu0
      %v6273 = vadd.f32 %v6184, %v6272
      %v6274 = vpop.f32.mrf.mxu0
      %v6275 = vadd.f32 %v6186, %v6274
      %6276 = vmatmul.bf16.gmra.mxu0 %v4992
      %v6277 = vpop.f32.mrf.mxu0
      %v6278 = vadd.f32 %v6189, %v6277
      %v6279 = vpop.f32.mrf.mxu0
      %v6280 = vadd.f32 %v6191, %v6279
      %6281 = vdwg.mxu0
      %6282 = vmatpush.bf16.msra.mxu0 %v5497
      %6283 = vmatpush.bf16.msra.mxu0 %v5496
      %6284 = vmatpush.bf16.msra.mxu0 %v5495
      %6285 = vmatpush.bf16.msra.mxu0 %v5494
      %6286 = vmatpush.bf16.msra.mxu0 %v5493
      %6287 = vmatpush.bf16.msra.mxu0 %v5492
      %6288 = vmatpush.bf16.msra.mxu0 %v5491
      %6289 = vmatpush.bf16.msra.mxu0 %v5490
      %6290 = vmatmul.bf16.gmra.mxu0 %v4858
      %v6291 = vpop.f32.mrf.mxu0
      %v6292 = vadd.f32 %v6203, %v6291
      %v6293 = vpop.f32.mrf.mxu0
      %v6294 = vadd.f32 %v6205, %v6293
      %6295 = vmatmul.bf16.gmra.mxu0 %v4867
      %v6296 = vpop.f32.mrf.mxu0
      %v6297 = vadd.f32 %v6208, %v6296
      %v6298 = vpop.f32.mrf.mxu0
      %v6299 = vadd.f32 %v6210, %v6298
      %6300 = vmatmul.bf16.gmra.mxu0 %v4876
      %v6301 = vpop.f32.mrf.mxu0
      %v6302 = vadd.f32 %v6213, %v6301
      %v6303 = vpop.f32.mrf.mxu0
      %v6304 = vadd.f32 %v6215, %v6303
      %6305 = vmatmul.bf16.gmra.mxu0 %v4885
      %v6306 = vpop.f32.mrf.mxu0
      %v6307 = vadd.f32 %v6218, %v6306
      %v6308 = vpop.f32.mrf.mxu0
      %v6309 = vadd.f32 %v6220, %v6308
      %6310 = vmatmul.bf16.gmra.mxu0 %v4894
      %v6311 = vpop.f32.mrf.mxu0
      %v6312 = vadd.f32 %v6223, %v6311
      %v6313 = vpop.f32.mrf.mxu0
      %v6314 = vadd.f32 %v6225, %v6313
      %6315 = vmatmul.bf16.gmra.mxu0 %v4903
      %v6316 = vpop.f32.mrf.mxu0
      %v6317 = vadd.f32 %v6228, %v6316
      %v6318 = vpop.f32.mrf.mxu0
      %v6319 = vadd.f32 %v6230, %v6318
      %6320 = vmatmul.bf16.gmra.mxu0 %v4912
      %v6321 = vpop.f32.mrf.mxu0
      %v6322 = vadd.f32 %v6233, %v6321
      %v6323 = vpop.f32.mrf.mxu0
      %v6324 = vadd.f32 %v6235, %v6323
      %6325 = vmatmul.bf16.gmra.mxu0 %v4921
      %v6326 = vpop.f32.mrf.mxu0
      %v6327 = vadd.f32 %v6238, %v6326
      %v6328 = vpop.f32.mrf.mxu0
      %v6329 = vadd.f32 %v6240, %v6328
      %6330 = vmatmul.bf16.gmra.mxu0 %v4930
      %v6331 = vpop.f32.mrf.mxu0
      %v6332 = vadd.f32 %v6243, %v6331
      %v6333 = vpop.f32.mrf.mxu0
      %v6334 = vadd.f32 %v6245, %v6333
      %6335 = vmatmul.bf16.gmra.mxu0 %v4939
      %v6336 = vpop.f32.mrf.mxu0
      %v6337 = vadd.f32 %v6248, %v6336
      %v6338 = vpop.f32.mrf.mxu0
      %v6339 = vadd.f32 %v6250, %v6338
      %6340 = vmatmul.bf16.gmra.mxu0 %v4948
      %v6341 = vpop.f32.mrf.mxu0
      %v6342 = vadd.f32 %v6253, %v6341
      %v6343 = vpop.f32.mrf.mxu0
      %v6344 = vadd.f32 %v6255, %v6343
      %6345 = vmatmul.bf16.gmra.mxu0 %v4957
      %v6346 = vpop.f32.mrf.mxu0
      %v6347 = vadd.f32 %v6258, %v6346
      %v6348 = vpop.f32.mrf.mxu0
      %v6349 = vadd.f32 %v6260, %v6348
      %6350 = vmatmul.bf16.gmra.mxu0 %v4966
      %v6351 = vpop.f32.mrf.mxu0
      %v6352 = vadd.f32 %v6263, %v6351
      %v6353 = vpop.f32.mrf.mxu0
      %v6354 = vadd.f32 %v6265, %v6353
      %6355 = vmatmul.bf16.gmra.mxu0 %v4975
      %v6356 = vpop.f32.mrf.mxu0
      %v6357 = vadd.f32 %v6268, %v6356
      %v6358 = vpop.f32.mrf.mxu0
      %v6359 = vadd.f32 %v6270, %v6358
      %6360 = vmatmul.bf16.gmra.mxu0 %v4984
      %v6361 = vpop.f32.mrf.mxu0
      %v6362 = vadd.f32 %v6273, %v6361
      %v6363 = vpop.f32.mrf.mxu0
      %v6364 = vadd.f32 %v6275, %v6363
      %6365 = vmatmul.bf16.gmra.mxu0 %v4993
      %v6366 = vpop.f32.mrf.mxu0
      %v6367 = vadd.f32 %v6278, %v6366
      %v6368 = vpop.f32.mrf.mxu0
      %v6369 = vadd.f32 %v6280, %v6368
      %6370 = vdwg.mxu0
      %v6371 = vadd.f32 %v6292, %v6294
      %v6372 = vadd.f32 %v6371, %v6297
      %v6373 = vadd.f32 %v6372, %v6299
      %v6374 = vadd.f32 %v6373, %v6302
      %v6375 = vadd.f32 %v6374, %v6304
      %v6376 = vadd.f32 %v6375, %v6307
      %v6377 = vadd.f32 %v6376, %v6309
      %v6378 = vadd.f32 %v6377, %v6312
      %v6379 = vadd.f32 %v6378, %v6314
      %v6380 = vadd.f32 %v6379, %v6317
      %v6381 = vadd.f32 %v6380, %v6319
      %v6382 = vadd.f32 %v6381, %v6322
      %v6383 = vadd.f32 %v6382, %v6324
      %v6384 = vadd.f32 %v6383, %v6327
      %v6385 = vadd.f32 %v6384, %v6329
      %v6386 = vadd.f32 %v6385, %v6332
      %v6387 = vadd.f32 %v6386, %v6334
      %v6388 = vadd.f32 %v6387, %v6337
      %v6389 = vadd.f32 %v6388, %v6339
      %v6390 = vadd.f32 %v6389, %v6342
      %v6391 = vadd.f32 %v6390, %v6344
      %v6392 = vadd.f32 %v6391, %v6347
      %v6393 = vadd.f32 %v6392, %v6349
      %v6394 = vadd.f32 %v6393, %v6352
      %v6395 = vadd.f32 %v6394, %v6354
      %v6396 = vadd.f32 %v6395, %v6357
      %v6397 = vadd.f32 %v6396, %v6359
      %v6398 = vadd.f32 %v6397, %v6362
      %v6399 = vadd.f32 %v6398, %v6364
      %v6400 = vadd.f32 %v6399, %v6367
      %v6401 = vadd.f32 %v6400, %v6369
      %v6402 = vrot.slane %v6401, 4
      %v6403 = vadd.f32 %v6401, %v6402
      %v6404 = vrot.slane %v6403, 2
      %v6405 = vadd.f32 %v6403, %v6404
      %v6406 = vrot.slane %v6405, 1
      %v6407 = vadd.f32 %v6405, %v6406
      %6408 = vst [vmem:[#allocation7] sm:$0x1] %v6407
      %v6409 = vmul.f32 %v6292, %v6292
      %v6410 = vmul.f32 %v6294, %v6294
      %v6411 = vmul.f32 %v6297, %v6297
      %v6412 = vmul.f32 %v6299, %v6299
      %v6413 = vmul.f32 %v6302, %v6302
      %v6414 = vmul.f32 %v6304, %v6304
      %v6415 = vmul.f32 %v6307, %v6307
      %v6416 = vmul.f32 %v6309, %v6309
      %v6417 = vmul.f32 %v6312, %v6312
      %v6418 = vmul.f32 %v6314, %v6314
      %v6419 = vmul.f32 %v6317, %v6317
      %v6420 = vmul.f32 %v6319, %v6319
      %v6421 = vmul.f32 %v6322, %v6322
      %v6422 = vmul.f32 %v6324, %v6324
      %v6423 = vmul.f32 %v6327, %v6327
      %v6424 = vmul.f32 %v6329, %v6329
      %v6425 = vmul.f32 %v6332, %v6332
      %v6426 = vmul.f32 %v6334, %v6334
      %v6427 = vmul.f32 %v6337, %v6337
      %v6428 = vmul.f32 %v6339, %v6339
      %v6429 = vmul.f32 %v6342, %v6342
      %v6430 = vmul.f32 %v6344, %v6344
      %v6431 = vmul.f32 %v6347, %v6347
      %v6432 = vmul.f32 %v6349, %v6349
      %v6433 = vmul.f32 %v6352, %v6352
      %v6434 = vmul.f32 %v6354, %v6354
      %v6435 = vmul.f32 %v6357, %v6357
      %v6436 = vmul.f32 %v6359, %v6359
      %v6437 = vmul.f32 %v6362, %v6362
      %v6438 = vmul.f32 %v6364, %v6364
      %v6439 = vmul.f32 %v6367, %v6367
      %v6440 = vmul.f32 %v6369, %v6369
      %v6441 = vadd.f32 %v6409, %v6410
      %v6442 = vadd.f32 %v6441, %v6411
      %v6443 = vadd.f32 %v6442, %v6412
      %v6444 = vadd.f32 %v6443, %v6413
      %v6445 = vadd.f32 %v6444, %v6414
      %v6446 = vadd.f32 %v6445, %v6415
      %v6447 = vadd.f32 %v6446, %v6416
      %v6448 = vadd.f32 %v6447, %v6417
      %v6449 = vadd.f32 %v6448, %v6418
      %v6450 = vadd.f32 %v6449, %v6419
      %v6451 = vadd.f32 %v6450, %v6420
      %v6452 = vadd.f32 %v6451, %v6421
      %v6453 = vadd.f32 %v6452, %v6422
      %v6454 = vadd.f32 %v6453, %v6423
      %v6455 = vadd.f32 %v6454, %v6424
      %v6456 = vadd.f32 %v6455, %v6425
      %v6457 = vadd.f32 %v6456, %v6426
      %v6458 = vadd.f32 %v6457, %v6427
      %v6459 = vadd.f32 %v6458, %v6428
      %v6460 = vadd.f32 %v6459, %v6429
      %v6461 = vadd.f32 %v6460, %v6430
      %v6462 = vadd.f32 %v6461, %v6431
      %v6463 = vadd.f32 %v6462, %v6432
      %v6464 = vadd.f32 %v6463, %v6433
      %v6465 = vadd.f32 %v6464, %v6434
      %v6466 = vadd.f32 %v6465, %v6435
      %v6467 = vadd.f32 %v6466, %v6436
      %v6468 = vadd.f32 %v6467, %v6437
      %v6469 = vadd.f32 %v6468, %v6438
      %v6470 = vadd.f32 %v6469, %v6439
      %v6471 = vadd.f32 %v6470, %v6440
      %v6472 = vrot.slane %v6471, 4
      %v6473 = vadd.f32 %v6471, %v6472
      %v6474 = vrot.slane %v6473, 2
      %v6475 = vadd.f32 %v6473, %v6474
      %v6476 = vrot.slane %v6475, 1
      %v6477 = vadd.f32 %v6475, %v6476
      %6478 = vst [vmem:[#allocation7 + $0x1] sm:$0x1] %v6477
      %v6479 = vld [vmem:[#allocation7] sm:$0x3]
      %6480 = vmatpush.msra.mxu0 %v322
      %6481 = vmatpush.msra.mxu0 %v321
      %6482 = vmatpush.msra.mxu0 %v320
      %6483 = vmatpush.msra.mxu0 %v319
      %6484 = vmatpush.msra.mxu0 %v318
      %6485 = vmatpush.msra.mxu0 %v317
      %6486 = vmatpush.msra.mxu0 %v316
      %6487 = vmatpush.msra.mxu0 %v315
      %6488 = vmatpush.msra.mxu0 %v314
      %6489 = vmatpush.msra.mxu0 %v313
      %6490 = vmatpush.msra.mxu0 %v312
      %6491 = vmatpush.msra.mxu0 %v311
      %6492 = vmatpush.msra.mxu0 %v310
      %6493 = vmatpush.msra.mxu0 %v309
      %6494 = vmatpush.msra.mxu0 %v308
      %6495 = vmatpush.msra.mxu0 %v307
      %6496 = vmatmul.f32.gmra.mxu0 %v6479
      %v6497 = vpop.f32.mrf.mxu0
      %v6498 = vadd.f32 0.0, %v6497
      %6499 = vdwg.mxu0
      %v6500 = vmul.f32 %v6498, 0.001953125
      %v6501 = vmul.f32 %v6500, %v6500
      %v6503 = vrot.slane %v6501, 7
      %v6505 = vsub.f32 %v6500, %v6503
      %v6506 = vld [vmem:[%s6] sm:$0x1]
      %v6507 = vadd.f32 %v6505, 1e-05
      %v6508 = vrsqrt.pop %v6507
      %v6509 = vmul.f32 %v6508, %v6507
      %v6510 = vmul.f32 %v6509, %v6508
      %v6511 = vmul.f32 0.5, %v6510
      %v6512 = vsub.f32 1.5, %v6511
      %v6513 = vmul.f32 %v6508, %v6512
      %vm6514 = vweird.f32 %v6507
      %vm6515 = vweird.f32 %v6508
      %vm6516 = vmor %vm6514, %vm6515
      %v6517 = vsel %vm6516, %v6508, %v6513
      %v6519 = vrot.slane %v6517, 1
      %v6521 = vmul.f32 %v6506, %v6519
      %v6522 = vld [vmem:[%s6 + $0x1] sm:$0x1]
      %v6523 = vmul.f32 %v6500, %v6521
      %v6524 = vsub.f32 %v6522, %v6523
      %v6525 = vperm.slane %v6521, 0
      %v6526 = vmul.f32 %v6292, %v6525
      %v6527 = vmul.f32 %v6294, %v6525
      %v6528 = vmul.f32 %v6297, %v6525
      %v6529 = vmul.f32 %v6299, %v6525
      %v6530 = vmul.f32 %v6302, %v6525
      %v6531 = vmul.f32 %v6304, %v6525
      %v6532 = vmul.f32 %v6307, %v6525
      %v6533 = vmul.f32 %v6309, %v6525
      %v6534 = vmul.f32 %v6312, %v6525
      %v6535 = vmul.f32 %v6314, %v6525
      %v6536 = vmul.f32 %v6317, %v6525
      %v6537 = vmul.f32 %v6319, %v6525
      %v6538 = vmul.f32 %v6322, %v6525
      %v6539 = vmul.f32 %v6324, %v6525
      %v6540 = vmul.f32 %v6327, %v6525
      %v6541 = vmul.f32 %v6329, %v6525
      %v6542 = vmul.f32 %v6332, %v6525
      %v6543 = vmul.f32 %v6334, %v6525
      %v6544 = vmul.f32 %v6337, %v6525
      %v6545 = vmul.f32 %v6339, %v6525
      %v6546 = vmul.f32 %v6342, %v6525
      %v6547 = vmul.f32 %v6344, %v6525
      %v6548 = vmul.f32 %v6347, %v6525
      %v6549 = vmul.f32 %v6349, %v6525
      %v6550 = vmul.f32 %v6352, %v6525
      %v6551 = vmul.f32 %v6354, %v6525
      %v6552 = vmul.f32 %v6357, %v6525
      %v6553 = vmul.f32 %v6359, %v6525
      %v6554 = vmul.f32 %v6362, %v6525
      %v6555 = vmul.f32 %v6364, %v6525
      %v6556 = vmul.f32 %v6367, %v6525
      %v6557 = vmul.f32 %v6369, %v6525
      %v6558 = vperm.slane %v6524, 0
      %v6559 = vadd.f32 %v6526, %v6558
      %v6560 = vadd.f32 %v6527, %v6558
      %v6561 = vadd.f32 %v6528, %v6558
      %v6562 = vadd.f32 %v6529, %v6558
      %v6563 = vadd.f32 %v6530, %v6558
      %v6564 = vadd.f32 %v6531, %v6558
      %v6565 = vadd.f32 %v6532, %v6558
      %v6566 = vadd.f32 %v6533, %v6558
      %v6567 = vadd.f32 %v6534, %v6558
      %v6568 = vadd.f32 %v6535, %v6558
      %v6569 = vadd.f32 %v6536, %v6558
      %v6570 = vadd.f32 %v6537, %v6558
      %v6571 = vadd.f32 %v6538, %v6558
      %v6572 = vadd.f32 %v6539, %v6558
      %v6573 = vadd.f32 %v6540, %v6558
      %v6574 = vadd.f32 %v6541, %v6558
      %v6575 = vadd.f32 %v6542, %v6558
      %v6576 = vadd.f32 %v6543, %v6558
      %v6577 = vadd.f32 %v6544, %v6558
      %v6578 = vadd.f32 %v6545, %v6558
      %v6579 = vadd.f32 %v6546, %v6558
      %v6580 = vadd.f32 %v6547, %v6558
      %v6581 = vadd.f32 %v6548, %v6558
      %v6582 = vadd.f32 %v6549, %v6558
      %v6583 = vadd.f32 %v6550, %v6558
      %v6584 = vadd.f32 %v6551, %v6558
      %v6585 = vadd.f32 %v6552, %v6558
      %v6586 = vadd.f32 %v6553, %v6558
      %v6587 = vadd.f32 %v6554, %v6558
      %v6588 = vadd.f32 %v6555, %v6558
      %v6589 = vadd.f32 %v6556, %v6558
      %v6590 = vadd.f32 %v6557, %v6558
      %v6591 = vld [vmem:[#allocation6] sm:$0xff]
      %v6592 = vld [vmem:[#allocation6 + $0x8] sm:$0xff]
      %v6593 = vld [vmem:[#allocation6 + $0x10] sm:$0xff]
      %v6594 = vld [vmem:[#allocation6 + $0x18] sm:$0xff]
      %v6595 = vld [vmem:[#allocation6 + $0x20] sm:$0xff]
      %v6596 = vld [vmem:[#allocation6 + $0x28] sm:$0xff]
      %v6597 = vld [vmem:[#allocation6 + $0x30] sm:$0xff]
      %v6598 = vld [vmem:[#allocation6 + $0x38] sm:$0xff]
      %v6599 = vld [vmem:[#allocation6 + $0x40] sm:$0xff]
      %v6600 = vld [vmem:[#allocation6 + $0x48] sm:$0xff]
      %v6601 = vld [vmem:[#allocation6 + $0x50] sm:$0xff]
      %v6602 = vld [vmem:[#allocation6 + $0x58] sm:$0xff]
      %v6603 = vld [vmem:[#allocation6 + $0x60] sm:$0xff]
      %v6604 = vld [vmem:[#allocation6 + $0x68] sm:$0xff]
      %v6605 = vld [vmem:[#allocation6 + $0x70] sm:$0xff]
      %v6606 = vld [vmem:[#allocation6 + $0x78] sm:$0xff]
      %v6607 = vld [vmem:[#allocation6 + $0x80] sm:$0xff]
      %v6608 = vld [vmem:[#allocation6 + $0x88] sm:$0xff]
      %v6609 = vld [vmem:[#allocation6 + $0x90] sm:$0xff]
      %v6610 = vld [vmem:[#allocation6 + $0x98] sm:$0xff]
      %v6611 = vld [vmem:[#allocation6 + $0xa0] sm:$0xff]
      %v6612 = vld [vmem:[#allocation6 + $0xa8] sm:$0xff]
      %v6613 = vld [vmem:[#allocation6 + $0xb0] sm:$0xff]
      %v6614 = vld [vmem:[#allocation6 + $0xb8] sm:$0xff]
      %v6615 = vld [vmem:[#allocation6 + $0xc0] sm:$0xff]
      %v6616 = vld [vmem:[#allocation6 + $0xc8] sm:$0xff]
      %v6617 = vld [vmem:[#allocation6 + $0xd0] sm:$0xff]
      %v6618 = vld [vmem:[#allocation6 + $0xd8] sm:$0xff]
      %v6619 = vld [vmem:[#allocation6 + $0xe0] sm:$0xff]
      %v6620 = vld [vmem:[#allocation6 + $0xe8] sm:$0xff]
      %v6621 = vld [vmem:[#allocation6 + $0xf0] sm:$0xff]
      %v6622 = vld [vmem:[#allocation6 + $0xf8] sm:$0xff]
      %v6623 = vadd.f32 %v6559, %v6591
      %v6624 = vadd.f32 %v6560, %v6592
      %v6625 = vadd.f32 %v6561, %v6593
      %v6626 = vadd.f32 %v6562, %v6594
      %v6627 = vadd.f32 %v6563, %v6595
      %v6628 = vadd.f32 %v6564, %v6596
      %v6629 = vadd.f32 %v6565, %v6597
      %v6630 = vadd.f32 %v6566, %v6598
      %v6631 = vadd.f32 %v6567, %v6599
      %v6632 = vadd.f32 %v6568, %v6600
      %v6633 = vadd.f32 %v6569, %v6601
      %v6634 = vadd.f32 %v6570, %v6602
      %v6635 = vadd.f32 %v6571, %v6603
      %v6636 = vadd.f32 %v6572, %v6604
      %v6637 = vadd.f32 %v6573, %v6605
      %v6638 = vadd.f32 %v6574, %v6606
      %v6639 = vadd.f32 %v6575, %v6607
      %v6640 = vadd.f32 %v6576, %v6608
      %v6641 = vadd.f32 %v6577, %v6609
      %v6642 = vadd.f32 %v6578, %v6610
      %v6643 = vadd.f32 %v6579, %v6611
      %v6644 = vadd.f32 %v6580, %v6612
      %v6645 = vadd.f32 %v6581, %v6613
      %v6646 = vadd.f32 %v6582, %v6614
      %v6647 = vadd.f32 %v6583, %v6615
      %v6648 = vadd.f32 %v6584, %v6616
      %v6649 = vadd.f32 %v6585, %v6617
      %v6650 = vadd.f32 %v6586, %v6618
      %v6651 = vadd.f32 %v6587, %v6619
      %v6652 = vadd.f32 %v6588, %v6620
      %v6653 = vadd.f32 %v6589, %v6621
      %v6654 = vadd.f32 %v6590, %v6622
      %v6655 = vmax.f32 %v6623, 0.0
      %v6656 = vmax.f32 %v6624, 0.0
      %v6657 = vmax.f32 %v6625, 0.0
      %v6658 = vmax.f32 %v6626, 0.0
      %v6659 = vmax.f32 %v6627, 0.0
      %v6660 = vmax.f32 %v6628, 0.0
      %v6661 = vmax.f32 %v6629, 0.0
      %v6662 = vmax.f32 %v6630, 0.0
      %v6663 = vmax.f32 %v6631, 0.0
      %v6664 = vmax.f32 %v6632, 0.0
      %v6665 = vmax.f32 %v6633, 0.0
      %v6666 = vmax.f32 %v6634, 0.0
      %v6667 = vmax.f32 %v6635, 0.0
      %v6668 = vmax.f32 %v6636, 0.0
      %v6669 = vmax.f32 %v6637, 0.0
      %v6670 = vmax.f32 %v6638, 0.0
      %v6671 = vmax.f32 %v6639, 0.0
      %v6672 = vmax.f32 %v6640, 0.0
      %v6673 = vmax.f32 %v6641, 0.0
      %v6674 = vmax.f32 %v6642, 0.0
      %v6675 = vmax.f32 %v6643, 0.0
      %v6676 = vmax.f32 %v6644, 0.0
      %v6677 = vmax.f32 %v6645, 0.0
      %v6678 = vmax.f32 %v6646, 0.0
      %v6679 = vmax.f32 %v6647, 0.0
      %v6680 = vmax.f32 %v6648, 0.0
      %v6681 = vmax.f32 %v6649, 0.0
      %v6682 = vmax.f32 %v6650, 0.0
      %v6683 = vmax.f32 %v6651, 0.0
      %v6684 = vmax.f32 %v6652, 0.0
      %v6685 = vmax.f32 %v6653, 0.0
      %v6686 = vmax.f32 %v6654, 0.0
      %6687 = vst [vmem:[%s305] sm:$0xff] %v6655
      %6688 = vst [vmem:[%s305 + $0x8] sm:$0xff] %v6656
      %6689 = vst [vmem:[%s305 + $0x10] sm:$0xff] %v6657
      %6690 = vst [vmem:[%s305 + $0x18] sm:$0xff] %v6658
      %6691 = vst [vmem:[%s305 + $0x20] sm:$0xff] %v6659
      %6692 = vst [vmem:[%s305 + $0x28] sm:$0xff] %v6660
      %6693 = vst [vmem:[%s305 + $0x30] sm:$0xff] %v6661
      %6694 = vst [vmem:[%s305 + $0x38] sm:$0xff] %v6662
      %6695 = vst [vmem:[%s305 + $0x40] sm:$0xff] %v6663
      %6696 = vst [vmem:[%s305 + $0x48] sm:$0xff] %v6664
      %6697 = vst [vmem:[%s305 + $0x50] sm:$0xff] %v6665
      %6698 = vst [vmem:[%s305 + $0x58] sm:$0xff] %v6666
      %6699 = vst [vmem:[%s305 + $0x60] sm:$0xff] %v6667
      %6700 = vst [vmem:[%s305 + $0x68] sm:$0xff] %v6668
      %6701 = vst [vmem:[%s305 + $0x70] sm:$0xff] %v6669
      %6702 = vst [vmem:[%s305 + $0x78] sm:$0xff] %v6670
      %6703 = vst [vmem:[%s305 + $0x80] sm:$0xff] %v6671
      %6704 = vst [vmem:[%s305 + $0x88] sm:$0xff] %v6672
      %6705 = vst [vmem:[%s305 + $0x90] sm:$0xff] %v6673
      %6706 = vst [vmem:[%s305 + $0x98] sm:$0xff] %v6674
      %6707 = vst [vmem:[%s305 + $0xa0] sm:$0xff] %v6675
      %6708 = vst [vmem:[%s305 + $0xa8] sm:$0xff] %v6676
      %6709 = vst [vmem:[%s305 + $0xb0] sm:$0xff] %v6677
      %6710 = vst [vmem:[%s305 + $0xb8] sm:$0xff] %v6678
      %6711 = vst [vmem:[%s305 + $0xc0] sm:$0xff] %v6679
      %6712 = vst [vmem:[%s305 + $0xc8] sm:$0xff] %v6680
      %6713 = vst [vmem:[%s305 + $0xd0] sm:$0xff] %v6681
      %6714 = vst [vmem:[%s305 + $0xd8] sm:$0xff] %v6682
      %6715 = vst [vmem:[%s305 + $0xe0] sm:$0xff] %v6683
      %6716 = vst [vmem:[%s305 + $0xe8] sm:$0xff] %v6684
      %6717 = vst [vmem:[%s305 + $0xf0] sm:$0xff] %v6685
      %6718 = vst [vmem:[%s305 + $0xf8] sm:$0xff] %v6686
      %p6719 = scmp.lt.s32.totalorder %s19, 1
      %s6720 = scalar_select %p6719, %s19, 1
      %s6721 = smul.addr %s6720, 32
      %s6722 = smul.addr %s6721, 8
      %s6723 = scalar_lea.vmem %s8, %s6722
      // Predicated region
      $region53: #{basic_block_forward.1} parent=51 // pred_check
        %p6724 = pneg %p210
      $region54: #{basic_block_forward.1} parent=51 // pred_check_branch
        %6726 = sbr.rel (%p6724) target = $region56
      $region55: #{basic_block_forward.1} parent=51 // pred_region
        _
      $region56: #{basic_block_forward.1} parent=51 // pred_fallthru
        _
    $region52: #{basic_block_forward.1} parent=5 // pred_fallthru
      _
    %p6727 = scmp.le.s32.totalorder 2, %s14
    // Predicated region
    $region57: #{basic_block_forward.1} parent=5 // pred_check
      %p6728 = pneg %p6727
    $region58: #{basic_block_forward.1} parent=5 // pred_check_branch
      %6730 = sbr.rel (%p6728) target = $region60
    $region59: #{basic_block_forward.1} parent=5 // pred_region
      %s6731 = ssub.s32 %s14, 2
      // Predicated region
      $region61: #{basic_block_forward.1} parent=59 // pred_check
        %p6732 = pneg %p216
      $region62: #{basic_block_forward.1} parent=59 // pred_check_branch
        %6734 = sbr.rel (%p6732) target = $region64
      $region63: #{basic_block_forward.1} parent=59 // pred_region
        %p6735 = scmp.lt.s32.totalorder %s20, 1
        %s6736 = scalar_select %p6735, %s20, 1
        %s6737 = smul.addr %s6736, 32
        %s6738 = smul.addr %s6737, 8
        %s6739 = scalar_lea.vmem %s8, %s6738
      $region64: #{basic_block_forward.1} parent=59 // pred_fallthru
        _
    $region60: #{basic_block_forward.1} parent=5 // pred_fallthru
      _
  $region6: #{basic_block_forward.1} parent=0 // loop_footer
    %s18 = sadd.s32 1, %s14
  $region7: #{basic_block_forward.1} parent=0 // loop_footer_branch
    %13 = sbr.rel target = $region3
  $region8: #{basic_block_forward.1} parent=0 // loop_exit
    _

</llo_original>
